<compile_context>
chip_gen: v7x
topology: tpu7x:2x2x1
jax: 0.10.0
libtpu: 0.0.40
codegen_flags: <defaults>
</compile_context>

<pallas_src>
import functools
import numpy as np
import jax
import jax.numpy as jnp
from jax import lax
from jax.experimental import pallas as pl
from jax.experimental.pallas import tpu as pltpu

EPS = 1e-5
K = 4       # depthwise kernel size
STRIDE = 2
PAD = 1


# ---------------------------------------------------------------------------
# In-kernel helper: depthwise ConvTranspose2d rows for the current grid step
# ---------------------------------------------------------------------------
def _conv_rows(xdp_ref, wdw_ref, bdw_ref, row_tile, w_out):
    """Output rows [2*t*row_tile, 2*(t+1)*row_tile) of the depthwise conv.

    xdp_ref : (1, H+2, 2W+3, C) channels-last input, W-dilated by the stride
              and zero-padded (resident for the whole batch element).
    wdw_ref : (K*K, C) spatially flipped depthwise taps.
    bdw_ref : (1, C)   bias.
    Returns (2*row_tile*w_out, C) float32 rows in row-major (oh, ow) order.
    """
    t = pl.program_id(1)
    m0 = pl.multiple_of(t * row_tile, row_tile)
    c = xdp_ref.shape[-1]

    # The three (possibly) contributing input-row bands (offsets 0, 1, 2).
    blks = [xdp_ref[0, pl.ds(m0 + off, row_tile)] for off in range(3)]  # (row_tile, 2W+3, C)

    rows = []
    for ph in range(2):                      # output-row parity
        acc = jnp.zeros((row_tile, w_out, c), jnp.float32)
        for a in range(2):                   # <=2 contributing input rows
            blk = blks[ph + a]
            for b in range(K):               # 4 taps along the dilated W axis
                i0 = (ph + 2 * a) * K + b
                tap = wdw_ref[i0:i0 + 1]                      # (1, C)
                acc = acc + blk[:, b:b + w_out, :] * tap
        rows.append(acc)

    # Interleave even/odd output rows and flatten to (rows, C); bias folded in.
    y = jnp.stack(rows, axis=1).reshape(2 * row_tile * w_out, c)
    return y + bdw_ref[...]


# ---------------------------------------------------------------------------
# Kernels
# ---------------------------------------------------------------------------
def _conv_stats_kernel(xdp_ref, wdw_ref, bdw_ref, stats_ref, *, row_tile, w_out):
    """Per-tile sum / sumsq of the depthwise-conv output (for BN1 batch stats)."""
    y = _conv_rows(xdp_ref, wdw_ref, bdw_ref, row_tile, w_out)       # (TS, Cin)
    s = jnp.sum(y, axis=0, keepdims=True)
    sq = jnp.sum(y * y, axis=0, keepdims=True)
    stats_ref[0, 0] = jnp.concatenate([s, sq], axis=0)               # (2, Cin)


def _mid_stats_kernel(xdp_ref, wdw_ref, bdw_ref, wpwT_ref, a1_ref, c1_ref,
                      stats_ref, *, row_tile, w_out):
    """conv -> BN1+ReLU -> 1x1 matmul; emit per-tile sum/sumsq of u (for BN2)."""
    y = _conv_rows(xdp_ref, wdw_ref, bdw_ref, row_tile, w_out)       # (TS, Cin)
    z = jnp.maximum(y * a1_ref[...] + c1_ref[...], 0.0)
    u = lax.dot_general(wpwT_ref[...], z, (((1,), (1,)), ((), ())),
                        preferred_element_type=jnp.float32)          # (Cout, TS)
    s = jnp.sum(u, axis=1, keepdims=True)
    sq = jnp.sum(u * u, axis=1, keepdims=True)
    stats_ref[0, 0] = jnp.concatenate([s, sq], axis=1)               # (Cout, 2)


def _apply_kernel(xdp_ref, wdw_ref, bdw_ref, wpwT_ref, *rest,
                  row_tile, w_out, apply_bn):
    """Fused conv [+ BN1+ReLU] + 1x1 matmul [+ BN2+ReLU]; lane-dense store."""
    if apply_bn:
        a1_ref, c1_ref, a2_ref, c2_ref, out_ref = rest
    else:
        (out_ref,) = rest
    y = _conv_rows(xdp_ref, wdw_ref, bdw_ref, row_tile, w_out)       # (TS, Cin)
    if apply_bn:
        y = jnp.maximum(y * a1_ref[...] + c1_ref[...], 0.0)
    u = lax.dot_general(wpwT_ref[...], y, (((1,), (1,)), ((), ())),
                        preferred_element_type=jnp.float32)          # (Cout, TS)
    if apply_bn:
        u = jnp.maximum(u * a2_ref[...] + c2_ref[...], 0.0)          # (Cout,1) bcast
    out_ref[0] = u.astype(out_ref.dtype)


# ---------------------------------------------------------------------------
# Wrapper
# ---------------------------------------------------------------------------
def _pick_row_tile(h, w_out):
    """Largest divisor of H giving a lane-dense (multiple-of-128) output tile."""
    divs = [d for d in range(1, h + 1) if h % d == 0]
    dense = [d for d in divs if (2 * d * w_out) % 128 == 0]
    pref = [d for d in dense if 2 * d * w_out <= 2048 and h // d >= 2]
    if pref:
        return max(pref)
    if dense:
        return min(dense)
    return h   # single tile covering all rows (block == full array: always legal)


def _replicated_spec(shape):
    nd = len(shape)
    return pl.BlockSpec(tuple(shape), lambda i, t: (0,) * nd)


@functools.partial(jax.jit, static_argnames=("output_size", "is_out"))
def depth_transpose_cnn_forward(x, params, output_size, *, is_out=False):
    n, cin, h, w = x.shape
    bsz, cdim, ho, wo = output_size
    assert bsz == n and ho == STRIDE * h and wo == STRIDE * w, "output_size mismatch"

    w_dw = params["w_dw"].astype(jnp.float32)       # (Cin, 1, K, K)
    b_dw = params["b_dw"].astype(jnp.float32)       # (Cin,)
    w_pw = params["w_pw"].astype(jnp.float32)       # (Cin, Cout, 1, 1)
    cout = w_pw.shape[1]
    assert cdim == cout

    # --- XLA glue on the *small* input only: NCHW -> NHWC, dilate W by the
    #     stride (interior padding) and zero-pad.  One lax.pad, ~2.3x |x|. ---
    xt = jnp.transpose(x.astype(jnp.float32), (0, 2, 3, 1))          # (N, H, W, C)
    xdp = lax.pad(xt, jnp.array(0.0, jnp.float32),
                  ((0, 0, 0), (1, 1, 0), (2, 2, 1), (0, 0, 0)))      # (N, H+2, 2W+3, C)
    wd = 2 * w + 3

    # Depthwise taps: spatially flipped, flattened to (K*K, C) host-side.
    w_flip = jnp.transpose(w_dw[:, 0], (1, 2, 0))[::-1, ::-1, :]     # (K, K, Cin)
    w_taps = w_flip.reshape(K * K, cin)
    b_row = b_dw.reshape(1, cin)
    w_t = w_pw[:, :, 0, 0].T                                         # (Cout, Cin)

    row_tile = _pick_row_tile(h, wo)
    n_tiles = h // row_tile
    ts = 2 * row_tile * wo                                           # output tile (lanes)
    grid = (n, n_tiles)
    cparams = pltpu.CompilerParams(
        dimension_semantics=("parallel", "parallel"),
        vmem_limit_bytes=32 * 1024 * 1024)

    xdp_spec = pl.BlockSpec((1, h + 2, wd, cin), lambda i, t: (i, 0, 0, 0))
    out_spec = pl.BlockSpec((1, cout, ts), lambda i, t: (i, 0, t))
    common_in = [xdp_spec, _replicated_spec((K * K, cin)), _replicated_spec((1, cin))]

    if not is_out:
        g1 = params["g1"].astype(jnp.float32)
        bt1 = params["b1"].astype(jnp.float32)
        g2 = params["g2"].astype(jnp.float32)
        bt2 = params["b2"].astype(jnp.float32)
        cnt = float(n * ho * wo)

        # ---- pass 1: BN1 batch statistics of the depthwise-conv output ----
        sy = pl.pallas_call(
            functools.partial(_conv_stats_kernel, row_tile=row_tile, w_out=wo),
            out_shape=jax.ShapeDtypeStruct((n, n_tiles, 2, cin), jnp.float32),
            grid=grid,
            in_specs=common_in,
            out_specs=pl.BlockSpec((1, 1, 2, cin), lambda i, t: (i, t, 0, 0)),
            compiler_params=cparams,
        )(xdp, w_taps, b_row)
        sy = jnp.sum(sy, axis=(0, 1))                                # (2, Cin)
        mean1 = sy[0] / cnt
        var1 = sy[1] / cnt - mean1 * mean1
        scale1 = g1 * lax.rsqrt(var1 + EPS)
        a1 = scale1.reshape(1, cin)
        c1 = (bt1 - mean1 * scale1).reshape(1, cin)

        # ---- pass 2: BN2 batch statistics of the 1x1-conv output ----------
        su = pl.pallas_call(
            functools.partial(_mid_stats_kernel, row_tile=row_tile, w_out=wo),
            out_shape=jax.ShapeDtypeStruct((n, n_tiles, cout, 2), jnp.float32),
            grid=grid,
            in_specs=common_in + [_replicated_spec((cout, cin)),
                                  _replicated_spec((1, cin)),
                                  _replicated_spec((1, cin))],
            out_specs=pl.BlockSpec((1, 1, cout, 2), lambda i, t: (i, t, 0, 0)),
            compiler_params=cparams,
        )(xdp, w_taps, b_row, w_t, a1, c1)
        su = jnp.sum(su, axis=(0, 1))                                # (Cout, 2)
        mean2 = su[:, 0] / cnt
        var2 = su[:, 1] / cnt - mean2 * mean2
        scale2 = g2 * lax.rsqrt(var2 + EPS)
        a2 = scale2.reshape(cout, 1)
        c2 = (bt2 - mean2 * scale2).reshape(cout, 1)

        # ---- pass 3: fused conv + BN1 + ReLU + 1x1 + BN2 + ReLU -> output --
        out_flat = pl.pallas_call(
            functools.partial(_apply_kernel, row_tile=row_tile, w_out=wo, apply_bn=True),
            out_shape=jax.ShapeDtypeStruct((n, cout, ho * wo), jnp.float32),
            grid=grid,
            in_specs=common_in + [_replicated_spec((cout, cin)),
                                  _replicated_spec((1, cin)),
                                  _replicated_spec((1, cin)),
                                  _replicated_spec((cout, 1)),
                                  _replicated_spec((cout, 1))],
            out_specs=out_spec,
            compiler_params=cparams,
        )(xdp, w_taps, b_row, w_t, a1, c1, a2, c2)
    else:
        # is_out: no BatchNorm -> the whole module is one fused pallas_call.
        out_flat = pl.pallas_call(
            functools.partial(_apply_kernel, row_tile=row_tile, w_out=wo, apply_bn=False),
            out_shape=jax.ShapeDtypeStruct((n, cout, ho * wo), jnp.float32),
            grid=grid,
            in_specs=common_in + [_replicated_spec((cout, cin))],
            out_specs=out_spec,
            compiler_params=cparams,
        )(xdp, w_taps, b_row, w_t)

    # (N, Cout, Ho*Wo) -> (N, Cout, Ho, Wo): contiguous split, no data movement.
    return out_flat.reshape(n, cout, ho, wo)


# ---------------------------------------------------------------------------
# Deterministic parameter init (same shapes as the nn.Module)
# ---------------------------------------------------------------------------
def init_params(key, in_dim, out_dim):
    k1, k2, k3 = jax.random.split(key, 3)
    return dict(
        w_dw=jax.random.normal(k1, (in_dim, 1, K, K), jnp.float32) * 0.2,       # ConvT dw
        b_dw=jax.random.normal(k2, (in_dim,), jnp.float32) * 0.1,
        w_pw=jax.random.normal(k3, (in_dim, out_dim, 1, 1), jnp.float32) * 0.2,  # 1x1
        g1=jnp.ones((in_dim,), jnp.float32), b1=jnp.zeros((in_dim,), jnp.float32),
        g2=jnp.ones((out_dim,), jnp.float32), b2=jnp.zeros((out_dim,), jnp.float32),
    )


# ---------------------------------------------------------------------------
# Pure-NumPy reference implementing the PyTorch semantics directly
# ---------------------------------------------------------------------------
def reference_forward(x, params, output_size, is_out=False):
    x = np.asarray(x, np.float64)
    w_dw = np.asarray(params["w_dw"], np.float64)
    b_dw = np.asarray(params["b_dw"], np.float64)
    w_pw = np.asarray(params["w_pw"], np.float64)
    g1, b1 = np.asarray(params["g1"], np.float64), np.asarray(params["b1"], np.float64)
    g2, b2 = np.asarray(params["g2"], np.float64), np.asarray(params["b2"], np.float64)

    N, C, H, W = x.shape
    Ho, Wo = STRIDE * H, STRIDE * W
    # depthwise ConvTranspose2d: scatter-add, oh = 2*ih - 1 + kh (buffer offset +1)
    buf = np.zeros((N, C, Ho + 2, Wo + 2))
    for kh in range(K):
        for kw in range(K):
            buf[:, :, kh:kh + Ho:2, kw:kw + Wo:2] += \
                x * w_dw[:, 0, kh, kw][None, :, None, None]
    y = buf[:, :, 1:Ho + 1, 1:Wo + 1] + b_dw[None, :, None, None]

    def bn_relu(t, g, b):
        m = t.mean(axis=(0, 2, 3), keepdims=True)
        v = ((t - m) ** 2).mean(axis=(0, 2, 3), keepdims=True)
        t = (t - m) / np.sqrt(v + EPS) * g[None, :, None, None] + b[None, :, None, None]
        return np.maximum(t, 0.0)

    if not is_out:
        y = bn_relu(y, g1, b1)
    z = np.einsum('nchw,co->nohw', y, w_pw[:, :, 0, 0])
    if not is_out:
        z = bn_relu(z, g2, b2)
    return z


# ---------------------------------------------------------------------------
if __name__ == "__main__":
    in_dim, out_dim = 4, 8
    n, h, w = 2, 16, 16

    key = jax.random.PRNGKey(0)
    kx, kp = jax.random.split(key)
    x = jax.random.normal(kx, (n, in_dim, h, w), jnp.float32)
    params = init_params(kp, in_dim, out_dim)
    output_size = (n, out_dim, STRIDE * h, STRIDE * w)

    np_params = {k: np.asarray(v) for k, v in params.items()}

    for is_out in (False, True):
        out = depth_transpose_cnn_forward(x, params, output_size=output_size,
                                          is_out=is_out)
        out = jax.block_until_ready(out)
        ref = reference_forward(np.asarray(x), np_params, output_size, is_out=is_out)
        np.testing.assert_allclose(np.asarray(out), ref, rtol=2e-4, atol=2e-4)

    print("KERNEL_OK")
</pallas_src>

<mosaic_0001>
module attributes {stable_mosaic.version = 11 : i64} {
  func.func @_conv_stats_kernel(%arg0: i32, %arg1: i32, %arg2: memref<1x18x35x4xf32, #tpu.memory_space<vmem>>, %arg3: memref<16x4xf32, #tpu.memory_space<vmem>>, %arg4: memref<1x4xf32, #tpu.memory_space<vmem>>, %arg5: memref<1x1x2x4xf32, #tpu.memory_space<vmem>>) attributes {dimension_semantics = [#tpu.dimension_semantics<parallel>, #tpu.dimension_semantics<parallel>], iteration_bounds = array<i64: 2, 2>, scalar_prefetch = 0 : i64, scratch_operands = 0 : i64, tpu.core_type = #tpu.core_type<tc>, window_params = [{transform_indices = @transform_0, window_bounds = array<i64: 1, 18, 35, 4>}, {pipeline_mode = #tpu.pipeline_mode<synchronous>, transform_indices = @transform_1, window_bounds = array<i64: 16, 4>}, {pipeline_mode = #tpu.pipeline_mode<synchronous>, transform_indices = @transform_2, window_bounds = array<i64: 1, 4>}, {transform_indices = @transform_3, window_bounds = array<i64: 1, 1, 2, 4>}]} {
    %c8_i32 = arith.constant 8 : i32
    %0 = arith.muli %arg1, %c8_i32 : i32
    %1 = tpu.assume_multiple %0, 8 : i32
    %c0_i32 = arith.constant 0 : i32
    %2 = arith.addi %1, %c0_i32 : i32
    %c0 = arith.constant 0 : index
    %3 = arith.index_cast %2 : i32 to index
    %c0_0 = arith.constant 0 : index
    %c0_1 = arith.constant 0 : index
    %4 = vector.load %arg2[%c0, %3, %c0_0, %c0_1] : memref<1x18x35x4xf32, #tpu.memory_space<vmem>>, vector<1x8x35x4xf32>
    %5 = vector.shape_cast %4 : vector<1x8x35x4xf32> to vector<8x35x4xf32>
    %c1_i32 = arith.constant 1 : i32
    %6 = arith.addi %1, %c1_i32 : i32
    %c0_2 = arith.constant 0 : index
    %7 = arith.index_cast %6 : i32 to index
    %c0_3 = arith.constant 0 : index
    %c0_4 = arith.constant 0 : index
    %8 = vector.load %arg2[%c0_2, %7, %c0_3, %c0_4] : memref<1x18x35x4xf32, #tpu.memory_space<vmem>>, vector<1x8x35x4xf32>
    %9 = vector.shape_cast %8 : vector<1x8x35x4xf32> to vector<8x35x4xf32>
    %c2_i32 = arith.constant 2 : i32
    %10 = arith.addi %1, %c2_i32 : i32
    %c0_5 = arith.constant 0 : index
    %11 = arith.index_cast %10 : i32 to index
    %c0_6 = arith.constant 0 : index
    %c0_7 = arith.constant 0 : index
    %12 = vector.load %arg2[%c0_5, %11, %c0_6, %c0_7] : memref<1x18x35x4xf32, #tpu.memory_space<vmem>>, vector<1x8x35x4xf32>
    %13 = vector.shape_cast %12 : vector<1x8x35x4xf32> to vector<8x35x4xf32>
    %cst = arith.constant 0.000000e+00 : f32
    %14 = vector.broadcast %cst : f32 to vector<8x32x4xf32>
    %c0_8 = arith.constant 0 : index
    %c0_9 = arith.constant 0 : index
    %15 = vector.load %arg3[%c0_8, %c0_9] : memref<16x4xf32, #tpu.memory_space<vmem>>, vector<1x4xf32>
    %16 = vector.extract_strided_slice %5 {offsets = [0, 0, 0], sizes = [8, 32, 4], strides = [1, 1, 1]} : vector<8x35x4xf32> to vector<8x32x4xf32>
    %17 = vector.shape_cast %15 : vector<1x4xf32> to vector<1x1x4xf32>
    %18 = vector.broadcast %17 : vector<1x1x4xf32> to vector<8x32x4xf32>
    %19 = arith.mulf %16, %18 : vector<8x32x4xf32>
    %20 = arith.addf %14, %19 : vector<8x32x4xf32>
    %c1 = arith.constant 1 : index
    %c0_10 = arith.constant 0 : index
    %21 = vector.load %arg3[%c1, %c0_10] : memref<16x4xf32, #tpu.memory_space<vmem>>, vector<1x4xf32>
    %22 = vector.extract_strided_slice %5 {offsets = [0, 1, 0], sizes = [8, 32, 4], strides = [1, 1, 1]} : vector<8x35x4xf32> to vector<8x32x4xf32>
    %23 = vector.shape_cast %21 : vector<1x4xf32> to vector<1x1x4xf32>
    %24 = vector.broadcast %23 : vector<1x1x4xf32> to vector<8x32x4xf32>
    %25 = arith.mulf %22, %24 : vector<8x32x4xf32>
    %26 = arith.addf %20, %25 : vector<8x32x4xf32>
    %c2 = arith.constant 2 : index
    %c0_11 = arith.constant 0 : index
    %27 = vector.load %arg3[%c2, %c0_11] : memref<16x4xf32, #tpu.memory_space<vmem>>, vector<1x4xf32>
    %28 = vector.extract_strided_slice %5 {offsets = [0, 2, 0], sizes = [8, 32, 4], strides = [1, 1, 1]} : vector<8x35x4xf32> to vector<8x32x4xf32>
    %29 = vector.shape_cast %27 : vector<1x4xf32> to vector<1x1x4xf32>
    %30 = vector.broadcast %29 : vector<1x1x4xf32> to vector<8x32x4xf32>
    %31 = arith.mulf %28, %30 : vector<8x32x4xf32>
    %32 = arith.addf %26, %31 : vector<8x32x4xf32>
    %c3 = arith.constant 3 : index
    %c0_12 = arith.constant 0 : index
    %33 = vector.load %arg3[%c3, %c0_12] : memref<16x4xf32, #tpu.memory_space<vmem>>, vector<1x4xf32>
    %34 = vector.extract_strided_slice %5 {offsets = [0, 3, 0], sizes = [8, 32, 4], strides = [1, 1, 1]} : vector<8x35x4xf32> to vector<8x32x4xf32>
    %35 = vector.shape_cast %33 : vector<1x4xf32> to vector<1x1x4xf32>
    %36 = vector.broadcast %35 : vector<1x1x4xf32> to vector<8x32x4xf32>
    %37 = arith.mulf %34, %36 : vector<8x32x4xf32>
    %38 = arith.addf %32, %37 : vector<8x32x4xf32>
    %c8 = arith.constant 8 : index
    %c0_13 = arith.constant 0 : index
    %39 = vector.load %arg3[%c8, %c0_13] : memref<16x4xf32, #tpu.memory_space<vmem>>, vector<1x4xf32>
    %40 = vector.extract_strided_slice %9 {offsets = [0, 0, 0], sizes = [8, 32, 4], strides = [1, 1, 1]} : vector<8x35x4xf32> to vector<8x32x4xf32>
    %41 = vector.shape_cast %39 : vector<1x4xf32> to vector<1x1x4xf32>
    %42 = vector.broadcast %41 : vector<1x1x4xf32> to vector<8x32x4xf32>
    %43 = arith.mulf %40, %42 : vector<8x32x4xf32>
    %44 = arith.addf %38, %43 : vector<8x32x4xf32>
    %c9 = arith.constant 9 : index
    %c0_14 = arith.constant 0 : index
    %45 = vector.load %arg3[%c9, %c0_14] : memref<16x4xf32, #tpu.memory_space<vmem>>, vector<1x4xf32>
    %46 = vector.extract_strided_slice %9 {offsets = [0, 1, 0], sizes = [8, 32, 4], strides = [1, 1, 1]} : vector<8x35x4xf32> to vector<8x32x4xf32>
    %47 = vector.shape_cast %45 : vector<1x4xf32> to vector<1x1x4xf32>
    %48 = vector.broadcast %47 : vector<1x1x4xf32> to vector<8x32x4xf32>
    %49 = arith.mulf %46, %48 : vector<8x32x4xf32>
    %50 = arith.addf %44, %49 : vector<8x32x4xf32>
    %c10 = arith.constant 10 : index
    %c0_15 = arith.constant 0 : index
    %51 = vector.load %arg3[%c10, %c0_15] : memref<16x4xf32, #tpu.memory_space<vmem>>, vector<1x4xf32>
    %52 = vector.extract_strided_slice %9 {offsets = [0, 2, 0], sizes = [8, 32, 4], strides = [1, 1, 1]} : vector<8x35x4xf32> to vector<8x32x4xf32>
    %53 = vector.shape_cast %51 : vector<1x4xf32> to vector<1x1x4xf32>
    %54 = vector.broadcast %53 : vector<1x1x4xf32> to vector<8x32x4xf32>
    %55 = arith.mulf %52, %54 : vector<8x32x4xf32>
    %56 = arith.addf %50, %55 : vector<8x32x4xf32>
    %c11 = arith.constant 11 : index
    %c0_16 = arith.constant 0 : index
    %57 = vector.load %arg3[%c11, %c0_16] : memref<16x4xf32, #tpu.memory_space<vmem>>, vector<1x4xf32>
    %58 = vector.extract_strided_slice %9 {offsets = [0, 3, 0], sizes = [8, 32, 4], strides = [1, 1, 1]} : vector<8x35x4xf32> to vector<8x32x4xf32>
    %59 = vector.shape_cast %57 : vector<1x4xf32> to vector<1x1x4xf32>
    %60 = vector.broadcast %59 : vector<1x1x4xf32> to vector<8x32x4xf32>
    %61 = arith.mulf %58, %60 : vector<8x32x4xf32>
    %62 = arith.addf %56, %61 : vector<8x32x4xf32>
    %cst_17 = arith.constant 0.000000e+00 : f32
    %63 = vector.broadcast %cst_17 : f32 to vector<8x32x4xf32>
    %c4 = arith.constant 4 : index
    %c0_18 = arith.constant 0 : index
    %64 = vector.load %arg3[%c4, %c0_18] : memref<16x4xf32, #tpu.memory_space<vmem>>, vector<1x4xf32>
    %65 = vector.extract_strided_slice %9 {offsets = [0, 0, 0], sizes = [8, 32, 4], strides = [1, 1, 1]} : vector<8x35x4xf32> to vector<8x32x4xf32>
    %66 = vector.shape_cast %64 : vector<1x4xf32> to vector<1x1x4xf32>
    %67 = vector.broadcast %66 : vector<1x1x4xf32> to vector<8x32x4xf32>
    %68 = arith.mulf %65, %67 : vector<8x32x4xf32>
    %69 = arith.addf %63, %68 : vector<8x32x4xf32>
    %c5 = arith.constant 5 : index
    %c0_19 = arith.constant 0 : index
    %70 = vector.load %arg3[%c5, %c0_19] : memref<16x4xf32, #tpu.memory_space<vmem>>, vector<1x4xf32>
    %71 = vector.extract_strided_slice %9 {offsets = [0, 1, 0], sizes = [8, 32, 4], strides = [1, 1, 1]} : vector<8x35x4xf32> to vector<8x32x4xf32>
    %72 = vector.shape_cast %70 : vector<1x4xf32> to vector<1x1x4xf32>
    %73 = vector.broadcast %72 : vector<1x1x4xf32> to vector<8x32x4xf32>
    %74 = arith.mulf %71, %73 : vector<8x32x4xf32>
    %75 = arith.addf %69, %74 : vector<8x32x4xf32>
    %c6 = arith.constant 6 : index
    %c0_20 = arith.constant 0 : index
    %76 = vector.load %arg3[%c6, %c0_20] : memref<16x4xf32, #tpu.memory_space<vmem>>, vector<1x4xf32>
    %77 = vector.extract_strided_slice %9 {offsets = [0, 2, 0], sizes = [8, 32, 4], strides = [1, 1, 1]} : vector<8x35x4xf32> to vector<8x32x4xf32>
    %78 = vector.shape_cast %76 : vector<1x4xf32> to vector<1x1x4xf32>
    %79 = vector.broadcast %78 : vector<1x1x4xf32> to vector<8x32x4xf32>
    %80 = arith.mulf %77, %79 : vector<8x32x4xf32>
    %81 = arith.addf %75, %80 : vector<8x32x4xf32>
    %c7 = arith.constant 7 : index
    %c0_21 = arith.constant 0 : index
    %82 = vector.load %arg3[%c7, %c0_21] : memref<16x4xf32, #tpu.memory_space<vmem>>, vector<1x4xf32>
    %83 = vector.extract_strided_slice %9 {offsets = [0, 3, 0], sizes = [8, 32, 4], strides = [1, 1, 1]} : vector<8x35x4xf32> to vector<8x32x4xf32>
    %84 = vector.shape_cast %82 : vector<1x4xf32> to vector<1x1x4xf32>
    %85 = vector.broadcast %84 : vector<1x1x4xf32> to vector<8x32x4xf32>
    %86 = arith.mulf %83, %85 : vector<8x32x4xf32>
    %87 = arith.addf %81, %86 : vector<8x32x4xf32>
    %c12 = arith.constant 12 : index
    %c0_22 = arith.constant 0 : index
    %88 = vector.load %arg3[%c12, %c0_22] : memref<16x4xf32, #tpu.memory_space<vmem>>, vector<1x4xf32>
    %89 = vector.extract_strided_slice %13 {offsets = [0, 0, 0], sizes = [8, 32, 4], strides = [1, 1, 1]} : vector<8x35x4xf32> to vector<8x32x4xf32>
    %90 = vector.shape_cast %88 : vector<1x4xf32> to vector<1x1x4xf32>
    %91 = vector.broadcast %90 : vector<1x1x4xf32> to vector<8x32x4xf32>
    %92 = arith.mulf %89, %91 : vector<8x32x4xf32>
    %93 = arith.addf %87, %92 : vector<8x32x4xf32>
    %c13 = arith.constant 13 : index
    %c0_23 = arith.constant 0 : index
    %94 = vector.load %arg3[%c13, %c0_23] : memref<16x4xf32, #tpu.memory_space<vmem>>, vector<1x4xf32>
    %95 = vector.extract_strided_slice %13 {offsets = [0, 1, 0], sizes = [8, 32, 4], strides = [1, 1, 1]} : vector<8x35x4xf32> to vector<8x32x4xf32>
    %96 = vector.shape_cast %94 : vector<1x4xf32> to vector<1x1x4xf32>
    %97 = vector.broadcast %96 : vector<1x1x4xf32> to vector<8x32x4xf32>
    %98 = arith.mulf %95, %97 : vector<8x32x4xf32>
    %99 = arith.addf %93, %98 : vector<8x32x4xf32>
    %c14 = arith.constant 14 : index
    %c0_24 = arith.constant 0 : index
    %100 = vector.load %arg3[%c14, %c0_24] : memref<16x4xf32, #tpu.memory_space<vmem>>, vector<1x4xf32>
    %101 = vector.extract_strided_slice %13 {offsets = [0, 2, 0], sizes = [8, 32, 4], strides = [1, 1, 1]} : vector<8x35x4xf32> to vector<8x32x4xf32>
    %102 = vector.shape_cast %100 : vector<1x4xf32> to vector<1x1x4xf32>
    %103 = vector.broadcast %102 : vector<1x1x4xf32> to vector<8x32x4xf32>
    %104 = arith.mulf %101, %103 : vector<8x32x4xf32>
    %105 = arith.addf %99, %104 : vector<8x32x4xf32>
    %c15 = arith.constant 15 : index
    %c0_25 = arith.constant 0 : index
    %106 = vector.load %arg3[%c15, %c0_25] : memref<16x4xf32, #tpu.memory_space<vmem>>, vector<1x4xf32>
    %107 = vector.extract_strided_slice %13 {offsets = [0, 3, 0], sizes = [8, 32, 4], strides = [1, 1, 1]} : vector<8x35x4xf32> to vector<8x32x4xf32>
    %108 = vector.shape_cast %106 : vector<1x4xf32> to vector<1x1x4xf32>
    %109 = vector.broadcast %108 : vector<1x1x4xf32> to vector<8x32x4xf32>
    %110 = arith.mulf %107, %109 : vector<8x32x4xf32>
    %111 = arith.addf %105, %110 : vector<8x32x4xf32>
    %112 = vector.shape_cast %62 : vector<8x32x4xf32> to vector<8x1x32x4xf32>
    %113 = vector.shape_cast %111 : vector<8x32x4xf32> to vector<8x1x32x4xf32>
    %114 = tpu.concatenate %112, %113 in 1 : vector<8x1x32x4xf32>, vector<8x1x32x4xf32> -> vector<8x2x32x4xf32>
    %115 = vector.shape_cast %114 : vector<8x2x32x4xf32> to vector<512x4xf32>
    %c0_26 = arith.constant 0 : index
    %c0_27 = arith.constant 0 : index
    %116 = vector.load %arg4[%c0_26, %c0_27] : memref<1x4xf32, #tpu.memory_space<vmem>>, vector<1x4xf32>
    %117 = vector.broadcast %116 : vector<1x4xf32> to vector<512x4xf32>
    %118 = arith.addf %115, %117 : vector<512x4xf32>
    %cst_28 = arith.constant dense<0.000000e+00> : vector<4xf32>
    %119 = vector.multi_reduction <add>, %118, %cst_28 [0] : vector<512x4xf32> to vector<4xf32>
    %120 = vector.shape_cast %119 : vector<4xf32> to vector<1x4xf32>
    %121 = arith.mulf %118, %118 : vector<512x4xf32>
    %cst_29 = arith.constant dense<0.000000e+00> : vector<4xf32>
    %122 = vector.multi_reduction <add>, %121, %cst_29 [0] : vector<512x4xf32> to vector<4xf32>
    %123 = vector.shape_cast %122 : vector<4xf32> to vector<1x4xf32>
    %124 = tpu.concatenate %120, %123 in 0 : vector<1x4xf32>, vector<1x4xf32> -> vector<2x4xf32>
    %c0_30 = arith.constant 0 : index
    %c0_31 = arith.constant 0 : index
    %c0_32 = arith.constant 0 : index
    %c0_33 = arith.constant 0 : index
    %125 = vector.load %arg5[%c0_30, %c0_31, %c0_32, %c0_33] : memref<1x1x2x4xf32, #tpu.memory_space<vmem>>, vector<1x1x2x4xf32>
    %126 = vector.shape_cast %125 : vector<1x1x2x4xf32> to vector<2x4xf32>
    %127 = vector.shape_cast %124 : vector<2x4xf32> to vector<1x1x2x4xf32>
    tpu.vector_store %arg5[%c0_30, %c0_31, %c0_32, %c0_33], %127 {strides = array<i32>} : memref<1x1x2x4xf32, #tpu.memory_space<vmem>>, vector<1x1x2x4xf32>,
    return
  }
  func.func @transform_0(%arg0: i32, %arg1: i32) -> (i32, i32, i32, i32) {
    %c0_i32 = arith.constant 0 : i32
    %c0_i32_0 = arith.constant 0 : i32
    %c0_i32_1 = arith.constant 0 : i32
    %c0_i32_2 = arith.constant 0 : i32
    return %arg0, %c0_i32, %c0_i32_0, %c0_i32_1 : i32, i32, i32, i32
  }
  func.func @transform_1(%arg0: i32, %arg1: i32) -> (i32, i32) {
    %c0_i32 = arith.constant 0 : i32
    %c0_i32_0 = arith.constant 0 : i32
    %c0_i32_1 = arith.constant 0 : i32
    return %c0_i32, %c0_i32_0 : i32, i32
  }
  func.func @transform_2(%arg0: i32, %arg1: i32) -> (i32, i32) {
    %c0_i32 = arith.constant 0 : i32
    %c0_i32_0 = arith.constant 0 : i32
    %c0_i32_1 = arith.constant 0 : i32
    return %c0_i32, %c0_i32_0 : i32, i32
  }
  func.func @transform_3(%arg0: i32, %arg1: i32) -> (i32, i32, i32, i32) {
    %c0_i32 = arith.constant 0 : i32
    %c0_i32_0 = arith.constant 0 : i32
    %c0_i32_1 = arith.constant 0 : i32
    return %arg0, %arg1, %c0_i32, %c0_i32_0 : i32, i32, i32, i32
  }
}

module attributes {stable_mosaic.version = 11 : i64} {
  func.func @_mid_stats_kernel(%arg0: i32, %arg1: i32, %arg2: memref<1x18x35x4xf32, #tpu.memory_space<vmem>>, %arg3: memref<16x4xf32, #tpu.memory_space<vmem>>, %arg4: memref<1x4xf32, #tpu.memory_space<vmem>>, %arg5: memref<8x4xf32, #tpu.memory_space<vmem>>, %arg6: memref<1x4xf32, #tpu.memory_space<vmem>>, %arg7: memref<1x4xf32, #tpu.memory_space<vmem>>, %arg8: memref<1x1x8x2xf32, #tpu.memory_space<vmem>>) attributes {dimension_semantics = [#tpu.dimension_semantics<parallel>, #tpu.dimension_semantics<parallel>], iteration_bounds = array<i64: 2, 2>, scalar_prefetch = 0 : i64, scratch_operands = 0 : i64, tpu.core_type = #tpu.core_type<tc>, window_params = [{transform_indices = @transform_0, window_bounds = array<i64: 1, 18, 35, 4>}, {pipeline_mode = #tpu.pipeline_mode<synchronous>, transform_indices = @transform_1, window_bounds = array<i64: 16, 4>}, {pipeline_mode = #tpu.pipeline_mode<synchronous>, transform_indices = @transform_2, window_bounds = array<i64: 1, 4>}, {pipeline_mode = #tpu.pipeline_mode<synchronous>, transform_indices = @transform_3, window_bounds = array<i64: 8, 4>}, {pipeline_mode = #tpu.pipeline_mode<synchronous>, transform_indices = @transform_4, window_bounds = array<i64: 1, 4>}, {pipeline_mode = #tpu.pipeline_mode<synchronous>, transform_indices = @transform_5, window_bounds = array<i64: 1, 4>}, {transform_indices = @transform_6, window_bounds = array<i64: 1, 1, 8, 2>}]} {
    %c8_i32 = arith.constant 8 : i32
    %0 = arith.muli %arg1, %c8_i32 : i32
    %1 = tpu.assume_multiple %0, 8 : i32
    %c0_i32 = arith.constant 0 : i32
    %2 = arith.addi %1, %c0_i32 : i32
    %c0 = arith.constant 0 : index
    %3 = arith.index_cast %2 : i32 to index
    %c0_0 = arith.constant 0 : index
    %c0_1 = arith.constant 0 : index
    %4 = vector.load %arg2[%c0, %3, %c0_0, %c0_1] : memref<1x18x35x4xf32, #tpu.memory_space<vmem>>, vector<1x8x35x4xf32>
    %5 = vector.shape_cast %4 : vector<1x8x35x4xf32> to vector<8x35x4xf32>
    %c1_i32 = arith.constant 1 : i32
    %6 = arith.addi %1, %c1_i32 : i32
    %c0_2 = arith.constant 0 : index
    %7 = arith.index_cast %6 : i32 to index
    %c0_3 = arith.constant 0 : index
    %c0_4 = arith.constant 0 : index
    %8 = vector.load %arg2[%c0_2, %7, %c0_3, %c0_4] : memref<1x18x35x4xf32, #tpu.memory_space<vmem>>, vector<1x8x35x4xf32>
    %9 = vector.shape_cast %8 : vector<1x8x35x4xf32> to vector<8x35x4xf32>
    %c2_i32 = arith.constant 2 : i32
    %10 = arith.addi %1, %c2_i32 : i32
    %c0_5 = arith.constant 0 : index
    %11 = arith.index_cast %10 : i32 to index
    %c0_6 = arith.constant 0 : index
    %c0_7 = arith.constant 0 : index
    %12 = vector.load %arg2[%c0_5, %11, %c0_6, %c0_7] : memref<1x18x35x4xf32, #tpu.memory_space<vmem>>, vector<1x8x35x4xf32>
    %13 = vector.shape_cast %12 : vector<1x8x35x4xf32> to vector<8x35x4xf32>
    %cst = arith.constant 0.000000e+00 : f32
    %14 = vector.broadcast %cst : f32 to vector<8x32x4xf32>
    %c0_8 = arith.constant 0 : index
    %c0_9 = arith.constant 0 : index
    %15 = vector.load %arg3[%c0_8, %c0_9] : memref<16x4xf32, #tpu.memory_space<vmem>>, vector<1x4xf32>
    %16 = vector.extract_strided_slice %5 {offsets = [0, 0, 0], sizes = [8, 32, 4], strides = [1, 1, 1]} : vector<8x35x4xf32> to vector<8x32x4xf32>
    %17 = vector.shape_cast %15 : vector<1x4xf32> to vector<1x1x4xf32>
    %18 = vector.broadcast %17 : vector<1x1x4xf32> to vector<8x32x4xf32>
    %19 = arith.mulf %16, %18 : vector<8x32x4xf32>
    %20 = arith.addf %14, %19 : vector<8x32x4xf32>
    %c1 = arith.constant 1 : index
    %c0_10 = arith.constant 0 : index
    %21 = vector.load %arg3[%c1, %c0_10] : memref<16x4xf32, #tpu.memory_space<vmem>>, vector<1x4xf32>
    %22 = vector.extract_strided_slice %5 {offsets = [0, 1, 0], sizes = [8, 32, 4], strides = [1, 1, 1]} : vector<8x35x4xf32> to vector<8x32x4xf32>
    %23 = vector.shape_cast %21 : vector<1x4xf32> to vector<1x1x4xf32>
    %24 = vector.broadcast %23 : vector<1x1x4xf32> to vector<8x32x4xf32>
    %25 = arith.mulf %22, %24 : vector<8x32x4xf32>
    %26 = arith.addf %20, %25 : vector<8x32x4xf32>
    %c2 = arith.constant 2 : index
    %c0_11 = arith.constant 0 : index
    %27 = vector.load %arg3[%c2, %c0_11] : memref<16x4xf32, #tpu.memory_space<vmem>>, vector<1x4xf32>
    %28 = vector.extract_strided_slice %5 {offsets = [0, 2, 0], sizes = [8, 32, 4], strides = [1, 1, 1]} : vector<8x35x4xf32> to vector<8x32x4xf32>
    %29 = vector.shape_cast %27 : vector<1x4xf32> to vector<1x1x4xf32>
    %30 = vector.broadcast %29 : vector<1x1x4xf32> to vector<8x32x4xf32>
    %31 = arith.mulf %28, %30 : vector<8x32x4xf32>
    %32 = arith.addf %26, %31 : vector<8x32x4xf32>
    %c3 = arith.constant 3 : index
    %c0_12 = arith.constant 0 : index
    %33 = vector.load %arg3[%c3, %c0_12] : memref<16x4xf32, #tpu.memory_space<vmem>>, vector<1x4xf32>
    %34 = vector.extract_strided_slice %5 {offsets = [0, 3, 0], sizes = [8, 32, 4], strides = [1, 1, 1]} : vector<8x35x4xf32> to vector<8x32x4xf32>
    %35 = vector.shape_cast %33 : vector<1x4xf32> to vector<1x1x4xf32>
    %36 = vector.broadcast %35 : vector<1x1x4xf32> to vector<8x32x4xf32>
    %37 = arith.mulf %34, %36 : vector<8x32x4xf32>
    %38 = arith.addf %32, %37 : vector<8x32x4xf32>
    %c8 = arith.constant 8 : index
    %c0_13 = arith.constant 0 : index
    %39 = vector.load %arg3[%c8, %c0_13] : memref<16x4xf32, #tpu.memory_space<vmem>>, vector<1x4xf32>
    %40 = vector.extract_strided_slice %9 {offsets = [0, 0, 0], sizes = [8, 32, 4], strides = [1, 1, 1]} : vector<8x35x4xf32> to vector<8x32x4xf32>
    %41 = vector.shape_cast %39 : vector<1x4xf32> to vector<1x1x4xf32>
    %42 = vector.broadcast %41 : vector<1x1x4xf32> to vector<8x32x4xf32>
    %43 = arith.mulf %40, %42 : vector<8x32x4xf32>
    %44 = arith.addf %38, %43 : vector<8x32x4xf32>
    %c9 = arith.constant 9 : index
    %c0_14 = arith.constant 0 : index
    %45 = vector.load %arg3[%c9, %c0_14] : memref<16x4xf32, #tpu.memory_space<vmem>>, vector<1x4xf32>
    %46 = vector.extract_strided_slice %9 {offsets = [0, 1, 0], sizes = [8, 32, 4], strides = [1, 1, 1]} : vector<8x35x4xf32> to vector<8x32x4xf32>
    %47 = vector.shape_cast %45 : vector<1x4xf32> to vector<1x1x4xf32>
    %48 = vector.broadcast %47 : vector<1x1x4xf32> to vector<8x32x4xf32>
    %49 = arith.mulf %46, %48 : vector<8x32x4xf32>
    %50 = arith.addf %44, %49 : vector<8x32x4xf32>
    %c10 = arith.constant 10 : index
    %c0_15 = arith.constant 0 : index
    %51 = vector.load %arg3[%c10, %c0_15] : memref<16x4xf32, #tpu.memory_space<vmem>>, vector<1x4xf32>
    %52 = vector.extract_strided_slice %9 {offsets = [0, 2, 0], sizes = [8, 32, 4], strides = [1, 1, 1]} : vector<8x35x4xf32> to vector<8x32x4xf32>
    %53 = vector.shape_cast %51 : vector<1x4xf32> to vector<1x1x4xf32>
    %54 = vector.broadcast %53 : vector<1x1x4xf32> to vector<8x32x4xf32>
    %55 = arith.mulf %52, %54 : vector<8x32x4xf32>
    %56 = arith.addf %50, %55 : vector<8x32x4xf32>
    %c11 = arith.constant 11 : index
    %c0_16 = arith.constant 0 : index
    %57 = vector.load %arg3[%c11, %c0_16] : memref<16x4xf32, #tpu.memory_space<vmem>>, vector<1x4xf32>
    %58 = vector.extract_strided_slice %9 {offsets = [0, 3, 0], sizes = [8, 32, 4], strides = [1, 1, 1]} : vector<8x35x4xf32> to vector<8x32x4xf32>
    %59 = vector.shape_cast %57 : vector<1x4xf32> to vector<1x1x4xf32>
    %60 = vector.broadcast %59 : vector<1x1x4xf32> to vector<8x32x4xf32>
    %61 = arith.mulf %58, %60 : vector<8x32x4xf32>
    %62 = arith.addf %56, %61 : vector<8x32x4xf32>
    %cst_17 = arith.constant 0.000000e+00 : f32
    %63 = vector.broadcast %cst_17 : f32 to vector<8x32x4xf32>
    %c4 = arith.constant 4 : index
    %c0_18 = arith.constant 0 : index
    %64 = vector.load %arg3[%c4, %c0_18] : memref<16x4xf32, #tpu.memory_space<vmem>>, vector<1x4xf32>
    %65 = vector.extract_strided_slice %9 {offsets = [0, 0, 0], sizes = [8, 32, 4], strides = [1, 1, 1]} : vector<8x35x4xf32> to vector<8x32x4xf32>
    %66 = vector.shape_cast %64 : vector<1x4xf32> to vector<1x1x4xf32>
    %67 = vector.broadcast %66 : vector<1x1x4xf32> to vector<8x32x4xf32>
    %68 = arith.mulf %65, %67 : vector<8x32x4xf32>
    %69 = arith.addf %63, %68 : vector<8x32x4xf32>
    %c5 = arith.constant 5 : index
    %c0_19 = arith.constant 0 : index
    %70 = vector.load %arg3[%c5, %c0_19] : memref<16x4xf32, #tpu.memory_space<vmem>>, vector<1x4xf32>
    %71 = vector.extract_strided_slice %9 {offsets = [0, 1, 0], sizes = [8, 32, 4], strides = [1, 1, 1]} : vector<8x35x4xf32> to vector<8x32x4xf32>
    %72 = vector.shape_cast %70 : vector<1x4xf32> to vector<1x1x4xf32>
    %73 = vector.broadcast %72 : vector<1x1x4xf32> to vector<8x32x4xf32>
    %74 = arith.mulf %71, %73 : vector<8x32x4xf32>
    %75 = arith.addf %69, %74 : vector<8x32x4xf32>
    %c6 = arith.constant 6 : index
    %c0_20 = arith.constant 0 : index
    %76 = vector.load %arg3[%c6, %c0_20] : memref<16x4xf32, #tpu.memory_space<vmem>>, vector<1x4xf32>
    %77 = vector.extract_strided_slice %9 {offsets = [0, 2, 0], sizes = [8, 32, 4], strides = [1, 1, 1]} : vector<8x35x4xf32> to vector<8x32x4xf32>
    %78 = vector.shape_cast %76 : vector<1x4xf32> to vector<1x1x4xf32>
    %79 = vector.broadcast %78 : vector<1x1x4xf32> to vector<8x32x4xf32>
    %80 = arith.mulf %77, %79 : vector<8x32x4xf32>
    %81 = arith.addf %75, %80 : vector<8x32x4xf32>
    %c7 = arith.constant 7 : index
    %c0_21 = arith.constant 0 : index
    %82 = vector.load %arg3[%c7, %c0_21] : memref<16x4xf32, #tpu.memory_space<vmem>>, vector<1x4xf32>
    %83 = vector.extract_strided_slice %9 {offsets = [0, 3, 0], sizes = [8, 32, 4], strides = [1, 1, 1]} : vector<8x35x4xf32> to vector<8x32x4xf32>
    %84 = vector.shape_cast %82 : vector<1x4xf32> to vector<1x1x4xf32>
    %85 = vector.broadcast %84 : vector<1x1x4xf32> to vector<8x32x4xf32>
    %86 = arith.mulf %83, %85 : vector<8x32x4xf32>
    %87 = arith.addf %81, %86 : vector<8x32x4xf32>
    %c12 = arith.constant 12 : index
    %c0_22 = arith.constant 0 : index
    %88 = vector.load %arg3[%c12, %c0_22] : memref<16x4xf32, #tpu.memory_space<vmem>>, vector<1x4xf32>
    %89 = vector.extract_strided_slice %13 {offsets = [0, 0, 0], sizes = [8, 32, 4], strides = [1, 1, 1]} : vector<8x35x4xf32> to vector<8x32x4xf32>
    %90 = vector.shape_cast %88 : vector<1x4xf32> to vector<1x1x4xf32>
    %91 = vector.broadcast %90 : vector<1x1x4xf32> to vector<8x32x4xf32>
    %92 = arith.mulf %89, %91 : vector<8x32x4xf32>
    %93 = arith.addf %87, %92 : vector<8x32x4xf32>
    %c13 = arith.constant 13 : index
    %c0_23 = arith.constant 0 : index
    %94 = vector.load %arg3[%c13, %c0_23] : memref<16x4xf32, #tpu.memory_space<vmem>>, vector<1x4xf32>
    %95 = vector.extract_strided_slice %13 {offsets = [0, 1, 0], sizes = [8, 32, 4], strides = [1, 1, 1]} : vector<8x35x4xf32> to vector<8x32x4xf32>
    %96 = vector.shape_cast %94 : vector<1x4xf32> to vector<1x1x4xf32>
    %97 = vector.broadcast %96 : vector<1x1x4xf32> to vector<8x32x4xf32>
    %98 = arith.mulf %95, %97 : vector<8x32x4xf32>
    %99 = arith.addf %93, %98 : vector<8x32x4xf32>
    %c14 = arith.constant 14 : index
    %c0_24 = arith.constant 0 : index
    %100 = vector.load %arg3[%c14, %c0_24] : memref<16x4xf32, #tpu.memory_space<vmem>>, vector<1x4xf32>
    %101 = vector.extract_strided_slice %13 {offsets = [0, 2, 0], sizes = [8, 32, 4], strides = [1, 1, 1]} : vector<8x35x4xf32> to vector<8x32x4xf32>
    %102 = vector.shape_cast %100 : vector<1x4xf32> to vector<1x1x4xf32>
    %103 = vector.broadcast %102 : vector<1x1x4xf32> to vector<8x32x4xf32>
    %104 = arith.mulf %101, %103 : vector<8x32x4xf32>
    %105 = arith.addf %99, %104 : vector<8x32x4xf32>
    %c15 = arith.constant 15 : index
    %c0_25 = arith.constant 0 : index
    %106 = vector.load %arg3[%c15, %c0_25] : memref<16x4xf32, #tpu.memory_space<vmem>>, vector<1x4xf32>
    %107 = vector.extract_strided_slice %13 {offsets = [0, 3, 0], sizes = [8, 32, 4], strides = [1, 1, 1]} : vector<8x35x4xf32> to vector<8x32x4xf32>
    %108 = vector.shape_cast %106 : vector<1x4xf32> to vector<1x1x4xf32>
    %109 = vector.broadcast %108 : vector<1x1x4xf32> to vector<8x32x4xf32>
    %110 = arith.mulf %107, %109 : vector<8x32x4xf32>
    %111 = arith.addf %105, %110 : vector<8x32x4xf32>
    %112 = vector.shape_cast %62 : vector<8x32x4xf32> to vector<8x1x32x4xf32>
    %113 = vector.shape_cast %111 : vector<8x32x4xf32> to vector<8x1x32x4xf32>
    %114 = tpu.concatenate %112, %113 in 1 : vector<8x1x32x4xf32>, vector<8x1x32x4xf32> -> vector<8x2x32x4xf32>
    %115 = vector.shape_cast %114 : vector<8x2x32x4xf32> to vector<512x4xf32>
    %c0_26 = arith.constant 0 : index
    %c0_27 = arith.constant 0 : index
    %116 = vector.load %arg4[%c0_26, %c0_27] : memref<1x4xf32, #tpu.memory_space<vmem>>, vector<1x4xf32>
    %117 = vector.broadcast %116 : vector<1x4xf32> to vector<512x4xf32>
    %118 = arith.addf %115, %117 : vector<512x4xf32>
    %c0_28 = arith.constant 0 : index
    %c0_29 = arith.constant 0 : index
    %119 = vector.load %arg6[%c0_28, %c0_29] : memref<1x4xf32, #tpu.memory_space<vmem>>, vector<1x4xf32>
    %120 = vector.broadcast %119 : vector<1x4xf32> to vector<512x4xf32>
    %121 = arith.mulf %118, %120 : vector<512x4xf32>
    %c0_30 = arith.constant 0 : index
    %c0_31 = arith.constant 0 : index
    %122 = vector.load %arg7[%c0_30, %c0_31] : memref<1x4xf32, #tpu.memory_space<vmem>>, vector<1x4xf32>
    %123 = vector.broadcast %122 : vector<1x4xf32> to vector<512x4xf32>
    %124 = arith.addf %121, %123 : vector<512x4xf32>
    %cst_32 = arith.constant 0.000000e+00 : f32
    %125 = vector.broadcast %cst_32 : f32 to vector<512x4xf32>
    %126 = arith.maximumf %124, %125 : vector<512x4xf32>
    %c0_33 = arith.constant 0 : index
    %c0_34 = arith.constant 0 : index
    %127 = vector.load %arg5[%c0_33, %c0_34] : memref<8x4xf32, #tpu.memory_space<vmem>>, vector<8x4xf32>
    %cst_35 = arith.constant dense<0.000000e+00> : vector<8x512xf32>
    %128 = tpu.matmul %127, %126, %cst_35 {dimension_numbers = #tpu.dot_dimension_numbers<[1], [1], [0], [0], [0, 0, 1, 0], [], []>} : vector<8x4xf32>, vector<512x4xf32>, vector<8x512xf32> -> vector<8x512xf32>
    %cst_36 = arith.constant dense<0.000000e+00> : vector<8xf32>
    %129 = vector.multi_reduction <add>, %128, %cst_36 [1] : vector<8x512xf32> to vector<8xf32>
    %130 = vector.shape_cast %129 : vector<8xf32> to vector<8x1xf32>
    %131 = arith.mulf %128, %128 : vector<8x512xf32>
    %cst_37 = arith.constant dense<0.000000e+00> : vector<8xf32>
    %132 = vector.multi_reduction <add>, %131, %cst_37 [1] : vector<8x512xf32> to vector<8xf32>
    %133 = vector.shape_cast %132 : vector<8xf32> to vector<8x1xf32>
    %134 = tpu.concatenate %130, %133 in 1 : vector<8x1xf32>, vector<8x1xf32> -> vector<8x2xf32>
    %c0_38 = arith.constant 0 : index
    %c0_39 = arith.constant 0 : index
    %c0_40 = arith.constant 0 : index
    %c0_41 = arith.constant 0 : index
    %135 = vector.load %arg8[%c0_38, %c0_39, %c0_40, %c0_41] : memref<1x1x8x2xf32, #tpu.memory_space<vmem>>, vector<1x1x8x2xf32>
    %136 = vector.shape_cast %135 : vector<1x1x8x2xf32> to vector<8x2xf32>
    %137 = vector.shape_cast %134 : vector<8x2xf32> to vector<1x1x8x2xf32>
    tpu.vector_store %arg8[%c0_38, %c0_39, %c0_40, %c0_41], %137 {strides = array<i32>} : memref<1x1x8x2xf32, #tpu.memory_space<vmem>>, vector<1x1x8x2xf32>,
    return
  }
  func.func @transform_0(%arg0: i32, %arg1: i32) -> (i32, i32, i32, i32) {
    %c0_i32 = arith.constant 0 : i32
    %c0_i32_0 = arith.constant 0 : i32
    %c0_i32_1 = arith.constant 0 : i32
    %c0_i32_2 = arith.constant 0 : i32
    return %arg0, %c0_i32, %c0_i32_0, %c0_i32_1 : i32, i32, i32, i32
  }
  func.func @transform_1(%arg0: i32, %arg1: i32) -> (i32, i32) {
    %c0_i32 = arith.constant 0 : i32
    %c0_i32_0 = arith.constant 0 : i32
    %c0_i32_1 = arith.constant 0 : i32
    return %c0_i32, %c0_i32_0 : i32, i32
  }
  func.func @transform_2(%arg0: i32, %arg1: i32) -> (i32, i32) {
    %c0_i32 = arith.constant 0 : i32
    %c0_i32_0 = arith.constant 0 : i32
    %c0_i32_1 = arith.constant 0 : i32
    return %c0_i32, %c0_i32_0 : i32, i32
  }
  func.func @transform_3(%arg0: i32, %arg1: i32) -> (i32, i32) {
    %c0_i32 = arith.constant 0 : i32
    %c0_i32_0 = arith.constant 0 : i32
    %c0_i32_1 = arith.constant 0 : i32
    return %c0_i32, %c0_i32_0 : i32, i32
  }
  func.func @transform_4(%arg0: i32, %arg1: i32) -> (i32, i32) {
    %c0_i32 = arith.constant 0 : i32
    %c0_i32_0 = arith.constant 0 : i32
    %c0_i32_1 = arith.constant 0 : i32
    return %c0_i32, %c0_i32_0 : i32, i32
  }
  func.func @transform_5(%arg0: i32, %arg1: i32) -> (i32, i32) {
    %c0_i32 = arith.constant 0 : i32
    %c0_i32_0 = arith.constant 0 : i32
    %c0_i32_1 = arith.constant 0 : i32
    return %c0_i32, %c0_i32_0 : i32, i32
  }
  func.func @transform_6(%arg0: i32, %arg1: i32) -> (i32, i32, i32, i32) {
    %c0_i32 = arith.constant 0 : i32
    %c0_i32_0 = arith.constant 0 : i32
    %c0_i32_1 = arith.constant 0 : i32
    return %arg0, %arg1, %c0_i32, %c0_i32_0 : i32, i32, i32, i32
  }
}

module attributes {stable_mosaic.version = 11 : i64} {
  func.func @_apply_kernel(%arg0: i32, %arg1: i32, %arg2: memref<1x18x35x4xf32, #tpu.memory_space<vmem>>, %arg3: memref<16x4xf32, #tpu.memory_space<vmem>>, %arg4: memref<1x4xf32, #tpu.memory_space<vmem>>, %arg5: memref<8x4xf32, #tpu.memory_space<vmem>>, %arg6: memref<1x4xf32, #tpu.memory_space<vmem>>, %arg7: memref<1x4xf32, #tpu.memory_space<vmem>>, %arg8: memref<8x1xf32, #tpu.memory_space<vmem>>, %arg9: memref<8x1xf32, #tpu.memory_space<vmem>>, %arg10: memref<1x8x512xf32, #tpu.memory_space<vmem>>) attributes {dimension_semantics = [#tpu.dimension_semantics<parallel>, #tpu.dimension_semantics<parallel>], iteration_bounds = array<i64: 2, 2>, scalar_prefetch = 0 : i64, scratch_operands = 0 : i64, tpu.core_type = #tpu.core_type<tc>, window_params = [{transform_indices = @transform_0, window_bounds = array<i64: 1, 18, 35, 4>}, {pipeline_mode = #tpu.pipeline_mode<synchronous>, transform_indices = @transform_1, window_bounds = array<i64: 16, 4>}, {pipeline_mode = #tpu.pipeline_mode<synchronous>, transform_indices = @transform_2, window_bounds = array<i64: 1, 4>}, {pipeline_mode = #tpu.pipeline_mode<synchronous>, transform_indices = @transform_3, window_bounds = array<i64: 8, 4>}, {pipeline_mode = #tpu.pipeline_mode<synchronous>, transform_indices = @transform_4, window_bounds = array<i64: 1, 4>}, {pipeline_mode = #tpu.pipeline_mode<synchronous>, transform_indices = @transform_5, window_bounds = array<i64: 1, 4>}, {pipeline_mode = #tpu.pipeline_mode<synchronous>, transform_indices = @transform_6, window_bounds = array<i64: 8, 1>}, {pipeline_mode = #tpu.pipeline_mode<synchronous>, transform_indices = @transform_7, window_bounds = array<i64: 8, 1>}, {transform_indices = @transform_8, window_bounds = array<i64: 1, 8, 512>}]} {
    %c8_i32 = arith.constant 8 : i32
    %0 = arith.muli %arg1, %c8_i32 : i32
    %1 = tpu.assume_multiple %0, 8 : i32
    %c0_i32 = arith.constant 0 : i32
    %2 = arith.addi %1, %c0_i32 : i32
    %c0 = arith.constant 0 : index
    %3 = arith.index_cast %2 : i32 to index
    %c0_0 = arith.constant 0 : index
    %c0_1 = arith.constant 0 : index
    %4 = vector.load %arg2[%c0, %3, %c0_0, %c0_1] : memref<1x18x35x4xf32, #tpu.memory_space<vmem>>, vector<1x8x35x4xf32>
    %5 = vector.shape_cast %4 : vector<1x8x35x4xf32> to vector<8x35x4xf32>
    %c1_i32 = arith.constant 1 : i32
    %6 = arith.addi %1, %c1_i32 : i32
    %c0_2 = arith.constant 0 : index
    %7 = arith.index_cast %6 : i32 to index
    %c0_3 = arith.constant 0 : index
    %c0_4 = arith.constant 0 : index
    %8 = vector.load %arg2[%c0_2, %7, %c0_3, %c0_4] : memref<1x18x35x4xf32, #tpu.memory_space<vmem>>, vector<1x8x35x4xf32>
    %9 = vector.shape_cast %8 : vector<1x8x35x4xf32> to vector<8x35x4xf32>
    %c2_i32 = arith.constant 2 : i32
    %10 = arith.addi %1, %c2_i32 : i32
    %c0_5 = arith.constant 0 : index
    %11 = arith.index_cast %10 : i32 to index
    %c0_6 = arith.constant 0 : index
    %c0_7 = arith.constant 0 : index
    %12 = vector.load %arg2[%c0_5, %11, %c0_6, %c0_7] : memref<1x18x35x4xf32, #tpu.memory_space<vmem>>, vector<1x8x35x4xf32>
    %13 = vector.shape_cast %12 : vector<1x8x35x4xf32> to vector<8x35x4xf32>
    %cst = arith.constant 0.000000e+00 : f32
    %14 = vector.broadcast %cst : f32 to vector<8x32x4xf32>
    %c0_8 = arith.constant 0 : index
    %c0_9 = arith.constant 0 : index
    %15 = vector.load %arg3[%c0_8, %c0_9] : memref<16x4xf32, #tpu.memory_space<vmem>>, vector<1x4xf32>
    %16 = vector.extract_strided_slice %5 {offsets = [0, 0, 0], sizes = [8, 32, 4], strides = [1, 1, 1]} : vector<8x35x4xf32> to vector<8x32x4xf32>
    %17 = vector.shape_cast %15 : vector<1x4xf32> to vector<1x1x4xf32>
    %18 = vector.broadcast %17 : vector<1x1x4xf32> to vector<8x32x4xf32>
    %19 = arith.mulf %16, %18 : vector<8x32x4xf32>
    %20 = arith.addf %14, %19 : vector<8x32x4xf32>
    %c1 = arith.constant 1 : index
    %c0_10 = arith.constant 0 : index
    %21 = vector.load %arg3[%c1, %c0_10] : memref<16x4xf32, #tpu.memory_space<vmem>>, vector<1x4xf32>
    %22 = vector.extract_strided_slice %5 {offsets = [0, 1, 0], sizes = [8, 32, 4], strides = [1, 1, 1]} : vector<8x35x4xf32> to vector<8x32x4xf32>
    %23 = vector.shape_cast %21 : vector<1x4xf32> to vector<1x1x4xf32>
    %24 = vector.broadcast %23 : vector<1x1x4xf32> to vector<8x32x4xf32>
    %25 = arith.mulf %22, %24 : vector<8x32x4xf32>
    %26 = arith.addf %20, %25 : vector<8x32x4xf32>
    %c2 = arith.constant 2 : index
    %c0_11 = arith.constant 0 : index
    %27 = vector.load %arg3[%c2, %c0_11] : memref<16x4xf32, #tpu.memory_space<vmem>>, vector<1x4xf32>
    %28 = vector.extract_strided_slice %5 {offsets = [0, 2, 0], sizes = [8, 32, 4], strides = [1, 1, 1]} : vector<8x35x4xf32> to vector<8x32x4xf32>
    %29 = vector.shape_cast %27 : vector<1x4xf32> to vector<1x1x4xf32>
    %30 = vector.broadcast %29 : vector<1x1x4xf32> to vector<8x32x4xf32>
    %31 = arith.mulf %28, %30 : vector<8x32x4xf32>
    %32 = arith.addf %26, %31 : vector<8x32x4xf32>
    %c3 = arith.constant 3 : index
    %c0_12 = arith.constant 0 : index
    %33 = vector.load %arg3[%c3, %c0_12] : memref<16x4xf32, #tpu.memory_space<vmem>>, vector<1x4xf32>
    %34 = vector.extract_strided_slice %5 {offsets = [0, 3, 0], sizes = [8, 32, 4], strides = [1, 1, 1]} : vector<8x35x4xf32> to vector<8x32x4xf32>
    %35 = vector.shape_cast %33 : vector<1x4xf32> to vector<1x1x4xf32>
    %36 = vector.broadcast %35 : vector<1x1x4xf32> to vector<8x32x4xf32>
    %37 = arith.mulf %34, %36 : vector<8x32x4xf32>
    %38 = arith.addf %32, %37 : vector<8x32x4xf32>
    %c8 = arith.constant 8 : index
    %c0_13 = arith.constant 0 : index
    %39 = vector.load %arg3[%c8, %c0_13] : memref<16x4xf32, #tpu.memory_space<vmem>>, vector<1x4xf32>
    %40 = vector.extract_strided_slice %9 {offsets = [0, 0, 0], sizes = [8, 32, 4], strides = [1, 1, 1]} : vector<8x35x4xf32> to vector<8x32x4xf32>
    %41 = vector.shape_cast %39 : vector<1x4xf32> to vector<1x1x4xf32>
    %42 = vector.broadcast %41 : vector<1x1x4xf32> to vector<8x32x4xf32>
    %43 = arith.mulf %40, %42 : vector<8x32x4xf32>
    %44 = arith.addf %38, %43 : vector<8x32x4xf32>
    %c9 = arith.constant 9 : index
    %c0_14 = arith.constant 0 : index
    %45 = vector.load %arg3[%c9, %c0_14] : memref<16x4xf32, #tpu.memory_space<vmem>>, vector<1x4xf32>
    %46 = vector.extract_strided_slice %9 {offsets = [0, 1, 0], sizes = [8, 32, 4], strides = [1, 1, 1]} : vector<8x35x4xf32> to vector<8x32x4xf32>
    %47 = vector.shape_cast %45 : vector<1x4xf32> to vector<1x1x4xf32>
    %48 = vector.broadcast %47 : vector<1x1x4xf32> to vector<8x32x4xf32>
    %49 = arith.mulf %46, %48 : vector<8x32x4xf32>
    %50 = arith.addf %44, %49 : vector<8x32x4xf32>
    %c10 = arith.constant 10 : index
    %c0_15 = arith.constant 0 : index
    %51 = vector.load %arg3[%c10, %c0_15] : memref<16x4xf32, #tpu.memory_space<vmem>>, vector<1x4xf32>
    %52 = vector.extract_strided_slice %9 {offsets = [0, 2, 0], sizes = [8, 32, 4], strides = [1, 1, 1]} : vector<8x35x4xf32> to vector<8x32x4xf32>
    %53 = vector.shape_cast %51 : vector<1x4xf32> to vector<1x1x4xf32>
    %54 = vector.broadcast %53 : vector<1x1x4xf32> to vector<8x32x4xf32>
    %55 = arith.mulf %52, %54 : vector<8x32x4xf32>
    %56 = arith.addf %50, %55 : vector<8x32x4xf32>
    %c11 = arith.constant 11 : index
    %c0_16 = arith.constant 0 : index
    %57 = vector.load %arg3[%c11, %c0_16] : memref<16x4xf32, #tpu.memory_space<vmem>>, vector<1x4xf32>
    %58 = vector.extract_strided_slice %9 {offsets = [0, 3, 0], sizes = [8, 32, 4], strides = [1, 1, 1]} : vector<8x35x4xf32> to vector<8x32x4xf32>
    %59 = vector.shape_cast %57 : vector<1x4xf32> to vector<1x1x4xf32>
    %60 = vector.broadcast %59 : vector<1x1x4xf32> to vector<8x32x4xf32>
    %61 = arith.mulf %58, %60 : vector<8x32x4xf32>
    %62 = arith.addf %56, %61 : vector<8x32x4xf32>
    %cst_17 = arith.constant 0.000000e+00 : f32
    %63 = vector.broadcast %cst_17 : f32 to vector<8x32x4xf32>
    %c4 = arith.constant 4 : index
    %c0_18 = arith.constant 0 : index
    %64 = vector.load %arg3[%c4, %c0_18] : memref<16x4xf32, #tpu.memory_space<vmem>>, vector<1x4xf32>
    %65 = vector.extract_strided_slice %9 {offsets = [0, 0, 0], sizes = [8, 32, 4], strides = [1, 1, 1]} : vector<8x35x4xf32> to vector<8x32x4xf32>
    %66 = vector.shape_cast %64 : vector<1x4xf32> to vector<1x1x4xf32>
    %67 = vector.broadcast %66 : vector<1x1x4xf32> to vector<8x32x4xf32>
    %68 = arith.mulf %65, %67 : vector<8x32x4xf32>
    %69 = arith.addf %63, %68 : vector<8x32x4xf32>
    %c5 = arith.constant 5 : index
    %c0_19 = arith.constant 0 : index
    %70 = vector.load %arg3[%c5, %c0_19] : memref<16x4xf32, #tpu.memory_space<vmem>>, vector<1x4xf32>
    %71 = vector.extract_strided_slice %9 {offsets = [0, 1, 0], sizes = [8, 32, 4], strides = [1, 1, 1]} : vector<8x35x4xf32> to vector<8x32x4xf32>
    %72 = vector.shape_cast %70 : vector<1x4xf32> to vector<1x1x4xf32>
    %73 = vector.broadcast %72 : vector<1x1x4xf32> to vector<8x32x4xf32>
    %74 = arith.mulf %71, %73 : vector<8x32x4xf32>
    %75 = arith.addf %69, %74 : vector<8x32x4xf32>
    %c6 = arith.constant 6 : index
    %c0_20 = arith.constant 0 : index
    %76 = vector.load %arg3[%c6, %c0_20] : memref<16x4xf32, #tpu.memory_space<vmem>>, vector<1x4xf32>
    %77 = vector.extract_strided_slice %9 {offsets = [0, 2, 0], sizes = [8, 32, 4], strides = [1, 1, 1]} : vector<8x35x4xf32> to vector<8x32x4xf32>
    %78 = vector.shape_cast %76 : vector<1x4xf32> to vector<1x1x4xf32>
    %79 = vector.broadcast %78 : vector<1x1x4xf32> to vector<8x32x4xf32>
    %80 = arith.mulf %77, %79 : vector<8x32x4xf32>
    %81 = arith.addf %75, %80 : vector<8x32x4xf32>
    %c7 = arith.constant 7 : index
    %c0_21 = arith.constant 0 : index
    %82 = vector.load %arg3[%c7, %c0_21] : memref<16x4xf32, #tpu.memory_space<vmem>>, vector<1x4xf32>
    %83 = vector.extract_strided_slice %9 {offsets = [0, 3, 0], sizes = [8, 32, 4], strides = [1, 1, 1]} : vector<8x35x4xf32> to vector<8x32x4xf32>
    %84 = vector.shape_cast %82 : vector<1x4xf32> to vector<1x1x4xf32>
    %85 = vector.broadcast %84 : vector<1x1x4xf32> to vector<8x32x4xf32>
    %86 = arith.mulf %83, %85 : vector<8x32x4xf32>
    %87 = arith.addf %81, %86 : vector<8x32x4xf32>
    %c12 = arith.constant 12 : index
    %c0_22 = arith.constant 0 : index
    %88 = vector.load %arg3[%c12, %c0_22] : memref<16x4xf32, #tpu.memory_space<vmem>>, vector<1x4xf32>
    %89 = vector.extract_strided_slice %13 {offsets = [0, 0, 0], sizes = [8, 32, 4], strides = [1, 1, 1]} : vector<8x35x4xf32> to vector<8x32x4xf32>
    %90 = vector.shape_cast %88 : vector<1x4xf32> to vector<1x1x4xf32>
    %91 = vector.broadcast %90 : vector<1x1x4xf32> to vector<8x32x4xf32>
    %92 = arith.mulf %89, %91 : vector<8x32x4xf32>
    %93 = arith.addf %87, %92 : vector<8x32x4xf32>
    %c13 = arith.constant 13 : index
    %c0_23 = arith.constant 0 : index
    %94 = vector.load %arg3[%c13, %c0_23] : memref<16x4xf32, #tpu.memory_space<vmem>>, vector<1x4xf32>
    %95 = vector.extract_strided_slice %13 {offsets = [0, 1, 0], sizes = [8, 32, 4], strides = [1, 1, 1]} : vector<8x35x4xf32> to vector<8x32x4xf32>
    %96 = vector.shape_cast %94 : vector<1x4xf32> to vector<1x1x4xf32>
    %97 = vector.broadcast %96 : vector<1x1x4xf32> to vector<8x32x4xf32>
    %98 = arith.mulf %95, %97 : vector<8x32x4xf32>
    %99 = arith.addf %93, %98 : vector<8x32x4xf32>
    %c14 = arith.constant 14 : index
    %c0_24 = arith.constant 0 : index
    %100 = vector.load %arg3[%c14, %c0_24] : memref<16x4xf32, #tpu.memory_space<vmem>>, vector<1x4xf32>
    %101 = vector.extract_strided_slice %13 {offsets = [0, 2, 0], sizes = [8, 32, 4], strides = [1, 1, 1]} : vector<8x35x4xf32> to vector<8x32x4xf32>
    %102 = vector.shape_cast %100 : vector<1x4xf32> to vector<1x1x4xf32>
    %103 = vector.broadcast %102 : vector<1x1x4xf32> to vector<8x32x4xf32>
    %104 = arith.mulf %101, %103 : vector<8x32x4xf32>
    %105 = arith.addf %99, %104 : vector<8x32x4xf32>
    %c15 = arith.constant 15 : index
    %c0_25 = arith.constant 0 : index
    %106 = vector.load %arg3[%c15, %c0_25] : memref<16x4xf32, #tpu.memory_space<vmem>>, vector<1x4xf32>
    %107 = vector.extract_strided_slice %13 {offsets = [0, 3, 0], sizes = [8, 32, 4], strides = [1, 1, 1]} : vector<8x35x4xf32> to vector<8x32x4xf32>
    %108 = vector.shape_cast %106 : vector<1x4xf32> to vector<1x1x4xf32>
    %109 = vector.broadcast %108 : vector<1x1x4xf32> to vector<8x32x4xf32>
    %110 = arith.mulf %107, %109 : vector<8x32x4xf32>
    %111 = arith.addf %105, %110 : vector<8x32x4xf32>
    %112 = vector.shape_cast %62 : vector<8x32x4xf32> to vector<8x1x32x4xf32>
    %113 = vector.shape_cast %111 : vector<8x32x4xf32> to vector<8x1x32x4xf32>
    %114 = tpu.concatenate %112, %113 in 1 : vector<8x1x32x4xf32>, vector<8x1x32x4xf32> -> vector<8x2x32x4xf32>
    %115 = vector.shape_cast %114 : vector<8x2x32x4xf32> to vector<512x4xf32>
    %c0_26 = arith.constant 0 : index
    %c0_27 = arith.constant 0 : index
    %116 = vector.load %arg4[%c0_26, %c0_27] : memref<1x4xf32, #tpu.memory_space<vmem>>, vector<1x4xf32>
    %117 = vector.broadcast %116 : vector<1x4xf32> to vector<512x4xf32>
    %118 = arith.addf %115, %117 : vector<512x4xf32>
    %c0_28 = arith.constant 0 : index
    %c0_29 = arith.constant 0 : index
    %119 = vector.load %arg6[%c0_28, %c0_29] : memref<1x4xf32, #tpu.memory_space<vmem>>, vector<1x4xf32>
    %120 = vector.broadcast %119 : vector<1x4xf32> to vector<512x4xf32>
    %121 = arith.mulf %118, %120 : vector<512x4xf32>
    %c0_30 = arith.constant 0 : index
    %c0_31 = arith.constant 0 : index
    %122 = vector.load %arg7[%c0_30, %c0_31] : memref<1x4xf32, #tpu.memory_space<vmem>>, vector<1x4xf32>
    %123 = vector.broadcast %122 : vector<1x4xf32> to vector<512x4xf32>
    %124 = arith.addf %121, %123 : vector<512x4xf32>
    %cst_32 = arith.constant 0.000000e+00 : f32
    %125 = vector.broadcast %cst_32 : f32 to vector<512x4xf32>
    %126 = arith.maximumf %124, %125 : vector<512x4xf32>
    %c0_33 = arith.constant 0 : index
    %c0_34 = arith.constant 0 : index
    %127 = vector.load %arg5[%c0_33, %c0_34] : memref<8x4xf32, #tpu.memory_space<vmem>>, vector<8x4xf32>
    %cst_35 = arith.constant dense<0.000000e+00> : vector<8x512xf32>
    %128 = tpu.matmul %127, %126, %cst_35 {dimension_numbers = #tpu.dot_dimension_numbers<[1], [1], [0], [0], [0, 0, 1, 0], [], []>} : vector<8x4xf32>, vector<512x4xf32>, vector<8x512xf32> -> vector<8x512xf32>
    %c0_36 = arith.constant 0 : index
    %c0_37 = arith.constant 0 : index
    %129 = vector.load %arg8[%c0_36, %c0_37] : memref<8x1xf32, #tpu.memory_space<vmem>>, vector<8x1xf32>
    %130 = vector.broadcast %129 : vector<8x1xf32> to vector<8x512xf32>
    %131 = arith.mulf %128, %130 : vector<8x512xf32>
    %c0_38 = arith.constant 0 : index
    %c0_39 = arith.constant 0 : index
    %132 = vector.load %arg9[%c0_38, %c0_39] : memref<8x1xf32, #tpu.memory_space<vmem>>, vector<8x1xf32>
    %133 = vector.broadcast %132 : vector<8x1xf32> to vector<8x512xf32>
    %134 = arith.addf %131, %133 : vector<8x512xf32>
    %cst_40 = arith.constant 0.000000e+00 : f32
    %135 = vector.broadcast %cst_40 : f32 to vector<8x512xf32>
    %136 = arith.maximumf %134, %135 : vector<8x512xf32>
    %c0_41 = arith.constant 0 : index
    %c0_42 = arith.constant 0 : index
    %c0_43 = arith.constant 0 : index
    %137 = vector.load %arg10[%c0_41, %c0_42, %c0_43] : memref<1x8x512xf32, #tpu.memory_space<vmem>>, vector<1x8x512xf32>
    %138 = vector.shape_cast %137 : vector<1x8x512xf32> to vector<8x512xf32>
    %139 = vector.shape_cast %136 : vector<8x512xf32> to vector<1x8x512xf32>
    tpu.vector_store %arg10[%c0_41, %c0_42, %c0_43], %139 {strides = array<i32>} : memref<1x8x512xf32, #tpu.memory_space<vmem>>, vector<1x8x512xf32>,
    return
  }
  func.func @transform_0(%arg0: i32, %arg1: i32) -> (i32, i32, i32, i32) {
    %c0_i32 = arith.constant 0 : i32
    %c0_i32_0 = arith.constant 0 : i32
    %c0_i32_1 = arith.constant 0 : i32
    %c0_i32_2 = arith.constant 0 : i32
    return %arg0, %c0_i32, %c0_i32_0, %c0_i32_1 : i32, i32, i32, i32
  }
  func.func @transform_1(%arg0: i32, %arg1: i32) -> (i32, i32) {
    %c0_i32 = arith.constant 0 : i32
    %c0_i32_0 = arith.constant 0 : i32
    %c0_i32_1 = arith.constant 0 : i32
    return %c0_i32, %c0_i32_0 : i32, i32
  }
  func.func @transform_2(%arg0: i32, %arg1: i32) -> (i32, i32) {
    %c0_i32 = arith.constant 0 : i32
    %c0_i32_0 = arith.constant 0 : i32
    %c0_i32_1 = arith.constant 0 : i32
    return %c0_i32, %c0_i32_0 : i32, i32
  }
  func.func @transform_3(%arg0: i32, %arg1: i32) -> (i32, i32) {
    %c0_i32 = arith.constant 0 : i32
    %c0_i32_0 = arith.constant 0 : i32
    %c0_i32_1 = arith.constant 0 : i32
    return %c0_i32, %c0_i32_0 : i32, i32
  }
  func.func @transform_4(%arg0: i32, %arg1: i32) -> (i32, i32) {
    %c0_i32 = arith.constant 0 : i32
    %c0_i32_0 = arith.constant 0 : i32
    %c0_i32_1 = arith.constant 0 : i32
    return %c0_i32, %c0_i32_0 : i32, i32
  }
  func.func @transform_5(%arg0: i32, %arg1: i32) -> (i32, i32) {
    %c0_i32 = arith.constant 0 : i32
    %c0_i32_0 = arith.constant 0 : i32
    %c0_i32_1 = arith.constant 0 : i32
    return %c0_i32, %c0_i32_0 : i32, i32
  }
  func.func @transform_6(%arg0: i32, %arg1: i32) -> (i32, i32) {
    %c0_i32 = arith.constant 0 : i32
    %c0_i32_0 = arith.constant 0 : i32
    %c0_i32_1 = arith.constant 0 : i32
    return %c0_i32, %c0_i32_0 : i32, i32
  }
  func.func @transform_7(%arg0: i32, %arg1: i32) -> (i32, i32) {
    %c0_i32 = arith.constant 0 : i32
    %c0_i32_0 = arith.constant 0 : i32
    %c0_i32_1 = arith.constant 0 : i32
    return %c0_i32, %c0_i32_0 : i32, i32
  }
  func.func @transform_8(%arg0: i32, %arg1: i32) -> (i32, i32, i32) {
    %c0_i32 = arith.constant 0 : i32
    %c0_i32_0 = arith.constant 0 : i32
    return %arg0, %c0_i32, %arg1 : i32, i32, i32
  }
}

</mosaic_0001>

<llo_original>
// kernel: depth_transpose_cnn_forward.3
$region0: #{depth_transpose_cnn_forward.3}
  #allocation0 [shape = 'u32[]', space=smem, size = 0x4, offset = 0x4, fixed_abs, tag = 'smem constant byte address 0x4 - core index']
  #allocation1 [shape = 'u32[144,128]{1,0:T(1,128)}', space=vmem, size = 0x12000, scoped, tag = 'internal scratch']
  %s0 = inlined_call_operand.vmem [shape: f32[2,18,35,4], index: 0, kind: input, shape index: {}]
  %s1 = inlined_call_operand.vmem [shape: f32[16,4], index: 1, kind: input, shape index: {}]
  %s2 = inlined_call_operand.vmem [shape: f32[1,4], index: 2, kind: input, shape index: {}]
  %s3 = inlined_call_operand.vmem [shape: f32[2,2,2,4], index: 3, kind: output, shape index: {}]
  %s4 = sld [smem:[#allocation0]]
  $region45: #{depth_transpose_cnn_forward.3} parent=0
    _
  %s6 = ssub.s32 1, %s4
  %s7 = scalar_select 0, %s6, %s4
  loop: start=0, step=1, limit=6
  $region2: #{depth_transpose_cnn_forward.3} parent=0 // loop_pre_header
    _
  $region3: #{depth_transpose_cnn_forward.3} parent=0 // loop_header
    %s9 = sphi 0, %s13
    %p10 = scmp.ge.s32.totalorder %s9, 6
    %s16 = sphi 0, %s28
    %s17 = sphi 0, %s24
    %s18 = sphi 0, %s16
    %s19 = sphi 0, %s17
    %s20 = sphi 0, %s18
    %s21 = sphi 0, %s19
    %s31 = sphi 0, %s33
    %s34 = sphi 0, %s31
    %s35 = sphi 0, %s34
    %s51 = sphi 0, %s35
    %s55 = sphi 0, %s55
    %s57 = sphi 0, %s55
    %s58 = sphi 0, %s57
    %s72 = sphi 0, %s58
    %s76 = sphi 0, %s76
    %s78 = sphi 0, %s76
    %s79 = sphi 0, %s78
    %s93 = sphi 0, %s79
    %s101 = sphi 0, %s103
    %s104 = sphi 0, %s101
    %s105 = sphi 0, %s104
    %s121 = sphi 0, %s105
  $region4: #{depth_transpose_cnn_forward.3} parent=0 // loop_header_branch
    %12 = sbr.rel (%p10) target = $region8
  $region5: #{depth_transpose_cnn_forward.3} parent=0 // loop_body
    %s14 = ssub.s32 %s9, 1
    %s15 = ssub.s32 %s9, 2
    %s22 = sadd.s32 1, %s17
    %p23 = scmp.ge.s32.totalorder %s22, 2
    %s24 = scalar_select %p23, 0, %s22
    %s25 = sadd.s32 1, %s16
    %s26 = scalar_select %p23, %s25, %s16
    %p27 = scmp.ge.s32.totalorder %s26, 2
    %s28 = scalar_select %p27, 0, %s26
    %s29 = ssub.s32 %s16, %s28
    %p30 = scmp.eq.s32.totalorder %s29, 0
    %s32 = sadd.s32 %s31, 1
    %s33 = scalar_select %p30, %s31, %s32
    %p36 = pneg %p30
    %p37 = scmp.eq.s32.totalorder %s9, 3
    %p38 = por %p36, %p37
    %p39 = scmp.ne.s32.totalorder %s31, %s34
    %p40 = scmp.eq.s32.totalorder %s9, 0
    %p41 = por %p39, %p40
    %p42 = scmp.ne.s32.totalorder %s31, %s34
    %p43 = scmp.eq.s32.totalorder %s14, 3
    %p44 = por %p42, %p43
    %p45 = scmp.ne.s32.totalorder %s34, %s35
    %p46 = scmp.eq.s32.totalorder %s14, 0
    %p47 = por %p45, %p46
    %p48 = scmp.ne.s32.totalorder %s34, %s35
    %p49 = scmp.eq.s32.totalorder %s15, 3
    %p50 = por %p48, %p49
    %p52 = scmp.ne.s32.totalorder %s35, %s51
    %p53 = scmp.eq.s32.totalorder %s15, 0
    %p54 = por %p52, %p53
    %s56 = sadd.s32 %s55, 1
    %p59 = scmp.eq.s32.totalorder %s9, 3
    %p60 = scmp.ne.s32.totalorder %s55, %s57
    %p61 = scmp.eq.s32.totalorder %s9, 0
    %p62 = por %p60, %p61
    %p63 = scmp.ne.s32.totalorder %s55, %s57
    %p64 = scmp.eq.s32.totalorder %s14, 3
    %p65 = por %p63, %p64
    %p66 = scmp.ne.s32.totalorder %s57, %s58
    %p67 = scmp.eq.s32.totalorder %s14, 0
    %p68 = por %p66, %p67
    %p69 = scmp.ne.s32.totalorder %s57, %s58
    %p70 = scmp.eq.s32.totalorder %s15, 3
    %p71 = por %p69, %p70
    %p73 = scmp.ne.s32.totalorder %s58, %s72
    %p74 = scmp.eq.s32.totalorder %s15, 0
    %p75 = por %p73, %p74
    %s77 = sadd.s32 %s76, 1
    %p80 = scmp.eq.s32.totalorder %s9, 3
    %p81 = scmp.ne.s32.totalorder %s76, %s78
    %p82 = scmp.eq.s32.totalorder %s9, 0
    %p83 = por %p81, %p82
    %p84 = scmp.ne.s32.totalorder %s76, %s78
    %p85 = scmp.eq.s32.totalorder %s14, 3
    %p86 = por %p84, %p85
    %p87 = scmp.ne.s32.totalorder %s78, %s79
    %p88 = scmp.eq.s32.totalorder %s14, 0
    %p89 = por %p87, %p88
    %p90 = scmp.ne.s32.totalorder %s78, %s79
    %p91 = scmp.eq.s32.totalorder %s15, 3
    %p92 = por %p90, %p91
    %p94 = scmp.ne.s32.totalorder %s79, %s93
    %p95 = scmp.eq.s32.totalorder %s15, 0
    %p96 = por %p94, %p95
    %s97 = ssub.s32 %s16, %s28
    %s98 = ssub.s32 %s17, %s24
    %s99 = sor.u32 %s97, %s98
    %p100 = scmp.eq.s32.totalorder %s99, 0
    %s102 = sadd.s32 %s101, 1
    %s103 = scalar_select %p100, %s101, %s102
    %p106 = pneg %p100
    %p107 = scmp.eq.s32.totalorder %s9, 3
    %p108 = por %p106, %p107
    %p109 = scmp.ne.s32.totalorder %s101, %s104
    %p110 = scmp.eq.s32.totalorder %s9, 0
    %p111 = por %p109, %p110
    %p112 = scmp.ne.s32.totalorder %s101, %s104
    %p113 = scmp.eq.s32.totalorder %s14, 3
    %p114 = por %p112, %p113
    %p115 = scmp.ne.s32.totalorder %s104, %s105
    %p116 = scmp.eq.s32.totalorder %s14, 0
    %p117 = por %p115, %p116
    %p118 = scmp.ne.s32.totalorder %s104, %s105
    %p119 = scmp.eq.s32.totalorder %s15, 3
    %p120 = por %p118, %p119
    %p122 = scmp.ne.s32.totalorder %s105, %s121
    %p123 = scmp.eq.s32.totalorder %s15, 0
    %p124 = por %p122, %p123
    %p125 = scmp.le.s32.totalorder 1, %s9
    %p126 = scmp.lt.s32.totalorder %s9, 5
    %p127 = pnand %p125, %p126
    %p128 = pneg %p127
    // Predicated region
    $region9: #{depth_transpose_cnn_forward.3} parent=5 // pred_check
      _
    $region10: #{depth_transpose_cnn_forward.3} parent=5 // pred_check_branch
      %130 = sbr.rel (%p127) target = $region12
    $region11: #{depth_transpose_cnn_forward.3} parent=5 // pred_region
      %s131 = ssub.s32 %s9, 1
      // Predicated region
      $region13: #{depth_transpose_cnn_forward.3} parent=11 // pred_check
        %p132 = pneg %p68
      $region14: #{depth_transpose_cnn_forward.3} parent=11 // pred_check_branch
        %134 = sbr.rel (%p132) target = $region16
      $region15: #{depth_transpose_cnn_forward.3} parent=11 // pred_region
        _
      $region16: #{depth_transpose_cnn_forward.3} parent=11 // pred_fallthru
        _
      // Predicated region
      $region17: #{depth_transpose_cnn_forward.3} parent=11 // pred_check
        %p135 = pneg %p89
      $region18: #{depth_transpose_cnn_forward.3} parent=11 // pred_check_branch
        %137 = sbr.rel (%p135) target = $region20
      $region19: #{depth_transpose_cnn_forward.3} parent=11 // pred_region
        _
      $region20: #{depth_transpose_cnn_forward.3} parent=11 // pred_fallthru
        _
    $region12: #{depth_transpose_cnn_forward.3} parent=5 // pred_fallthru
      _
    %p138 = scmp.lt.s32.totalorder %s9, 4
    // Predicated region
    $region21: #{depth_transpose_cnn_forward.3} parent=5 // pred_check
      %p139 = pneg %p138
    $region22: #{depth_transpose_cnn_forward.3} parent=5 // pred_check_branch
      %141 = sbr.rel (%p139) target = $region24
    $region23: #{depth_transpose_cnn_forward.3} parent=5 // pred_region
      // Predicated region
      $region25: #{depth_transpose_cnn_forward.3} parent=23 // pred_check
        %p142 = pneg %p41
      $region26: #{depth_transpose_cnn_forward.3} parent=23 // pred_check_branch
        %144 = sbr.rel (%p142) target = $region28
      $region27: #{depth_transpose_cnn_forward.3} parent=23 // pred_region
        %p145 = scmp.lt.s32.totalorder %s16, 1
        %s146 = scalar_select %p145, %s16, 1
        %s147 = smul.addr %s146, 90
        %s148 = smul.addr %s147, 8
        %s149 = scalar_lea.vmem %s0, %s148
      $region28: #{depth_transpose_cnn_forward.3} parent=23 // pred_fallthru
        _
    $region24: #{depth_transpose_cnn_forward.3} parent=5 // pred_fallthru
      _
    %p150 = scmp.le.s32.totalorder 1, %s9
    %p151 = scmp.lt.s32.totalorder %s9, 5
    %p152 = pnand %p150, %p151
    %p153 = pneg %p152
    // Predicated region
    $region29: #{depth_transpose_cnn_forward.3} parent=5 // pred_check
      _
    $region30: #{depth_transpose_cnn_forward.3} parent=5 // pred_check_branch
      %155 = sbr.rel (%p152) target = $region32
    $region31: #{depth_transpose_cnn_forward.3} parent=5 // pred_region
      %s156 = ssub.s32 %s9, 1
      %p157 = scmp.lt.s32.totalorder %s18, 1
      %s158 = scalar_select %p157, %s18, 1
      %s159 = smul.addr %s158, 90
      %s160 = smul.addr %s159, 8
      %s161 = scalar_lea.vmem %s0, %s160
      %p162 = pneg %p47
      %p163 = pneg %p44
      %p164 = pneg %p68
      %p165 = pneg %p65
      %p166 = pneg %p89
      %p167 = pneg %p86
      %p168 = pneg %p117
      %p169 = pneg %p114
      %p170 = scmp.lt.s32.totalorder %s18, 1
      %s171 = scalar_select %p170, %s18, 1
      %p172 = scmp.lt.s32.totalorder %s19, 1
      %s173 = scalar_select %p172, %s19, 1
      %s174 = smul.addr %s171, 2
      %s175 = sadd.s32 %s173, %s174
      %s176 = smul.addr %s175, 2
      %s177 = scalar_lea.vmem %s3, %s176
      %p178 = scmp.lt.s32.totalorder %s18, 1
      %s179 = scalar_select %p178, %s18, 1
      %s180 = smul.addr %s179, 90
      %s181 = smul.addr %s180, 8
      %s182 = scalar_lea.vmem %s0, %s181
      %p183 = scmp.lt.s32.totalorder %s18, 1
      %s184 = scalar_select %p183, %s18, 1
      %p185 = scmp.lt.s32.totalorder %s19, 1
      %s186 = scalar_select %p185, %s19, 1
      %s187 = smul.addr %s184, 2
      %s188 = sadd.s32 %s186, %s187
      %s189 = smul.addr %s188, 2
      %s190 = scalar_lea.vmem %s3, %s189
      %s191 = smul.u32 %s19, 8
      %s192 = smul.u32 %s191, 40
      %s193 = scalar_lea.vmem %s182, %s192
      %v194 = vld [vmem:[%s193] sm:$0xff]
      %v195 = vld [vmem:[%s193 + $0x8] sm:$0xff]
      %v196 = vld [vmem:[%s193 + $0x10] sm:$0xff]
      %v197 = vld [vmem:[%s193 + $0x18] sm:$0xff]
      %v198 = vld [vmem:[%s193 + $0x20] sm:$0x7]
      %v199 = vld [vmem:[%s193 + $0x28] sm:$0xff]
      %v200 = vld [vmem:[%s193 + $0x30] sm:$0xff]
      %v201 = vld [vmem:[%s193 + $0x38] sm:$0xff]
      %v202 = vld [vmem:[%s193 + $0x40] sm:$0xff]
      %v203 = vld [vmem:[%s193 + $0x48] sm:$0x7]
      %v204 = vld [vmem:[%s193 + $0x50] sm:$0xff]
      %v205 = vld [vmem:[%s193 + $0x58] sm:$0xff]
      %v206 = vld [vmem:[%s193 + $0x60] sm:$0xff]
      %v207 = vld [vmem:[%s193 + $0x68] sm:$0xff]
      %v208 = vld [vmem:[%s193 + $0x70] sm:$0x7]
      %v209 = vld [vmem:[%s193 + $0x78] sm:$0xff]
      %v210 = vld [vmem:[%s193 + $0x80] sm:$0xff]
      %v211 = vld [vmem:[%s193 + $0x88] sm:$0xff]
      %v212 = vld [vmem:[%s193 + $0x90] sm:$0xff]
      %v213 = vld [vmem:[%s193 + $0x98] sm:$0x7]
      %v214 = vld [vmem:[%s193 + $0xa0] sm:$0xff]
      %v215 = vld [vmem:[%s193 + $0xa8] sm:$0xff]
      %v216 = vld [vmem:[%s193 + $0xb0] sm:$0xff]
      %v217 = vld [vmem:[%s193 + $0xb8] sm:$0xff]
      %v218 = vld [vmem:[%s193 + $0xc0] sm:$0x7]
      %v219 = vld [vmem:[%s193 + $0xc8] sm:$0xff]
      %v220 = vld [vmem:[%s193 + $0xd0] sm:$0xff]
      %v221 = vld [vmem:[%s193 + $0xd8] sm:$0xff]
      %v222 = vld [vmem:[%s193 + $0xe0] sm:$0xff]
      %v223 = vld [vmem:[%s193 + $0xe8] sm:$0x7]
      %v224 = vld [vmem:[%s193 + $0xf0] sm:$0xff]
      %v225 = vld [vmem:[%s193 + $0xf8] sm:$0xff]
      %v226 = vld [vmem:[%s193 + $0x100] sm:$0xff]
      %v227 = vld [vmem:[%s193 + $0x108] sm:$0xff]
      %v228 = vld [vmem:[%s193 + $0x110] sm:$0x7]
      %v229 = vld [vmem:[%s193 + $0x118] sm:$0xff]
      %v230 = vld [vmem:[%s193 + $0x120] sm:$0xff]
      %v231 = vld [vmem:[%s193 + $0x128] sm:$0xff]
      %v232 = vld [vmem:[%s193 + $0x130] sm:$0xff]
      %v233 = vld [vmem:[%s193 + $0x138] sm:$0x7]
      %s234 = sadd.s32 %s191, 1
      %s235 = smul.u32 %s234, 40
      %s236 = scalar_lea.vmem %s182, %s235
      %v237 = vld [vmem:[%s236] sm:$0xff]
      %v238 = vld [vmem:[%s236 + $0x8] sm:$0xff]
      %v239 = vld [vmem:[%s236 + $0x10] sm:$0xff]
      %v240 = vld [vmem:[%s236 + $0x18] sm:$0xff]
      %v241 = vld [vmem:[%s236 + $0x20] sm:$0x7]
      %v242 = vld [vmem:[%s236 + $0x28] sm:$0xff]
      %v243 = vld [vmem:[%s236 + $0x30] sm:$0xff]
      %v244 = vld [vmem:[%s236 + $0x38] sm:$0xff]
      %v245 = vld [vmem:[%s236 + $0x40] sm:$0xff]
      %v246 = vld [vmem:[%s236 + $0x48] sm:$0x7]
      %v247 = vld [vmem:[%s236 + $0x50] sm:$0xff]
      %v248 = vld [vmem:[%s236 + $0x58] sm:$0xff]
      %v249 = vld [vmem:[%s236 + $0x60] sm:$0xff]
      %v250 = vld [vmem:[%s236 + $0x68] sm:$0xff]
      %v251 = vld [vmem:[%s236 + $0x70] sm:$0x7]
      %v252 = vld [vmem:[%s236 + $0x78] sm:$0xff]
      %v253 = vld [vmem:[%s236 + $0x80] sm:$0xff]
      %v254 = vld [vmem:[%s236 + $0x88] sm:$0xff]
      %v255 = vld [vmem:[%s236 + $0x90] sm:$0xff]
      %v256 = vld [vmem:[%s236 + $0x98] sm:$0x7]
      %v257 = vld [vmem:[%s236 + $0xa0] sm:$0xff]
      %v258 = vld [vmem:[%s236 + $0xa8] sm:$0xff]
      %v259 = vld [vmem:[%s236 + $0xb0] sm:$0xff]
      %v260 = vld [vmem:[%s236 + $0xb8] sm:$0xff]
      %v261 = vld [vmem:[%s236 + $0xc0] sm:$0x7]
      %v262 = vld [vmem:[%s236 + $0xc8] sm:$0xff]
      %v263 = vld [vmem:[%s236 + $0xd0] sm:$0xff]
      %v264 = vld [vmem:[%s236 + $0xd8] sm:$0xff]
      %v265 = vld [vmem:[%s236 + $0xe0] sm:$0xff]
      %v266 = vld [vmem:[%s236 + $0xe8] sm:$0x7]
      %v267 = vld [vmem:[%s236 + $0xf0] sm:$0xff]
      %v268 = vld [vmem:[%s236 + $0xf8] sm:$0xff]
      %v269 = vld [vmem:[%s236 + $0x100] sm:$0xff]
      %v270 = vld [vmem:[%s236 + $0x108] sm:$0xff]
      %v271 = vld [vmem:[%s236 + $0x110] sm:$0x7]
      %v272 = vld [vmem:[%s236 + $0x118] sm:$0xff]
      %v273 = vld [vmem:[%s236 + $0x120] sm:$0xff]
      %v274 = vld [vmem:[%s236 + $0x128] sm:$0xff]
      %v275 = vld [vmem:[%s236 + $0x130] sm:$0xff]
      %v276 = vld [vmem:[%s236 + $0x138] sm:$0x7]
      %s277 = sadd.s32 %s191, 2
      %s278 = smul.u32 %s277, 40
      %s279 = scalar_lea.vmem %s182, %s278
      %v280 = vld [vmem:[%s279] sm:$0xff]
      %v281 = vld [vmem:[%s279 + $0x8] sm:$0xff]
      %v282 = vld [vmem:[%s279 + $0x10] sm:$0xff]
      %v283 = vld [vmem:[%s279 + $0x18] sm:$0xff]
      %v284 = vld [vmem:[%s279 + $0x20] sm:$0x7]
      %v285 = vld [vmem:[%s279 + $0x28] sm:$0xff]
      %v286 = vld [vmem:[%s279 + $0x30] sm:$0xff]
      %v287 = vld [vmem:[%s279 + $0x38] sm:$0xff]
      %v288 = vld [vmem:[%s279 + $0x40] sm:$0xff]
      %v289 = vld [vmem:[%s279 + $0x48] sm:$0x7]
      %v290 = vld [vmem:[%s279 + $0x50] sm:$0xff]
      %v291 = vld [vmem:[%s279 + $0x58] sm:$0xff]
      %v292 = vld [vmem:[%s279 + $0x60] sm:$0xff]
      %v293 = vld [vmem:[%s279 + $0x68] sm:$0xff]
      %v294 = vld [vmem:[%s279 + $0x70] sm:$0x7]
      %v295 = vld [vmem:[%s279 + $0x78] sm:$0xff]
      %v296 = vld [vmem:[%s279 + $0x80] sm:$0xff]
      %v297 = vld [vmem:[%s279 + $0x88] sm:$0xff]
      %v298 = vld [vmem:[%s279 + $0x90] sm:$0xff]
      %v299 = vld [vmem:[%s279 + $0x98] sm:$0x7]
      %v300 = vld [vmem:[%s279 + $0xa0] sm:$0xff]
      %v301 = vld [vmem:[%s279 + $0xa8] sm:$0xff]
      %v302 = vld [vmem:[%s279 + $0xb0] sm:$0xff]
      %v303 = vld [vmem:[%s279 + $0xb8] sm:$0xff]
      %v304 = vld [vmem:[%s279 + $0xc0] sm:$0x7]
      %v305 = vld [vmem:[%s279 + $0xc8] sm:$0xff]
      %v306 = vld [vmem:[%s279 + $0xd0] sm:$0xff]
      %v307 = vld [vmem:[%s279 + $0xd8] sm:$0xff]
      %v308 = vld [vmem:[%s279 + $0xe0] sm:$0xff]
      %v309 = vld [vmem:[%s279 + $0xe8] sm:$0x7]
      %v310 = vld [vmem:[%s279 + $0xf0] sm:$0xff]
      %v311 = vld [vmem:[%s279 + $0xf8] sm:$0xff]
      %v312 = vld [vmem:[%s279 + $0x100] sm:$0xff]
      %v313 = vld [vmem:[%s279 + $0x108] sm:$0xff]
      %v314 = vld [vmem:[%s279 + $0x110] sm:$0x7]
      %v315 = vld [vmem:[%s279 + $0x118] sm:$0xff]
      %v316 = vld [vmem:[%s279 + $0x120] sm:$0xff]
      %v317 = vld [vmem:[%s279 + $0x128] sm:$0xff]
      %v318 = vld [vmem:[%s279 + $0x130] sm:$0xff]
      %v319 = vld [vmem:[%s279 + $0x138] sm:$0x7]
      %v320 = vld [vmem:[%s1] sm:$0x1]
      %v321 = vlaneseq
      %v322 = vshrl.u32 %v321, 7
      %v323 = vsub.s32 0, %v322
      %v324 = vrot.slane %v320, %v323
      %v325 = vmul.f32 %v194, %v324
      %v326 = vmul.f32 %v195, %v324
      %v327 = vmul.f32 %v196, %v324
      %v328 = vmul.f32 %v197, %v324
      %v329 = vmul.f32 %v199, %v324
      %v330 = vmul.f32 %v200, %v324
      %v331 = vmul.f32 %v201, %v324
      %v332 = vmul.f32 %v202, %v324
      %v333 = vmul.f32 %v204, %v324
      %v334 = vmul.f32 %v205, %v324
      %v335 = vmul.f32 %v206, %v324
      %v336 = vmul.f32 %v207, %v324
      %v337 = vmul.f32 %v209, %v324
      %v338 = vmul.f32 %v210, %v324
      %v339 = vmul.f32 %v211, %v324
      %v340 = vmul.f32 %v212, %v324
      %v341 = vmul.f32 %v214, %v324
      %v342 = vmul.f32 %v215, %v324
      %v343 = vmul.f32 %v216, %v324
      %v344 = vmul.f32 %v217, %v324
      %v345 = vmul.f32 %v219, %v324
      %v346 = vmul.f32 %v220, %v324
      %v347 = vmul.f32 %v221, %v324
      %v348 = vmul.f32 %v222, %v324
      %v349 = vmul.f32 %v224, %v324
      %v350 = vmul.f32 %v225, %v324
      %v351 = vmul.f32 %v226, %v324
      %v352 = vmul.f32 %v227, %v324
      %v353 = vmul.f32 %v229, %v324
      %v354 = vmul.f32 %v230, %v324
      %v355 = vmul.f32 %v231, %v324
      %v356 = vmul.f32 %v232, %v324
      %v357 = vadd.f32 %v325, 0.0
      %v358 = vadd.f32 %v326, 0.0
      %v359 = vadd.f32 %v327, 0.0
      %v360 = vadd.f32 %v328, 0.0
      %v361 = vadd.f32 %v329, 0.0
      %v362 = vadd.f32 %v330, 0.0
      %v363 = vadd.f32 %v331, 0.0
      %v364 = vadd.f32 %v332, 0.0
      %v365 = vadd.f32 %v333, 0.0
      %v366 = vadd.f32 %v334, 0.0
      %v367 = vadd.f32 %v335, 0.0
      %v368 = vadd.f32 %v336, 0.0
      %v369 = vadd.f32 %v337, 0.0
      %v370 = vadd.f32 %v338, 0.0
      %v371 = vadd.f32 %v339, 0.0
      %v372 = vadd.f32 %v340, 0.0
      %v373 = vadd.f32 %v341, 0.0
      %v374 = vadd.f32 %v342, 0.0
      %v375 = vadd.f32 %v343, 0.0
      %v376 = vadd.f32 %v344, 0.0
      %v377 = vadd.f32 %v345, 0.0
      %v378 = vadd.f32 %v346, 0.0
      %v379 = vadd.f32 %v347, 0.0
      %v380 = vadd.f32 %v348, 0.0
      %v381 = vadd.f32 %v349, 0.0
      %v382 = vadd.f32 %v350, 0.0
      %v383 = vadd.f32 %v351, 0.0
      %v384 = vadd.f32 %v352, 0.0
      %v385 = vadd.f32 %v353, 0.0
      %v386 = vadd.f32 %v354, 0.0
      %v387 = vadd.f32 %v355, 0.0
      %v388 = vadd.f32 %v356, 0.0
      %v389 = vld [vmem:[%s1 + $0x1] sm:$0x1]
      %v390 = vlaneseq
      %v391 = vshrl.u32 %v390, 7
      %v392 = vsub.s32 0, %v391
      %v393 = vrot.slane %v389, %v392
      %v394 = vmul.f32 %v194, %v393
      %v395 = vmul.f32 %v195, %v393
      %v396 = vmul.f32 %v196, %v393
      %v397 = vmul.f32 %v197, %v393
      %v398 = vmul.f32 %v198, %v393
      %v399 = vmul.f32 %v199, %v393
      %v400 = vmul.f32 %v200, %v393
      %v401 = vmul.f32 %v201, %v393
      %v402 = vmul.f32 %v202, %v393
      %v403 = vmul.f32 %v203, %v393
      %v404 = vmul.f32 %v204, %v393
      %v405 = vmul.f32 %v205, %v393
      %v406 = vmul.f32 %v206, %v393
      %v407 = vmul.f32 %v207, %v393
      %v408 = vmul.f32 %v208, %v393
      %v409 = vmul.f32 %v209, %v393
      %v410 = vmul.f32 %v210, %v393
      %v411 = vmul.f32 %v211, %v393
      %v412 = vmul.f32 %v212, %v393
      %v413 = vmul.f32 %v213, %v393
      %v414 = vmul.f32 %v214, %v393
      %v415 = vmul.f32 %v215, %v393
      %v416 = vmul.f32 %v216, %v393
      %v417 = vmul.f32 %v217, %v393
      %v418 = vmul.f32 %v218, %v393
      %v419 = vmul.f32 %v219, %v393
      %v420 = vmul.f32 %v220, %v393
      %v421 = vmul.f32 %v221, %v393
      %v422 = vmul.f32 %v222, %v393
      %v423 = vmul.f32 %v223, %v393
      %v424 = vmul.f32 %v224, %v393
      %v425 = vmul.f32 %v225, %v393
      %v426 = vmul.f32 %v226, %v393
      %v427 = vmul.f32 %v227, %v393
      %v428 = vmul.f32 %v228, %v393
      %v429 = vmul.f32 %v229, %v393
      %v430 = vmul.f32 %v230, %v393
      %v431 = vmul.f32 %v231, %v393
      %v432 = vmul.f32 %v232, %v393
      %v433 = vmul.f32 %v233, %v393
      %vm474 = vcmask 1046528
      %v475 = vrot.slane %v394, 1
      %v476 = vrot.slane %v395, 1
      %v477 = vsel %vm474, %v475, %v476
      %v478 = vrot.slane %v396, 1
      %v479 = vsel %vm474, %v476, %v478
      %v480 = vrot.slane %v397, 1
      %v481 = vsel %vm474, %v478, %v480
      %v482 = vrot.slane %v398, 1
      %v483 = vsel %vm474, %v480, %v482
      %v484 = vrot.slane %v399, 1
      %v485 = vrot.slane %v400, 1
      %v486 = vsel %vm474, %v484, %v485
      %v487 = vrot.slane %v401, 1
      %v488 = vsel %vm474, %v485, %v487
      %v489 = vrot.slane %v402, 1
      %v490 = vsel %vm474, %v487, %v489
      %v491 = vrot.slane %v403, 1
      %v492 = vsel %vm474, %v489, %v491
      %v493 = vrot.slane %v404, 1
      %v494 = vrot.slane %v405, 1
      %v495 = vsel %vm474, %v493, %v494
      %v496 = vrot.slane %v406, 1
      %v497 = vsel %vm474, %v494, %v496
      %v498 = vrot.slane %v407, 1
      %v499 = vsel %vm474, %v496, %v498
      %v500 = vrot.slane %v408, 1
      %v501 = vsel %vm474, %v498, %v500
      %v502 = vrot.slane %v409, 1
      %v503 = vrot.slane %v410, 1
      %v504 = vsel %vm474, %v502, %v503
      %v505 = vrot.slane %v411, 1
      %v506 = vsel %vm474, %v503, %v505
      %v507 = vrot.slane %v412, 1
      %v508 = vsel %vm474, %v505, %v507
      %v509 = vrot.slane %v413, 1
      %v510 = vsel %vm474, %v507, %v509
      %v511 = vrot.slane %v414, 1
      %v512 = vrot.slane %v415, 1
      %v513 = vsel %vm474, %v511, %v512
      %v514 = vrot.slane %v416, 1
      %v515 = vsel %vm474, %v512, %v514
      %v516 = vrot.slane %v417, 1
      %v517 = vsel %vm474, %v514, %v516
      %v518 = vrot.slane %v418, 1
      %v519 = vsel %vm474, %v516, %v518
      %v520 = vrot.slane %v419, 1
      %v521 = vrot.slane %v420, 1
      %v522 = vsel %vm474, %v520, %v521
      %v523 = vrot.slane %v421, 1
      %v524 = vsel %vm474, %v521, %v523
      %v525 = vrot.slane %v422, 1
      %v526 = vsel %vm474, %v523, %v525
      %v527 = vrot.slane %v423, 1
      %v528 = vsel %vm474, %v525, %v527
      %v529 = vrot.slane %v424, 1
      %v530 = vrot.slane %v425, 1
      %v531 = vsel %vm474, %v529, %v530
      %v532 = vrot.slane %v426, 1
      %v533 = vsel %vm474, %v530, %v532
      %v534 = vrot.slane %v427, 1
      %v535 = vsel %vm474, %v532, %v534
      %v536 = vrot.slane %v428, 1
      %v537 = vsel %vm474, %v534, %v536
      %v538 = vrot.slane %v429, 1
      %v539 = vrot.slane %v430, 1
      %v540 = vsel %vm474, %v538, %v539
      %v541 = vrot.slane %v431, 1
      %v542 = vsel %vm474, %v539, %v541
      %v543 = vrot.slane %v432, 1
      %v544 = vsel %vm474, %v541, %v543
      %v545 = vrot.slane %v433, 1
      %v546 = vsel %vm474, %v543, %v545
      %v579 = vadd.f32 %v357, %v477
      %v580 = vadd.f32 %v358, %v479
      %v581 = vadd.f32 %v359, %v481
      %v582 = vadd.f32 %v360, %v483
      %v583 = vadd.f32 %v361, %v486
      %v584 = vadd.f32 %v362, %v488
      %v585 = vadd.f32 %v363, %v490
      %v586 = vadd.f32 %v364, %v492
      %v587 = vadd.f32 %v365, %v495
      %v588 = vadd.f32 %v366, %v497
      %v589 = vadd.f32 %v367, %v499
      %v590 = vadd.f32 %v368, %v501
      %v591 = vadd.f32 %v369, %v504
      %v592 = vadd.f32 %v370, %v506
      %v593 = vadd.f32 %v371, %v508
      %v594 = vadd.f32 %v372, %v510
      %v595 = vadd.f32 %v373, %v513
      %v596 = vadd.f32 %v374, %v515
      %v597 = vadd.f32 %v375, %v517
      %v598 = vadd.f32 %v376, %v519
      %v599 = vadd.f32 %v377, %v522
      %v600 = vadd.f32 %v378, %v524
      %v601 = vadd.f32 %v379, %v526
      %v602 = vadd.f32 %v380, %v528
      %v603 = vadd.f32 %v381, %v531
      %v604 = vadd.f32 %v382, %v533
      %v605 = vadd.f32 %v383, %v535
      %v606 = vadd.f32 %v384, %v537
      %v607 = vadd.f32 %v385, %v540
      %v608 = vadd.f32 %v386, %v542
      %v609 = vadd.f32 %v387, %v544
      %v610 = vadd.f32 %v388, %v546
      %v611 = vld [vmem:[%s1 + $0x2] sm:$0x1]
      %v612 = vlaneseq
      %v613 = vshrl.u32 %v612, 7
      %v614 = vsub.s32 0, %v613
      %v615 = vrot.slane %v611, %v614
      %v616 = vmul.f32 %v194, %v615
      %v617 = vmul.f32 %v195, %v615
      %v618 = vmul.f32 %v196, %v615
      %v619 = vmul.f32 %v197, %v615
      %v620 = vmul.f32 %v198, %v615
      %v621 = vmul.f32 %v199, %v615
      %v622 = vmul.f32 %v200, %v615
      %v623 = vmul.f32 %v201, %v615
      %v624 = vmul.f32 %v202, %v615
      %v625 = vmul.f32 %v203, %v615
      %v626 = vmul.f32 %v204, %v615
      %v627 = vmul.f32 %v205, %v615
      %v628 = vmul.f32 %v206, %v615
      %v629 = vmul.f32 %v207, %v615
      %v630 = vmul.f32 %v208, %v615
      %v631 = vmul.f32 %v209, %v615
      %v632 = vmul.f32 %v210, %v615
      %v633 = vmul.f32 %v211, %v615
      %v634 = vmul.f32 %v212, %v615
      %v635 = vmul.f32 %v213, %v615
      %v636 = vmul.f32 %v214, %v615
      %v637 = vmul.f32 %v215, %v615
      %v638 = vmul.f32 %v216, %v615
      %v639 = vmul.f32 %v217, %v615
      %v640 = vmul.f32 %v218, %v615
      %v641 = vmul.f32 %v219, %v615
      %v642 = vmul.f32 %v220, %v615
      %v643 = vmul.f32 %v221, %v615
      %v644 = vmul.f32 %v222, %v615
      %v645 = vmul.f32 %v223, %v615
      %v646 = vmul.f32 %v224, %v615
      %v647 = vmul.f32 %v225, %v615
      %v648 = vmul.f32 %v226, %v615
      %v649 = vmul.f32 %v227, %v615
      %v650 = vmul.f32 %v228, %v615
      %v651 = vmul.f32 %v229, %v615
      %v652 = vmul.f32 %v230, %v615
      %v653 = vmul.f32 %v231, %v615
      %v654 = vmul.f32 %v232, %v615
      %v655 = vmul.f32 %v233, %v615
      %vm696 = vcmask 1045504
      %v697 = vrot.slane %v616, 2
      %v698 = vrot.slane %v617, 2
      %v699 = vsel %vm696, %v697, %v698
      %v700 = vrot.slane %v618, 2
      %v701 = vsel %vm696, %v698, %v700
      %v702 = vrot.slane %v619, 2
      %v703 = vsel %vm696, %v700, %v702
      %v704 = vrot.slane %v620, 2
      %v705 = vsel %vm696, %v702, %v704
      %v706 = vrot.slane %v621, 2
      %v707 = vrot.slane %v622, 2
      %v708 = vsel %vm696, %v706, %v707
      %v709 = vrot.slane %v623, 2
      %v710 = vsel %vm696, %v707, %v709
      %v711 = vrot.slane %v624, 2
      %v712 = vsel %vm696, %v709, %v711
      %v713 = vrot.slane %v625, 2
      %v714 = vsel %vm696, %v711, %v713
      %v715 = vrot.slane %v626, 2
      %v716 = vrot.slane %v627, 2
      %v717 = vsel %vm696, %v715, %v716
      %v718 = vrot.slane %v628, 2
      %v719 = vsel %vm696, %v716, %v718
      %v720 = vrot.slane %v629, 2
      %v721 = vsel %vm696, %v718, %v720
      %v722 = vrot.slane %v630, 2
      %v723 = vsel %vm696, %v720, %v722
      %v724 = vrot.slane %v631, 2
      %v725 = vrot.slane %v632, 2
      %v726 = vsel %vm696, %v724, %v725
      %v727 = vrot.slane %v633, 2
      %v728 = vsel %vm696, %v725, %v727
      %v729 = vrot.slane %v634, 2
      %v730 = vsel %vm696, %v727, %v729
      %v731 = vrot.slane %v635, 2
      %v732 = vsel %vm696, %v729, %v731
      %v733 = vrot.slane %v636, 2
      %v734 = vrot.slane %v637, 2
      %v735 = vsel %vm696, %v733, %v734
      %v736 = vrot.slane %v638, 2
      %v737 = vsel %vm696, %v734, %v736
      %v738 = vrot.slane %v639, 2
      %v739 = vsel %vm696, %v736, %v738
      %v740 = vrot.slane %v640, 2
      %v741 = vsel %vm696, %v738, %v740
      %v742 = vrot.slane %v641, 2
      %v743 = vrot.slane %v642, 2
      %v744 = vsel %vm696, %v742, %v743
      %v745 = vrot.slane %v643, 2
      %v746 = vsel %vm696, %v743, %v745
      %v747 = vrot.slane %v644, 2
      %v748 = vsel %vm696, %v745, %v747
      %v749 = vrot.slane %v645, 2
      %v750 = vsel %vm696, %v747, %v749
      %v751 = vrot.slane %v646, 2
      %v752 = vrot.slane %v647, 2
      %v753 = vsel %vm696, %v751, %v752
      %v754 = vrot.slane %v648, 2
      %v755 = vsel %vm696, %v752, %v754
      %v756 = vrot.slane %v649, 2
      %v757 = vsel %vm696, %v754, %v756
      %v758 = vrot.slane %v650, 2
      %v759 = vsel %vm696, %v756, %v758
      %v760 = vrot.slane %v651, 2
      %v761 = vrot.slane %v652, 2
      %v762 = vsel %vm696, %v760, %v761
      %v763 = vrot.slane %v653, 2
      %v764 = vsel %vm696, %v761, %v763
      %v765 = vrot.slane %v654, 2
      %v766 = vsel %vm696, %v763, %v765
      %v767 = vrot.slane %v655, 2
      %v768 = vsel %vm696, %v765, %v767
      %v801 = vadd.f32 %v579, %v699
      %v802 = vadd.f32 %v580, %v701
      %v803 = vadd.f32 %v581, %v703
      %v804 = vadd.f32 %v582, %v705
      %v805 = vadd.f32 %v583, %v708
      %v806 = vadd.f32 %v584, %v710
      %v807 = vadd.f32 %v585, %v712
      %v808 = vadd.f32 %v586, %v714
      %v809 = vadd.f32 %v587, %v717
      %v810 = vadd.f32 %v588, %v719
      %v811 = vadd.f32 %v589, %v721
      %v812 = vadd.f32 %v590, %v723
      %v813 = vadd.f32 %v591, %v726
      %v814 = vadd.f32 %v592, %v728
      %v815 = vadd.f32 %v593, %v730
      %v816 = vadd.f32 %v594, %v732
      %v817 = vadd.f32 %v595, %v735
      %v818 = vadd.f32 %v596, %v737
      %v819 = vadd.f32 %v597, %v739
      %v820 = vadd.f32 %v598, %v741
      %v821 = vadd.f32 %v599, %v744
      %v822 = vadd.f32 %v600, %v746
      %v823 = vadd.f32 %v601, %v748
      %v824 = vadd.f32 %v602, %v750
      %v825 = vadd.f32 %v603, %v753
      %v826 = vadd.f32 %v604, %v755
      %v827 = vadd.f32 %v605, %v757
      %v828 = vadd.f32 %v606, %v759
      %v829 = vadd.f32 %v607, %v762
      %v830 = vadd.f32 %v608, %v764
      %v831 = vadd.f32 %v609, %v766
      %v832 = vadd.f32 %v610, %v768
      %v833 = vld [vmem:[%s1 + $0x3] sm:$0x1]
      %v834 = vlaneseq
      %v835 = vshrl.u32 %v834, 7
      %v836 = vsub.s32 0, %v835
      %v837 = vrot.slane %v833, %v836
      %v838 = vmul.f32 %v194, %v837
      %v839 = vmul.f32 %v195, %v837
      %v840 = vmul.f32 %v196, %v837
      %v841 = vmul.f32 %v197, %v837
      %v842 = vmul.f32 %v198, %v837
      %v843 = vmul.f32 %v199, %v837
      %v844 = vmul.f32 %v200, %v837
      %v845 = vmul.f32 %v201, %v837
      %v846 = vmul.f32 %v202, %v837
      %v847 = vmul.f32 %v203, %v837
      %v848 = vmul.f32 %v204, %v837
      %v849 = vmul.f32 %v205, %v837
      %v850 = vmul.f32 %v206, %v837
      %v851 = vmul.f32 %v207, %v837
      %v852 = vmul.f32 %v208, %v837
      %v853 = vmul.f32 %v209, %v837
      %v854 = vmul.f32 %v210, %v837
      %v855 = vmul.f32 %v211, %v837
      %v856 = vmul.f32 %v212, %v837
      %v857 = vmul.f32 %v213, %v837
      %v858 = vmul.f32 %v214, %v837
      %v859 = vmul.f32 %v215, %v837
      %v860 = vmul.f32 %v216, %v837
      %v861 = vmul.f32 %v217, %v837
      %v862 = vmul.f32 %v218, %v837
      %v863 = vmul.f32 %v219, %v837
      %v864 = vmul.f32 %v220, %v837
      %v865 = vmul.f32 %v221, %v837
      %v866 = vmul.f32 %v222, %v837
      %v867 = vmul.f32 %v223, %v837
      %v868 = vmul.f32 %v224, %v837
      %v869 = vmul.f32 %v225, %v837
      %v870 = vmul.f32 %v226, %v837
      %v871 = vmul.f32 %v227, %v837
      %v872 = vmul.f32 %v228, %v837
      %v873 = vmul.f32 %v229, %v837
      %v874 = vmul.f32 %v230, %v837
      %v875 = vmul.f32 %v231, %v837
      %v876 = vmul.f32 %v232, %v837
      %v877 = vmul.f32 %v233, %v837
      %vm918 = vcmask 1044480
      %v919 = vrot.slane %v838, 3
      %v920 = vrot.slane %v839, 3
      %v921 = vsel %vm918, %v919, %v920
      %v922 = vrot.slane %v840, 3
      %v923 = vsel %vm918, %v920, %v922
      %v924 = vrot.slane %v841, 3
      %v925 = vsel %vm918, %v922, %v924
      %v926 = vrot.slane %v842, 3
      %v927 = vsel %vm918, %v924, %v926
      %v928 = vrot.slane %v843, 3
      %v929 = vrot.slane %v844, 3
      %v930 = vsel %vm918, %v928, %v929
      %v931 = vrot.slane %v845, 3
      %v932 = vsel %vm918, %v929, %v931
      %v933 = vrot.slane %v846, 3
      %v934 = vsel %vm918, %v931, %v933
      %v935 = vrot.slane %v847, 3
      %v936 = vsel %vm918, %v933, %v935
      %v937 = vrot.slane %v848, 3
      %v938 = vrot.slane %v849, 3
      %v939 = vsel %vm918, %v937, %v938
      %v940 = vrot.slane %v850, 3
      %v941 = vsel %vm918, %v938, %v940
      %v942 = vrot.slane %v851, 3
      %v943 = vsel %vm918, %v940, %v942
      %v944 = vrot.slane %v852, 3
      %v945 = vsel %vm918, %v942, %v944
      %v946 = vrot.slane %v853, 3
      %v947 = vrot.slane %v854, 3
      %v948 = vsel %vm918, %v946, %v947
      %v949 = vrot.slane %v855, 3
      %v950 = vsel %vm918, %v947, %v949
      %v951 = vrot.slane %v856, 3
      %v952 = vsel %vm918, %v949, %v951
      %v953 = vrot.slane %v857, 3
      %v954 = vsel %vm918, %v951, %v953
      %v955 = vrot.slane %v858, 3
      %v956 = vrot.slane %v859, 3
      %v957 = vsel %vm918, %v955, %v956
      %v958 = vrot.slane %v860, 3
      %v959 = vsel %vm918, %v956, %v958
      %v960 = vrot.slane %v861, 3
      %v961 = vsel %vm918, %v958, %v960
      %v962 = vrot.slane %v862, 3
      %v963 = vsel %vm918, %v960, %v962
      %v964 = vrot.slane %v863, 3
      %v965 = vrot.slane %v864, 3
      %v966 = vsel %vm918, %v964, %v965
      %v967 = vrot.slane %v865, 3
      %v968 = vsel %vm918, %v965, %v967
      %v969 = vrot.slane %v866, 3
      %v970 = vsel %vm918, %v967, %v969
      %v971 = vrot.slane %v867, 3
      %v972 = vsel %vm918, %v969, %v971
      %v973 = vrot.slane %v868, 3
      %v974 = vrot.slane %v869, 3
      %v975 = vsel %vm918, %v973, %v974
      %v976 = vrot.slane %v870, 3
      %v977 = vsel %vm918, %v974, %v976
      %v978 = vrot.slane %v871, 3
      %v979 = vsel %vm918, %v976, %v978
      %v980 = vrot.slane %v872, 3
      %v981 = vsel %vm918, %v978, %v980
      %v982 = vrot.slane %v873, 3
      %v983 = vrot.slane %v874, 3
      %v984 = vsel %vm918, %v982, %v983
      %v985 = vrot.slane %v875, 3
      %v986 = vsel %vm918, %v983, %v985
      %v987 = vrot.slane %v876, 3
      %v988 = vsel %vm918, %v985, %v987
      %v989 = vrot.slane %v877, 3
      %v990 = vsel %vm918, %v987, %v989
      %v1023 = vadd.f32 %v801, %v921
      %v1024 = vadd.f32 %v802, %v923
      %v1025 = vadd.f32 %v803, %v925
      %v1026 = vadd.f32 %v804, %v927
      %v1027 = vadd.f32 %v805, %v930
      %v1028 = vadd.f32 %v806, %v932
      %v1029 = vadd.f32 %v807, %v934
      %v1030 = vadd.f32 %v808, %v936
      %v1031 = vadd.f32 %v809, %v939
      %v1032 = vadd.f32 %v810, %v941
      %v1033 = vadd.f32 %v811, %v943
      %v1034 = vadd.f32 %v812, %v945
      %v1035 = vadd.f32 %v813, %v948
      %v1036 = vadd.f32 %v814, %v950
      %v1037 = vadd.f32 %v815, %v952
      %v1038 = vadd.f32 %v816, %v954
      %v1039 = vadd.f32 %v817, %v957
      %v1040 = vadd.f32 %v818, %v959
      %v1041 = vadd.f32 %v819, %v961
      %v1042 = vadd.f32 %v820, %v963
      %v1043 = vadd.f32 %v821, %v966
      %v1044 = vadd.f32 %v822, %v968
      %v1045 = vadd.f32 %v823, %v970
      %v1046 = vadd.f32 %v824, %v972
      %v1047 = vadd.f32 %v825, %v975
      %v1048 = vadd.f32 %v826, %v977
      %v1049 = vadd.f32 %v827, %v979
      %v1050 = vadd.f32 %v828, %v981
      %v1051 = vadd.f32 %v829, %v984
      %v1052 = vadd.f32 %v830, %v986
      %v1053 = vadd.f32 %v831, %v988
      %v1054 = vadd.f32 %v832, %v990
      %v1055 = vld [vmem:[%s1 + $0x8] sm:$0x1]
      %v1056 = vlaneseq
      %v1057 = vshrl.u32 %v1056, 7
      %v1058 = vsub.s32 0, %v1057
      %v1059 = vrot.slane %v1055, %v1058
      %v1060 = vmul.f32 %v237, %v1059
      %v1061 = vmul.f32 %v238, %v1059
      %v1062 = vmul.f32 %v239, %v1059
      %v1063 = vmul.f32 %v240, %v1059
      %v1064 = vmul.f32 %v242, %v1059
      %v1065 = vmul.f32 %v243, %v1059
      %v1066 = vmul.f32 %v244, %v1059
      %v1067 = vmul.f32 %v245, %v1059
      %v1068 = vmul.f32 %v247, %v1059
      %v1069 = vmul.f32 %v248, %v1059
      %v1070 = vmul.f32 %v249, %v1059
      %v1071 = vmul.f32 %v250, %v1059
      %v1072 = vmul.f32 %v252, %v1059
      %v1073 = vmul.f32 %v253, %v1059
      %v1074 = vmul.f32 %v254, %v1059
      %v1075 = vmul.f32 %v255, %v1059
      %v1076 = vmul.f32 %v257, %v1059
      %v1077 = vmul.f32 %v258, %v1059
      %v1078 = vmul.f32 %v259, %v1059
      %v1079 = vmul.f32 %v260, %v1059
      %v1080 = vmul.f32 %v262, %v1059
      %v1081 = vmul.f32 %v263, %v1059
      %v1082 = vmul.f32 %v264, %v1059
      %v1083 = vmul.f32 %v265, %v1059
      %v1084 = vmul.f32 %v267, %v1059
      %v1085 = vmul.f32 %v268, %v1059
      %v1086 = vmul.f32 %v269, %v1059
      %v1087 = vmul.f32 %v270, %v1059
      %v1088 = vmul.f32 %v272, %v1059
      %v1089 = vmul.f32 %v273, %v1059
      %v1090 = vmul.f32 %v274, %v1059
      %v1091 = vmul.f32 %v275, %v1059
      %v1092 = vadd.f32 %v1023, %v1060
      %v1093 = vadd.f32 %v1024, %v1061
      %v1094 = vadd.f32 %v1025, %v1062
      %v1095 = vadd.f32 %v1026, %v1063
      %v1096 = vadd.f32 %v1027, %v1064
      %v1097 = vadd.f32 %v1028, %v1065
      %v1098 = vadd.f32 %v1029, %v1066
      %v1099 = vadd.f32 %v1030, %v1067
      %v1100 = vadd.f32 %v1031, %v1068
      %v1101 = vadd.f32 %v1032, %v1069
      %v1102 = vadd.f32 %v1033, %v1070
      %v1103 = vadd.f32 %v1034, %v1071
      %v1104 = vadd.f32 %v1035, %v1072
      %v1105 = vadd.f32 %v1036, %v1073
      %v1106 = vadd.f32 %v1037, %v1074
      %v1107 = vadd.f32 %v1038, %v1075
      %v1108 = vadd.f32 %v1039, %v1076
      %v1109 = vadd.f32 %v1040, %v1077
      %v1110 = vadd.f32 %v1041, %v1078
      %v1111 = vadd.f32 %v1042, %v1079
      %v1112 = vadd.f32 %v1043, %v1080
      %v1113 = vadd.f32 %v1044, %v1081
      %v1114 = vadd.f32 %v1045, %v1082
      %v1115 = vadd.f32 %v1046, %v1083
      %v1116 = vadd.f32 %v1047, %v1084
      %v1117 = vadd.f32 %v1048, %v1085
      %v1118 = vadd.f32 %v1049, %v1086
      %v1119 = vadd.f32 %v1050, %v1087
      %v1120 = vadd.f32 %v1051, %v1088
      %v1121 = vadd.f32 %v1052, %v1089
      %v1122 = vadd.f32 %v1053, %v1090
      %v1123 = vadd.f32 %v1054, %v1091
      %v1124 = vld [vmem:[%s1 + $0x9] sm:$0x1]
      %v1125 = vlaneseq
      %v1126 = vshrl.u32 %v1125, 7
      %v1127 = vsub.s32 0, %v1126
      %v1128 = vrot.slane %v1124, %v1127
      %v1129 = vmul.f32 %v237, %v1128
      %v1130 = vmul.f32 %v238, %v1128
      %v1131 = vmul.f32 %v239, %v1128
      %v1132 = vmul.f32 %v240, %v1128
      %v1133 = vmul.f32 %v241, %v1128
      %v1134 = vmul.f32 %v242, %v1128
      %v1135 = vmul.f32 %v243, %v1128
      %v1136 = vmul.f32 %v244, %v1128
      %v1137 = vmul.f32 %v245, %v1128
      %v1138 = vmul.f32 %v246, %v1128
      %v1139 = vmul.f32 %v247, %v1128
      %v1140 = vmul.f32 %v248, %v1128
      %v1141 = vmul.f32 %v249, %v1128
      %v1142 = vmul.f32 %v250, %v1128
      %v1143 = vmul.f32 %v251, %v1128
      %v1144 = vmul.f32 %v252, %v1128
      %v1145 = vmul.f32 %v253, %v1128
      %v1146 = vmul.f32 %v254, %v1128
      %v1147 = vmul.f32 %v255, %v1128
      %v1148 = vmul.f32 %v256, %v1128
      %v1149 = vmul.f32 %v257, %v1128
      %v1150 = vmul.f32 %v258, %v1128
      %v1151 = vmul.f32 %v259, %v1128
      %v1152 = vmul.f32 %v260, %v1128
      %v1153 = vmul.f32 %v261, %v1128
      %v1154 = vmul.f32 %v262, %v1128
      %v1155 = vmul.f32 %v263, %v1128
      %v1156 = vmul.f32 %v264, %v1128
      %v1157 = vmul.f32 %v265, %v1128
      %v1158 = vmul.f32 %v266, %v1128
      %v1159 = vmul.f32 %v267, %v1128
      %v1160 = vmul.f32 %v268, %v1128
      %v1161 = vmul.f32 %v269, %v1128
      %v1162 = vmul.f32 %v270, %v1128
      %v1163 = vmul.f32 %v271, %v1128
      %v1164 = vmul.f32 %v272, %v1128
      %v1165 = vmul.f32 %v273, %v1128
      %v1166 = vmul.f32 %v274, %v1128
      %v1167 = vmul.f32 %v275, %v1128
      %v1168 = vmul.f32 %v276, %v1128
      %v1209 = vrot.slane %v1129, 1
      %v1210 = vrot.slane %v1130, 1
      %v1211 = vsel %vm474, %v1209, %v1210
      %v1212 = vrot.slane %v1131, 1
      %v1213 = vsel %vm474, %v1210, %v1212
      %v1214 = vrot.slane %v1132, 1
      %v1215 = vsel %vm474, %v1212, %v1214
      %v1216 = vrot.slane %v1133, 1
      %v1217 = vsel %vm474, %v1214, %v1216
      %v1218 = vrot.slane %v1134, 1
      %v1219 = vrot.slane %v1135, 1
      %v1220 = vsel %vm474, %v1218, %v1219
      %v1221 = vrot.slane %v1136, 1
      %v1222 = vsel %vm474, %v1219, %v1221
      %v1223 = vrot.slane %v1137, 1
      %v1224 = vsel %vm474, %v1221, %v1223
      %v1225 = vrot.slane %v1138, 1
      %v1226 = vsel %vm474, %v1223, %v1225
      %v1227 = vrot.slane %v1139, 1
      %v1228 = vrot.slane %v1140, 1
      %v1229 = vsel %vm474, %v1227, %v1228
      %v1230 = vrot.slane %v1141, 1
      %v1231 = vsel %vm474, %v1228, %v1230
      %v1232 = vrot.slane %v1142, 1
      %v1233 = vsel %vm474, %v1230, %v1232
      %v1234 = vrot.slane %v1143, 1
      %v1235 = vsel %vm474, %v1232, %v1234
      %v1236 = vrot.slane %v1144, 1
      %v1237 = vrot.slane %v1145, 1
      %v1238 = vsel %vm474, %v1236, %v1237
      %v1239 = vrot.slane %v1146, 1
      %v1240 = vsel %vm474, %v1237, %v1239
      %v1241 = vrot.slane %v1147, 1
      %v1242 = vsel %vm474, %v1239, %v1241
      %v1243 = vrot.slane %v1148, 1
      %v1244 = vsel %vm474, %v1241, %v1243
      %v1245 = vrot.slane %v1149, 1
      %v1246 = vrot.slane %v1150, 1
      %v1247 = vsel %vm474, %v1245, %v1246
      %v1248 = vrot.slane %v1151, 1
      %v1249 = vsel %vm474, %v1246, %v1248
      %v1250 = vrot.slane %v1152, 1
      %v1251 = vsel %vm474, %v1248, %v1250
      %v1252 = vrot.slane %v1153, 1
      %v1253 = vsel %vm474, %v1250, %v1252
      %v1254 = vrot.slane %v1154, 1
      %v1255 = vrot.slane %v1155, 1
      %v1256 = vsel %vm474, %v1254, %v1255
      %v1257 = vrot.slane %v1156, 1
      %v1258 = vsel %vm474, %v1255, %v1257
      %v1259 = vrot.slane %v1157, 1
      %v1260 = vsel %vm474, %v1257, %v1259
      %v1261 = vrot.slane %v1158, 1
      %v1262 = vsel %vm474, %v1259, %v1261
      %v1263 = vrot.slane %v1159, 1
      %v1264 = vrot.slane %v1160, 1
      %v1265 = vsel %vm474, %v1263, %v1264
      %v1266 = vrot.slane %v1161, 1
      %v1267 = vsel %vm474, %v1264, %v1266
      %v1268 = vrot.slane %v1162, 1
      %v1269 = vsel %vm474, %v1266, %v1268
      %v1270 = vrot.slane %v1163, 1
      %v1271 = vsel %vm474, %v1268, %v1270
      %v1272 = vrot.slane %v1164, 1
      %v1273 = vrot.slane %v1165, 1
      %v1274 = vsel %vm474, %v1272, %v1273
      %v1275 = vrot.slane %v1166, 1
      %v1276 = vsel %vm474, %v1273, %v1275
      %v1277 = vrot.slane %v1167, 1
      %v1278 = vsel %vm474, %v1275, %v1277
      %v1279 = vrot.slane %v1168, 1
      %v1280 = vsel %vm474, %v1277, %v1279
      %v1313 = vadd.f32 %v1092, %v1211
      %v1314 = vadd.f32 %v1093, %v1213
      %v1315 = vadd.f32 %v1094, %v1215
      %v1316 = vadd.f32 %v1095, %v1217
      %v1317 = vadd.f32 %v1096, %v1220
      %v1318 = vadd.f32 %v1097, %v1222
      %v1319 = vadd.f32 %v1098, %v1224
      %v1320 = vadd.f32 %v1099, %v1226
      %v1321 = vadd.f32 %v1100, %v1229
      %v1322 = vadd.f32 %v1101, %v1231
      %v1323 = vadd.f32 %v1102, %v1233
      %v1324 = vadd.f32 %v1103, %v1235
      %v1325 = vadd.f32 %v1104, %v1238
      %v1326 = vadd.f32 %v1105, %v1240
      %v1327 = vadd.f32 %v1106, %v1242
      %v1328 = vadd.f32 %v1107, %v1244
      %v1329 = vadd.f32 %v1108, %v1247
      %v1330 = vadd.f32 %v1109, %v1249
      %v1331 = vadd.f32 %v1110, %v1251
      %v1332 = vadd.f32 %v1111, %v1253
      %v1333 = vadd.f32 %v1112, %v1256
      %v1334 = vadd.f32 %v1113, %v1258
      %v1335 = vadd.f32 %v1114, %v1260
      %v1336 = vadd.f32 %v1115, %v1262
      %v1337 = vadd.f32 %v1116, %v1265
      %v1338 = vadd.f32 %v1117, %v1267
      %v1339 = vadd.f32 %v1118, %v1269
      %v1340 = vadd.f32 %v1119, %v1271
      %v1341 = vadd.f32 %v1120, %v1274
      %v1342 = vadd.f32 %v1121, %v1276
      %v1343 = vadd.f32 %v1122, %v1278
      %v1344 = vadd.f32 %v1123, %v1280
      %v1345 = vld [vmem:[%s1 + $0xa] sm:$0x1]
      %v1346 = vlaneseq
      %v1347 = vshrl.u32 %v1346, 7
      %v1348 = vsub.s32 0, %v1347
      %v1349 = vrot.slane %v1345, %v1348
      %v1350 = vmul.f32 %v237, %v1349
      %v1351 = vmul.f32 %v238, %v1349
      %v1352 = vmul.f32 %v239, %v1349
      %v1353 = vmul.f32 %v240, %v1349
      %v1354 = vmul.f32 %v241, %v1349
      %v1355 = vmul.f32 %v242, %v1349
      %v1356 = vmul.f32 %v243, %v1349
      %v1357 = vmul.f32 %v244, %v1349
      %v1358 = vmul.f32 %v245, %v1349
      %v1359 = vmul.f32 %v246, %v1349
      %v1360 = vmul.f32 %v247, %v1349
      %v1361 = vmul.f32 %v248, %v1349
      %v1362 = vmul.f32 %v249, %v1349
      %v1363 = vmul.f32 %v250, %v1349
      %v1364 = vmul.f32 %v251, %v1349
      %v1365 = vmul.f32 %v252, %v1349
      %v1366 = vmul.f32 %v253, %v1349
      %v1367 = vmul.f32 %v254, %v1349
      %v1368 = vmul.f32 %v255, %v1349
      %v1369 = vmul.f32 %v256, %v1349
      %v1370 = vmul.f32 %v257, %v1349
      %v1371 = vmul.f32 %v258, %v1349
      %v1372 = vmul.f32 %v259, %v1349
      %v1373 = vmul.f32 %v260, %v1349
      %v1374 = vmul.f32 %v261, %v1349
      %v1375 = vmul.f32 %v262, %v1349
      %v1376 = vmul.f32 %v263, %v1349
      %v1377 = vmul.f32 %v264, %v1349
      %v1378 = vmul.f32 %v265, %v1349
      %v1379 = vmul.f32 %v266, %v1349
      %v1380 = vmul.f32 %v267, %v1349
      %v1381 = vmul.f32 %v268, %v1349
      %v1382 = vmul.f32 %v269, %v1349
      %v1383 = vmul.f32 %v270, %v1349
      %v1384 = vmul.f32 %v271, %v1349
      %v1385 = vmul.f32 %v272, %v1349
      %v1386 = vmul.f32 %v273, %v1349
      %v1387 = vmul.f32 %v274, %v1349
      %v1388 = vmul.f32 %v275, %v1349
      %v1389 = vmul.f32 %v276, %v1349
      %v1430 = vrot.slane %v1350, 2
      %v1431 = vrot.slane %v1351, 2
      %v1432 = vsel %vm696, %v1430, %v1431
      %v1433 = vrot.slane %v1352, 2
      %v1434 = vsel %vm696, %v1431, %v1433
      %v1435 = vrot.slane %v1353, 2
      %v1436 = vsel %vm696, %v1433, %v1435
      %v1437 = vrot.slane %v1354, 2
      %v1438 = vsel %vm696, %v1435, %v1437
      %v1439 = vrot.slane %v1355, 2
      %v1440 = vrot.slane %v1356, 2
      %v1441 = vsel %vm696, %v1439, %v1440
      %v1442 = vrot.slane %v1357, 2
      %v1443 = vsel %vm696, %v1440, %v1442
      %v1444 = vrot.slane %v1358, 2
      %v1445 = vsel %vm696, %v1442, %v1444
      %v1446 = vrot.slane %v1359, 2
      %v1447 = vsel %vm696, %v1444, %v1446
      %v1448 = vrot.slane %v1360, 2
      %v1449 = vrot.slane %v1361, 2
      %v1450 = vsel %vm696, %v1448, %v1449
      %v1451 = vrot.slane %v1362, 2
      %v1452 = vsel %vm696, %v1449, %v1451
      %v1453 = vrot.slane %v1363, 2
      %v1454 = vsel %vm696, %v1451, %v1453
      %v1455 = vrot.slane %v1364, 2
      %v1456 = vsel %vm696, %v1453, %v1455
      %v1457 = vrot.slane %v1365, 2
      %v1458 = vrot.slane %v1366, 2
      %v1459 = vsel %vm696, %v1457, %v1458
      %v1460 = vrot.slane %v1367, 2
      %v1461 = vsel %vm696, %v1458, %v1460
      %v1462 = vrot.slane %v1368, 2
      %v1463 = vsel %vm696, %v1460, %v1462
      %v1464 = vrot.slane %v1369, 2
      %v1465 = vsel %vm696, %v1462, %v1464
      %v1466 = vrot.slane %v1370, 2
      %v1467 = vrot.slane %v1371, 2
      %v1468 = vsel %vm696, %v1466, %v1467
      %v1469 = vrot.slane %v1372, 2
      %v1470 = vsel %vm696, %v1467, %v1469
      %v1471 = vrot.slane %v1373, 2
      %v1472 = vsel %vm696, %v1469, %v1471
      %v1473 = vrot.slane %v1374, 2
      %v1474 = vsel %vm696, %v1471, %v1473
      %v1475 = vrot.slane %v1375, 2
      %v1476 = vrot.slane %v1376, 2
      %v1477 = vsel %vm696, %v1475, %v1476
      %v1478 = vrot.slane %v1377, 2
      %v1479 = vsel %vm696, %v1476, %v1478
      %v1480 = vrot.slane %v1378, 2
      %v1481 = vsel %vm696, %v1478, %v1480
      %v1482 = vrot.slane %v1379, 2
      %v1483 = vsel %vm696, %v1480, %v1482
      %v1484 = vrot.slane %v1380, 2
      %v1485 = vrot.slane %v1381, 2
      %v1486 = vsel %vm696, %v1484, %v1485
      %v1487 = vrot.slane %v1382, 2
      %v1488 = vsel %vm696, %v1485, %v1487
      %v1489 = vrot.slane %v1383, 2
      %v1490 = vsel %vm696, %v1487, %v1489
      %v1491 = vrot.slane %v1384, 2
      %v1492 = vsel %vm696, %v1489, %v1491
      %v1493 = vrot.slane %v1385, 2
      %v1494 = vrot.slane %v1386, 2
      %v1495 = vsel %vm696, %v1493, %v1494
      %v1496 = vrot.slane %v1387, 2
      %v1497 = vsel %vm696, %v1494, %v1496
      %v1498 = vrot.slane %v1388, 2
      %v1499 = vsel %vm696, %v1496, %v1498
      %v1500 = vrot.slane %v1389, 2
      %v1501 = vsel %vm696, %v1498, %v1500
      %v1534 = vadd.f32 %v1313, %v1432
      %v1535 = vadd.f32 %v1314, %v1434
      %v1536 = vadd.f32 %v1315, %v1436
      %v1537 = vadd.f32 %v1316, %v1438
      %v1538 = vadd.f32 %v1317, %v1441
      %v1539 = vadd.f32 %v1318, %v1443
      %v1540 = vadd.f32 %v1319, %v1445
      %v1541 = vadd.f32 %v1320, %v1447
      %v1542 = vadd.f32 %v1321, %v1450
      %v1543 = vadd.f32 %v1322, %v1452
      %v1544 = vadd.f32 %v1323, %v1454
      %v1545 = vadd.f32 %v1324, %v1456
      %v1546 = vadd.f32 %v1325, %v1459
      %v1547 = vadd.f32 %v1326, %v1461
      %v1548 = vadd.f32 %v1327, %v1463
      %v1549 = vadd.f32 %v1328, %v1465
      %v1550 = vadd.f32 %v1329, %v1468
      %v1551 = vadd.f32 %v1330, %v1470
      %v1552 = vadd.f32 %v1331, %v1472
      %v1553 = vadd.f32 %v1332, %v1474
      %v1554 = vadd.f32 %v1333, %v1477
      %v1555 = vadd.f32 %v1334, %v1479
      %v1556 = vadd.f32 %v1335, %v1481
      %v1557 = vadd.f32 %v1336, %v1483
      %v1558 = vadd.f32 %v1337, %v1486
      %v1559 = vadd.f32 %v1338, %v1488
      %v1560 = vadd.f32 %v1339, %v1490
      %v1561 = vadd.f32 %v1340, %v1492
      %v1562 = vadd.f32 %v1341, %v1495
      %v1563 = vadd.f32 %v1342, %v1497
      %v1564 = vadd.f32 %v1343, %v1499
      %v1565 = vadd.f32 %v1344, %v1501
      %v1566 = vld [vmem:[%s1 + $0xb] sm:$0x1]
      %v1567 = vlaneseq
      %v1568 = vshrl.u32 %v1567, 7
      %v1569 = vsub.s32 0, %v1568
      %v1570 = vrot.slane %v1566, %v1569
      %v1571 = vmul.f32 %v237, %v1570
      %v1572 = vmul.f32 %v238, %v1570
      %v1573 = vmul.f32 %v239, %v1570
      %v1574 = vmul.f32 %v240, %v1570
      %v1575 = vmul.f32 %v241, %v1570
      %v1576 = vmul.f32 %v242, %v1570
      %v1577 = vmul.f32 %v243, %v1570
      %v1578 = vmul.f32 %v244, %v1570
      %v1579 = vmul.f32 %v245, %v1570
      %v1580 = vmul.f32 %v246, %v1570
      %v1581 = vmul.f32 %v247, %v1570
      %v1582 = vmul.f32 %v248, %v1570
      %v1583 = vmul.f32 %v249, %v1570
      %v1584 = vmul.f32 %v250, %v1570
      %v1585 = vmul.f32 %v251, %v1570
      %v1586 = vmul.f32 %v252, %v1570
      %v1587 = vmul.f32 %v253, %v1570
      %v1588 = vmul.f32 %v254, %v1570
      %v1589 = vmul.f32 %v255, %v1570
      %v1590 = vmul.f32 %v256, %v1570
      %v1591 = vmul.f32 %v257, %v1570
      %v1592 = vmul.f32 %v258, %v1570
      %v1593 = vmul.f32 %v259, %v1570
      %v1594 = vmul.f32 %v260, %v1570
      %v1595 = vmul.f32 %v261, %v1570
      %v1596 = vmul.f32 %v262, %v1570
      %v1597 = vmul.f32 %v263, %v1570
      %v1598 = vmul.f32 %v264, %v1570
      %v1599 = vmul.f32 %v265, %v1570
      %v1600 = vmul.f32 %v266, %v1570
      %v1601 = vmul.f32 %v267, %v1570
      %v1602 = vmul.f32 %v268, %v1570
      %v1603 = vmul.f32 %v269, %v1570
      %v1604 = vmul.f32 %v270, %v1570
      %v1605 = vmul.f32 %v271, %v1570
      %v1606 = vmul.f32 %v272, %v1570
      %v1607 = vmul.f32 %v273, %v1570
      %v1608 = vmul.f32 %v274, %v1570
      %v1609 = vmul.f32 %v275, %v1570
      %v1610 = vmul.f32 %v276, %v1570
      %v1651 = vrot.slane %v1571, 3
      %v1652 = vrot.slane %v1572, 3
      %v1653 = vsel %vm918, %v1651, %v1652
      %v1654 = vrot.slane %v1573, 3
      %v1655 = vsel %vm918, %v1652, %v1654
      %v1656 = vrot.slane %v1574, 3
      %v1657 = vsel %vm918, %v1654, %v1656
      %v1658 = vrot.slane %v1575, 3
      %v1659 = vsel %vm918, %v1656, %v1658
      %v1660 = vrot.slane %v1576, 3
      %v1661 = vrot.slane %v1577, 3
      %v1662 = vsel %vm918, %v1660, %v1661
      %v1663 = vrot.slane %v1578, 3
      %v1664 = vsel %vm918, %v1661, %v1663
      %v1665 = vrot.slane %v1579, 3
      %v1666 = vsel %vm918, %v1663, %v1665
      %v1667 = vrot.slane %v1580, 3
      %v1668 = vsel %vm918, %v1665, %v1667
      %v1669 = vrot.slane %v1581, 3
      %v1670 = vrot.slane %v1582, 3
      %v1671 = vsel %vm918, %v1669, %v1670
      %v1672 = vrot.slane %v1583, 3
      %v1673 = vsel %vm918, %v1670, %v1672
      %v1674 = vrot.slane %v1584, 3
      %v1675 = vsel %vm918, %v1672, %v1674
      %v1676 = vrot.slane %v1585, 3
      %v1677 = vsel %vm918, %v1674, %v1676
      %v1678 = vrot.slane %v1586, 3
      %v1679 = vrot.slane %v1587, 3
      %v1680 = vsel %vm918, %v1678, %v1679
      %v1681 = vrot.slane %v1588, 3
      %v1682 = vsel %vm918, %v1679, %v1681
      %v1683 = vrot.slane %v1589, 3
      %v1684 = vsel %vm918, %v1681, %v1683
      %v1685 = vrot.slane %v1590, 3
      %v1686 = vsel %vm918, %v1683, %v1685
      %v1687 = vrot.slane %v1591, 3
      %v1688 = vrot.slane %v1592, 3
      %v1689 = vsel %vm918, %v1687, %v1688
      %v1690 = vrot.slane %v1593, 3
      %v1691 = vsel %vm918, %v1688, %v1690
      %v1692 = vrot.slane %v1594, 3
      %v1693 = vsel %vm918, %v1690, %v1692
      %v1694 = vrot.slane %v1595, 3
      %v1695 = vsel %vm918, %v1692, %v1694
      %v1696 = vrot.slane %v1596, 3
      %v1697 = vrot.slane %v1597, 3
      %v1698 = vsel %vm918, %v1696, %v1697
      %v1699 = vrot.slane %v1598, 3
      %v1700 = vsel %vm918, %v1697, %v1699
      %v1701 = vrot.slane %v1599, 3
      %v1702 = vsel %vm918, %v1699, %v1701
      %v1703 = vrot.slane %v1600, 3
      %v1704 = vsel %vm918, %v1701, %v1703
      %v1705 = vrot.slane %v1601, 3
      %v1706 = vrot.slane %v1602, 3
      %v1707 = vsel %vm918, %v1705, %v1706
      %v1708 = vrot.slane %v1603, 3
      %v1709 = vsel %vm918, %v1706, %v1708
      %v1710 = vrot.slane %v1604, 3
      %v1711 = vsel %vm918, %v1708, %v1710
      %v1712 = vrot.slane %v1605, 3
      %v1713 = vsel %vm918, %v1710, %v1712
      %v1714 = vrot.slane %v1606, 3
      %v1715 = vrot.slane %v1607, 3
      %v1716 = vsel %vm918, %v1714, %v1715
      %v1717 = vrot.slane %v1608, 3
      %v1718 = vsel %vm918, %v1715, %v1717
      %v1719 = vrot.slane %v1609, 3
      %v1720 = vsel %vm918, %v1717, %v1719
      %v1721 = vrot.slane %v1610, 3
      %v1722 = vsel %vm918, %v1719, %v1721
      %v1755 = vadd.f32 %v1534, %v1653
      %v1756 = vadd.f32 %v1535, %v1655
      %v1757 = vadd.f32 %v1536, %v1657
      %v1758 = vadd.f32 %v1537, %v1659
      %v1759 = vadd.f32 %v1538, %v1662
      %v1760 = vadd.f32 %v1539, %v1664
      %v1761 = vadd.f32 %v1540, %v1666
      %v1762 = vadd.f32 %v1541, %v1668
      %v1763 = vadd.f32 %v1542, %v1671
      %v1764 = vadd.f32 %v1543, %v1673
      %v1765 = vadd.f32 %v1544, %v1675
      %v1766 = vadd.f32 %v1545, %v1677
      %v1767 = vadd.f32 %v1546, %v1680
      %v1768 = vadd.f32 %v1547, %v1682
      %v1769 = vadd.f32 %v1548, %v1684
      %v1770 = vadd.f32 %v1549, %v1686
      %v1771 = vadd.f32 %v1550, %v1689
      %v1772 = vadd.f32 %v1551, %v1691
      %v1773 = vadd.f32 %v1552, %v1693
      %v1774 = vadd.f32 %v1553, %v1695
      %v1775 = vadd.f32 %v1554, %v1698
      %v1776 = vadd.f32 %v1555, %v1700
      %v1777 = vadd.f32 %v1556, %v1702
      %v1778 = vadd.f32 %v1557, %v1704
      %v1779 = vadd.f32 %v1558, %v1707
      %v1780 = vadd.f32 %v1559, %v1709
      %v1781 = vadd.f32 %v1560, %v1711
      %v1782 = vadd.f32 %v1561, %v1713
      %v1783 = vadd.f32 %v1562, %v1716
      %v1784 = vadd.f32 %v1563, %v1718
      %v1785 = vadd.f32 %v1564, %v1720
      %v1786 = vadd.f32 %v1565, %v1722
      %v1787 = vld [vmem:[%s1 + $0x4] sm:$0x1]
      %v1788 = vlaneseq
      %v1789 = vshrl.u32 %v1788, 7
      %v1790 = vsub.s32 0, %v1789
      %v1791 = vrot.slane %v1787, %v1790
      %v1792 = vmul.f32 %v237, %v1791
      %v1793 = vmul.f32 %v238, %v1791
      %v1794 = vmul.f32 %v239, %v1791
      %v1795 = vmul.f32 %v240, %v1791
      %v1796 = vmul.f32 %v242, %v1791
      %v1797 = vmul.f32 %v243, %v1791
      %v1798 = vmul.f32 %v244, %v1791
      %v1799 = vmul.f32 %v245, %v1791
      %v1800 = vmul.f32 %v247, %v1791
      %v1801 = vmul.f32 %v248, %v1791
      %v1802 = vmul.f32 %v249, %v1791
      %v1803 = vmul.f32 %v250, %v1791
      %v1804 = vmul.f32 %v252, %v1791
      %v1805 = vmul.f32 %v253, %v1791
      %v1806 = vmul.f32 %v254, %v1791
      %v1807 = vmul.f32 %v255, %v1791
      %v1808 = vmul.f32 %v257, %v1791
      %v1809 = vmul.f32 %v258, %v1791
      %v1810 = vmul.f32 %v259, %v1791
      %v1811 = vmul.f32 %v260, %v1791
      %v1812 = vmul.f32 %v262, %v1791
      %v1813 = vmul.f32 %v263, %v1791
      %v1814 = vmul.f32 %v264, %v1791
      %v1815 = vmul.f32 %v265, %v1791
      %v1816 = vmul.f32 %v267, %v1791
      %v1817 = vmul.f32 %v268, %v1791
      %v1818 = vmul.f32 %v269, %v1791
      %v1819 = vmul.f32 %v270, %v1791
      %v1820 = vmul.f32 %v272, %v1791
      %v1821 = vmul.f32 %v273, %v1791
      %v1822 = vmul.f32 %v274, %v1791
      %v1823 = vmul.f32 %v275, %v1791
      %v1824 = vadd.f32 %v1792, 0.0
      %v1825 = vadd.f32 %v1793, 0.0
      %v1826 = vadd.f32 %v1794, 0.0
      %v1827 = vadd.f32 %v1795, 0.0
      %v1828 = vadd.f32 %v1796, 0.0
      %v1829 = vadd.f32 %v1797, 0.0
      %v1830 = vadd.f32 %v1798, 0.0
      %v1831 = vadd.f32 %v1799, 0.0
      %v1832 = vadd.f32 %v1800, 0.0
      %v1833 = vadd.f32 %v1801, 0.0
      %v1834 = vadd.f32 %v1802, 0.0
      %v1835 = vadd.f32 %v1803, 0.0
      %v1836 = vadd.f32 %v1804, 0.0
      %v1837 = vadd.f32 %v1805, 0.0
      %v1838 = vadd.f32 %v1806, 0.0
      %v1839 = vadd.f32 %v1807, 0.0
      %v1840 = vadd.f32 %v1808, 0.0
      %v1841 = vadd.f32 %v1809, 0.0
      %v1842 = vadd.f32 %v1810, 0.0
      %v1843 = vadd.f32 %v1811, 0.0
      %v1844 = vadd.f32 %v1812, 0.0
      %v1845 = vadd.f32 %v1813, 0.0
      %v1846 = vadd.f32 %v1814, 0.0
      %v1847 = vadd.f32 %v1815, 0.0
      %v1848 = vadd.f32 %v1816, 0.0
      %v1849 = vadd.f32 %v1817, 0.0
      %v1850 = vadd.f32 %v1818, 0.0
      %v1851 = vadd.f32 %v1819, 0.0
      %v1852 = vadd.f32 %v1820, 0.0
      %v1853 = vadd.f32 %v1821, 0.0
      %v1854 = vadd.f32 %v1822, 0.0
      %v1855 = vadd.f32 %v1823, 0.0
      %v1856 = vld [vmem:[%s1 + $0x5] sm:$0x1]
      %v1857 = vlaneseq
      %v1858 = vshrl.u32 %v1857, 7
      %v1859 = vsub.s32 0, %v1858
      %v1860 = vrot.slane %v1856, %v1859
      %v1861 = vmul.f32 %v237, %v1860
      %v1862 = vmul.f32 %v238, %v1860
      %v1863 = vmul.f32 %v239, %v1860
      %v1864 = vmul.f32 %v240, %v1860
      %v1865 = vmul.f32 %v241, %v1860
      %v1866 = vmul.f32 %v242, %v1860
      %v1867 = vmul.f32 %v243, %v1860
      %v1868 = vmul.f32 %v244, %v1860
      %v1869 = vmul.f32 %v245, %v1860
      %v1870 = vmul.f32 %v246, %v1860
      %v1871 = vmul.f32 %v247, %v1860
      %v1872 = vmul.f32 %v248, %v1860
      %v1873 = vmul.f32 %v249, %v1860
      %v1874 = vmul.f32 %v250, %v1860
      %v1875 = vmul.f32 %v251, %v1860
      %v1876 = vmul.f32 %v252, %v1860
      %v1877 = vmul.f32 %v253, %v1860
      %v1878 = vmul.f32 %v254, %v1860
      %v1879 = vmul.f32 %v255, %v1860
      %v1880 = vmul.f32 %v256, %v1860
      %v1881 = vmul.f32 %v257, %v1860
      %v1882 = vmul.f32 %v258, %v1860
      %v1883 = vmul.f32 %v259, %v1860
      %v1884 = vmul.f32 %v260, %v1860
      %v1885 = vmul.f32 %v261, %v1860
      %v1886 = vmul.f32 %v262, %v1860
      %v1887 = vmul.f32 %v263, %v1860
      %v1888 = vmul.f32 %v264, %v1860
      %v1889 = vmul.f32 %v265, %v1860
      %v1890 = vmul.f32 %v266, %v1860
      %v1891 = vmul.f32 %v267, %v1860
      %v1892 = vmul.f32 %v268, %v1860
      %v1893 = vmul.f32 %v269, %v1860
      %v1894 = vmul.f32 %v270, %v1860
      %v1895 = vmul.f32 %v271, %v1860
      %v1896 = vmul.f32 %v272, %v1860
      %v1897 = vmul.f32 %v273, %v1860
      %v1898 = vmul.f32 %v274, %v1860
      %v1899 = vmul.f32 %v275, %v1860
      %v1900 = vmul.f32 %v276, %v1860
      %v1941 = vrot.slane %v1861, 1
      %v1942 = vrot.slane %v1862, 1
      %v1943 = vsel %vm474, %v1941, %v1942
      %v1944 = vrot.slane %v1863, 1
      %v1945 = vsel %vm474, %v1942, %v1944
      %v1946 = vrot.slane %v1864, 1
      %v1947 = vsel %vm474, %v1944, %v1946
      %v1948 = vrot.slane %v1865, 1
      %v1949 = vsel %vm474, %v1946, %v1948
      %v1950 = vrot.slane %v1866, 1
      %v1951 = vrot.slane %v1867, 1
      %v1952 = vsel %vm474, %v1950, %v1951
      %v1953 = vrot.slane %v1868, 1
      %v1954 = vsel %vm474, %v1951, %v1953
      %v1955 = vrot.slane %v1869, 1
      %v1956 = vsel %vm474, %v1953, %v1955
      %v1957 = vrot.slane %v1870, 1
      %v1958 = vsel %vm474, %v1955, %v1957
      %v1959 = vrot.slane %v1871, 1
      %v1960 = vrot.slane %v1872, 1
      %v1961 = vsel %vm474, %v1959, %v1960
      %v1962 = vrot.slane %v1873, 1
      %v1963 = vsel %vm474, %v1960, %v1962
      %v1964 = vrot.slane %v1874, 1
      %v1965 = vsel %vm474, %v1962, %v1964
      %v1966 = vrot.slane %v1875, 1
      %v1967 = vsel %vm474, %v1964, %v1966
      %v1968 = vrot.slane %v1876, 1
      %v1969 = vrot.slane %v1877, 1
      %v1970 = vsel %vm474, %v1968, %v1969
      %v1971 = vrot.slane %v1878, 1
      %v1972 = vsel %vm474, %v1969, %v1971
      %v1973 = vrot.slane %v1879, 1
      %v1974 = vsel %vm474, %v1971, %v1973
      %v1975 = vrot.slane %v1880, 1
      %v1976 = vsel %vm474, %v1973, %v1975
      %v1977 = vrot.slane %v1881, 1
      %v1978 = vrot.slane %v1882, 1
      %v1979 = vsel %vm474, %v1977, %v1978
      %v1980 = vrot.slane %v1883, 1
      %v1981 = vsel %vm474, %v1978, %v1980
      %v1982 = vrot.slane %v1884, 1
      %v1983 = vsel %vm474, %v1980, %v1982
      %v1984 = vrot.slane %v1885, 1
      %v1985 = vsel %vm474, %v1982, %v1984
      %v1986 = vrot.slane %v1886, 1
      %v1987 = vrot.slane %v1887, 1
      %v1988 = vsel %vm474, %v1986, %v1987
      %v1989 = vrot.slane %v1888, 1
      %v1990 = vsel %vm474, %v1987, %v1989
      %v1991 = vrot.slane %v1889, 1
      %v1992 = vsel %vm474, %v1989, %v1991
      %v1993 = vrot.slane %v1890, 1
      %v1994 = vsel %vm474, %v1991, %v1993
      %v1995 = vrot.slane %v1891, 1
      %v1996 = vrot.slane %v1892, 1
      %v1997 = vsel %vm474, %v1995, %v1996
      %v1998 = vrot.slane %v1893, 1
      %v1999 = vsel %vm474, %v1996, %v1998
      %v2000 = vrot.slane %v1894, 1
      %v2001 = vsel %vm474, %v1998, %v2000
      %v2002 = vrot.slane %v1895, 1
      %v2003 = vsel %vm474, %v2000, %v2002
      %v2004 = vrot.slane %v1896, 1
      %v2005 = vrot.slane %v1897, 1
      %v2006 = vsel %vm474, %v2004, %v2005
      %v2007 = vrot.slane %v1898, 1
      %v2008 = vsel %vm474, %v2005, %v2007
      %v2009 = vrot.slane %v1899, 1
      %v2010 = vsel %vm474, %v2007, %v2009
      %v2011 = vrot.slane %v1900, 1
      %v2012 = vsel %vm474, %v2009, %v2011
      %v2045 = vadd.f32 %v1824, %v1943
      %v2046 = vadd.f32 %v1825, %v1945
      %v2047 = vadd.f32 %v1826, %v1947
      %v2048 = vadd.f32 %v1827, %v1949
      %v2049 = vadd.f32 %v1828, %v1952
      %v2050 = vadd.f32 %v1829, %v1954
      %v2051 = vadd.f32 %v1830, %v1956
      %v2052 = vadd.f32 %v1831, %v1958
      %v2053 = vadd.f32 %v1832, %v1961
      %v2054 = vadd.f32 %v1833, %v1963
      %v2055 = vadd.f32 %v1834, %v1965
      %v2056 = vadd.f32 %v1835, %v1967
      %v2057 = vadd.f32 %v1836, %v1970
      %v2058 = vadd.f32 %v1837, %v1972
      %v2059 = vadd.f32 %v1838, %v1974
      %v2060 = vadd.f32 %v1839, %v1976
      %v2061 = vadd.f32 %v1840, %v1979
      %v2062 = vadd.f32 %v1841, %v1981
      %v2063 = vadd.f32 %v1842, %v1983
      %v2064 = vadd.f32 %v1843, %v1985
      %v2065 = vadd.f32 %v1844, %v1988
      %v2066 = vadd.f32 %v1845, %v1990
      %v2067 = vadd.f32 %v1846, %v1992
      %v2068 = vadd.f32 %v1847, %v1994
      %v2069 = vadd.f32 %v1848, %v1997
      %v2070 = vadd.f32 %v1849, %v1999
      %v2071 = vadd.f32 %v1850, %v2001
      %v2072 = vadd.f32 %v1851, %v2003
      %v2073 = vadd.f32 %v1852, %v2006
      %v2074 = vadd.f32 %v1853, %v2008
      %v2075 = vadd.f32 %v1854, %v2010
      %v2076 = vadd.f32 %v1855, %v2012
      %v2077 = vld [vmem:[%s1 + $0x6] sm:$0x1]
      %v2078 = vlaneseq
      %v2079 = vshrl.u32 %v2078, 7
      %v2080 = vsub.s32 0, %v2079
      %v2081 = vrot.slane %v2077, %v2080
      %v2082 = vmul.f32 %v237, %v2081
      %v2083 = vmul.f32 %v238, %v2081
      %v2084 = vmul.f32 %v239, %v2081
      %v2085 = vmul.f32 %v240, %v2081
      %v2086 = vmul.f32 %v241, %v2081
      %v2087 = vmul.f32 %v242, %v2081
      %v2088 = vmul.f32 %v243, %v2081
      %v2089 = vmul.f32 %v244, %v2081
      %v2090 = vmul.f32 %v245, %v2081
      %v2091 = vmul.f32 %v246, %v2081
      %v2092 = vmul.f32 %v247, %v2081
      %v2093 = vmul.f32 %v248, %v2081
      %v2094 = vmul.f32 %v249, %v2081
      %v2095 = vmul.f32 %v250, %v2081
      %v2096 = vmul.f32 %v251, %v2081
      %v2097 = vmul.f32 %v252, %v2081
      %v2098 = vmul.f32 %v253, %v2081
      %v2099 = vmul.f32 %v254, %v2081
      %v2100 = vmul.f32 %v255, %v2081
      %v2101 = vmul.f32 %v256, %v2081
      %v2102 = vmul.f32 %v257, %v2081
      %v2103 = vmul.f32 %v258, %v2081
      %v2104 = vmul.f32 %v259, %v2081
      %v2105 = vmul.f32 %v260, %v2081
      %v2106 = vmul.f32 %v261, %v2081
      %v2107 = vmul.f32 %v262, %v2081
      %v2108 = vmul.f32 %v263, %v2081
      %v2109 = vmul.f32 %v264, %v2081
      %v2110 = vmul.f32 %v265, %v2081
      %v2111 = vmul.f32 %v266, %v2081
      %v2112 = vmul.f32 %v267, %v2081
      %v2113 = vmul.f32 %v268, %v2081
      %v2114 = vmul.f32 %v269, %v2081
      %v2115 = vmul.f32 %v270, %v2081
      %v2116 = vmul.f32 %v271, %v2081
      %v2117 = vmul.f32 %v272, %v2081
      %v2118 = vmul.f32 %v273, %v2081
      %v2119 = vmul.f32 %v274, %v2081
      %v2120 = vmul.f32 %v275, %v2081
      %v2121 = vmul.f32 %v276, %v2081
      %v2162 = vrot.slane %v2082, 2
      %v2163 = vrot.slane %v2083, 2
      %v2164 = vsel %vm696, %v2162, %v2163
      %v2165 = vrot.slane %v2084, 2
      %v2166 = vsel %vm696, %v2163, %v2165
      %v2167 = vrot.slane %v2085, 2
      %v2168 = vsel %vm696, %v2165, %v2167
      %v2169 = vrot.slane %v2086, 2
      %v2170 = vsel %vm696, %v2167, %v2169
      %v2171 = vrot.slane %v2087, 2
      %v2172 = vrot.slane %v2088, 2
      %v2173 = vsel %vm696, %v2171, %v2172
      %v2174 = vrot.slane %v2089, 2
      %v2175 = vsel %vm696, %v2172, %v2174
      %v2176 = vrot.slane %v2090, 2
      %v2177 = vsel %vm696, %v2174, %v2176
      %v2178 = vrot.slane %v2091, 2
      %v2179 = vsel %vm696, %v2176, %v2178
      %v2180 = vrot.slane %v2092, 2
      %v2181 = vrot.slane %v2093, 2
      %v2182 = vsel %vm696, %v2180, %v2181
      %v2183 = vrot.slane %v2094, 2
      %v2184 = vsel %vm696, %v2181, %v2183
      %v2185 = vrot.slane %v2095, 2
      %v2186 = vsel %vm696, %v2183, %v2185
      %v2187 = vrot.slane %v2096, 2
      %v2188 = vsel %vm696, %v2185, %v2187
      %v2189 = vrot.slane %v2097, 2
      %v2190 = vrot.slane %v2098, 2
      %v2191 = vsel %vm696, %v2189, %v2190
      %v2192 = vrot.slane %v2099, 2
      %v2193 = vsel %vm696, %v2190, %v2192
      %v2194 = vrot.slane %v2100, 2
      %v2195 = vsel %vm696, %v2192, %v2194
      %v2196 = vrot.slane %v2101, 2
      %v2197 = vsel %vm696, %v2194, %v2196
      %v2198 = vrot.slane %v2102, 2
      %v2199 = vrot.slane %v2103, 2
      %v2200 = vsel %vm696, %v2198, %v2199
      %v2201 = vrot.slane %v2104, 2
      %v2202 = vsel %vm696, %v2199, %v2201
      %v2203 = vrot.slane %v2105, 2
      %v2204 = vsel %vm696, %v2201, %v2203
      %v2205 = vrot.slane %v2106, 2
      %v2206 = vsel %vm696, %v2203, %v2205
      %v2207 = vrot.slane %v2107, 2
      %v2208 = vrot.slane %v2108, 2
      %v2209 = vsel %vm696, %v2207, %v2208
      %v2210 = vrot.slane %v2109, 2
      %v2211 = vsel %vm696, %v2208, %v2210
      %v2212 = vrot.slane %v2110, 2
      %v2213 = vsel %vm696, %v2210, %v2212
      %v2214 = vrot.slane %v2111, 2
      %v2215 = vsel %vm696, %v2212, %v2214
      %v2216 = vrot.slane %v2112, 2
      %v2217 = vrot.slane %v2113, 2
      %v2218 = vsel %vm696, %v2216, %v2217
      %v2219 = vrot.slane %v2114, 2
      %v2220 = vsel %vm696, %v2217, %v2219
      %v2221 = vrot.slane %v2115, 2
      %v2222 = vsel %vm696, %v2219, %v2221
      %v2223 = vrot.slane %v2116, 2
      %v2224 = vsel %vm696, %v2221, %v2223
      %v2225 = vrot.slane %v2117, 2
      %v2226 = vrot.slane %v2118, 2
      %v2227 = vsel %vm696, %v2225, %v2226
      %v2228 = vrot.slane %v2119, 2
      %v2229 = vsel %vm696, %v2226, %v2228
      %v2230 = vrot.slane %v2120, 2
      %v2231 = vsel %vm696, %v2228, %v2230
      %v2232 = vrot.slane %v2121, 2
      %v2233 = vsel %vm696, %v2230, %v2232
      %v2266 = vadd.f32 %v2045, %v2164
      %v2267 = vadd.f32 %v2046, %v2166
      %v2268 = vadd.f32 %v2047, %v2168
      %v2269 = vadd.f32 %v2048, %v2170
      %v2270 = vadd.f32 %v2049, %v2173
      %v2271 = vadd.f32 %v2050, %v2175
      %v2272 = vadd.f32 %v2051, %v2177
      %v2273 = vadd.f32 %v2052, %v2179
      %v2274 = vadd.f32 %v2053, %v2182
      %v2275 = vadd.f32 %v2054, %v2184
      %v2276 = vadd.f32 %v2055, %v2186
      %v2277 = vadd.f32 %v2056, %v2188
      %v2278 = vadd.f32 %v2057, %v2191
      %v2279 = vadd.f32 %v2058, %v2193
      %v2280 = vadd.f32 %v2059, %v2195
      %v2281 = vadd.f32 %v2060, %v2197
      %v2282 = vadd.f32 %v2061, %v2200
      %v2283 = vadd.f32 %v2062, %v2202
      %v2284 = vadd.f32 %v2063, %v2204
      %v2285 = vadd.f32 %v2064, %v2206
      %v2286 = vadd.f32 %v2065, %v2209
      %v2287 = vadd.f32 %v2066, %v2211
      %v2288 = vadd.f32 %v2067, %v2213
      %v2289 = vadd.f32 %v2068, %v2215
      %v2290 = vadd.f32 %v2069, %v2218
      %v2291 = vadd.f32 %v2070, %v2220
      %v2292 = vadd.f32 %v2071, %v2222
      %v2293 = vadd.f32 %v2072, %v2224
      %v2294 = vadd.f32 %v2073, %v2227
      %v2295 = vadd.f32 %v2074, %v2229
      %v2296 = vadd.f32 %v2075, %v2231
      %v2297 = vadd.f32 %v2076, %v2233
      %v2298 = vld [vmem:[%s1 + $0x7] sm:$0x1]
      %v2299 = vlaneseq
      %v2300 = vshrl.u32 %v2299, 7
      %v2301 = vsub.s32 0, %v2300
      %v2302 = vrot.slane %v2298, %v2301
      %v2303 = vmul.f32 %v237, %v2302
      %v2304 = vmul.f32 %v238, %v2302
      %v2305 = vmul.f32 %v239, %v2302
      %v2306 = vmul.f32 %v240, %v2302
      %v2307 = vmul.f32 %v241, %v2302
      %v2308 = vmul.f32 %v242, %v2302
      %v2309 = vmul.f32 %v243, %v2302
      %v2310 = vmul.f32 %v244, %v2302
      %v2311 = vmul.f32 %v245, %v2302
      %v2312 = vmul.f32 %v246, %v2302
      %v2313 = vmul.f32 %v247, %v2302
      %v2314 = vmul.f32 %v248, %v2302
      %v2315 = vmul.f32 %v249, %v2302
      %v2316 = vmul.f32 %v250, %v2302
      %v2317 = vmul.f32 %v251, %v2302
      %v2318 = vmul.f32 %v252, %v2302
      %v2319 = vmul.f32 %v253, %v2302
      %v2320 = vmul.f32 %v254, %v2302
      %v2321 = vmul.f32 %v255, %v2302
      %v2322 = vmul.f32 %v256, %v2302
      %v2323 = vmul.f32 %v257, %v2302
      %v2324 = vmul.f32 %v258, %v2302
      %v2325 = vmul.f32 %v259, %v2302
      %v2326 = vmul.f32 %v260, %v2302
      %v2327 = vmul.f32 %v261, %v2302
      %v2328 = vmul.f32 %v262, %v2302
      %v2329 = vmul.f32 %v263, %v2302
      %v2330 = vmul.f32 %v264, %v2302
      %v2331 = vmul.f32 %v265, %v2302
      %v2332 = vmul.f32 %v266, %v2302
      %v2333 = vmul.f32 %v267, %v2302
      %v2334 = vmul.f32 %v268, %v2302
      %v2335 = vmul.f32 %v269, %v2302
      %v2336 = vmul.f32 %v270, %v2302
      %v2337 = vmul.f32 %v271, %v2302
      %v2338 = vmul.f32 %v272, %v2302
      %v2339 = vmul.f32 %v273, %v2302
      %v2340 = vmul.f32 %v274, %v2302
      %v2341 = vmul.f32 %v275, %v2302
      %v2342 = vmul.f32 %v276, %v2302
      %v2383 = vrot.slane %v2303, 3
      %v2384 = vrot.slane %v2304, 3
      %v2385 = vsel %vm918, %v2383, %v2384
      %v2386 = vrot.slane %v2305, 3
      %v2387 = vsel %vm918, %v2384, %v2386
      %v2388 = vrot.slane %v2306, 3
      %v2389 = vsel %vm918, %v2386, %v2388
      %v2390 = vrot.slane %v2307, 3
      %v2391 = vsel %vm918, %v2388, %v2390
      %v2392 = vrot.slane %v2308, 3
      %v2393 = vrot.slane %v2309, 3
      %v2394 = vsel %vm918, %v2392, %v2393
      %v2395 = vrot.slane %v2310, 3
      %v2396 = vsel %vm918, %v2393, %v2395
      %v2397 = vrot.slane %v2311, 3
      %v2398 = vsel %vm918, %v2395, %v2397
      %v2399 = vrot.slane %v2312, 3
      %v2400 = vsel %vm918, %v2397, %v2399
      %v2401 = vrot.slane %v2313, 3
      %v2402 = vrot.slane %v2314, 3
      %v2403 = vsel %vm918, %v2401, %v2402
      %v2404 = vrot.slane %v2315, 3
      %v2405 = vsel %vm918, %v2402, %v2404
      %v2406 = vrot.slane %v2316, 3
      %v2407 = vsel %vm918, %v2404, %v2406
      %v2408 = vrot.slane %v2317, 3
      %v2409 = vsel %vm918, %v2406, %v2408
      %v2410 = vrot.slane %v2318, 3
      %v2411 = vrot.slane %v2319, 3
      %v2412 = vsel %vm918, %v2410, %v2411
      %v2413 = vrot.slane %v2320, 3
      %v2414 = vsel %vm918, %v2411, %v2413
      %v2415 = vrot.slane %v2321, 3
      %v2416 = vsel %vm918, %v2413, %v2415
      %v2417 = vrot.slane %v2322, 3
      %v2418 = vsel %vm918, %v2415, %v2417
      %v2419 = vrot.slane %v2323, 3
      %v2420 = vrot.slane %v2324, 3
      %v2421 = vsel %vm918, %v2419, %v2420
      %v2422 = vrot.slane %v2325, 3
      %v2423 = vsel %vm918, %v2420, %v2422
      %v2424 = vrot.slane %v2326, 3
      %v2425 = vsel %vm918, %v2422, %v2424
      %v2426 = vrot.slane %v2327, 3
      %v2427 = vsel %vm918, %v2424, %v2426
      %v2428 = vrot.slane %v2328, 3
      %v2429 = vrot.slane %v2329, 3
      %v2430 = vsel %vm918, %v2428, %v2429
      %v2431 = vrot.slane %v2330, 3
      %v2432 = vsel %vm918, %v2429, %v2431
      %v2433 = vrot.slane %v2331, 3
      %v2434 = vsel %vm918, %v2431, %v2433
      %v2435 = vrot.slane %v2332, 3
      %v2436 = vsel %vm918, %v2433, %v2435
      %v2437 = vrot.slane %v2333, 3
      %v2438 = vrot.slane %v2334, 3
      %v2439 = vsel %vm918, %v2437, %v2438
      %v2440 = vrot.slane %v2335, 3
      %v2441 = vsel %vm918, %v2438, %v2440
      %v2442 = vrot.slane %v2336, 3
      %v2443 = vsel %vm918, %v2440, %v2442
      %v2444 = vrot.slane %v2337, 3
      %v2445 = vsel %vm918, %v2442, %v2444
      %v2446 = vrot.slane %v2338, 3
      %v2447 = vrot.slane %v2339, 3
      %v2448 = vsel %vm918, %v2446, %v2447
      %v2449 = vrot.slane %v2340, 3
      %v2450 = vsel %vm918, %v2447, %v2449
      %v2451 = vrot.slane %v2341, 3
      %v2452 = vsel %vm918, %v2449, %v2451
      %v2453 = vrot.slane %v2342, 3
      %v2454 = vsel %vm918, %v2451, %v2453
      %v2487 = vadd.f32 %v2266, %v2385
      %v2488 = vadd.f32 %v2267, %v2387
      %v2489 = vadd.f32 %v2268, %v2389
      %v2490 = vadd.f32 %v2269, %v2391
      %v2491 = vadd.f32 %v2270, %v2394
      %v2492 = vadd.f32 %v2271, %v2396
      %v2493 = vadd.f32 %v2272, %v2398
      %v2494 = vadd.f32 %v2273, %v2400
      %v2495 = vadd.f32 %v2274, %v2403
      %v2496 = vadd.f32 %v2275, %v2405
      %v2497 = vadd.f32 %v2276, %v2407
      %v2498 = vadd.f32 %v2277, %v2409
      %v2499 = vadd.f32 %v2278, %v2412
      %v2500 = vadd.f32 %v2279, %v2414
      %v2501 = vadd.f32 %v2280, %v2416
      %v2502 = vadd.f32 %v2281, %v2418
      %v2503 = vadd.f32 %v2282, %v2421
      %v2504 = vadd.f32 %v2283, %v2423
      %v2505 = vadd.f32 %v2284, %v2425
      %v2506 = vadd.f32 %v2285, %v2427
      %v2507 = vadd.f32 %v2286, %v2430
      %v2508 = vadd.f32 %v2287, %v2432
      %v2509 = vadd.f32 %v2288, %v2434
      %v2510 = vadd.f32 %v2289, %v2436
      %v2511 = vadd.f32 %v2290, %v2439
      %v2512 = vadd.f32 %v2291, %v2441
      %v2513 = vadd.f32 %v2292, %v2443
      %v2514 = vadd.f32 %v2293, %v2445
      %v2515 = vadd.f32 %v2294, %v2448
      %v2516 = vadd.f32 %v2295, %v2450
      %v2517 = vadd.f32 %v2296, %v2452
      %v2518 = vadd.f32 %v2297, %v2454
      %v2519 = vld [vmem:[%s1 + $0xc] sm:$0x1]
      %v2520 = vlaneseq
      %v2521 = vshrl.u32 %v2520, 7
      %v2522 = vsub.s32 0, %v2521
      %v2523 = vrot.slane %v2519, %v2522
      %v2524 = vmul.f32 %v280, %v2523
      %v2525 = vmul.f32 %v281, %v2523
      %v2526 = vmul.f32 %v282, %v2523
      %v2527 = vmul.f32 %v283, %v2523
      %v2528 = vmul.f32 %v285, %v2523
      %v2529 = vmul.f32 %v286, %v2523
      %v2530 = vmul.f32 %v287, %v2523
      %v2531 = vmul.f32 %v288, %v2523
      %v2532 = vmul.f32 %v290, %v2523
      %v2533 = vmul.f32 %v291, %v2523
      %v2534 = vmul.f32 %v292, %v2523
      %v2535 = vmul.f32 %v293, %v2523
      %v2536 = vmul.f32 %v295, %v2523
      %v2537 = vmul.f32 %v296, %v2523
      %v2538 = vmul.f32 %v297, %v2523
      %v2539 = vmul.f32 %v298, %v2523
      %v2540 = vmul.f32 %v300, %v2523
      %v2541 = vmul.f32 %v301, %v2523
      %v2542 = vmul.f32 %v302, %v2523
      %v2543 = vmul.f32 %v303, %v2523
      %v2544 = vmul.f32 %v305, %v2523
      %v2545 = vmul.f32 %v306, %v2523
      %v2546 = vmul.f32 %v307, %v2523
      %v2547 = vmul.f32 %v308, %v2523
      %v2548 = vmul.f32 %v310, %v2523
      %v2549 = vmul.f32 %v311, %v2523
      %v2550 = vmul.f32 %v312, %v2523
      %v2551 = vmul.f32 %v313, %v2523
      %v2552 = vmul.f32 %v315, %v2523
      %v2553 = vmul.f32 %v316, %v2523
      %v2554 = vmul.f32 %v317, %v2523
      %v2555 = vmul.f32 %v318, %v2523
      %v2556 = vadd.f32 %v2487, %v2524
      %v2557 = vadd.f32 %v2488, %v2525
      %v2558 = vadd.f32 %v2489, %v2526
      %v2559 = vadd.f32 %v2490, %v2527
      %v2560 = vadd.f32 %v2491, %v2528
      %v2561 = vadd.f32 %v2492, %v2529
      %v2562 = vadd.f32 %v2493, %v2530
      %v2563 = vadd.f32 %v2494, %v2531
      %v2564 = vadd.f32 %v2495, %v2532
      %v2565 = vadd.f32 %v2496, %v2533
      %v2566 = vadd.f32 %v2497, %v2534
      %v2567 = vadd.f32 %v2498, %v2535
      %v2568 = vadd.f32 %v2499, %v2536
      %v2569 = vadd.f32 %v2500, %v2537
      %v2570 = vadd.f32 %v2501, %v2538
      %v2571 = vadd.f32 %v2502, %v2539
      %v2572 = vadd.f32 %v2503, %v2540
      %v2573 = vadd.f32 %v2504, %v2541
      %v2574 = vadd.f32 %v2505, %v2542
      %v2575 = vadd.f32 %v2506, %v2543
      %v2576 = vadd.f32 %v2507, %v2544
      %v2577 = vadd.f32 %v2508, %v2545
      %v2578 = vadd.f32 %v2509, %v2546
      %v2579 = vadd.f32 %v2510, %v2547
      %v2580 = vadd.f32 %v2511, %v2548
      %v2581 = vadd.f32 %v2512, %v2549
      %v2582 = vadd.f32 %v2513, %v2550
      %v2583 = vadd.f32 %v2514, %v2551
      %v2584 = vadd.f32 %v2515, %v2552
      %v2585 = vadd.f32 %v2516, %v2553
      %v2586 = vadd.f32 %v2517, %v2554
      %v2587 = vadd.f32 %v2518, %v2555
      %v2588 = vld [vmem:[%s1 + $0xd] sm:$0x1]
      %v2589 = vlaneseq
      %v2590 = vshrl.u32 %v2589, 7
      %v2591 = vsub.s32 0, %v2590
      %v2592 = vrot.slane %v2588, %v2591
      %v2593 = vmul.f32 %v280, %v2592
      %v2594 = vmul.f32 %v281, %v2592
      %v2595 = vmul.f32 %v282, %v2592
      %v2596 = vmul.f32 %v283, %v2592
      %v2597 = vmul.f32 %v284, %v2592
      %v2598 = vmul.f32 %v285, %v2592
      %v2599 = vmul.f32 %v286, %v2592
      %v2600 = vmul.f32 %v287, %v2592
      %v2601 = vmul.f32 %v288, %v2592
      %v2602 = vmul.f32 %v289, %v2592
      %v2603 = vmul.f32 %v290, %v2592
      %v2604 = vmul.f32 %v291, %v2592
      %v2605 = vmul.f32 %v292, %v2592
      %v2606 = vmul.f32 %v293, %v2592
      %v2607 = vmul.f32 %v294, %v2592
      %v2608 = vmul.f32 %v295, %v2592
      %v2609 = vmul.f32 %v296, %v2592
      %v2610 = vmul.f32 %v297, %v2592
      %v2611 = vmul.f32 %v298, %v2592
      %v2612 = vmul.f32 %v299, %v2592
      %v2613 = vmul.f32 %v300, %v2592
      %v2614 = vmul.f32 %v301, %v2592
      %v2615 = vmul.f32 %v302, %v2592
      %v2616 = vmul.f32 %v303, %v2592
      %v2617 = vmul.f32 %v304, %v2592
      %v2618 = vmul.f32 %v305, %v2592
      %v2619 = vmul.f32 %v306, %v2592
      %v2620 = vmul.f32 %v307, %v2592
      %v2621 = vmul.f32 %v308, %v2592
      %v2622 = vmul.f32 %v309, %v2592
      %v2623 = vmul.f32 %v310, %v2592
      %v2624 = vmul.f32 %v311, %v2592
      %v2625 = vmul.f32 %v312, %v2592
      %v2626 = vmul.f32 %v313, %v2592
      %v2627 = vmul.f32 %v314, %v2592
      %v2628 = vmul.f32 %v315, %v2592
      %v2629 = vmul.f32 %v316, %v2592
      %v2630 = vmul.f32 %v317, %v2592
      %v2631 = vmul.f32 %v318, %v2592
      %v2632 = vmul.f32 %v319, %v2592
      %v2673 = vrot.slane %v2593, 1
      %v2674 = vrot.slane %v2594, 1
      %v2675 = vsel %vm474, %v2673, %v2674
      %v2676 = vrot.slane %v2595, 1
      %v2677 = vsel %vm474, %v2674, %v2676
      %v2678 = vrot.slane %v2596, 1
      %v2679 = vsel %vm474, %v2676, %v2678
      %v2680 = vrot.slane %v2597, 1
      %v2681 = vsel %vm474, %v2678, %v2680
      %v2682 = vrot.slane %v2598, 1
      %v2683 = vrot.slane %v2599, 1
      %v2684 = vsel %vm474, %v2682, %v2683
      %v2685 = vrot.slane %v2600, 1
      %v2686 = vsel %vm474, %v2683, %v2685
      %v2687 = vrot.slane %v2601, 1
      %v2688 = vsel %vm474, %v2685, %v2687
      %v2689 = vrot.slane %v2602, 1
      %v2690 = vsel %vm474, %v2687, %v2689
      %v2691 = vrot.slane %v2603, 1
      %v2692 = vrot.slane %v2604, 1
      %v2693 = vsel %vm474, %v2691, %v2692
      %v2694 = vrot.slane %v2605, 1
      %v2695 = vsel %vm474, %v2692, %v2694
      %v2696 = vrot.slane %v2606, 1
      %v2697 = vsel %vm474, %v2694, %v2696
      %v2698 = vrot.slane %v2607, 1
      %v2699 = vsel %vm474, %v2696, %v2698
      %v2700 = vrot.slane %v2608, 1
      %v2701 = vrot.slane %v2609, 1
      %v2702 = vsel %vm474, %v2700, %v2701
      %v2703 = vrot.slane %v2610, 1
      %v2704 = vsel %vm474, %v2701, %v2703
      %v2705 = vrot.slane %v2611, 1
      %v2706 = vsel %vm474, %v2703, %v2705
      %v2707 = vrot.slane %v2612, 1
      %v2708 = vsel %vm474, %v2705, %v2707
      %v2709 = vrot.slane %v2613, 1
      %v2710 = vrot.slane %v2614, 1
      %v2711 = vsel %vm474, %v2709, %v2710
      %v2712 = vrot.slane %v2615, 1
      %v2713 = vsel %vm474, %v2710, %v2712
      %v2714 = vrot.slane %v2616, 1
      %v2715 = vsel %vm474, %v2712, %v2714
      %v2716 = vrot.slane %v2617, 1
      %v2717 = vsel %vm474, %v2714, %v2716
      %v2718 = vrot.slane %v2618, 1
      %v2719 = vrot.slane %v2619, 1
      %v2720 = vsel %vm474, %v2718, %v2719
      %v2721 = vrot.slane %v2620, 1
      %v2722 = vsel %vm474, %v2719, %v2721
      %v2723 = vrot.slane %v2621, 1
      %v2724 = vsel %vm474, %v2721, %v2723
      %v2725 = vrot.slane %v2622, 1
      %v2726 = vsel %vm474, %v2723, %v2725
      %v2727 = vrot.slane %v2623, 1
      %v2728 = vrot.slane %v2624, 1
      %v2729 = vsel %vm474, %v2727, %v2728
      %v2730 = vrot.slane %v2625, 1
      %v2731 = vsel %vm474, %v2728, %v2730
      %v2732 = vrot.slane %v2626, 1
      %v2733 = vsel %vm474, %v2730, %v2732
      %v2734 = vrot.slane %v2627, 1
      %v2735 = vsel %vm474, %v2732, %v2734
      %v2736 = vrot.slane %v2628, 1
      %v2737 = vrot.slane %v2629, 1
      %v2738 = vsel %vm474, %v2736, %v2737
      %v2739 = vrot.slane %v2630, 1
      %v2740 = vsel %vm474, %v2737, %v2739
      %v2741 = vrot.slane %v2631, 1
      %v2742 = vsel %vm474, %v2739, %v2741
      %v2743 = vrot.slane %v2632, 1
      %v2744 = vsel %vm474, %v2741, %v2743
      %v2777 = vadd.f32 %v2556, %v2675
      %v2778 = vadd.f32 %v2557, %v2677
      %v2779 = vadd.f32 %v2558, %v2679
      %v2780 = vadd.f32 %v2559, %v2681
      %v2781 = vadd.f32 %v2560, %v2684
      %v2782 = vadd.f32 %v2561, %v2686
      %v2783 = vadd.f32 %v2562, %v2688
      %v2784 = vadd.f32 %v2563, %v2690
      %v2785 = vadd.f32 %v2564, %v2693
      %v2786 = vadd.f32 %v2565, %v2695
      %v2787 = vadd.f32 %v2566, %v2697
      %v2788 = vadd.f32 %v2567, %v2699
      %v2789 = vadd.f32 %v2568, %v2702
      %v2790 = vadd.f32 %v2569, %v2704
      %v2791 = vadd.f32 %v2570, %v2706
      %v2792 = vadd.f32 %v2571, %v2708
      %v2793 = vadd.f32 %v2572, %v2711
      %v2794 = vadd.f32 %v2573, %v2713
      %v2795 = vadd.f32 %v2574, %v2715
      %v2796 = vadd.f32 %v2575, %v2717
      %v2797 = vadd.f32 %v2576, %v2720
      %v2798 = vadd.f32 %v2577, %v2722
      %v2799 = vadd.f32 %v2578, %v2724
      %v2800 = vadd.f32 %v2579, %v2726
      %v2801 = vadd.f32 %v2580, %v2729
      %v2802 = vadd.f32 %v2581, %v2731
      %v2803 = vadd.f32 %v2582, %v2733
      %v2804 = vadd.f32 %v2583, %v2735
      %v2805 = vadd.f32 %v2584, %v2738
      %v2806 = vadd.f32 %v2585, %v2740
      %v2807 = vadd.f32 %v2586, %v2742
      %v2808 = vadd.f32 %v2587, %v2744
      %v2809 = vld [vmem:[%s1 + $0xe] sm:$0x1]
      %v2810 = vlaneseq
      %v2811 = vshrl.u32 %v2810, 7
      %v2812 = vsub.s32 0, %v2811
      %v2813 = vrot.slane %v2809, %v2812
      %v2814 = vmul.f32 %v280, %v2813
      %v2815 = vmul.f32 %v281, %v2813
      %v2816 = vmul.f32 %v282, %v2813
      %v2817 = vmul.f32 %v283, %v2813
      %v2818 = vmul.f32 %v284, %v2813
      %v2819 = vmul.f32 %v285, %v2813
      %v2820 = vmul.f32 %v286, %v2813
      %v2821 = vmul.f32 %v287, %v2813
      %v2822 = vmul.f32 %v288, %v2813
      %v2823 = vmul.f32 %v289, %v2813
      %v2824 = vmul.f32 %v290, %v2813
      %v2825 = vmul.f32 %v291, %v2813
      %v2826 = vmul.f32 %v292, %v2813
      %v2827 = vmul.f32 %v293, %v2813
      %v2828 = vmul.f32 %v294, %v2813
      %v2829 = vmul.f32 %v295, %v2813
      %v2830 = vmul.f32 %v296, %v2813
      %v2831 = vmul.f32 %v297, %v2813
      %v2832 = vmul.f32 %v298, %v2813
      %v2833 = vmul.f32 %v299, %v2813
      %v2834 = vmul.f32 %v300, %v2813
      %v2835 = vmul.f32 %v301, %v2813
      %v2836 = vmul.f32 %v302, %v2813
      %v2837 = vmul.f32 %v303, %v2813
      %v2838 = vmul.f32 %v304, %v2813
      %v2839 = vmul.f32 %v305, %v2813
      %v2840 = vmul.f32 %v306, %v2813
      %v2841 = vmul.f32 %v307, %v2813
      %v2842 = vmul.f32 %v308, %v2813
      %v2843 = vmul.f32 %v309, %v2813
      %v2844 = vmul.f32 %v310, %v2813
      %v2845 = vmul.f32 %v311, %v2813
      %v2846 = vmul.f32 %v312, %v2813
      %v2847 = vmul.f32 %v313, %v2813
      %v2848 = vmul.f32 %v314, %v2813
      %v2849 = vmul.f32 %v315, %v2813
      %v2850 = vmul.f32 %v316, %v2813
      %v2851 = vmul.f32 %v317, %v2813
      %v2852 = vmul.f32 %v318, %v2813
      %v2853 = vmul.f32 %v319, %v2813
      %v2894 = vrot.slane %v2814, 2
      %v2895 = vrot.slane %v2815, 2
      %v2896 = vsel %vm696, %v2894, %v2895
      %v2897 = vrot.slane %v2816, 2
      %v2898 = vsel %vm696, %v2895, %v2897
      %v2899 = vrot.slane %v2817, 2
      %v2900 = vsel %vm696, %v2897, %v2899
      %v2901 = vrot.slane %v2818, 2
      %v2902 = vsel %vm696, %v2899, %v2901
      %v2903 = vrot.slane %v2819, 2
      %v2904 = vrot.slane %v2820, 2
      %v2905 = vsel %vm696, %v2903, %v2904
      %v2906 = vrot.slane %v2821, 2
      %v2907 = vsel %vm696, %v2904, %v2906
      %v2908 = vrot.slane %v2822, 2
      %v2909 = vsel %vm696, %v2906, %v2908
      %v2910 = vrot.slane %v2823, 2
      %v2911 = vsel %vm696, %v2908, %v2910
      %v2912 = vrot.slane %v2824, 2
      %v2913 = vrot.slane %v2825, 2
      %v2914 = vsel %vm696, %v2912, %v2913
      %v2915 = vrot.slane %v2826, 2
      %v2916 = vsel %vm696, %v2913, %v2915
      %v2917 = vrot.slane %v2827, 2
      %v2918 = vsel %vm696, %v2915, %v2917
      %v2919 = vrot.slane %v2828, 2
      %v2920 = vsel %vm696, %v2917, %v2919
      %v2921 = vrot.slane %v2829, 2
      %v2922 = vrot.slane %v2830, 2
      %v2923 = vsel %vm696, %v2921, %v2922
      %v2924 = vrot.slane %v2831, 2
      %v2925 = vsel %vm696, %v2922, %v2924
      %v2926 = vrot.slane %v2832, 2
      %v2927 = vsel %vm696, %v2924, %v2926
      %v2928 = vrot.slane %v2833, 2
      %v2929 = vsel %vm696, %v2926, %v2928
      %v2930 = vrot.slane %v2834, 2
      %v2931 = vrot.slane %v2835, 2
      %v2932 = vsel %vm696, %v2930, %v2931
      %v2933 = vrot.slane %v2836, 2
      %v2934 = vsel %vm696, %v2931, %v2933
      %v2935 = vrot.slane %v2837, 2
      %v2936 = vsel %vm696, %v2933, %v2935
      %v2937 = vrot.slane %v2838, 2
      %v2938 = vsel %vm696, %v2935, %v2937
      %v2939 = vrot.slane %v2839, 2
      %v2940 = vrot.slane %v2840, 2
      %v2941 = vsel %vm696, %v2939, %v2940
      %v2942 = vrot.slane %v2841, 2
      %v2943 = vsel %vm696, %v2940, %v2942
      %v2944 = vrot.slane %v2842, 2
      %v2945 = vsel %vm696, %v2942, %v2944
      %v2946 = vrot.slane %v2843, 2
      %v2947 = vsel %vm696, %v2944, %v2946
      %v2948 = vrot.slane %v2844, 2
      %v2949 = vrot.slane %v2845, 2
      %v2950 = vsel %vm696, %v2948, %v2949
      %v2951 = vrot.slane %v2846, 2
      %v2952 = vsel %vm696, %v2949, %v2951
      %v2953 = vrot.slane %v2847, 2
      %v2954 = vsel %vm696, %v2951, %v2953
      %v2955 = vrot.slane %v2848, 2
      %v2956 = vsel %vm696, %v2953, %v2955
      %v2957 = vrot.slane %v2849, 2
      %v2958 = vrot.slane %v2850, 2
      %v2959 = vsel %vm696, %v2957, %v2958
      %v2960 = vrot.slane %v2851, 2
      %v2961 = vsel %vm696, %v2958, %v2960
      %v2962 = vrot.slane %v2852, 2
      %v2963 = vsel %vm696, %v2960, %v2962
      %v2964 = vrot.slane %v2853, 2
      %v2965 = vsel %vm696, %v2962, %v2964
      %v2998 = vadd.f32 %v2777, %v2896
      %v2999 = vadd.f32 %v2778, %v2898
      %v3000 = vadd.f32 %v2779, %v2900
      %v3001 = vadd.f32 %v2780, %v2902
      %v3002 = vadd.f32 %v2781, %v2905
      %v3003 = vadd.f32 %v2782, %v2907
      %v3004 = vadd.f32 %v2783, %v2909
      %v3005 = vadd.f32 %v2784, %v2911
      %v3006 = vadd.f32 %v2785, %v2914
      %v3007 = vadd.f32 %v2786, %v2916
      %v3008 = vadd.f32 %v2787, %v2918
      %v3009 = vadd.f32 %v2788, %v2920
      %v3010 = vadd.f32 %v2789, %v2923
      %v3011 = vadd.f32 %v2790, %v2925
      %v3012 = vadd.f32 %v2791, %v2927
      %v3013 = vadd.f32 %v2792, %v2929
      %v3014 = vadd.f32 %v2793, %v2932
      %v3015 = vadd.f32 %v2794, %v2934
      %v3016 = vadd.f32 %v2795, %v2936
      %v3017 = vadd.f32 %v2796, %v2938
      %v3018 = vadd.f32 %v2797, %v2941
      %v3019 = vadd.f32 %v2798, %v2943
      %v3020 = vadd.f32 %v2799, %v2945
      %v3021 = vadd.f32 %v2800, %v2947
      %v3022 = vadd.f32 %v2801, %v2950
      %v3023 = vadd.f32 %v2802, %v2952
      %v3024 = vadd.f32 %v2803, %v2954
      %v3025 = vadd.f32 %v2804, %v2956
      %v3026 = vadd.f32 %v2805, %v2959
      %v3027 = vadd.f32 %v2806, %v2961
      %v3028 = vadd.f32 %v2807, %v2963
      %v3029 = vadd.f32 %v2808, %v2965
      %v3030 = vld [vmem:[%s1 + $0xf] sm:$0x1]
      %v3031 = vlaneseq
      %v3032 = vshrl.u32 %v3031, 7
      %v3033 = vsub.s32 0, %v3032
      %v3034 = vrot.slane %v3030, %v3033
      %v3035 = vmul.f32 %v280, %v3034
      %v3036 = vmul.f32 %v281, %v3034
      %v3037 = vmul.f32 %v282, %v3034
      %v3038 = vmul.f32 %v283, %v3034
      %v3039 = vmul.f32 %v284, %v3034
      %v3040 = vmul.f32 %v285, %v3034
      %v3041 = vmul.f32 %v286, %v3034
      %v3042 = vmul.f32 %v287, %v3034
      %v3043 = vmul.f32 %v288, %v3034
      %v3044 = vmul.f32 %v289, %v3034
      %v3045 = vmul.f32 %v290, %v3034
      %v3046 = vmul.f32 %v291, %v3034
      %v3047 = vmul.f32 %v292, %v3034
      %v3048 = vmul.f32 %v293, %v3034
      %v3049 = vmul.f32 %v294, %v3034
      %v3050 = vmul.f32 %v295, %v3034
      %v3051 = vmul.f32 %v296, %v3034
      %v3052 = vmul.f32 %v297, %v3034
      %v3053 = vmul.f32 %v298, %v3034
      %v3054 = vmul.f32 %v299, %v3034
      %v3055 = vmul.f32 %v300, %v3034
      %v3056 = vmul.f32 %v301, %v3034
      %v3057 = vmul.f32 %v302, %v3034
      %v3058 = vmul.f32 %v303, %v3034
      %v3059 = vmul.f32 %v304, %v3034
      %v3060 = vmul.f32 %v305, %v3034
      %v3061 = vmul.f32 %v306, %v3034
      %v3062 = vmul.f32 %v307, %v3034
      %v3063 = vmul.f32 %v308, %v3034
      %v3064 = vmul.f32 %v309, %v3034
      %v3065 = vmul.f32 %v310, %v3034
      %v3066 = vmul.f32 %v311, %v3034
      %v3067 = vmul.f32 %v312, %v3034
      %v3068 = vmul.f32 %v313, %v3034
      %v3069 = vmul.f32 %v314, %v3034
      %v3070 = vmul.f32 %v315, %v3034
      %v3071 = vmul.f32 %v316, %v3034
      %v3072 = vmul.f32 %v317, %v3034
      %v3073 = vmul.f32 %v318, %v3034
      %v3074 = vmul.f32 %v319, %v3034
      %v3115 = vrot.slane %v3035, 3
      %v3116 = vrot.slane %v3036, 3
      %v3117 = vsel %vm918, %v3115, %v3116
      %v3118 = vrot.slane %v3037, 3
      %v3119 = vsel %vm918, %v3116, %v3118
      %v3120 = vrot.slane %v3038, 3
      %v3121 = vsel %vm918, %v3118, %v3120
      %v3122 = vrot.slane %v3039, 3
      %v3123 = vsel %vm918, %v3120, %v3122
      %v3124 = vrot.slane %v3040, 3
      %v3125 = vrot.slane %v3041, 3
      %v3126 = vsel %vm918, %v3124, %v3125
      %v3127 = vrot.slane %v3042, 3
      %v3128 = vsel %vm918, %v3125, %v3127
      %v3129 = vrot.slane %v3043, 3
      %v3130 = vsel %vm918, %v3127, %v3129
      %v3131 = vrot.slane %v3044, 3
      %v3132 = vsel %vm918, %v3129, %v3131
      %v3133 = vrot.slane %v3045, 3
      %v3134 = vrot.slane %v3046, 3
      %v3135 = vsel %vm918, %v3133, %v3134
      %v3136 = vrot.slane %v3047, 3
      %v3137 = vsel %vm918, %v3134, %v3136
      %v3138 = vrot.slane %v3048, 3
      %v3139 = vsel %vm918, %v3136, %v3138
      %v3140 = vrot.slane %v3049, 3
      %v3141 = vsel %vm918, %v3138, %v3140
      %v3142 = vrot.slane %v3050, 3
      %v3143 = vrot.slane %v3051, 3
      %v3144 = vsel %vm918, %v3142, %v3143
      %v3145 = vrot.slane %v3052, 3
      %v3146 = vsel %vm918, %v3143, %v3145
      %v3147 = vrot.slane %v3053, 3
      %v3148 = vsel %vm918, %v3145, %v3147
      %v3149 = vrot.slane %v3054, 3
      %v3150 = vsel %vm918, %v3147, %v3149
      %v3151 = vrot.slane %v3055, 3
      %v3152 = vrot.slane %v3056, 3
      %v3153 = vsel %vm918, %v3151, %v3152
      %v3154 = vrot.slane %v3057, 3
      %v3155 = vsel %vm918, %v3152, %v3154
      %v3156 = vrot.slane %v3058, 3
      %v3157 = vsel %vm918, %v3154, %v3156
      %v3158 = vrot.slane %v3059, 3
      %v3159 = vsel %vm918, %v3156, %v3158
      %v3160 = vrot.slane %v3060, 3
      %v3161 = vrot.slane %v3061, 3
      %v3162 = vsel %vm918, %v3160, %v3161
      %v3163 = vrot.slane %v3062, 3
      %v3164 = vsel %vm918, %v3161, %v3163
      %v3165 = vrot.slane %v3063, 3
      %v3166 = vsel %vm918, %v3163, %v3165
      %v3167 = vrot.slane %v3064, 3
      %v3168 = vsel %vm918, %v3165, %v3167
      %v3169 = vrot.slane %v3065, 3
      %v3170 = vrot.slane %v3066, 3
      %v3171 = vsel %vm918, %v3169, %v3170
      %v3172 = vrot.slane %v3067, 3
      %v3173 = vsel %vm918, %v3170, %v3172
      %v3174 = vrot.slane %v3068, 3
      %v3175 = vsel %vm918, %v3172, %v3174
      %v3176 = vrot.slane %v3069, 3
      %v3177 = vsel %vm918, %v3174, %v3176
      %v3178 = vrot.slane %v3070, 3
      %v3179 = vrot.slane %v3071, 3
      %v3180 = vsel %vm918, %v3178, %v3179
      %v3181 = vrot.slane %v3072, 3
      %v3182 = vsel %vm918, %v3179, %v3181
      %v3183 = vrot.slane %v3073, 3
      %v3184 = vsel %vm918, %v3181, %v3183
      %v3185 = vrot.slane %v3074, 3
      %v3186 = vsel %vm918, %v3183, %v3185
      %v3219 = vadd.f32 %v2998, %v3117
      %v3220 = vadd.f32 %v2999, %v3119
      %v3221 = vadd.f32 %v3000, %v3121
      %v3222 = vadd.f32 %v3001, %v3123
      %v3223 = vadd.f32 %v3002, %v3126
      %v3224 = vadd.f32 %v3003, %v3128
      %v3225 = vadd.f32 %v3004, %v3130
      %v3226 = vadd.f32 %v3005, %v3132
      %v3227 = vadd.f32 %v3006, %v3135
      %v3228 = vadd.f32 %v3007, %v3137
      %v3229 = vadd.f32 %v3008, %v3139
      %v3230 = vadd.f32 %v3009, %v3141
      %v3231 = vadd.f32 %v3010, %v3144
      %v3232 = vadd.f32 %v3011, %v3146
      %v3233 = vadd.f32 %v3012, %v3148
      %v3234 = vadd.f32 %v3013, %v3150
      %v3235 = vadd.f32 %v3014, %v3153
      %v3236 = vadd.f32 %v3015, %v3155
      %v3237 = vadd.f32 %v3016, %v3157
      %v3238 = vadd.f32 %v3017, %v3159
      %v3239 = vadd.f32 %v3018, %v3162
      %v3240 = vadd.f32 %v3019, %v3164
      %v3241 = vadd.f32 %v3020, %v3166
      %v3242 = vadd.f32 %v3021, %v3168
      %v3243 = vadd.f32 %v3022, %v3171
      %v3244 = vadd.f32 %v3023, %v3173
      %v3245 = vadd.f32 %v3024, %v3175
      %v3246 = vadd.f32 %v3025, %v3177
      %v3247 = vadd.f32 %v3026, %v3180
      %v3248 = vadd.f32 %v3027, %v3182
      %v3249 = vadd.f32 %v3028, %v3184
      %v3250 = vadd.f32 %v3029, %v3186
      %v3251 = vld [vmem:[%s2] sm:$0x1]
      %v3253 = vlaneseq
      %v3254 = vshrl.u32 %v3253, 7
      %v3255 = vsub.s32 0, %v3254
      %v3256 = vrot.slane %v3251, %v3255
      %v3258 = vadd.f32 %v1755, %v3256
      %v3259 = vadd.f32 %v1756, %v3256
      %v3260 = vadd.f32 %v1757, %v3256
      %v3261 = vadd.f32 %v1758, %v3256
      %v3262 = vadd.f32 %v3219, %v3256
      %v3263 = vadd.f32 %v3220, %v3256
      %v3264 = vadd.f32 %v3221, %v3256
      %v3265 = vadd.f32 %v3222, %v3256
      %v3266 = vadd.f32 %v1759, %v3256
      %v3267 = vadd.f32 %v1760, %v3256
      %v3268 = vadd.f32 %v1761, %v3256
      %v3269 = vadd.f32 %v1762, %v3256
      %v3270 = vadd.f32 %v3223, %v3256
      %v3271 = vadd.f32 %v3224, %v3256
      %v3272 = vadd.f32 %v3225, %v3256
      %v3273 = vadd.f32 %v3226, %v3256
      %v3274 = vadd.f32 %v1763, %v3256
      %v3275 = vadd.f32 %v1764, %v3256
      %v3276 = vadd.f32 %v1765, %v3256
      %v3277 = vadd.f32 %v1766, %v3256
      %v3278 = vadd.f32 %v3227, %v3256
      %v3279 = vadd.f32 %v3228, %v3256
      %v3280 = vadd.f32 %v3229, %v3256
      %v3281 = vadd.f32 %v3230, %v3256
      %v3282 = vadd.f32 %v1767, %v3256
      %v3283 = vadd.f32 %v1768, %v3256
      %v3284 = vadd.f32 %v1769, %v3256
      %v3285 = vadd.f32 %v1770, %v3256
      %v3286 = vadd.f32 %v3231, %v3256
      %v3287 = vadd.f32 %v3232, %v3256
      %v3288 = vadd.f32 %v3233, %v3256
      %v3289 = vadd.f32 %v3234, %v3256
      %v3290 = vadd.f32 %v1771, %v3256
      %v3291 = vadd.f32 %v1772, %v3256
      %v3292 = vadd.f32 %v1773, %v3256
      %v3293 = vadd.f32 %v1774, %v3256
      %v3294 = vadd.f32 %v3235, %v3256
      %v3295 = vadd.f32 %v3236, %v3256
      %v3296 = vadd.f32 %v3237, %v3256
      %v3297 = vadd.f32 %v3238, %v3256
      %v3298 = vadd.f32 %v1775, %v3256
      %v3299 = vadd.f32 %v1776, %v3256
      %v3300 = vadd.f32 %v1777, %v3256
      %v3301 = vadd.f32 %v1778, %v3256
      %v3302 = vadd.f32 %v3239, %v3256
      %v3303 = vadd.f32 %v3240, %v3256
      %v3304 = vadd.f32 %v3241, %v3256
      %v3305 = vadd.f32 %v3242, %v3256
      %v3306 = vadd.f32 %v1779, %v3256
      %v3307 = vadd.f32 %v1780, %v3256
      %v3308 = vadd.f32 %v1781, %v3256
      %v3309 = vadd.f32 %v1782, %v3256
      %v3310 = vadd.f32 %v3243, %v3256
      %v3311 = vadd.f32 %v3244, %v3256
      %v3312 = vadd.f32 %v3245, %v3256
      %v3313 = vadd.f32 %v3246, %v3256
      %v3314 = vadd.f32 %v1783, %v3256
      %v3315 = vadd.f32 %v1784, %v3256
      %v3316 = vadd.f32 %v1785, %v3256
      %v3317 = vadd.f32 %v1786, %v3256
      %v3318 = vadd.f32 %v3247, %v3256
      %v3319 = vadd.f32 %v3248, %v3256
      %v3320 = vadd.f32 %v3249, %v3256
      %v3321 = vadd.f32 %v3250, %v3256
      %vm3322 = vcmask 31744
      %v3323 = vsel %vm3322, %v3258, 0.0
      %v3324 = vsel %vm3322, %v3259, 0.0
      %v3325 = vadd.f32 %v3323, %v3324
      %v3326 = vsel %vm3322, %v3260, 0.0
      %v3327 = vadd.f32 %v3325, %v3326
      %v3328 = vsel %vm3322, %v3261, 0.0
      %v3329 = vadd.f32 %v3327, %v3328
      %v3330 = vsel %vm3322, %v3262, 0.0
      %v3331 = vadd.f32 %v3329, %v3330
      %v3332 = vsel %vm3322, %v3263, 0.0
      %v3333 = vadd.f32 %v3331, %v3332
      %v3334 = vsel %vm3322, %v3264, 0.0
      %v3335 = vadd.f32 %v3333, %v3334
      %v3336 = vsel %vm3322, %v3265, 0.0
      %v3337 = vadd.f32 %v3335, %v3336
      %v3338 = vsel %vm3322, %v3266, 0.0
      %v3339 = vadd.f32 %v3337, %v3338
      %v3340 = vsel %vm3322, %v3267, 0.0
      %v3341 = vadd.f32 %v3339, %v3340
      %v3342 = vsel %vm3322, %v3268, 0.0
      %v3343 = vadd.f32 %v3341, %v3342
      %v3344 = vsel %vm3322, %v3269, 0.0
      %v3345 = vadd.f32 %v3343, %v3344
      %v3346 = vsel %vm3322, %v3270, 0.0
      %v3347 = vadd.f32 %v3345, %v3346
      %v3348 = vsel %vm3322, %v3271, 0.0
      %v3349 = vadd.f32 %v3347, %v3348
      %v3350 = vsel %vm3322, %v3272, 0.0
      %v3351 = vadd.f32 %v3349, %v3350
      %v3352 = vsel %vm3322, %v3273, 0.0
      %v3353 = vadd.f32 %v3351, %v3352
      %v3354 = vsel %vm3322, %v3274, 0.0
      %v3355 = vadd.f32 %v3353, %v3354
      %v3356 = vsel %vm3322, %v3275, 0.0
      %v3357 = vadd.f32 %v3355, %v3356
      %v3358 = vsel %vm3322, %v3276, 0.0
      %v3359 = vadd.f32 %v3357, %v3358
      %v3360 = vsel %vm3322, %v3277, 0.0
      %v3361 = vadd.f32 %v3359, %v3360
      %v3362 = vsel %vm3322, %v3278, 0.0
      %v3363 = vadd.f32 %v3361, %v3362
      %v3364 = vsel %vm3322, %v3279, 0.0
      %v3365 = vadd.f32 %v3363, %v3364
      %v3366 = vsel %vm3322, %v3280, 0.0
      %v3367 = vadd.f32 %v3365, %v3366
      %v3368 = vsel %vm3322, %v3281, 0.0
      %v3369 = vadd.f32 %v3367, %v3368
      %v3370 = vsel %vm3322, %v3282, 0.0
      %v3371 = vadd.f32 %v3369, %v3370
      %v3372 = vsel %vm3322, %v3283, 0.0
      %v3373 = vadd.f32 %v3371, %v3372
      %v3374 = vsel %vm3322, %v3284, 0.0
      %v3375 = vadd.f32 %v3373, %v3374
      %v3376 = vsel %vm3322, %v3285, 0.0
      %v3377 = vadd.f32 %v3375, %v3376
      %v3378 = vsel %vm3322, %v3286, 0.0
      %v3379 = vadd.f32 %v3377, %v3378
      %v3380 = vsel %vm3322, %v3287, 0.0
      %v3381 = vadd.f32 %v3379, %v3380
      %v3382 = vsel %vm3322, %v3288, 0.0
      %v3383 = vadd.f32 %v3381, %v3382
      %v3384 = vsel %vm3322, %v3289, 0.0
      %v3385 = vadd.f32 %v3383, %v3384
      %v3386 = vsel %vm3322, %v3290, 0.0
      %v3387 = vadd.f32 %v3385, %v3386
      %v3388 = vsel %vm3322, %v3291, 0.0
      %v3389 = vadd.f32 %v3387, %v3388
      %v3390 = vsel %vm3322, %v3292, 0.0
      %v3391 = vadd.f32 %v3389, %v3390
      %v3392 = vsel %vm3322, %v3293, 0.0
      %v3393 = vadd.f32 %v3391, %v3392
      %v3394 = vsel %vm3322, %v3294, 0.0
      %v3395 = vadd.f32 %v3393, %v3394
      %v3396 = vsel %vm3322, %v3295, 0.0
      %v3397 = vadd.f32 %v3395, %v3396
      %v3398 = vsel %vm3322, %v3296, 0.0
      %v3399 = vadd.f32 %v3397, %v3398
      %v3400 = vsel %vm3322, %v3297, 0.0
      %v3401 = vadd.f32 %v3399, %v3400
      %v3402 = vsel %vm3322, %v3298, 0.0
      %v3403 = vadd.f32 %v3401, %v3402
      %v3404 = vsel %vm3322, %v3299, 0.0
      %v3405 = vadd.f32 %v3403, %v3404
      %v3406 = vsel %vm3322, %v3300, 0.0
      %v3407 = vadd.f32 %v3405, %v3406
      %v3408 = vsel %vm3322, %v3301, 0.0
      %v3409 = vadd.f32 %v3407, %v3408
      %v3410 = vsel %vm3322, %v3302, 0.0
      %v3411 = vadd.f32 %v3409, %v3410
      %v3412 = vsel %vm3322, %v3303, 0.0
      %v3413 = vadd.f32 %v3411, %v3412
      %v3414 = vsel %vm3322, %v3304, 0.0
      %v3415 = vadd.f32 %v3413, %v3414
      %v3416 = vsel %vm3322, %v3305, 0.0
      %v3417 = vadd.f32 %v3415, %v3416
      %v3418 = vsel %vm3322, %v3306, 0.0
      %v3419 = vadd.f32 %v3417, %v3418
      %v3420 = vsel %vm3322, %v3307, 0.0
      %v3421 = vadd.f32 %v3419, %v3420
      %v3422 = vsel %vm3322, %v3308, 0.0
      %v3423 = vadd.f32 %v3421, %v3422
      %v3424 = vsel %vm3322, %v3309, 0.0
      %v3425 = vadd.f32 %v3423, %v3424
      %v3426 = vsel %vm3322, %v3310, 0.0
      %v3427 = vadd.f32 %v3425, %v3426
      %v3428 = vsel %vm3322, %v3311, 0.0
      %v3429 = vadd.f32 %v3427, %v3428
      %v3430 = vsel %vm3322, %v3312, 0.0
      %v3431 = vadd.f32 %v3429, %v3430
      %v3432 = vsel %vm3322, %v3313, 0.0
      %v3433 = vadd.f32 %v3431, %v3432
      %v3434 = vsel %vm3322, %v3314, 0.0
      %v3435 = vadd.f32 %v3433, %v3434
      %v3436 = vsel %vm3322, %v3315, 0.0
      %v3437 = vadd.f32 %v3435, %v3436
      %v3438 = vsel %vm3322, %v3316, 0.0
      %v3439 = vadd.f32 %v3437, %v3438
      %v3440 = vsel %vm3322, %v3317, 0.0
      %v3441 = vadd.f32 %v3439, %v3440
      %v3442 = vsel %vm3322, %v3318, 0.0
      %v3443 = vadd.f32 %v3441, %v3442
      %v3444 = vsel %vm3322, %v3319, 0.0
      %v3445 = vadd.f32 %v3443, %v3444
      %v3446 = vsel %vm3322, %v3320, 0.0
      %v3447 = vadd.f32 %v3445, %v3446
      %v3448 = vsel %vm3322, %v3321, 0.0
      %v3449 = vadd.f32 %v3447, %v3448
      %v3450 = vrot.slane %v3449, 4
      %v3451 = vadd.f32 %v3449, %v3450
      %v3452 = vrot.slane %v3451, 2
      %v3453 = vadd.f32 %v3451, %v3452
      %v3454 = vrot.slane %v3453, 1
      %v3455 = vadd.f32 %v3453, %v3454
      %v3456 = vmul.f32 %v3258, %v3258
      %v3457 = vmul.f32 %v3259, %v3259
      %v3458 = vmul.f32 %v3260, %v3260
      %v3459 = vmul.f32 %v3261, %v3261
      %v3460 = vmul.f32 %v3262, %v3262
      %v3461 = vmul.f32 %v3263, %v3263
      %v3462 = vmul.f32 %v3264, %v3264
      %v3463 = vmul.f32 %v3265, %v3265
      %v3464 = vmul.f32 %v3266, %v3266
      %v3465 = vmul.f32 %v3267, %v3267
      %v3466 = vmul.f32 %v3268, %v3268
      %v3467 = vmul.f32 %v3269, %v3269
      %v3468 = vmul.f32 %v3270, %v3270
      %v3469 = vmul.f32 %v3271, %v3271
      %v3470 = vmul.f32 %v3272, %v3272
      %v3471 = vmul.f32 %v3273, %v3273
      %v3472 = vmul.f32 %v3274, %v3274
      %v3473 = vmul.f32 %v3275, %v3275
      %v3474 = vmul.f32 %v3276, %v3276
      %v3475 = vmul.f32 %v3277, %v3277
      %v3476 = vmul.f32 %v3278, %v3278
      %v3477 = vmul.f32 %v3279, %v3279
      %v3478 = vmul.f32 %v3280, %v3280
      %v3479 = vmul.f32 %v3281, %v3281
      %v3480 = vmul.f32 %v3282, %v3282
      %v3481 = vmul.f32 %v3283, %v3283
      %v3482 = vmul.f32 %v3284, %v3284
      %v3483 = vmul.f32 %v3285, %v3285
      %v3484 = vmul.f32 %v3286, %v3286
      %v3485 = vmul.f32 %v3287, %v3287
      %v3486 = vmul.f32 %v3288, %v3288
      %v3487 = vmul.f32 %v3289, %v3289
      %v3488 = vmul.f32 %v3290, %v3290
      %v3489 = vmul.f32 %v3291, %v3291
      %v3490 = vmul.f32 %v3292, %v3292
      %v3491 = vmul.f32 %v3293, %v3293
      %v3492 = vmul.f32 %v3294, %v3294
      %v3493 = vmul.f32 %v3295, %v3295
      %v3494 = vmul.f32 %v3296, %v3296
      %v3495 = vmul.f32 %v3297, %v3297
      %v3496 = vmul.f32 %v3298, %v3298
      %v3497 = vmul.f32 %v3299, %v3299
      %v3498 = vmul.f32 %v3300, %v3300
      %v3499 = vmul.f32 %v3301, %v3301
      %v3500 = vmul.f32 %v3302, %v3302
      %v3501 = vmul.f32 %v3303, %v3303
      %v3502 = vmul.f32 %v3304, %v3304
      %v3503 = vmul.f32 %v3305, %v3305
      %v3504 = vmul.f32 %v3306, %v3306
      %v3505 = vmul.f32 %v3307, %v3307
      %v3506 = vmul.f32 %v3308, %v3308
      %v3507 = vmul.f32 %v3309, %v3309
      %v3508 = vmul.f32 %v3310, %v3310
      %v3509 = vmul.f32 %v3311, %v3311
      %v3510 = vmul.f32 %v3312, %v3312
      %v3511 = vmul.f32 %v3313, %v3313
      %v3512 = vmul.f32 %v3314, %v3314
      %v3513 = vmul.f32 %v3315, %v3315
      %v3514 = vmul.f32 %v3316, %v3316
      %v3515 = vmul.f32 %v3317, %v3317
      %v3516 = vmul.f32 %v3318, %v3318
      %v3517 = vmul.f32 %v3319, %v3319
      %v3518 = vmul.f32 %v3320, %v3320
      %v3519 = vmul.f32 %v3321, %v3321
      %v3520 = vsel %vm3322, %v3456, 0.0
      %v3521 = vsel %vm3322, %v3457, 0.0
      %v3522 = vadd.f32 %v3520, %v3521
      %v3523 = vsel %vm3322, %v3458, 0.0
      %v3524 = vadd.f32 %v3522, %v3523
      %v3525 = vsel %vm3322, %v3459, 0.0
      %v3526 = vadd.f32 %v3524, %v3525
      %v3527 = vsel %vm3322, %v3460, 0.0
      %v3528 = vadd.f32 %v3526, %v3527
      %v3529 = vsel %vm3322, %v3461, 0.0
      %v3530 = vadd.f32 %v3528, %v3529
      %v3531 = vsel %vm3322, %v3462, 0.0
      %v3532 = vadd.f32 %v3530, %v3531
      %v3533 = vsel %vm3322, %v3463, 0.0
      %v3534 = vadd.f32 %v3532, %v3533
      %v3535 = vsel %vm3322, %v3464, 0.0
      %v3536 = vadd.f32 %v3534, %v3535
      %v3537 = vsel %vm3322, %v3465, 0.0
      %v3538 = vadd.f32 %v3536, %v3537
      %v3539 = vsel %vm3322, %v3466, 0.0
      %v3540 = vadd.f32 %v3538, %v3539
      %v3541 = vsel %vm3322, %v3467, 0.0
      %v3542 = vadd.f32 %v3540, %v3541
      %v3543 = vsel %vm3322, %v3468, 0.0
      %v3544 = vadd.f32 %v3542, %v3543
      %v3545 = vsel %vm3322, %v3469, 0.0
      %v3546 = vadd.f32 %v3544, %v3545
      %v3547 = vsel %vm3322, %v3470, 0.0
      %v3548 = vadd.f32 %v3546, %v3547
      %v3549 = vsel %vm3322, %v3471, 0.0
      %v3550 = vadd.f32 %v3548, %v3549
      %v3551 = vsel %vm3322, %v3472, 0.0
      %v3552 = vadd.f32 %v3550, %v3551
      %v3553 = vsel %vm3322, %v3473, 0.0
      %v3554 = vadd.f32 %v3552, %v3553
      %v3555 = vsel %vm3322, %v3474, 0.0
      %v3556 = vadd.f32 %v3554, %v3555
      %v3557 = vsel %vm3322, %v3475, 0.0
      %v3558 = vadd.f32 %v3556, %v3557
      %v3559 = vsel %vm3322, %v3476, 0.0
      %v3560 = vadd.f32 %v3558, %v3559
      %v3561 = vsel %vm3322, %v3477, 0.0
      %v3562 = vadd.f32 %v3560, %v3561
      %v3563 = vsel %vm3322, %v3478, 0.0
      %v3564 = vadd.f32 %v3562, %v3563
      %v3565 = vsel %vm3322, %v3479, 0.0
      %v3566 = vadd.f32 %v3564, %v3565
      %v3567 = vsel %vm3322, %v3480, 0.0
      %v3568 = vadd.f32 %v3566, %v3567
      %v3569 = vsel %vm3322, %v3481, 0.0
      %v3570 = vadd.f32 %v3568, %v3569
      %v3571 = vsel %vm3322, %v3482, 0.0
      %v3572 = vadd.f32 %v3570, %v3571
      %v3573 = vsel %vm3322, %v3483, 0.0
      %v3574 = vadd.f32 %v3572, %v3573
      %v3575 = vsel %vm3322, %v3484, 0.0
      %v3576 = vadd.f32 %v3574, %v3575
      %v3577 = vsel %vm3322, %v3485, 0.0
      %v3578 = vadd.f32 %v3576, %v3577
      %v3579 = vsel %vm3322, %v3486, 0.0
      %v3580 = vadd.f32 %v3578, %v3579
      %v3581 = vsel %vm3322, %v3487, 0.0
      %v3582 = vadd.f32 %v3580, %v3581
      %v3583 = vsel %vm3322, %v3488, 0.0
      %v3584 = vadd.f32 %v3582, %v3583
      %v3585 = vsel %vm3322, %v3489, 0.0
      %v3586 = vadd.f32 %v3584, %v3585
      %v3587 = vsel %vm3322, %v3490, 0.0
      %v3588 = vadd.f32 %v3586, %v3587
      %v3589 = vsel %vm3322, %v3491, 0.0
      %v3590 = vadd.f32 %v3588, %v3589
      %v3591 = vsel %vm3322, %v3492, 0.0
      %v3592 = vadd.f32 %v3590, %v3591
      %v3593 = vsel %vm3322, %v3493, 0.0
      %v3594 = vadd.f32 %v3592, %v3593
      %v3595 = vsel %vm3322, %v3494, 0.0
      %v3596 = vadd.f32 %v3594, %v3595
      %v3597 = vsel %vm3322, %v3495, 0.0
      %v3598 = vadd.f32 %v3596, %v3597
      %v3599 = vsel %vm3322, %v3496, 0.0
      %v3600 = vadd.f32 %v3598, %v3599
      %v3601 = vsel %vm3322, %v3497, 0.0
      %v3602 = vadd.f32 %v3600, %v3601
      %v3603 = vsel %vm3322, %v3498, 0.0
      %v3604 = vadd.f32 %v3602, %v3603
      %v3605 = vsel %vm3322, %v3499, 0.0
      %v3606 = vadd.f32 %v3604, %v3605
      %v3607 = vsel %vm3322, %v3500, 0.0
      %v3608 = vadd.f32 %v3606, %v3607
      %v3609 = vsel %vm3322, %v3501, 0.0
      %v3610 = vadd.f32 %v3608, %v3609
      %v3611 = vsel %vm3322, %v3502, 0.0
      %v3612 = vadd.f32 %v3610, %v3611
      %v3613 = vsel %vm3322, %v3503, 0.0
      %v3614 = vadd.f32 %v3612, %v3613
      %v3615 = vsel %vm3322, %v3504, 0.0
      %v3616 = vadd.f32 %v3614, %v3615
      %v3617 = vsel %vm3322, %v3505, 0.0
      %v3618 = vadd.f32 %v3616, %v3617
      %v3619 = vsel %vm3322, %v3506, 0.0
      %v3620 = vadd.f32 %v3618, %v3619
      %v3621 = vsel %vm3322, %v3507, 0.0
      %v3622 = vadd.f32 %v3620, %v3621
      %v3623 = vsel %vm3322, %v3508, 0.0
      %v3624 = vadd.f32 %v3622, %v3623
      %v3625 = vsel %vm3322, %v3509, 0.0
      %v3626 = vadd.f32 %v3624, %v3625
      %v3627 = vsel %vm3322, %v3510, 0.0
      %v3628 = vadd.f32 %v3626, %v3627
      %v3629 = vsel %vm3322, %v3511, 0.0
      %v3630 = vadd.f32 %v3628, %v3629
      %v3631 = vsel %vm3322, %v3512, 0.0
      %v3632 = vadd.f32 %v3630, %v3631
      %v3633 = vsel %vm3322, %v3513, 0.0
      %v3634 = vadd.f32 %v3632, %v3633
      %v3635 = vsel %vm3322, %v3514, 0.0
      %v3636 = vadd.f32 %v3634, %v3635
      %v3637 = vsel %vm3322, %v3515, 0.0
      %v3638 = vadd.f32 %v3636, %v3637
      %v3639 = vsel %vm3322, %v3516, 0.0
      %v3640 = vadd.f32 %v3638, %v3639
      %v3641 = vsel %vm3322, %v3517, 0.0
      %v3642 = vadd.f32 %v3640, %v3641
      %v3643 = vsel %vm3322, %v3518, 0.0
      %v3644 = vadd.f32 %v3642, %v3643
      %v3645 = vsel %vm3322, %v3519, 0.0
      %v3646 = vadd.f32 %v3644, %v3645
      %v3647 = vrot.slane %v3646, 4
      %v3648 = vadd.f32 %v3646, %v3647
      %v3649 = vrot.slane %v3648, 2
      %v3650 = vadd.f32 %v3648, %v3649
      %v3651 = vrot.slane %v3650, 1
      %v3652 = vadd.f32 %v3650, %v3651
      %vm3653 = vcmask 1040384
      %v3654 = vsel %vm3653, %v3455, %v3652
      %vm3655 = vcmask 25600
      %3656 = vst.msk [vmem:[%s190] sm:$0x3] %vm3655, %v3654
      %p3657 = scmp.lt.s32.totalorder %s18, 1
      %s3658 = scalar_select %p3657, %s18, 1
      %p3659 = scmp.lt.s32.totalorder %s19, 1
      %s3660 = scalar_select %p3659, %s19, 1
      %s3661 = smul.addr %s3658, 2
      %s3662 = sadd.s32 %s3660, %s3661
      %s3663 = smul.addr %s3662, 2
      %s3664 = scalar_lea.vmem %s3, %s3663
      // Predicated region
      $region33: #{depth_transpose_cnn_forward.3} parent=31 // pred_check
        %p3665 = pneg %p114
      $region34: #{depth_transpose_cnn_forward.3} parent=31 // pred_check_branch
        %3667 = sbr.rel (%p3665) target = $region36
      $region35: #{depth_transpose_cnn_forward.3} parent=31 // pred_region
        _
      $region36: #{depth_transpose_cnn_forward.3} parent=31 // pred_fallthru
        _
    $region32: #{depth_transpose_cnn_forward.3} parent=5 // pred_fallthru
      _
    %p3668 = scmp.le.s32.totalorder 2, %s9
    // Predicated region
    $region37: #{depth_transpose_cnn_forward.3} parent=5 // pred_check
      %p3669 = pneg %p3668
    $region38: #{depth_transpose_cnn_forward.3} parent=5 // pred_check_branch
      %3671 = sbr.rel (%p3669) target = $region40
    $region39: #{depth_transpose_cnn_forward.3} parent=5 // pred_region
      %s3672 = ssub.s32 %s9, 2
      // Predicated region
      $region41: #{depth_transpose_cnn_forward.3} parent=39 // pred_check
        %p3673 = pneg %p120
      $region42: #{depth_transpose_cnn_forward.3} parent=39 // pred_check_branch
        %3675 = sbr.rel (%p3673) target = $region44
      $region43: #{depth_transpose_cnn_forward.3} parent=39 // pred_region
        %p3676 = scmp.lt.s32.totalorder %s20, 1
        %s3677 = scalar_select %p3676, %s20, 1
        %p3678 = scmp.lt.s32.totalorder %s21, 1
        %s3679 = scalar_select %p3678, %s21, 1
        %s3680 = smul.addr %s3677, 2
        %s3681 = sadd.s32 %s3679, %s3680
        %s3682 = smul.addr %s3681, 2
        %s3683 = scalar_lea.vmem %s3, %s3682
      $region44: #{depth_transpose_cnn_forward.3} parent=39 // pred_fallthru
        _
    $region40: #{depth_transpose_cnn_forward.3} parent=5 // pred_fallthru
      _
  $region6: #{depth_transpose_cnn_forward.3} parent=0 // loop_footer
    %s13 = sadd.s32 1, %s9
  $region7: #{depth_transpose_cnn_forward.3} parent=0 // loop_footer_branch
    %8 = sbr.rel target = $region3
  $region8: #{depth_transpose_cnn_forward.3} parent=0 // loop_exit
    _

// kernel: depth_transpose_cnn_forward.4
$region0: #{depth_transpose_cnn_forward.4}
  #allocation0 [shape = 'u32[]', space=smem, size = 0x4, offset = 0x4, fixed_abs, tag = 'smem constant byte address 0x4 - core index']
  #allocation1 [shape = 'u32[144,128]{1,0:T(1,128)}', space=vmem, size = 0x12000, scoped, tag = 'internal scratch']
  %s0 = inlined_call_operand.vmem [shape: f32[2,18,35,4], index: 0, kind: input, shape index: {}]
  %s1 = inlined_call_operand.vmem [shape: f32[16,4], index: 1, kind: input, shape index: {}]
  %s2 = inlined_call_operand.vmem [shape: f32[1,4], index: 2, kind: input, shape index: {}]
  %s3 = inlined_call_operand.vmem [shape: f32[8,4], index: 3, kind: input, shape index: {}]
  %s4 = inlined_call_operand.vmem [shape: f32[1,4], index: 4, kind: input, shape index: {}]
  %s5 = inlined_call_operand.vmem [shape: f32[1,4], index: 5, kind: input, shape index: {}]
  %s6 = inlined_call_operand.vmem [shape: f32[2,2,8,2], index: 6, kind: output, shape index: {}]
  %s7 = sld [smem:[#allocation0]]
  $region57: #{depth_transpose_cnn_forward.4} parent=0
    _
  %s9 = ssub.s32 1, %s7
  %s10 = scalar_select 0, %s9, %s7
  loop: start=0, step=1, limit=6
  $region2: #{depth_transpose_cnn_forward.4} parent=0 // loop_pre_header
    _
  $region3: #{depth_transpose_cnn_forward.4} parent=0 // loop_header
    %s12 = sphi 0, %s16
    %p13 = scmp.ge.s32.totalorder %s12, 6
    %s19 = sphi 0, %s31
    %s20 = sphi 0, %s27
    %s21 = sphi 0, %s19
    %s22 = sphi 0, %s20
    %s23 = sphi 0, %s21
    %s24 = sphi 0, %s22
    %s34 = sphi 0, %s36
    %s37 = sphi 0, %s34
    %s38 = sphi 0, %s37
    %s54 = sphi 0, %s38
    %s58 = sphi 0, %s58
    %s60 = sphi 0, %s58
    %s61 = sphi 0, %s60
    %s75 = sphi 0, %s61
    %s79 = sphi 0, %s79
    %s81 = sphi 0, %s79
    %s82 = sphi 0, %s81
    %s96 = sphi 0, %s82
    %s100 = sphi 0, %s100
    %s102 = sphi 0, %s100
    %s103 = sphi 0, %s102
    %s117 = sphi 0, %s103
    %s121 = sphi 0, %s121
    %s123 = sphi 0, %s121
    %s124 = sphi 0, %s123
    %s138 = sphi 0, %s124
    %s142 = sphi 0, %s142
    %s144 = sphi 0, %s142
    %s145 = sphi 0, %s144
    %s159 = sphi 0, %s145
    %s167 = sphi 0, %s169
    %s170 = sphi 0, %s167
    %s171 = sphi 0, %s170
    %s187 = sphi 0, %s171
  $region4: #{depth_transpose_cnn_forward.4} parent=0 // loop_header_branch
    %15 = sbr.rel (%p13) target = $region8
  $region5: #{depth_transpose_cnn_forward.4} parent=0 // loop_body
    %s17 = ssub.s32 %s12, 1
    %s18 = ssub.s32 %s12, 2
    %s25 = sadd.s32 1, %s20
    %p26 = scmp.ge.s32.totalorder %s25, 2
    %s27 = scalar_select %p26, 0, %s25
    %s28 = sadd.s32 1, %s19
    %s29 = scalar_select %p26, %s28, %s19
    %p30 = scmp.ge.s32.totalorder %s29, 2
    %s31 = scalar_select %p30, 0, %s29
    %s32 = ssub.s32 %s19, %s31
    %p33 = scmp.eq.s32.totalorder %s32, 0
    %s35 = sadd.s32 %s34, 1
    %s36 = scalar_select %p33, %s34, %s35
    %p39 = pneg %p33
    %p40 = scmp.eq.s32.totalorder %s12, 3
    %p41 = por %p39, %p40
    %p42 = scmp.ne.s32.totalorder %s34, %s37
    %p43 = scmp.eq.s32.totalorder %s12, 0
    %p44 = por %p42, %p43
    %p45 = scmp.ne.s32.totalorder %s34, %s37
    %p46 = scmp.eq.s32.totalorder %s17, 3
    %p47 = por %p45, %p46
    %p48 = scmp.ne.s32.totalorder %s37, %s38
    %p49 = scmp.eq.s32.totalorder %s17, 0
    %p50 = por %p48, %p49
    %p51 = scmp.ne.s32.totalorder %s37, %s38
    %p52 = scmp.eq.s32.totalorder %s18, 3
    %p53 = por %p51, %p52
    %p55 = scmp.ne.s32.totalorder %s38, %s54
    %p56 = scmp.eq.s32.totalorder %s18, 0
    %p57 = por %p55, %p56
    %s59 = sadd.s32 %s58, 1
    %p62 = scmp.eq.s32.totalorder %s12, 3
    %p63 = scmp.ne.s32.totalorder %s58, %s60
    %p64 = scmp.eq.s32.totalorder %s12, 0
    %p65 = por %p63, %p64
    %p66 = scmp.ne.s32.totalorder %s58, %s60
    %p67 = scmp.eq.s32.totalorder %s17, 3
    %p68 = por %p66, %p67
    %p69 = scmp.ne.s32.totalorder %s60, %s61
    %p70 = scmp.eq.s32.totalorder %s17, 0
    %p71 = por %p69, %p70
    %p72 = scmp.ne.s32.totalorder %s60, %s61
    %p73 = scmp.eq.s32.totalorder %s18, 3
    %p74 = por %p72, %p73
    %p76 = scmp.ne.s32.totalorder %s61, %s75
    %p77 = scmp.eq.s32.totalorder %s18, 0
    %p78 = por %p76, %p77
    %s80 = sadd.s32 %s79, 1
    %p83 = scmp.eq.s32.totalorder %s12, 3
    %p84 = scmp.ne.s32.totalorder %s79, %s81
    %p85 = scmp.eq.s32.totalorder %s12, 0
    %p86 = por %p84, %p85
    %p87 = scmp.ne.s32.totalorder %s79, %s81
    %p88 = scmp.eq.s32.totalorder %s17, 3
    %p89 = por %p87, %p88
    %p90 = scmp.ne.s32.totalorder %s81, %s82
    %p91 = scmp.eq.s32.totalorder %s17, 0
    %p92 = por %p90, %p91
    %p93 = scmp.ne.s32.totalorder %s81, %s82
    %p94 = scmp.eq.s32.totalorder %s18, 3
    %p95 = por %p93, %p94
    %p97 = scmp.ne.s32.totalorder %s82, %s96
    %p98 = scmp.eq.s32.totalorder %s18, 0
    %p99 = por %p97, %p98
    %s101 = sadd.s32 %s100, 1
    %p104 = scmp.eq.s32.totalorder %s12, 3
    %p105 = scmp.ne.s32.totalorder %s100, %s102
    %p106 = scmp.eq.s32.totalorder %s12, 0
    %p107 = por %p105, %p106
    %p108 = scmp.ne.s32.totalorder %s100, %s102
    %p109 = scmp.eq.s32.totalorder %s17, 3
    %p110 = por %p108, %p109
    %p111 = scmp.ne.s32.totalorder %s102, %s103
    %p112 = scmp.eq.s32.totalorder %s17, 0
    %p113 = por %p111, %p112
    %p114 = scmp.ne.s32.totalorder %s102, %s103
    %p115 = scmp.eq.s32.totalorder %s18, 3
    %p116 = por %p114, %p115
    %p118 = scmp.ne.s32.totalorder %s103, %s117
    %p119 = scmp.eq.s32.totalorder %s18, 0
    %p120 = por %p118, %p119
    %s122 = sadd.s32 %s121, 1
    %p125 = scmp.eq.s32.totalorder %s12, 3
    %p126 = scmp.ne.s32.totalorder %s121, %s123
    %p127 = scmp.eq.s32.totalorder %s12, 0
    %p128 = por %p126, %p127
    %p129 = scmp.ne.s32.totalorder %s121, %s123
    %p130 = scmp.eq.s32.totalorder %s17, 3
    %p131 = por %p129, %p130
    %p132 = scmp.ne.s32.totalorder %s123, %s124
    %p133 = scmp.eq.s32.totalorder %s17, 0
    %p134 = por %p132, %p133
    %p135 = scmp.ne.s32.totalorder %s123, %s124
    %p136 = scmp.eq.s32.totalorder %s18, 3
    %p137 = por %p135, %p136
    %p139 = scmp.ne.s32.totalorder %s124, %s138
    %p140 = scmp.eq.s32.totalorder %s18, 0
    %p141 = por %p139, %p140
    %s143 = sadd.s32 %s142, 1
    %p146 = scmp.eq.s32.totalorder %s12, 3
    %p147 = scmp.ne.s32.totalorder %s142, %s144
    %p148 = scmp.eq.s32.totalorder %s12, 0
    %p149 = por %p147, %p148
    %p150 = scmp.ne.s32.totalorder %s142, %s144
    %p151 = scmp.eq.s32.totalorder %s17, 3
    %p152 = por %p150, %p151
    %p153 = scmp.ne.s32.totalorder %s144, %s145
    %p154 = scmp.eq.s32.totalorder %s17, 0
    %p155 = por %p153, %p154
    %p156 = scmp.ne.s32.totalorder %s144, %s145
    %p157 = scmp.eq.s32.totalorder %s18, 3
    %p158 = por %p156, %p157
    %p160 = scmp.ne.s32.totalorder %s145, %s159
    %p161 = scmp.eq.s32.totalorder %s18, 0
    %p162 = por %p160, %p161
    %s163 = ssub.s32 %s19, %s31
    %s164 = ssub.s32 %s20, %s27
    %s165 = sor.u32 %s163, %s164
    %p166 = scmp.eq.s32.totalorder %s165, 0
    %s168 = sadd.s32 %s167, 1
    %s169 = scalar_select %p166, %s167, %s168
    %p172 = pneg %p166
    %p173 = scmp.eq.s32.totalorder %s12, 3
    %p174 = por %p172, %p173
    %p175 = scmp.ne.s32.totalorder %s167, %s170
    %p176 = scmp.eq.s32.totalorder %s12, 0
    %p177 = por %p175, %p176
    %p178 = scmp.ne.s32.totalorder %s167, %s170
    %p179 = scmp.eq.s32.totalorder %s17, 3
    %p180 = por %p178, %p179
    %p181 = scmp.ne.s32.totalorder %s170, %s171
    %p182 = scmp.eq.s32.totalorder %s17, 0
    %p183 = por %p181, %p182
    %p184 = scmp.ne.s32.totalorder %s170, %s171
    %p185 = scmp.eq.s32.totalorder %s18, 3
    %p186 = por %p184, %p185
    %p188 = scmp.ne.s32.totalorder %s171, %s187
    %p189 = scmp.eq.s32.totalorder %s18, 0
    %p190 = por %p188, %p189
    %p191 = scmp.le.s32.totalorder 1, %s12
    %p192 = scmp.lt.s32.totalorder %s12, 5
    %p193 = pnand %p191, %p192
    %p194 = pneg %p193
    // Predicated region
    $region9: #{depth_transpose_cnn_forward.4} parent=5 // pred_check
      _
    $region10: #{depth_transpose_cnn_forward.4} parent=5 // pred_check_branch
      %196 = sbr.rel (%p193) target = $region12
    $region11: #{depth_transpose_cnn_forward.4} parent=5 // pred_region
      %s197 = ssub.s32 %s12, 1
      // Predicated region
      $region13: #{depth_transpose_cnn_forward.4} parent=11 // pred_check
        %p198 = pneg %p71
      $region14: #{depth_transpose_cnn_forward.4} parent=11 // pred_check_branch
        %200 = sbr.rel (%p198) target = $region16
      $region15: #{depth_transpose_cnn_forward.4} parent=11 // pred_region
        _
      $region16: #{depth_transpose_cnn_forward.4} parent=11 // pred_fallthru
        _
      // Predicated region
      $region17: #{depth_transpose_cnn_forward.4} parent=11 // pred_check
        %p201 = pneg %p92
      $region18: #{depth_transpose_cnn_forward.4} parent=11 // pred_check_branch
        %203 = sbr.rel (%p201) target = $region20
      $region19: #{depth_transpose_cnn_forward.4} parent=11 // pred_region
        _
      $region20: #{depth_transpose_cnn_forward.4} parent=11 // pred_fallthru
        _
      // Predicated region
      $region21: #{depth_transpose_cnn_forward.4} parent=11 // pred_check
        %p204 = pneg %p113
      $region22: #{depth_transpose_cnn_forward.4} parent=11 // pred_check_branch
        %206 = sbr.rel (%p204) target = $region24
      $region23: #{depth_transpose_cnn_forward.4} parent=11 // pred_region
        _
      $region24: #{depth_transpose_cnn_forward.4} parent=11 // pred_fallthru
        _
      // Predicated region
      $region25: #{depth_transpose_cnn_forward.4} parent=11 // pred_check
        %p207 = pneg %p134
      $region26: #{depth_transpose_cnn_forward.4} parent=11 // pred_check_branch
        %209 = sbr.rel (%p207) target = $region28
      $region27: #{depth_transpose_cnn_forward.4} parent=11 // pred_region
        _
      $region28: #{depth_transpose_cnn_forward.4} parent=11 // pred_fallthru
        _
      // Predicated region
      $region29: #{depth_transpose_cnn_forward.4} parent=11 // pred_check
        %p210 = pneg %p155
      $region30: #{depth_transpose_cnn_forward.4} parent=11 // pred_check_branch
        %212 = sbr.rel (%p210) target = $region32
      $region31: #{depth_transpose_cnn_forward.4} parent=11 // pred_region
        _
      $region32: #{depth_transpose_cnn_forward.4} parent=11 // pred_fallthru
        _
    $region12: #{depth_transpose_cnn_forward.4} parent=5 // pred_fallthru
      _
    %p213 = scmp.lt.s32.totalorder %s12, 4
    // Predicated region
    $region33: #{depth_transpose_cnn_forward.4} parent=5 // pred_check
      %p214 = pneg %p213
    $region34: #{depth_transpose_cnn_forward.4} parent=5 // pred_check_branch
      %216 = sbr.rel (%p214) target = $region36
    $region35: #{depth_transpose_cnn_forward.4} parent=5 // pred_region
      // Predicated region
      $region37: #{depth_transpose_cnn_forward.4} parent=35 // pred_check
        %p217 = pneg %p44
      $region38: #{depth_transpose_cnn_forward.4} parent=35 // pred_check_branch
        %219 = sbr.rel (%p217) target = $region40
      $region39: #{depth_transpose_cnn_forward.4} parent=35 // pred_region
        %p220 = scmp.lt.s32.totalorder %s19, 1
        %s221 = scalar_select %p220, %s19, 1
        %s222 = smul.addr %s221, 90
        %s223 = smul.addr %s222, 8
        %s224 = scalar_lea.vmem %s0, %s223
      $region40: #{depth_transpose_cnn_forward.4} parent=35 // pred_fallthru
        _
    $region36: #{depth_transpose_cnn_forward.4} parent=5 // pred_fallthru
      _
    %p225 = scmp.le.s32.totalorder 1, %s12
    %p226 = scmp.lt.s32.totalorder %s12, 5
    %p227 = pnand %p225, %p226
    %p228 = pneg %p227
    // Predicated region
    $region41: #{depth_transpose_cnn_forward.4} parent=5 // pred_check
      _
    $region42: #{depth_transpose_cnn_forward.4} parent=5 // pred_check_branch
      %230 = sbr.rel (%p227) target = $region44
    $region43: #{depth_transpose_cnn_forward.4} parent=5 // pred_region
      %s231 = ssub.s32 %s12, 1
      %p232 = scmp.lt.s32.totalorder %s21, 1
      %s233 = scalar_select %p232, %s21, 1
      %s234 = smul.addr %s233, 90
      %s235 = smul.addr %s234, 8
      %s236 = scalar_lea.vmem %s0, %s235
      %p237 = pneg %p50
      %p238 = pneg %p47
      %p239 = pneg %p71
      %p240 = pneg %p68
      %p241 = pneg %p92
      %p242 = pneg %p89
      %p243 = pneg %p113
      %p244 = pneg %p110
      %p245 = pneg %p134
      %p246 = pneg %p131
      %p247 = pneg %p155
      %p248 = pneg %p152
      %p249 = pneg %p183
      %p250 = pneg %p180
      %p251 = scmp.lt.s32.totalorder %s21, 1
      %s252 = scalar_select %p251, %s21, 1
      %p253 = scmp.lt.s32.totalorder %s22, 1
      %s254 = scalar_select %p253, %s22, 1
      %s255 = smul.addr %s252, 2
      %s256 = sadd.s32 %s254, %s255
      %s257 = smul.addr %s256, 8
      %s258 = scalar_lea.vmem %s6, %s257
      %p259 = scmp.lt.s32.totalorder %s21, 1
      %s260 = scalar_select %p259, %s21, 1
      %s261 = smul.addr %s260, 90
      %s262 = smul.addr %s261, 8
      %s263 = scalar_lea.vmem %s0, %s262
      %p264 = scmp.lt.s32.totalorder %s21, 1
      %s265 = scalar_select %p264, %s21, 1
      %p266 = scmp.lt.s32.totalorder %s22, 1
      %s267 = scalar_select %p266, %s22, 1
      %s268 = smul.addr %s265, 2
      %s269 = sadd.s32 %s267, %s268
      %s270 = smul.addr %s269, 8
      %s271 = scalar_lea.vmem %s6, %s270
      %s272 = smul.u32 %s22, 8
      %s273 = smul.u32 %s272, 40
      %s274 = scalar_lea.vmem %s263, %s273
      %v275 = vld [vmem:[%s274] sm:$0xff]
      %v276 = vld [vmem:[%s274 + $0x8] sm:$0xff]
      %v277 = vld [vmem:[%s274 + $0x10] sm:$0xff]
      %v278 = vld [vmem:[%s274 + $0x18] sm:$0xff]
      %v279 = vld [vmem:[%s274 + $0x20] sm:$0x7]
      %v280 = vld [vmem:[%s274 + $0x28] sm:$0xff]
      %v281 = vld [vmem:[%s274 + $0x30] sm:$0xff]
      %v282 = vld [vmem:[%s274 + $0x38] sm:$0xff]
      %v283 = vld [vmem:[%s274 + $0x40] sm:$0xff]
      %v284 = vld [vmem:[%s274 + $0x48] sm:$0x7]
      %v285 = vld [vmem:[%s274 + $0x50] sm:$0xff]
      %v286 = vld [vmem:[%s274 + $0x58] sm:$0xff]
      %v287 = vld [vmem:[%s274 + $0x60] sm:$0xff]
      %v288 = vld [vmem:[%s274 + $0x68] sm:$0xff]
      %v289 = vld [vmem:[%s274 + $0x70] sm:$0x7]
      %v290 = vld [vmem:[%s274 + $0x78] sm:$0xff]
      %v291 = vld [vmem:[%s274 + $0x80] sm:$0xff]
      %v292 = vld [vmem:[%s274 + $0x88] sm:$0xff]
      %v293 = vld [vmem:[%s274 + $0x90] sm:$0xff]
      %v294 = vld [vmem:[%s274 + $0x98] sm:$0x7]
      %v295 = vld [vmem:[%s274 + $0xa0] sm:$0xff]
      %v296 = vld [vmem:[%s274 + $0xa8] sm:$0xff]
      %v297 = vld [vmem:[%s274 + $0xb0] sm:$0xff]
      %v298 = vld [vmem:[%s274 + $0xb8] sm:$0xff]
      %v299 = vld [vmem:[%s274 + $0xc0] sm:$0x7]
      %v300 = vld [vmem:[%s274 + $0xc8] sm:$0xff]
      %v301 = vld [vmem:[%s274 + $0xd0] sm:$0xff]
      %v302 = vld [vmem:[%s274 + $0xd8] sm:$0xff]
      %v303 = vld [vmem:[%s274 + $0xe0] sm:$0xff]
      %v304 = vld [vmem:[%s274 + $0xe8] sm:$0x7]
      %v305 = vld [vmem:[%s274 + $0xf0] sm:$0xff]
      %v306 = vld [vmem:[%s274 + $0xf8] sm:$0xff]
      %v307 = vld [vmem:[%s274 + $0x100] sm:$0xff]
      %v308 = vld [vmem:[%s274 + $0x108] sm:$0xff]
      %v309 = vld [vmem:[%s274 + $0x110] sm:$0x7]
      %v310 = vld [vmem:[%s274 + $0x118] sm:$0xff]
      %v311 = vld [vmem:[%s274 + $0x120] sm:$0xff]
      %v312 = vld [vmem:[%s274 + $0x128] sm:$0xff]
      %v313 = vld [vmem:[%s274 + $0x130] sm:$0xff]
      %v314 = vld [vmem:[%s274 + $0x138] sm:$0x7]
      %s315 = sadd.s32 %s272, 1
      %s316 = smul.u32 %s315, 40
      %s317 = scalar_lea.vmem %s263, %s316
      %v318 = vld [vmem:[%s317] sm:$0xff]
      %v319 = vld [vmem:[%s317 + $0x8] sm:$0xff]
      %v320 = vld [vmem:[%s317 + $0x10] sm:$0xff]
      %v321 = vld [vmem:[%s317 + $0x18] sm:$0xff]
      %v322 = vld [vmem:[%s317 + $0x20] sm:$0x7]
      %v323 = vld [vmem:[%s317 + $0x28] sm:$0xff]
      %v324 = vld [vmem:[%s317 + $0x30] sm:$0xff]
      %v325 = vld [vmem:[%s317 + $0x38] sm:$0xff]
      %v326 = vld [vmem:[%s317 + $0x40] sm:$0xff]
      %v327 = vld [vmem:[%s317 + $0x48] sm:$0x7]
      %v328 = vld [vmem:[%s317 + $0x50] sm:$0xff]
      %v329 = vld [vmem:[%s317 + $0x58] sm:$0xff]
      %v330 = vld [vmem:[%s317 + $0x60] sm:$0xff]
      %v331 = vld [vmem:[%s317 + $0x68] sm:$0xff]
      %v332 = vld [vmem:[%s317 + $0x70] sm:$0x7]
      %v333 = vld [vmem:[%s317 + $0x78] sm:$0xff]
      %v334 = vld [vmem:[%s317 + $0x80] sm:$0xff]
      %v335 = vld [vmem:[%s317 + $0x88] sm:$0xff]
      %v336 = vld [vmem:[%s317 + $0x90] sm:$0xff]
      %v337 = vld [vmem:[%s317 + $0x98] sm:$0x7]
      %v338 = vld [vmem:[%s317 + $0xa0] sm:$0xff]
      %v339 = vld [vmem:[%s317 + $0xa8] sm:$0xff]
      %v340 = vld [vmem:[%s317 + $0xb0] sm:$0xff]
      %v341 = vld [vmem:[%s317 + $0xb8] sm:$0xff]
      %v342 = vld [vmem:[%s317 + $0xc0] sm:$0x7]
      %v343 = vld [vmem:[%s317 + $0xc8] sm:$0xff]
      %v344 = vld [vmem:[%s317 + $0xd0] sm:$0xff]
      %v345 = vld [vmem:[%s317 + $0xd8] sm:$0xff]
      %v346 = vld [vmem:[%s317 + $0xe0] sm:$0xff]
      %v347 = vld [vmem:[%s317 + $0xe8] sm:$0x7]
      %v348 = vld [vmem:[%s317 + $0xf0] sm:$0xff]
      %v349 = vld [vmem:[%s317 + $0xf8] sm:$0xff]
      %v350 = vld [vmem:[%s317 + $0x100] sm:$0xff]
      %v351 = vld [vmem:[%s317 + $0x108] sm:$0xff]
      %v352 = vld [vmem:[%s317 + $0x110] sm:$0x7]
      %v353 = vld [vmem:[%s317 + $0x118] sm:$0xff]
      %v354 = vld [vmem:[%s317 + $0x120] sm:$0xff]
      %v355 = vld [vmem:[%s317 + $0x128] sm:$0xff]
      %v356 = vld [vmem:[%s317 + $0x130] sm:$0xff]
      %v357 = vld [vmem:[%s317 + $0x138] sm:$0x7]
      %s358 = sadd.s32 %s272, 2
      %s359 = smul.u32 %s358, 40
      %s360 = scalar_lea.vmem %s263, %s359
      %v361 = vld [vmem:[%s360] sm:$0xff]
      %v362 = vld [vmem:[%s360 + $0x8] sm:$0xff]
      %v363 = vld [vmem:[%s360 + $0x10] sm:$0xff]
      %v364 = vld [vmem:[%s360 + $0x18] sm:$0xff]
      %v365 = vld [vmem:[%s360 + $0x20] sm:$0x7]
      %v366 = vld [vmem:[%s360 + $0x28] sm:$0xff]
      %v367 = vld [vmem:[%s360 + $0x30] sm:$0xff]
      %v368 = vld [vmem:[%s360 + $0x38] sm:$0xff]
      %v369 = vld [vmem:[%s360 + $0x40] sm:$0xff]
      %v370 = vld [vmem:[%s360 + $0x48] sm:$0x7]
      %v371 = vld [vmem:[%s360 + $0x50] sm:$0xff]
      %v372 = vld [vmem:[%s360 + $0x58] sm:$0xff]
      %v373 = vld [vmem:[%s360 + $0x60] sm:$0xff]
      %v374 = vld [vmem:[%s360 + $0x68] sm:$0xff]
      %v375 = vld [vmem:[%s360 + $0x70] sm:$0x7]
      %v376 = vld [vmem:[%s360 + $0x78] sm:$0xff]
      %v377 = vld [vmem:[%s360 + $0x80] sm:$0xff]
      %v378 = vld [vmem:[%s360 + $0x88] sm:$0xff]
      %v379 = vld [vmem:[%s360 + $0x90] sm:$0xff]
      %v380 = vld [vmem:[%s360 + $0x98] sm:$0x7]
      %v381 = vld [vmem:[%s360 + $0xa0] sm:$0xff]
      %v382 = vld [vmem:[%s360 + $0xa8] sm:$0xff]
      %v383 = vld [vmem:[%s360 + $0xb0] sm:$0xff]
      %v384 = vld [vmem:[%s360 + $0xb8] sm:$0xff]
      %v385 = vld [vmem:[%s360 + $0xc0] sm:$0x7]
      %v386 = vld [vmem:[%s360 + $0xc8] sm:$0xff]
      %v387 = vld [vmem:[%s360 + $0xd0] sm:$0xff]
      %v388 = vld [vmem:[%s360 + $0xd8] sm:$0xff]
      %v389 = vld [vmem:[%s360 + $0xe0] sm:$0xff]
      %v390 = vld [vmem:[%s360 + $0xe8] sm:$0x7]
      %v391 = vld [vmem:[%s360 + $0xf0] sm:$0xff]
      %v392 = vld [vmem:[%s360 + $0xf8] sm:$0xff]
      %v393 = vld [vmem:[%s360 + $0x100] sm:$0xff]
      %v394 = vld [vmem:[%s360 + $0x108] sm:$0xff]
      %v395 = vld [vmem:[%s360 + $0x110] sm:$0x7]
      %v396 = vld [vmem:[%s360 + $0x118] sm:$0xff]
      %v397 = vld [vmem:[%s360 + $0x120] sm:$0xff]
      %v398 = vld [vmem:[%s360 + $0x128] sm:$0xff]
      %v399 = vld [vmem:[%s360 + $0x130] sm:$0xff]
      %v400 = vld [vmem:[%s360 + $0x138] sm:$0x7]
      %v401 = vld [vmem:[%s1] sm:$0x1]
      %v402 = vlaneseq
      %v403 = vshrl.u32 %v402, 7
      %v404 = vsub.s32 0, %v403
      %v405 = vrot.slane %v401, %v404
      %v406 = vmul.f32 %v275, %v405
      %v407 = vmul.f32 %v276, %v405
      %v408 = vmul.f32 %v277, %v405
      %v409 = vmul.f32 %v278, %v405
      %v410 = vmul.f32 %v280, %v405
      %v411 = vmul.f32 %v281, %v405
      %v412 = vmul.f32 %v282, %v405
      %v413 = vmul.f32 %v283, %v405
      %v414 = vmul.f32 %v285, %v405
      %v415 = vmul.f32 %v286, %v405
      %v416 = vmul.f32 %v287, %v405
      %v417 = vmul.f32 %v288, %v405
      %v418 = vmul.f32 %v290, %v405
      %v419 = vmul.f32 %v291, %v405
      %v420 = vmul.f32 %v292, %v405
      %v421 = vmul.f32 %v293, %v405
      %v422 = vmul.f32 %v295, %v405
      %v423 = vmul.f32 %v296, %v405
      %v424 = vmul.f32 %v297, %v405
      %v425 = vmul.f32 %v298, %v405
      %v426 = vmul.f32 %v300, %v405
      %v427 = vmul.f32 %v301, %v405
      %v428 = vmul.f32 %v302, %v405
      %v429 = vmul.f32 %v303, %v405
      %v430 = vmul.f32 %v305, %v405
      %v431 = vmul.f32 %v306, %v405
      %v432 = vmul.f32 %v307, %v405
      %v433 = vmul.f32 %v308, %v405
      %v434 = vmul.f32 %v310, %v405
      %v435 = vmul.f32 %v311, %v405
      %v436 = vmul.f32 %v312, %v405
      %v437 = vmul.f32 %v313, %v405
      %v438 = vadd.f32 %v406, 0.0
      %v439 = vadd.f32 %v407, 0.0
      %v440 = vadd.f32 %v408, 0.0
      %v441 = vadd.f32 %v409, 0.0
      %v442 = vadd.f32 %v410, 0.0
      %v443 = vadd.f32 %v411, 0.0
      %v444 = vadd.f32 %v412, 0.0
      %v445 = vadd.f32 %v413, 0.0
      %v446 = vadd.f32 %v414, 0.0
      %v447 = vadd.f32 %v415, 0.0
      %v448 = vadd.f32 %v416, 0.0
      %v449 = vadd.f32 %v417, 0.0
      %v450 = vadd.f32 %v418, 0.0
      %v451 = vadd.f32 %v419, 0.0
      %v452 = vadd.f32 %v420, 0.0
      %v453 = vadd.f32 %v421, 0.0
      %v454 = vadd.f32 %v422, 0.0
      %v455 = vadd.f32 %v423, 0.0
      %v456 = vadd.f32 %v424, 0.0
      %v457 = vadd.f32 %v425, 0.0
      %v458 = vadd.f32 %v426, 0.0
      %v459 = vadd.f32 %v427, 0.0
      %v460 = vadd.f32 %v428, 0.0
      %v461 = vadd.f32 %v429, 0.0
      %v462 = vadd.f32 %v430, 0.0
      %v463 = vadd.f32 %v431, 0.0
      %v464 = vadd.f32 %v432, 0.0
      %v465 = vadd.f32 %v433, 0.0
      %v466 = vadd.f32 %v434, 0.0
      %v467 = vadd.f32 %v435, 0.0
      %v468 = vadd.f32 %v436, 0.0
      %v469 = vadd.f32 %v437, 0.0
      %v470 = vld [vmem:[%s1 + $0x1] sm:$0x1]
      %v471 = vlaneseq
      %v472 = vshrl.u32 %v471, 7
      %v473 = vsub.s32 0, %v472
      %v474 = vrot.slane %v470, %v473
      %v475 = vmul.f32 %v275, %v474
      %v476 = vmul.f32 %v276, %v474
      %v477 = vmul.f32 %v277, %v474
      %v478 = vmul.f32 %v278, %v474
      %v479 = vmul.f32 %v279, %v474
      %v480 = vmul.f32 %v280, %v474
      %v481 = vmul.f32 %v281, %v474
      %v482 = vmul.f32 %v282, %v474
      %v483 = vmul.f32 %v283, %v474
      %v484 = vmul.f32 %v284, %v474
      %v485 = vmul.f32 %v285, %v474
      %v486 = vmul.f32 %v286, %v474
      %v487 = vmul.f32 %v287, %v474
      %v488 = vmul.f32 %v288, %v474
      %v489 = vmul.f32 %v289, %v474
      %v490 = vmul.f32 %v290, %v474
      %v491 = vmul.f32 %v291, %v474
      %v492 = vmul.f32 %v292, %v474
      %v493 = vmul.f32 %v293, %v474
      %v494 = vmul.f32 %v294, %v474
      %v495 = vmul.f32 %v295, %v474
      %v496 = vmul.f32 %v296, %v474
      %v497 = vmul.f32 %v297, %v474
      %v498 = vmul.f32 %v298, %v474
      %v499 = vmul.f32 %v299, %v474
      %v500 = vmul.f32 %v300, %v474
      %v501 = vmul.f32 %v301, %v474
      %v502 = vmul.f32 %v302, %v474
      %v503 = vmul.f32 %v303, %v474
      %v504 = vmul.f32 %v304, %v474
      %v505 = vmul.f32 %v305, %v474
      %v506 = vmul.f32 %v306, %v474
      %v507 = vmul.f32 %v307, %v474
      %v508 = vmul.f32 %v308, %v474
      %v509 = vmul.f32 %v309, %v474
      %v510 = vmul.f32 %v310, %v474
      %v511 = vmul.f32 %v311, %v474
      %v512 = vmul.f32 %v312, %v474
      %v513 = vmul.f32 %v313, %v474
      %v514 = vmul.f32 %v314, %v474
      %vm555 = vcmask 1046528
      %v556 = vrot.slane %v475, 1
      %v557 = vrot.slane %v476, 1
      %v558 = vsel %vm555, %v556, %v557
      %v559 = vrot.slane %v477, 1
      %v560 = vsel %vm555, %v557, %v559
      %v561 = vrot.slane %v478, 1
      %v562 = vsel %vm555, %v559, %v561
      %v563 = vrot.slane %v479, 1
      %v564 = vsel %vm555, %v561, %v563
      %v565 = vrot.slane %v480, 1
      %v566 = vrot.slane %v481, 1
      %v567 = vsel %vm555, %v565, %v566
      %v568 = vrot.slane %v482, 1
      %v569 = vsel %vm555, %v566, %v568
      %v570 = vrot.slane %v483, 1
      %v571 = vsel %vm555, %v568, %v570
      %v572 = vrot.slane %v484, 1
      %v573 = vsel %vm555, %v570, %v572
      %v574 = vrot.slane %v485, 1
      %v575 = vrot.slane %v486, 1
      %v576 = vsel %vm555, %v574, %v575
      %v577 = vrot.slane %v487, 1
      %v578 = vsel %vm555, %v575, %v577
      %v579 = vrot.slane %v488, 1
      %v580 = vsel %vm555, %v577, %v579
      %v581 = vrot.slane %v489, 1
      %v582 = vsel %vm555, %v579, %v581
      %v583 = vrot.slane %v490, 1
      %v584 = vrot.slane %v491, 1
      %v585 = vsel %vm555, %v583, %v584
      %v586 = vrot.slane %v492, 1
      %v587 = vsel %vm555, %v584, %v586
      %v588 = vrot.slane %v493, 1
      %v589 = vsel %vm555, %v586, %v588
      %v590 = vrot.slane %v494, 1
      %v591 = vsel %vm555, %v588, %v590
      %v592 = vrot.slane %v495, 1
      %v593 = vrot.slane %v496, 1
      %v594 = vsel %vm555, %v592, %v593
      %v595 = vrot.slane %v497, 1
      %v596 = vsel %vm555, %v593, %v595
      %v597 = vrot.slane %v498, 1
      %v598 = vsel %vm555, %v595, %v597
      %v599 = vrot.slane %v499, 1
      %v600 = vsel %vm555, %v597, %v599
      %v601 = vrot.slane %v500, 1
      %v602 = vrot.slane %v501, 1
      %v603 = vsel %vm555, %v601, %v602
      %v604 = vrot.slane %v502, 1
      %v605 = vsel %vm555, %v602, %v604
      %v606 = vrot.slane %v503, 1
      %v607 = vsel %vm555, %v604, %v606
      %v608 = vrot.slane %v504, 1
      %v609 = vsel %vm555, %v606, %v608
      %v610 = vrot.slane %v505, 1
      %v611 = vrot.slane %v506, 1
      %v612 = vsel %vm555, %v610, %v611
      %v613 = vrot.slane %v507, 1
      %v614 = vsel %vm555, %v611, %v613
      %v615 = vrot.slane %v508, 1
      %v616 = vsel %vm555, %v613, %v615
      %v617 = vrot.slane %v509, 1
      %v618 = vsel %vm555, %v615, %v617
      %v619 = vrot.slane %v510, 1
      %v620 = vrot.slane %v511, 1
      %v621 = vsel %vm555, %v619, %v620
      %v622 = vrot.slane %v512, 1
      %v623 = vsel %vm555, %v620, %v622
      %v624 = vrot.slane %v513, 1
      %v625 = vsel %vm555, %v622, %v624
      %v626 = vrot.slane %v514, 1
      %v627 = vsel %vm555, %v624, %v626
      %v660 = vadd.f32 %v438, %v558
      %v661 = vadd.f32 %v439, %v560
      %v662 = vadd.f32 %v440, %v562
      %v663 = vadd.f32 %v441, %v564
      %v664 = vadd.f32 %v442, %v567
      %v665 = vadd.f32 %v443, %v569
      %v666 = vadd.f32 %v444, %v571
      %v667 = vadd.f32 %v445, %v573
      %v668 = vadd.f32 %v446, %v576
      %v669 = vadd.f32 %v447, %v578
      %v670 = vadd.f32 %v448, %v580
      %v671 = vadd.f32 %v449, %v582
      %v672 = vadd.f32 %v450, %v585
      %v673 = vadd.f32 %v451, %v587
      %v674 = vadd.f32 %v452, %v589
      %v675 = vadd.f32 %v453, %v591
      %v676 = vadd.f32 %v454, %v594
      %v677 = vadd.f32 %v455, %v596
      %v678 = vadd.f32 %v456, %v598
      %v679 = vadd.f32 %v457, %v600
      %v680 = vadd.f32 %v458, %v603
      %v681 = vadd.f32 %v459, %v605
      %v682 = vadd.f32 %v460, %v607
      %v683 = vadd.f32 %v461, %v609
      %v684 = vadd.f32 %v462, %v612
      %v685 = vadd.f32 %v463, %v614
      %v686 = vadd.f32 %v464, %v616
      %v687 = vadd.f32 %v465, %v618
      %v688 = vadd.f32 %v466, %v621
      %v689 = vadd.f32 %v467, %v623
      %v690 = vadd.f32 %v468, %v625
      %v691 = vadd.f32 %v469, %v627
      %v692 = vld [vmem:[%s1 + $0x2] sm:$0x1]
      %v693 = vlaneseq
      %v694 = vshrl.u32 %v693, 7
      %v695 = vsub.s32 0, %v694
      %v696 = vrot.slane %v692, %v695
      %v697 = vmul.f32 %v275, %v696
      %v698 = vmul.f32 %v276, %v696
      %v699 = vmul.f32 %v277, %v696
      %v700 = vmul.f32 %v278, %v696
      %v701 = vmul.f32 %v279, %v696
      %v702 = vmul.f32 %v280, %v696
      %v703 = vmul.f32 %v281, %v696
      %v704 = vmul.f32 %v282, %v696
      %v705 = vmul.f32 %v283, %v696
      %v706 = vmul.f32 %v284, %v696
      %v707 = vmul.f32 %v285, %v696
      %v708 = vmul.f32 %v286, %v696
      %v709 = vmul.f32 %v287, %v696
      %v710 = vmul.f32 %v288, %v696
      %v711 = vmul.f32 %v289, %v696
      %v712 = vmul.f32 %v290, %v696
      %v713 = vmul.f32 %v291, %v696
      %v714 = vmul.f32 %v292, %v696
      %v715 = vmul.f32 %v293, %v696
      %v716 = vmul.f32 %v294, %v696
      %v717 = vmul.f32 %v295, %v696
      %v718 = vmul.f32 %v296, %v696
      %v719 = vmul.f32 %v297, %v696
      %v720 = vmul.f32 %v298, %v696
      %v721 = vmul.f32 %v299, %v696
      %v722 = vmul.f32 %v300, %v696
      %v723 = vmul.f32 %v301, %v696
      %v724 = vmul.f32 %v302, %v696
      %v725 = vmul.f32 %v303, %v696
      %v726 = vmul.f32 %v304, %v696
      %v727 = vmul.f32 %v305, %v696
      %v728 = vmul.f32 %v306, %v696
      %v729 = vmul.f32 %v307, %v696
      %v730 = vmul.f32 %v308, %v696
      %v731 = vmul.f32 %v309, %v696
      %v732 = vmul.f32 %v310, %v696
      %v733 = vmul.f32 %v311, %v696
      %v734 = vmul.f32 %v312, %v696
      %v735 = vmul.f32 %v313, %v696
      %v736 = vmul.f32 %v314, %v696
      %vm777 = vcmask 1045504
      %v778 = vrot.slane %v697, 2
      %v779 = vrot.slane %v698, 2
      %v780 = vsel %vm777, %v778, %v779
      %v781 = vrot.slane %v699, 2
      %v782 = vsel %vm777, %v779, %v781
      %v783 = vrot.slane %v700, 2
      %v784 = vsel %vm777, %v781, %v783
      %v785 = vrot.slane %v701, 2
      %v786 = vsel %vm777, %v783, %v785
      %v787 = vrot.slane %v702, 2
      %v788 = vrot.slane %v703, 2
      %v789 = vsel %vm777, %v787, %v788
      %v790 = vrot.slane %v704, 2
      %v791 = vsel %vm777, %v788, %v790
      %v792 = vrot.slane %v705, 2
      %v793 = vsel %vm777, %v790, %v792
      %v794 = vrot.slane %v706, 2
      %v795 = vsel %vm777, %v792, %v794
      %v796 = vrot.slane %v707, 2
      %v797 = vrot.slane %v708, 2
      %v798 = vsel %vm777, %v796, %v797
      %v799 = vrot.slane %v709, 2
      %v800 = vsel %vm777, %v797, %v799
      %v801 = vrot.slane %v710, 2
      %v802 = vsel %vm777, %v799, %v801
      %v803 = vrot.slane %v711, 2
      %v804 = vsel %vm777, %v801, %v803
      %v805 = vrot.slane %v712, 2
      %v806 = vrot.slane %v713, 2
      %v807 = vsel %vm777, %v805, %v806
      %v808 = vrot.slane %v714, 2
      %v809 = vsel %vm777, %v806, %v808
      %v810 = vrot.slane %v715, 2
      %v811 = vsel %vm777, %v808, %v810
      %v812 = vrot.slane %v716, 2
      %v813 = vsel %vm777, %v810, %v812
      %v814 = vrot.slane %v717, 2
      %v815 = vrot.slane %v718, 2
      %v816 = vsel %vm777, %v814, %v815
      %v817 = vrot.slane %v719, 2
      %v818 = vsel %vm777, %v815, %v817
      %v819 = vrot.slane %v720, 2
      %v820 = vsel %vm777, %v817, %v819
      %v821 = vrot.slane %v721, 2
      %v822 = vsel %vm777, %v819, %v821
      %v823 = vrot.slane %v722, 2
      %v824 = vrot.slane %v723, 2
      %v825 = vsel %vm777, %v823, %v824
      %v826 = vrot.slane %v724, 2
      %v827 = vsel %vm777, %v824, %v826
      %v828 = vrot.slane %v725, 2
      %v829 = vsel %vm777, %v826, %v828
      %v830 = vrot.slane %v726, 2
      %v831 = vsel %vm777, %v828, %v830
      %v832 = vrot.slane %v727, 2
      %v833 = vrot.slane %v728, 2
      %v834 = vsel %vm777, %v832, %v833
      %v835 = vrot.slane %v729, 2
      %v836 = vsel %vm777, %v833, %v835
      %v837 = vrot.slane %v730, 2
      %v838 = vsel %vm777, %v835, %v837
      %v839 = vrot.slane %v731, 2
      %v840 = vsel %vm777, %v837, %v839
      %v841 = vrot.slane %v732, 2
      %v842 = vrot.slane %v733, 2
      %v843 = vsel %vm777, %v841, %v842
      %v844 = vrot.slane %v734, 2
      %v845 = vsel %vm777, %v842, %v844
      %v846 = vrot.slane %v735, 2
      %v847 = vsel %vm777, %v844, %v846
      %v848 = vrot.slane %v736, 2
      %v849 = vsel %vm777, %v846, %v848
      %v882 = vadd.f32 %v660, %v780
      %v883 = vadd.f32 %v661, %v782
      %v884 = vadd.f32 %v662, %v784
      %v885 = vadd.f32 %v663, %v786
      %v886 = vadd.f32 %v664, %v789
      %v887 = vadd.f32 %v665, %v791
      %v888 = vadd.f32 %v666, %v793
      %v889 = vadd.f32 %v667, %v795
      %v890 = vadd.f32 %v668, %v798
      %v891 = vadd.f32 %v669, %v800
      %v892 = vadd.f32 %v670, %v802
      %v893 = vadd.f32 %v671, %v804
      %v894 = vadd.f32 %v672, %v807
      %v895 = vadd.f32 %v673, %v809
      %v896 = vadd.f32 %v674, %v811
      %v897 = vadd.f32 %v675, %v813
      %v898 = vadd.f32 %v676, %v816
      %v899 = vadd.f32 %v677, %v818
      %v900 = vadd.f32 %v678, %v820
      %v901 = vadd.f32 %v679, %v822
      %v902 = vadd.f32 %v680, %v825
      %v903 = vadd.f32 %v681, %v827
      %v904 = vadd.f32 %v682, %v829
      %v905 = vadd.f32 %v683, %v831
      %v906 = vadd.f32 %v684, %v834
      %v907 = vadd.f32 %v685, %v836
      %v908 = vadd.f32 %v686, %v838
      %v909 = vadd.f32 %v687, %v840
      %v910 = vadd.f32 %v688, %v843
      %v911 = vadd.f32 %v689, %v845
      %v912 = vadd.f32 %v690, %v847
      %v913 = vadd.f32 %v691, %v849
      %v914 = vld [vmem:[%s1 + $0x3] sm:$0x1]
      %v915 = vlaneseq
      %v916 = vshrl.u32 %v915, 7
      %v917 = vsub.s32 0, %v916
      %v918 = vrot.slane %v914, %v917
      %v919 = vmul.f32 %v275, %v918
      %v920 = vmul.f32 %v276, %v918
      %v921 = vmul.f32 %v277, %v918
      %v922 = vmul.f32 %v278, %v918
      %v923 = vmul.f32 %v279, %v918
      %v924 = vmul.f32 %v280, %v918
      %v925 = vmul.f32 %v281, %v918
      %v926 = vmul.f32 %v282, %v918
      %v927 = vmul.f32 %v283, %v918
      %v928 = vmul.f32 %v284, %v918
      %v929 = vmul.f32 %v285, %v918
      %v930 = vmul.f32 %v286, %v918
      %v931 = vmul.f32 %v287, %v918
      %v932 = vmul.f32 %v288, %v918
      %v933 = vmul.f32 %v289, %v918
      %v934 = vmul.f32 %v290, %v918
      %v935 = vmul.f32 %v291, %v918
      %v936 = vmul.f32 %v292, %v918
      %v937 = vmul.f32 %v293, %v918
      %v938 = vmul.f32 %v294, %v918
      %v939 = vmul.f32 %v295, %v918
      %v940 = vmul.f32 %v296, %v918
      %v941 = vmul.f32 %v297, %v918
      %v942 = vmul.f32 %v298, %v918
      %v943 = vmul.f32 %v299, %v918
      %v944 = vmul.f32 %v300, %v918
      %v945 = vmul.f32 %v301, %v918
      %v946 = vmul.f32 %v302, %v918
      %v947 = vmul.f32 %v303, %v918
      %v948 = vmul.f32 %v304, %v918
      %v949 = vmul.f32 %v305, %v918
      %v950 = vmul.f32 %v306, %v918
      %v951 = vmul.f32 %v307, %v918
      %v952 = vmul.f32 %v308, %v918
      %v953 = vmul.f32 %v309, %v918
      %v954 = vmul.f32 %v310, %v918
      %v955 = vmul.f32 %v311, %v918
      %v956 = vmul.f32 %v312, %v918
      %v957 = vmul.f32 %v313, %v918
      %v958 = vmul.f32 %v314, %v918
      %vm999 = vcmask 1044480
      %v1000 = vrot.slane %v919, 3
      %v1001 = vrot.slane %v920, 3
      %v1002 = vsel %vm999, %v1000, %v1001
      %v1003 = vrot.slane %v921, 3
      %v1004 = vsel %vm999, %v1001, %v1003
      %v1005 = vrot.slane %v922, 3
      %v1006 = vsel %vm999, %v1003, %v1005
      %v1007 = vrot.slane %v923, 3
      %v1008 = vsel %vm999, %v1005, %v1007
      %v1009 = vrot.slane %v924, 3
      %v1010 = vrot.slane %v925, 3
      %v1011 = vsel %vm999, %v1009, %v1010
      %v1012 = vrot.slane %v926, 3
      %v1013 = vsel %vm999, %v1010, %v1012
      %v1014 = vrot.slane %v927, 3
      %v1015 = vsel %vm999, %v1012, %v1014
      %v1016 = vrot.slane %v928, 3
      %v1017 = vsel %vm999, %v1014, %v1016
      %v1018 = vrot.slane %v929, 3
      %v1019 = vrot.slane %v930, 3
      %v1020 = vsel %vm999, %v1018, %v1019
      %v1021 = vrot.slane %v931, 3
      %v1022 = vsel %vm999, %v1019, %v1021
      %v1023 = vrot.slane %v932, 3
      %v1024 = vsel %vm999, %v1021, %v1023
      %v1025 = vrot.slane %v933, 3
      %v1026 = vsel %vm999, %v1023, %v1025
      %v1027 = vrot.slane %v934, 3
      %v1028 = vrot.slane %v935, 3
      %v1029 = vsel %vm999, %v1027, %v1028
      %v1030 = vrot.slane %v936, 3
      %v1031 = vsel %vm999, %v1028, %v1030
      %v1032 = vrot.slane %v937, 3
      %v1033 = vsel %vm999, %v1030, %v1032
      %v1034 = vrot.slane %v938, 3
      %v1035 = vsel %vm999, %v1032, %v1034
      %v1036 = vrot.slane %v939, 3
      %v1037 = vrot.slane %v940, 3
      %v1038 = vsel %vm999, %v1036, %v1037
      %v1039 = vrot.slane %v941, 3
      %v1040 = vsel %vm999, %v1037, %v1039
      %v1041 = vrot.slane %v942, 3
      %v1042 = vsel %vm999, %v1039, %v1041
      %v1043 = vrot.slane %v943, 3
      %v1044 = vsel %vm999, %v1041, %v1043
      %v1045 = vrot.slane %v944, 3
      %v1046 = vrot.slane %v945, 3
      %v1047 = vsel %vm999, %v1045, %v1046
      %v1048 = vrot.slane %v946, 3
      %v1049 = vsel %vm999, %v1046, %v1048
      %v1050 = vrot.slane %v947, 3
      %v1051 = vsel %vm999, %v1048, %v1050
      %v1052 = vrot.slane %v948, 3
      %v1053 = vsel %vm999, %v1050, %v1052
      %v1054 = vrot.slane %v949, 3
      %v1055 = vrot.slane %v950, 3
      %v1056 = vsel %vm999, %v1054, %v1055
      %v1057 = vrot.slane %v951, 3
      %v1058 = vsel %vm999, %v1055, %v1057
      %v1059 = vrot.slane %v952, 3
      %v1060 = vsel %vm999, %v1057, %v1059
      %v1061 = vrot.slane %v953, 3
      %v1062 = vsel %vm999, %v1059, %v1061
      %v1063 = vrot.slane %v954, 3
      %v1064 = vrot.slane %v955, 3
      %v1065 = vsel %vm999, %v1063, %v1064
      %v1066 = vrot.slane %v956, 3
      %v1067 = vsel %vm999, %v1064, %v1066
      %v1068 = vrot.slane %v957, 3
      %v1069 = vsel %vm999, %v1066, %v1068
      %v1070 = vrot.slane %v958, 3
      %v1071 = vsel %vm999, %v1068, %v1070
      %v1104 = vadd.f32 %v882, %v1002
      %v1105 = vadd.f32 %v883, %v1004
      %v1106 = vadd.f32 %v884, %v1006
      %v1107 = vadd.f32 %v885, %v1008
      %v1108 = vadd.f32 %v886, %v1011
      %v1109 = vadd.f32 %v887, %v1013
      %v1110 = vadd.f32 %v888, %v1015
      %v1111 = vadd.f32 %v889, %v1017
      %v1112 = vadd.f32 %v890, %v1020
      %v1113 = vadd.f32 %v891, %v1022
      %v1114 = vadd.f32 %v892, %v1024
      %v1115 = vadd.f32 %v893, %v1026
      %v1116 = vadd.f32 %v894, %v1029
      %v1117 = vadd.f32 %v895, %v1031
      %v1118 = vadd.f32 %v896, %v1033
      %v1119 = vadd.f32 %v897, %v1035
      %v1120 = vadd.f32 %v898, %v1038
      %v1121 = vadd.f32 %v899, %v1040
      %v1122 = vadd.f32 %v900, %v1042
      %v1123 = vadd.f32 %v901, %v1044
      %v1124 = vadd.f32 %v902, %v1047
      %v1125 = vadd.f32 %v903, %v1049
      %v1126 = vadd.f32 %v904, %v1051
      %v1127 = vadd.f32 %v905, %v1053
      %v1128 = vadd.f32 %v906, %v1056
      %v1129 = vadd.f32 %v907, %v1058
      %v1130 = vadd.f32 %v908, %v1060
      %v1131 = vadd.f32 %v909, %v1062
      %v1132 = vadd.f32 %v910, %v1065
      %v1133 = vadd.f32 %v911, %v1067
      %v1134 = vadd.f32 %v912, %v1069
      %v1135 = vadd.f32 %v913, %v1071
      %v1136 = vld [vmem:[%s1 + $0x8] sm:$0x1]
      %v1137 = vlaneseq
      %v1138 = vshrl.u32 %v1137, 7
      %v1139 = vsub.s32 0, %v1138
      %v1140 = vrot.slane %v1136, %v1139
      %v1141 = vmul.f32 %v318, %v1140
      %v1142 = vmul.f32 %v319, %v1140
      %v1143 = vmul.f32 %v320, %v1140
      %v1144 = vmul.f32 %v321, %v1140
      %v1145 = vmul.f32 %v323, %v1140
      %v1146 = vmul.f32 %v324, %v1140
      %v1147 = vmul.f32 %v325, %v1140
      %v1148 = vmul.f32 %v326, %v1140
      %v1149 = vmul.f32 %v328, %v1140
      %v1150 = vmul.f32 %v329, %v1140
      %v1151 = vmul.f32 %v330, %v1140
      %v1152 = vmul.f32 %v331, %v1140
      %v1153 = vmul.f32 %v333, %v1140
      %v1154 = vmul.f32 %v334, %v1140
      %v1155 = vmul.f32 %v335, %v1140
      %v1156 = vmul.f32 %v336, %v1140
      %v1157 = vmul.f32 %v338, %v1140
      %v1158 = vmul.f32 %v339, %v1140
      %v1159 = vmul.f32 %v340, %v1140
      %v1160 = vmul.f32 %v341, %v1140
      %v1161 = vmul.f32 %v343, %v1140
      %v1162 = vmul.f32 %v344, %v1140
      %v1163 = vmul.f32 %v345, %v1140
      %v1164 = vmul.f32 %v346, %v1140
      %v1165 = vmul.f32 %v348, %v1140
      %v1166 = vmul.f32 %v349, %v1140
      %v1167 = vmul.f32 %v350, %v1140
      %v1168 = vmul.f32 %v351, %v1140
      %v1169 = vmul.f32 %v353, %v1140
      %v1170 = vmul.f32 %v354, %v1140
      %v1171 = vmul.f32 %v355, %v1140
      %v1172 = vmul.f32 %v356, %v1140
      %v1173 = vadd.f32 %v1104, %v1141
      %v1174 = vadd.f32 %v1105, %v1142
      %v1175 = vadd.f32 %v1106, %v1143
      %v1176 = vadd.f32 %v1107, %v1144
      %v1177 = vadd.f32 %v1108, %v1145
      %v1178 = vadd.f32 %v1109, %v1146
      %v1179 = vadd.f32 %v1110, %v1147
      %v1180 = vadd.f32 %v1111, %v1148
      %v1181 = vadd.f32 %v1112, %v1149
      %v1182 = vadd.f32 %v1113, %v1150
      %v1183 = vadd.f32 %v1114, %v1151
      %v1184 = vadd.f32 %v1115, %v1152
      %v1185 = vadd.f32 %v1116, %v1153
      %v1186 = vadd.f32 %v1117, %v1154
      %v1187 = vadd.f32 %v1118, %v1155
      %v1188 = vadd.f32 %v1119, %v1156
      %v1189 = vadd.f32 %v1120, %v1157
      %v1190 = vadd.f32 %v1121, %v1158
      %v1191 = vadd.f32 %v1122, %v1159
      %v1192 = vadd.f32 %v1123, %v1160
      %v1193 = vadd.f32 %v1124, %v1161
      %v1194 = vadd.f32 %v1125, %v1162
      %v1195 = vadd.f32 %v1126, %v1163
      %v1196 = vadd.f32 %v1127, %v1164
      %v1197 = vadd.f32 %v1128, %v1165
      %v1198 = vadd.f32 %v1129, %v1166
      %v1199 = vadd.f32 %v1130, %v1167
      %v1200 = vadd.f32 %v1131, %v1168
      %v1201 = vadd.f32 %v1132, %v1169
      %v1202 = vadd.f32 %v1133, %v1170
      %v1203 = vadd.f32 %v1134, %v1171
      %v1204 = vadd.f32 %v1135, %v1172
      %v1205 = vld [vmem:[%s1 + $0x9] sm:$0x1]
      %v1206 = vlaneseq
      %v1207 = vshrl.u32 %v1206, 7
      %v1208 = vsub.s32 0, %v1207
      %v1209 = vrot.slane %v1205, %v1208
      %v1210 = vmul.f32 %v318, %v1209
      %v1211 = vmul.f32 %v319, %v1209
      %v1212 = vmul.f32 %v320, %v1209
      %v1213 = vmul.f32 %v321, %v1209
      %v1214 = vmul.f32 %v322, %v1209
      %v1215 = vmul.f32 %v323, %v1209
      %v1216 = vmul.f32 %v324, %v1209
      %v1217 = vmul.f32 %v325, %v1209
      %v1218 = vmul.f32 %v326, %v1209
      %v1219 = vmul.f32 %v327, %v1209
      %v1220 = vmul.f32 %v328, %v1209
      %v1221 = vmul.f32 %v329, %v1209
      %v1222 = vmul.f32 %v330, %v1209
      %v1223 = vmul.f32 %v331, %v1209
      %v1224 = vmul.f32 %v332, %v1209
      %v1225 = vmul.f32 %v333, %v1209
      %v1226 = vmul.f32 %v334, %v1209
      %v1227 = vmul.f32 %v335, %v1209
      %v1228 = vmul.f32 %v336, %v1209
      %v1229 = vmul.f32 %v337, %v1209
      %v1230 = vmul.f32 %v338, %v1209
      %v1231 = vmul.f32 %v339, %v1209
      %v1232 = vmul.f32 %v340, %v1209
      %v1233 = vmul.f32 %v341, %v1209
      %v1234 = vmul.f32 %v342, %v1209
      %v1235 = vmul.f32 %v343, %v1209
      %v1236 = vmul.f32 %v344, %v1209
      %v1237 = vmul.f32 %v345, %v1209
      %v1238 = vmul.f32 %v346, %v1209
      %v1239 = vmul.f32 %v347, %v1209
      %v1240 = vmul.f32 %v348, %v1209
      %v1241 = vmul.f32 %v349, %v1209
      %v1242 = vmul.f32 %v350, %v1209
      %v1243 = vmul.f32 %v351, %v1209
      %v1244 = vmul.f32 %v352, %v1209
      %v1245 = vmul.f32 %v353, %v1209
      %v1246 = vmul.f32 %v354, %v1209
      %v1247 = vmul.f32 %v355, %v1209
      %v1248 = vmul.f32 %v356, %v1209
      %v1249 = vmul.f32 %v357, %v1209
      %v1290 = vrot.slane %v1210, 1
      %v1291 = vrot.slane %v1211, 1
      %v1292 = vsel %vm555, %v1290, %v1291
      %v1293 = vrot.slane %v1212, 1
      %v1294 = vsel %vm555, %v1291, %v1293
      %v1295 = vrot.slane %v1213, 1
      %v1296 = vsel %vm555, %v1293, %v1295
      %v1297 = vrot.slane %v1214, 1
      %v1298 = vsel %vm555, %v1295, %v1297
      %v1299 = vrot.slane %v1215, 1
      %v1300 = vrot.slane %v1216, 1
      %v1301 = vsel %vm555, %v1299, %v1300
      %v1302 = vrot.slane %v1217, 1
      %v1303 = vsel %vm555, %v1300, %v1302
      %v1304 = vrot.slane %v1218, 1
      %v1305 = vsel %vm555, %v1302, %v1304
      %v1306 = vrot.slane %v1219, 1
      %v1307 = vsel %vm555, %v1304, %v1306
      %v1308 = vrot.slane %v1220, 1
      %v1309 = vrot.slane %v1221, 1
      %v1310 = vsel %vm555, %v1308, %v1309
      %v1311 = vrot.slane %v1222, 1
      %v1312 = vsel %vm555, %v1309, %v1311
      %v1313 = vrot.slane %v1223, 1
      %v1314 = vsel %vm555, %v1311, %v1313
      %v1315 = vrot.slane %v1224, 1
      %v1316 = vsel %vm555, %v1313, %v1315
      %v1317 = vrot.slane %v1225, 1
      %v1318 = vrot.slane %v1226, 1
      %v1319 = vsel %vm555, %v1317, %v1318
      %v1320 = vrot.slane %v1227, 1
      %v1321 = vsel %vm555, %v1318, %v1320
      %v1322 = vrot.slane %v1228, 1
      %v1323 = vsel %vm555, %v1320, %v1322
      %v1324 = vrot.slane %v1229, 1
      %v1325 = vsel %vm555, %v1322, %v1324
      %v1326 = vrot.slane %v1230, 1
      %v1327 = vrot.slane %v1231, 1
      %v1328 = vsel %vm555, %v1326, %v1327
      %v1329 = vrot.slane %v1232, 1
      %v1330 = vsel %vm555, %v1327, %v1329
      %v1331 = vrot.slane %v1233, 1
      %v1332 = vsel %vm555, %v1329, %v1331
      %v1333 = vrot.slane %v1234, 1
      %v1334 = vsel %vm555, %v1331, %v1333
      %v1335 = vrot.slane %v1235, 1
      %v1336 = vrot.slane %v1236, 1
      %v1337 = vsel %vm555, %v1335, %v1336
      %v1338 = vrot.slane %v1237, 1
      %v1339 = vsel %vm555, %v1336, %v1338
      %v1340 = vrot.slane %v1238, 1
      %v1341 = vsel %vm555, %v1338, %v1340
      %v1342 = vrot.slane %v1239, 1
      %v1343 = vsel %vm555, %v1340, %v1342
      %v1344 = vrot.slane %v1240, 1
      %v1345 = vrot.slane %v1241, 1
      %v1346 = vsel %vm555, %v1344, %v1345
      %v1347 = vrot.slane %v1242, 1
      %v1348 = vsel %vm555, %v1345, %v1347
      %v1349 = vrot.slane %v1243, 1
      %v1350 = vsel %vm555, %v1347, %v1349
      %v1351 = vrot.slane %v1244, 1
      %v1352 = vsel %vm555, %v1349, %v1351
      %v1353 = vrot.slane %v1245, 1
      %v1354 = vrot.slane %v1246, 1
      %v1355 = vsel %vm555, %v1353, %v1354
      %v1356 = vrot.slane %v1247, 1
      %v1357 = vsel %vm555, %v1354, %v1356
      %v1358 = vrot.slane %v1248, 1
      %v1359 = vsel %vm555, %v1356, %v1358
      %v1360 = vrot.slane %v1249, 1
      %v1361 = vsel %vm555, %v1358, %v1360
      %v1394 = vadd.f32 %v1173, %v1292
      %v1395 = vadd.f32 %v1174, %v1294
      %v1396 = vadd.f32 %v1175, %v1296
      %v1397 = vadd.f32 %v1176, %v1298
      %v1398 = vadd.f32 %v1177, %v1301
      %v1399 = vadd.f32 %v1178, %v1303
      %v1400 = vadd.f32 %v1179, %v1305
      %v1401 = vadd.f32 %v1180, %v1307
      %v1402 = vadd.f32 %v1181, %v1310
      %v1403 = vadd.f32 %v1182, %v1312
      %v1404 = vadd.f32 %v1183, %v1314
      %v1405 = vadd.f32 %v1184, %v1316
      %v1406 = vadd.f32 %v1185, %v1319
      %v1407 = vadd.f32 %v1186, %v1321
      %v1408 = vadd.f32 %v1187, %v1323
      %v1409 = vadd.f32 %v1188, %v1325
      %v1410 = vadd.f32 %v1189, %v1328
      %v1411 = vadd.f32 %v1190, %v1330
      %v1412 = vadd.f32 %v1191, %v1332
      %v1413 = vadd.f32 %v1192, %v1334
      %v1414 = vadd.f32 %v1193, %v1337
      %v1415 = vadd.f32 %v1194, %v1339
      %v1416 = vadd.f32 %v1195, %v1341
      %v1417 = vadd.f32 %v1196, %v1343
      %v1418 = vadd.f32 %v1197, %v1346
      %v1419 = vadd.f32 %v1198, %v1348
      %v1420 = vadd.f32 %v1199, %v1350
      %v1421 = vadd.f32 %v1200, %v1352
      %v1422 = vadd.f32 %v1201, %v1355
      %v1423 = vadd.f32 %v1202, %v1357
      %v1424 = vadd.f32 %v1203, %v1359
      %v1425 = vadd.f32 %v1204, %v1361
      %v1426 = vld [vmem:[%s1 + $0xa] sm:$0x1]
      %v1427 = vlaneseq
      %v1428 = vshrl.u32 %v1427, 7
      %v1429 = vsub.s32 0, %v1428
      %v1430 = vrot.slane %v1426, %v1429
      %v1431 = vmul.f32 %v318, %v1430
      %v1432 = vmul.f32 %v319, %v1430
      %v1433 = vmul.f32 %v320, %v1430
      %v1434 = vmul.f32 %v321, %v1430
      %v1435 = vmul.f32 %v322, %v1430
      %v1436 = vmul.f32 %v323, %v1430
      %v1437 = vmul.f32 %v324, %v1430
      %v1438 = vmul.f32 %v325, %v1430
      %v1439 = vmul.f32 %v326, %v1430
      %v1440 = vmul.f32 %v327, %v1430
      %v1441 = vmul.f32 %v328, %v1430
      %v1442 = vmul.f32 %v329, %v1430
      %v1443 = vmul.f32 %v330, %v1430
      %v1444 = vmul.f32 %v331, %v1430
      %v1445 = vmul.f32 %v332, %v1430
      %v1446 = vmul.f32 %v333, %v1430
      %v1447 = vmul.f32 %v334, %v1430
      %v1448 = vmul.f32 %v335, %v1430
      %v1449 = vmul.f32 %v336, %v1430
      %v1450 = vmul.f32 %v337, %v1430
      %v1451 = vmul.f32 %v338, %v1430
      %v1452 = vmul.f32 %v339, %v1430
      %v1453 = vmul.f32 %v340, %v1430
      %v1454 = vmul.f32 %v341, %v1430
      %v1455 = vmul.f32 %v342, %v1430
      %v1456 = vmul.f32 %v343, %v1430
      %v1457 = vmul.f32 %v344, %v1430
      %v1458 = vmul.f32 %v345, %v1430
      %v1459 = vmul.f32 %v346, %v1430
      %v1460 = vmul.f32 %v347, %v1430
      %v1461 = vmul.f32 %v348, %v1430
      %v1462 = vmul.f32 %v349, %v1430
      %v1463 = vmul.f32 %v350, %v1430
      %v1464 = vmul.f32 %v351, %v1430
      %v1465 = vmul.f32 %v352, %v1430
      %v1466 = vmul.f32 %v353, %v1430
      %v1467 = vmul.f32 %v354, %v1430
      %v1468 = vmul.f32 %v355, %v1430
      %v1469 = vmul.f32 %v356, %v1430
      %v1470 = vmul.f32 %v357, %v1430
      %v1511 = vrot.slane %v1431, 2
      %v1512 = vrot.slane %v1432, 2
      %v1513 = vsel %vm777, %v1511, %v1512
      %v1514 = vrot.slane %v1433, 2
      %v1515 = vsel %vm777, %v1512, %v1514
      %v1516 = vrot.slane %v1434, 2
      %v1517 = vsel %vm777, %v1514, %v1516
      %v1518 = vrot.slane %v1435, 2
      %v1519 = vsel %vm777, %v1516, %v1518
      %v1520 = vrot.slane %v1436, 2
      %v1521 = vrot.slane %v1437, 2
      %v1522 = vsel %vm777, %v1520, %v1521
      %v1523 = vrot.slane %v1438, 2
      %v1524 = vsel %vm777, %v1521, %v1523
      %v1525 = vrot.slane %v1439, 2
      %v1526 = vsel %vm777, %v1523, %v1525
      %v1527 = vrot.slane %v1440, 2
      %v1528 = vsel %vm777, %v1525, %v1527
      %v1529 = vrot.slane %v1441, 2
      %v1530 = vrot.slane %v1442, 2
      %v1531 = vsel %vm777, %v1529, %v1530
      %v1532 = vrot.slane %v1443, 2
      %v1533 = vsel %vm777, %v1530, %v1532
      %v1534 = vrot.slane %v1444, 2
      %v1535 = vsel %vm777, %v1532, %v1534
      %v1536 = vrot.slane %v1445, 2
      %v1537 = vsel %vm777, %v1534, %v1536
      %v1538 = vrot.slane %v1446, 2
      %v1539 = vrot.slane %v1447, 2
      %v1540 = vsel %vm777, %v1538, %v1539
      %v1541 = vrot.slane %v1448, 2
      %v1542 = vsel %vm777, %v1539, %v1541
      %v1543 = vrot.slane %v1449, 2
      %v1544 = vsel %vm777, %v1541, %v1543
      %v1545 = vrot.slane %v1450, 2
      %v1546 = vsel %vm777, %v1543, %v1545
      %v1547 = vrot.slane %v1451, 2
      %v1548 = vrot.slane %v1452, 2
      %v1549 = vsel %vm777, %v1547, %v1548
      %v1550 = vrot.slane %v1453, 2
      %v1551 = vsel %vm777, %v1548, %v1550
      %v1552 = vrot.slane %v1454, 2
      %v1553 = vsel %vm777, %v1550, %v1552
      %v1554 = vrot.slane %v1455, 2
      %v1555 = vsel %vm777, %v1552, %v1554
      %v1556 = vrot.slane %v1456, 2
      %v1557 = vrot.slane %v1457, 2
      %v1558 = vsel %vm777, %v1556, %v1557
      %v1559 = vrot.slane %v1458, 2
      %v1560 = vsel %vm777, %v1557, %v1559
      %v1561 = vrot.slane %v1459, 2
      %v1562 = vsel %vm777, %v1559, %v1561
      %v1563 = vrot.slane %v1460, 2
      %v1564 = vsel %vm777, %v1561, %v1563
      %v1565 = vrot.slane %v1461, 2
      %v1566 = vrot.slane %v1462, 2
      %v1567 = vsel %vm777, %v1565, %v1566
      %v1568 = vrot.slane %v1463, 2
      %v1569 = vsel %vm777, %v1566, %v1568
      %v1570 = vrot.slane %v1464, 2
      %v1571 = vsel %vm777, %v1568, %v1570
      %v1572 = vrot.slane %v1465, 2
      %v1573 = vsel %vm777, %v1570, %v1572
      %v1574 = vrot.slane %v1466, 2
      %v1575 = vrot.slane %v1467, 2
      %v1576 = vsel %vm777, %v1574, %v1575
      %v1577 = vrot.slane %v1468, 2
      %v1578 = vsel %vm777, %v1575, %v1577
      %v1579 = vrot.slane %v1469, 2
      %v1580 = vsel %vm777, %v1577, %v1579
      %v1581 = vrot.slane %v1470, 2
      %v1582 = vsel %vm777, %v1579, %v1581
      %v1615 = vadd.f32 %v1394, %v1513
      %v1616 = vadd.f32 %v1395, %v1515
      %v1617 = vadd.f32 %v1396, %v1517
      %v1618 = vadd.f32 %v1397, %v1519
      %v1619 = vadd.f32 %v1398, %v1522
      %v1620 = vadd.f32 %v1399, %v1524
      %v1621 = vadd.f32 %v1400, %v1526
      %v1622 = vadd.f32 %v1401, %v1528
      %v1623 = vadd.f32 %v1402, %v1531
      %v1624 = vadd.f32 %v1403, %v1533
      %v1625 = vadd.f32 %v1404, %v1535
      %v1626 = vadd.f32 %v1405, %v1537
      %v1627 = vadd.f32 %v1406, %v1540
      %v1628 = vadd.f32 %v1407, %v1542
      %v1629 = vadd.f32 %v1408, %v1544
      %v1630 = vadd.f32 %v1409, %v1546
      %v1631 = vadd.f32 %v1410, %v1549
      %v1632 = vadd.f32 %v1411, %v1551
      %v1633 = vadd.f32 %v1412, %v1553
      %v1634 = vadd.f32 %v1413, %v1555
      %v1635 = vadd.f32 %v1414, %v1558
      %v1636 = vadd.f32 %v1415, %v1560
      %v1637 = vadd.f32 %v1416, %v1562
      %v1638 = vadd.f32 %v1417, %v1564
      %v1639 = vadd.f32 %v1418, %v1567
      %v1640 = vadd.f32 %v1419, %v1569
      %v1641 = vadd.f32 %v1420, %v1571
      %v1642 = vadd.f32 %v1421, %v1573
      %v1643 = vadd.f32 %v1422, %v1576
      %v1644 = vadd.f32 %v1423, %v1578
      %v1645 = vadd.f32 %v1424, %v1580
      %v1646 = vadd.f32 %v1425, %v1582
      %v1647 = vld [vmem:[%s1 + $0xb] sm:$0x1]
      %v1648 = vlaneseq
      %v1649 = vshrl.u32 %v1648, 7
      %v1650 = vsub.s32 0, %v1649
      %v1651 = vrot.slane %v1647, %v1650
      %v1652 = vmul.f32 %v318, %v1651
      %v1653 = vmul.f32 %v319, %v1651
      %v1654 = vmul.f32 %v320, %v1651
      %v1655 = vmul.f32 %v321, %v1651
      %v1656 = vmul.f32 %v322, %v1651
      %v1657 = vmul.f32 %v323, %v1651
      %v1658 = vmul.f32 %v324, %v1651
      %v1659 = vmul.f32 %v325, %v1651
      %v1660 = vmul.f32 %v326, %v1651
      %v1661 = vmul.f32 %v327, %v1651
      %v1662 = vmul.f32 %v328, %v1651
      %v1663 = vmul.f32 %v329, %v1651
      %v1664 = vmul.f32 %v330, %v1651
      %v1665 = vmul.f32 %v331, %v1651
      %v1666 = vmul.f32 %v332, %v1651
      %v1667 = vmul.f32 %v333, %v1651
      %v1668 = vmul.f32 %v334, %v1651
      %v1669 = vmul.f32 %v335, %v1651
      %v1670 = vmul.f32 %v336, %v1651
      %v1671 = vmul.f32 %v337, %v1651
      %v1672 = vmul.f32 %v338, %v1651
      %v1673 = vmul.f32 %v339, %v1651
      %v1674 = vmul.f32 %v340, %v1651
      %v1675 = vmul.f32 %v341, %v1651
      %v1676 = vmul.f32 %v342, %v1651
      %v1677 = vmul.f32 %v343, %v1651
      %v1678 = vmul.f32 %v344, %v1651
      %v1679 = vmul.f32 %v345, %v1651
      %v1680 = vmul.f32 %v346, %v1651
      %v1681 = vmul.f32 %v347, %v1651
      %v1682 = vmul.f32 %v348, %v1651
      %v1683 = vmul.f32 %v349, %v1651
      %v1684 = vmul.f32 %v350, %v1651
      %v1685 = vmul.f32 %v351, %v1651
      %v1686 = vmul.f32 %v352, %v1651
      %v1687 = vmul.f32 %v353, %v1651
      %v1688 = vmul.f32 %v354, %v1651
      %v1689 = vmul.f32 %v355, %v1651
      %v1690 = vmul.f32 %v356, %v1651
      %v1691 = vmul.f32 %v357, %v1651
      %v1732 = vrot.slane %v1652, 3
      %v1733 = vrot.slane %v1653, 3
      %v1734 = vsel %vm999, %v1732, %v1733
      %v1735 = vrot.slane %v1654, 3
      %v1736 = vsel %vm999, %v1733, %v1735
      %v1737 = vrot.slane %v1655, 3
      %v1738 = vsel %vm999, %v1735, %v1737
      %v1739 = vrot.slane %v1656, 3
      %v1740 = vsel %vm999, %v1737, %v1739
      %v1741 = vrot.slane %v1657, 3
      %v1742 = vrot.slane %v1658, 3
      %v1743 = vsel %vm999, %v1741, %v1742
      %v1744 = vrot.slane %v1659, 3
      %v1745 = vsel %vm999, %v1742, %v1744
      %v1746 = vrot.slane %v1660, 3
      %v1747 = vsel %vm999, %v1744, %v1746
      %v1748 = vrot.slane %v1661, 3
      %v1749 = vsel %vm999, %v1746, %v1748
      %v1750 = vrot.slane %v1662, 3
      %v1751 = vrot.slane %v1663, 3
      %v1752 = vsel %vm999, %v1750, %v1751
      %v1753 = vrot.slane %v1664, 3
      %v1754 = vsel %vm999, %v1751, %v1753
      %v1755 = vrot.slane %v1665, 3
      %v1756 = vsel %vm999, %v1753, %v1755
      %v1757 = vrot.slane %v1666, 3
      %v1758 = vsel %vm999, %v1755, %v1757
      %v1759 = vrot.slane %v1667, 3
      %v1760 = vrot.slane %v1668, 3
      %v1761 = vsel %vm999, %v1759, %v1760
      %v1762 = vrot.slane %v1669, 3
      %v1763 = vsel %vm999, %v1760, %v1762
      %v1764 = vrot.slane %v1670, 3
      %v1765 = vsel %vm999, %v1762, %v1764
      %v1766 = vrot.slane %v1671, 3
      %v1767 = vsel %vm999, %v1764, %v1766
      %v1768 = vrot.slane %v1672, 3
      %v1769 = vrot.slane %v1673, 3
      %v1770 = vsel %vm999, %v1768, %v1769
      %v1771 = vrot.slane %v1674, 3
      %v1772 = vsel %vm999, %v1769, %v1771
      %v1773 = vrot.slane %v1675, 3
      %v1774 = vsel %vm999, %v1771, %v1773
      %v1775 = vrot.slane %v1676, 3
      %v1776 = vsel %vm999, %v1773, %v1775
      %v1777 = vrot.slane %v1677, 3
      %v1778 = vrot.slane %v1678, 3
      %v1779 = vsel %vm999, %v1777, %v1778
      %v1780 = vrot.slane %v1679, 3
      %v1781 = vsel %vm999, %v1778, %v1780
      %v1782 = vrot.slane %v1680, 3
      %v1783 = vsel %vm999, %v1780, %v1782
      %v1784 = vrot.slane %v1681, 3
      %v1785 = vsel %vm999, %v1782, %v1784
      %v1786 = vrot.slane %v1682, 3
      %v1787 = vrot.slane %v1683, 3
      %v1788 = vsel %vm999, %v1786, %v1787
      %v1789 = vrot.slane %v1684, 3
      %v1790 = vsel %vm999, %v1787, %v1789
      %v1791 = vrot.slane %v1685, 3
      %v1792 = vsel %vm999, %v1789, %v1791
      %v1793 = vrot.slane %v1686, 3
      %v1794 = vsel %vm999, %v1791, %v1793
      %v1795 = vrot.slane %v1687, 3
      %v1796 = vrot.slane %v1688, 3
      %v1797 = vsel %vm999, %v1795, %v1796
      %v1798 = vrot.slane %v1689, 3
      %v1799 = vsel %vm999, %v1796, %v1798
      %v1800 = vrot.slane %v1690, 3
      %v1801 = vsel %vm999, %v1798, %v1800
      %v1802 = vrot.slane %v1691, 3
      %v1803 = vsel %vm999, %v1800, %v1802
      %v1836 = vadd.f32 %v1615, %v1734
      %v1837 = vadd.f32 %v1616, %v1736
      %v1838 = vadd.f32 %v1617, %v1738
      %v1839 = vadd.f32 %v1618, %v1740
      %v1840 = vadd.f32 %v1619, %v1743
      %v1841 = vadd.f32 %v1620, %v1745
      %v1842 = vadd.f32 %v1621, %v1747
      %v1843 = vadd.f32 %v1622, %v1749
      %v1844 = vadd.f32 %v1623, %v1752
      %v1845 = vadd.f32 %v1624, %v1754
      %v1846 = vadd.f32 %v1625, %v1756
      %v1847 = vadd.f32 %v1626, %v1758
      %v1848 = vadd.f32 %v1627, %v1761
      %v1849 = vadd.f32 %v1628, %v1763
      %v1850 = vadd.f32 %v1629, %v1765
      %v1851 = vadd.f32 %v1630, %v1767
      %v1852 = vadd.f32 %v1631, %v1770
      %v1853 = vadd.f32 %v1632, %v1772
      %v1854 = vadd.f32 %v1633, %v1774
      %v1855 = vadd.f32 %v1634, %v1776
      %v1856 = vadd.f32 %v1635, %v1779
      %v1857 = vadd.f32 %v1636, %v1781
      %v1858 = vadd.f32 %v1637, %v1783
      %v1859 = vadd.f32 %v1638, %v1785
      %v1860 = vadd.f32 %v1639, %v1788
      %v1861 = vadd.f32 %v1640, %v1790
      %v1862 = vadd.f32 %v1641, %v1792
      %v1863 = vadd.f32 %v1642, %v1794
      %v1864 = vadd.f32 %v1643, %v1797
      %v1865 = vadd.f32 %v1644, %v1799
      %v1866 = vadd.f32 %v1645, %v1801
      %v1867 = vadd.f32 %v1646, %v1803
      %v1868 = vld [vmem:[%s1 + $0x4] sm:$0x1]
      %v1869 = vlaneseq
      %v1870 = vshrl.u32 %v1869, 7
      %v1871 = vsub.s32 0, %v1870
      %v1872 = vrot.slane %v1868, %v1871
      %v1873 = vmul.f32 %v318, %v1872
      %v1874 = vmul.f32 %v319, %v1872
      %v1875 = vmul.f32 %v320, %v1872
      %v1876 = vmul.f32 %v321, %v1872
      %v1877 = vmul.f32 %v323, %v1872
      %v1878 = vmul.f32 %v324, %v1872
      %v1879 = vmul.f32 %v325, %v1872
      %v1880 = vmul.f32 %v326, %v1872
      %v1881 = vmul.f32 %v328, %v1872
      %v1882 = vmul.f32 %v329, %v1872
      %v1883 = vmul.f32 %v330, %v1872
      %v1884 = vmul.f32 %v331, %v1872
      %v1885 = vmul.f32 %v333, %v1872
      %v1886 = vmul.f32 %v334, %v1872
      %v1887 = vmul.f32 %v335, %v1872
      %v1888 = vmul.f32 %v336, %v1872
      %v1889 = vmul.f32 %v338, %v1872
      %v1890 = vmul.f32 %v339, %v1872
      %v1891 = vmul.f32 %v340, %v1872
      %v1892 = vmul.f32 %v341, %v1872
      %v1893 = vmul.f32 %v343, %v1872
      %v1894 = vmul.f32 %v344, %v1872
      %v1895 = vmul.f32 %v345, %v1872
      %v1896 = vmul.f32 %v346, %v1872
      %v1897 = vmul.f32 %v348, %v1872
      %v1898 = vmul.f32 %v349, %v1872
      %v1899 = vmul.f32 %v350, %v1872
      %v1900 = vmul.f32 %v351, %v1872
      %v1901 = vmul.f32 %v353, %v1872
      %v1902 = vmul.f32 %v354, %v1872
      %v1903 = vmul.f32 %v355, %v1872
      %v1904 = vmul.f32 %v356, %v1872
      %v1905 = vadd.f32 %v1873, 0.0
      %v1906 = vadd.f32 %v1874, 0.0
      %v1907 = vadd.f32 %v1875, 0.0
      %v1908 = vadd.f32 %v1876, 0.0
      %v1909 = vadd.f32 %v1877, 0.0
      %v1910 = vadd.f32 %v1878, 0.0
      %v1911 = vadd.f32 %v1879, 0.0
      %v1912 = vadd.f32 %v1880, 0.0
      %v1913 = vadd.f32 %v1881, 0.0
      %v1914 = vadd.f32 %v1882, 0.0
      %v1915 = vadd.f32 %v1883, 0.0
      %v1916 = vadd.f32 %v1884, 0.0
      %v1917 = vadd.f32 %v1885, 0.0
      %v1918 = vadd.f32 %v1886, 0.0
      %v1919 = vadd.f32 %v1887, 0.0
      %v1920 = vadd.f32 %v1888, 0.0
      %v1921 = vadd.f32 %v1889, 0.0
      %v1922 = vadd.f32 %v1890, 0.0
      %v1923 = vadd.f32 %v1891, 0.0
      %v1924 = vadd.f32 %v1892, 0.0
      %v1925 = vadd.f32 %v1893, 0.0
      %v1926 = vadd.f32 %v1894, 0.0
      %v1927 = vadd.f32 %v1895, 0.0
      %v1928 = vadd.f32 %v1896, 0.0
      %v1929 = vadd.f32 %v1897, 0.0
      %v1930 = vadd.f32 %v1898, 0.0
      %v1931 = vadd.f32 %v1899, 0.0
      %v1932 = vadd.f32 %v1900, 0.0
      %v1933 = vadd.f32 %v1901, 0.0
      %v1934 = vadd.f32 %v1902, 0.0
      %v1935 = vadd.f32 %v1903, 0.0
      %v1936 = vadd.f32 %v1904, 0.0
      %v1937 = vld [vmem:[%s1 + $0x5] sm:$0x1]
      %v1938 = vlaneseq
      %v1939 = vshrl.u32 %v1938, 7
      %v1940 = vsub.s32 0, %v1939
      %v1941 = vrot.slane %v1937, %v1940
      %v1942 = vmul.f32 %v318, %v1941
      %v1943 = vmul.f32 %v319, %v1941
      %v1944 = vmul.f32 %v320, %v1941
      %v1945 = vmul.f32 %v321, %v1941
      %v1946 = vmul.f32 %v322, %v1941
      %v1947 = vmul.f32 %v323, %v1941
      %v1948 = vmul.f32 %v324, %v1941
      %v1949 = vmul.f32 %v325, %v1941
      %v1950 = vmul.f32 %v326, %v1941
      %v1951 = vmul.f32 %v327, %v1941
      %v1952 = vmul.f32 %v328, %v1941
      %v1953 = vmul.f32 %v329, %v1941
      %v1954 = vmul.f32 %v330, %v1941
      %v1955 = vmul.f32 %v331, %v1941
      %v1956 = vmul.f32 %v332, %v1941
      %v1957 = vmul.f32 %v333, %v1941
      %v1958 = vmul.f32 %v334, %v1941
      %v1959 = vmul.f32 %v335, %v1941
      %v1960 = vmul.f32 %v336, %v1941
      %v1961 = vmul.f32 %v337, %v1941
      %v1962 = vmul.f32 %v338, %v1941
      %v1963 = vmul.f32 %v339, %v1941
      %v1964 = vmul.f32 %v340, %v1941
      %v1965 = vmul.f32 %v341, %v1941
      %v1966 = vmul.f32 %v342, %v1941
      %v1967 = vmul.f32 %v343, %v1941
      %v1968 = vmul.f32 %v344, %v1941
      %v1969 = vmul.f32 %v345, %v1941
      %v1970 = vmul.f32 %v346, %v1941
      %v1971 = vmul.f32 %v347, %v1941
      %v1972 = vmul.f32 %v348, %v1941
      %v1973 = vmul.f32 %v349, %v1941
      %v1974 = vmul.f32 %v350, %v1941
      %v1975 = vmul.f32 %v351, %v1941
      %v1976 = vmul.f32 %v352, %v1941
      %v1977 = vmul.f32 %v353, %v1941
      %v1978 = vmul.f32 %v354, %v1941
      %v1979 = vmul.f32 %v355, %v1941
      %v1980 = vmul.f32 %v356, %v1941
      %v1981 = vmul.f32 %v357, %v1941
      %v2022 = vrot.slane %v1942, 1
      %v2023 = vrot.slane %v1943, 1
      %v2024 = vsel %vm555, %v2022, %v2023
      %v2025 = vrot.slane %v1944, 1
      %v2026 = vsel %vm555, %v2023, %v2025
      %v2027 = vrot.slane %v1945, 1
      %v2028 = vsel %vm555, %v2025, %v2027
      %v2029 = vrot.slane %v1946, 1
      %v2030 = vsel %vm555, %v2027, %v2029
      %v2031 = vrot.slane %v1947, 1
      %v2032 = vrot.slane %v1948, 1
      %v2033 = vsel %vm555, %v2031, %v2032
      %v2034 = vrot.slane %v1949, 1
      %v2035 = vsel %vm555, %v2032, %v2034
      %v2036 = vrot.slane %v1950, 1
      %v2037 = vsel %vm555, %v2034, %v2036
      %v2038 = vrot.slane %v1951, 1
      %v2039 = vsel %vm555, %v2036, %v2038
      %v2040 = vrot.slane %v1952, 1
      %v2041 = vrot.slane %v1953, 1
      %v2042 = vsel %vm555, %v2040, %v2041
      %v2043 = vrot.slane %v1954, 1
      %v2044 = vsel %vm555, %v2041, %v2043
      %v2045 = vrot.slane %v1955, 1
      %v2046 = vsel %vm555, %v2043, %v2045
      %v2047 = vrot.slane %v1956, 1
      %v2048 = vsel %vm555, %v2045, %v2047
      %v2049 = vrot.slane %v1957, 1
      %v2050 = vrot.slane %v1958, 1
      %v2051 = vsel %vm555, %v2049, %v2050
      %v2052 = vrot.slane %v1959, 1
      %v2053 = vsel %vm555, %v2050, %v2052
      %v2054 = vrot.slane %v1960, 1
      %v2055 = vsel %vm555, %v2052, %v2054
      %v2056 = vrot.slane %v1961, 1
      %v2057 = vsel %vm555, %v2054, %v2056
      %v2058 = vrot.slane %v1962, 1
      %v2059 = vrot.slane %v1963, 1
      %v2060 = vsel %vm555, %v2058, %v2059
      %v2061 = vrot.slane %v1964, 1
      %v2062 = vsel %vm555, %v2059, %v2061
      %v2063 = vrot.slane %v1965, 1
      %v2064 = vsel %vm555, %v2061, %v2063
      %v2065 = vrot.slane %v1966, 1
      %v2066 = vsel %vm555, %v2063, %v2065
      %v2067 = vrot.slane %v1967, 1
      %v2068 = vrot.slane %v1968, 1
      %v2069 = vsel %vm555, %v2067, %v2068
      %v2070 = vrot.slane %v1969, 1
      %v2071 = vsel %vm555, %v2068, %v2070
      %v2072 = vrot.slane %v1970, 1
      %v2073 = vsel %vm555, %v2070, %v2072
      %v2074 = vrot.slane %v1971, 1
      %v2075 = vsel %vm555, %v2072, %v2074
      %v2076 = vrot.slane %v1972, 1
      %v2077 = vrot.slane %v1973, 1
      %v2078 = vsel %vm555, %v2076, %v2077
      %v2079 = vrot.slane %v1974, 1
      %v2080 = vsel %vm555, %v2077, %v2079
      %v2081 = vrot.slane %v1975, 1
      %v2082 = vsel %vm555, %v2079, %v2081
      %v2083 = vrot.slane %v1976, 1
      %v2084 = vsel %vm555, %v2081, %v2083
      %v2085 = vrot.slane %v1977, 1
      %v2086 = vrot.slane %v1978, 1
      %v2087 = vsel %vm555, %v2085, %v2086
      %v2088 = vrot.slane %v1979, 1
      %v2089 = vsel %vm555, %v2086, %v2088
      %v2090 = vrot.slane %v1980, 1
      %v2091 = vsel %vm555, %v2088, %v2090
      %v2092 = vrot.slane %v1981, 1
      %v2093 = vsel %vm555, %v2090, %v2092
      %v2126 = vadd.f32 %v1905, %v2024
      %v2127 = vadd.f32 %v1906, %v2026
      %v2128 = vadd.f32 %v1907, %v2028
      %v2129 = vadd.f32 %v1908, %v2030
      %v2130 = vadd.f32 %v1909, %v2033
      %v2131 = vadd.f32 %v1910, %v2035
      %v2132 = vadd.f32 %v1911, %v2037
      %v2133 = vadd.f32 %v1912, %v2039
      %v2134 = vadd.f32 %v1913, %v2042
      %v2135 = vadd.f32 %v1914, %v2044
      %v2136 = vadd.f32 %v1915, %v2046
      %v2137 = vadd.f32 %v1916, %v2048
      %v2138 = vadd.f32 %v1917, %v2051
      %v2139 = vadd.f32 %v1918, %v2053
      %v2140 = vadd.f32 %v1919, %v2055
      %v2141 = vadd.f32 %v1920, %v2057
      %v2142 = vadd.f32 %v1921, %v2060
      %v2143 = vadd.f32 %v1922, %v2062
      %v2144 = vadd.f32 %v1923, %v2064
      %v2145 = vadd.f32 %v1924, %v2066
      %v2146 = vadd.f32 %v1925, %v2069
      %v2147 = vadd.f32 %v1926, %v2071
      %v2148 = vadd.f32 %v1927, %v2073
      %v2149 = vadd.f32 %v1928, %v2075
      %v2150 = vadd.f32 %v1929, %v2078
      %v2151 = vadd.f32 %v1930, %v2080
      %v2152 = vadd.f32 %v1931, %v2082
      %v2153 = vadd.f32 %v1932, %v2084
      %v2154 = vadd.f32 %v1933, %v2087
      %v2155 = vadd.f32 %v1934, %v2089
      %v2156 = vadd.f32 %v1935, %v2091
      %v2157 = vadd.f32 %v1936, %v2093
      %v2158 = vld [vmem:[%s1 + $0x6] sm:$0x1]
      %v2159 = vlaneseq
      %v2160 = vshrl.u32 %v2159, 7
      %v2161 = vsub.s32 0, %v2160
      %v2162 = vrot.slane %v2158, %v2161
      %v2163 = vmul.f32 %v318, %v2162
      %v2164 = vmul.f32 %v319, %v2162
      %v2165 = vmul.f32 %v320, %v2162
      %v2166 = vmul.f32 %v321, %v2162
      %v2167 = vmul.f32 %v322, %v2162
      %v2168 = vmul.f32 %v323, %v2162
      %v2169 = vmul.f32 %v324, %v2162
      %v2170 = vmul.f32 %v325, %v2162
      %v2171 = vmul.f32 %v326, %v2162
      %v2172 = vmul.f32 %v327, %v2162
      %v2173 = vmul.f32 %v328, %v2162
      %v2174 = vmul.f32 %v329, %v2162
      %v2175 = vmul.f32 %v330, %v2162
      %v2176 = vmul.f32 %v331, %v2162
      %v2177 = vmul.f32 %v332, %v2162
      %v2178 = vmul.f32 %v333, %v2162
      %v2179 = vmul.f32 %v334, %v2162
      %v2180 = vmul.f32 %v335, %v2162
      %v2181 = vmul.f32 %v336, %v2162
      %v2182 = vmul.f32 %v337, %v2162
      %v2183 = vmul.f32 %v338, %v2162
      %v2184 = vmul.f32 %v339, %v2162
      %v2185 = vmul.f32 %v340, %v2162
      %v2186 = vmul.f32 %v341, %v2162
      %v2187 = vmul.f32 %v342, %v2162
      %v2188 = vmul.f32 %v343, %v2162
      %v2189 = vmul.f32 %v344, %v2162
      %v2190 = vmul.f32 %v345, %v2162
      %v2191 = vmul.f32 %v346, %v2162
      %v2192 = vmul.f32 %v347, %v2162
      %v2193 = vmul.f32 %v348, %v2162
      %v2194 = vmul.f32 %v349, %v2162
      %v2195 = vmul.f32 %v350, %v2162
      %v2196 = vmul.f32 %v351, %v2162
      %v2197 = vmul.f32 %v352, %v2162
      %v2198 = vmul.f32 %v353, %v2162
      %v2199 = vmul.f32 %v354, %v2162
      %v2200 = vmul.f32 %v355, %v2162
      %v2201 = vmul.f32 %v356, %v2162
      %v2202 = vmul.f32 %v357, %v2162
      %v2243 = vrot.slane %v2163, 2
      %v2244 = vrot.slane %v2164, 2
      %v2245 = vsel %vm777, %v2243, %v2244
      %v2246 = vrot.slane %v2165, 2
      %v2247 = vsel %vm777, %v2244, %v2246
      %v2248 = vrot.slane %v2166, 2
      %v2249 = vsel %vm777, %v2246, %v2248
      %v2250 = vrot.slane %v2167, 2
      %v2251 = vsel %vm777, %v2248, %v2250
      %v2252 = vrot.slane %v2168, 2
      %v2253 = vrot.slane %v2169, 2
      %v2254 = vsel %vm777, %v2252, %v2253
      %v2255 = vrot.slane %v2170, 2
      %v2256 = vsel %vm777, %v2253, %v2255
      %v2257 = vrot.slane %v2171, 2
      %v2258 = vsel %vm777, %v2255, %v2257
      %v2259 = vrot.slane %v2172, 2
      %v2260 = vsel %vm777, %v2257, %v2259
      %v2261 = vrot.slane %v2173, 2
      %v2262 = vrot.slane %v2174, 2
      %v2263 = vsel %vm777, %v2261, %v2262
      %v2264 = vrot.slane %v2175, 2
      %v2265 = vsel %vm777, %v2262, %v2264
      %v2266 = vrot.slane %v2176, 2
      %v2267 = vsel %vm777, %v2264, %v2266
      %v2268 = vrot.slane %v2177, 2
      %v2269 = vsel %vm777, %v2266, %v2268
      %v2270 = vrot.slane %v2178, 2
      %v2271 = vrot.slane %v2179, 2
      %v2272 = vsel %vm777, %v2270, %v2271
      %v2273 = vrot.slane %v2180, 2
      %v2274 = vsel %vm777, %v2271, %v2273
      %v2275 = vrot.slane %v2181, 2
      %v2276 = vsel %vm777, %v2273, %v2275
      %v2277 = vrot.slane %v2182, 2
      %v2278 = vsel %vm777, %v2275, %v2277
      %v2279 = vrot.slane %v2183, 2
      %v2280 = vrot.slane %v2184, 2
      %v2281 = vsel %vm777, %v2279, %v2280
      %v2282 = vrot.slane %v2185, 2
      %v2283 = vsel %vm777, %v2280, %v2282
      %v2284 = vrot.slane %v2186, 2
      %v2285 = vsel %vm777, %v2282, %v2284
      %v2286 = vrot.slane %v2187, 2
      %v2287 = vsel %vm777, %v2284, %v2286
      %v2288 = vrot.slane %v2188, 2
      %v2289 = vrot.slane %v2189, 2
      %v2290 = vsel %vm777, %v2288, %v2289
      %v2291 = vrot.slane %v2190, 2
      %v2292 = vsel %vm777, %v2289, %v2291
      %v2293 = vrot.slane %v2191, 2
      %v2294 = vsel %vm777, %v2291, %v2293
      %v2295 = vrot.slane %v2192, 2
      %v2296 = vsel %vm777, %v2293, %v2295
      %v2297 = vrot.slane %v2193, 2
      %v2298 = vrot.slane %v2194, 2
      %v2299 = vsel %vm777, %v2297, %v2298
      %v2300 = vrot.slane %v2195, 2
      %v2301 = vsel %vm777, %v2298, %v2300
      %v2302 = vrot.slane %v2196, 2
      %v2303 = vsel %vm777, %v2300, %v2302
      %v2304 = vrot.slane %v2197, 2
      %v2305 = vsel %vm777, %v2302, %v2304
      %v2306 = vrot.slane %v2198, 2
      %v2307 = vrot.slane %v2199, 2
      %v2308 = vsel %vm777, %v2306, %v2307
      %v2309 = vrot.slane %v2200, 2
      %v2310 = vsel %vm777, %v2307, %v2309
      %v2311 = vrot.slane %v2201, 2
      %v2312 = vsel %vm777, %v2309, %v2311
      %v2313 = vrot.slane %v2202, 2
      %v2314 = vsel %vm777, %v2311, %v2313
      %v2347 = vadd.f32 %v2126, %v2245
      %v2348 = vadd.f32 %v2127, %v2247
      %v2349 = vadd.f32 %v2128, %v2249
      %v2350 = vadd.f32 %v2129, %v2251
      %v2351 = vadd.f32 %v2130, %v2254
      %v2352 = vadd.f32 %v2131, %v2256
      %v2353 = vadd.f32 %v2132, %v2258
      %v2354 = vadd.f32 %v2133, %v2260
      %v2355 = vadd.f32 %v2134, %v2263
      %v2356 = vadd.f32 %v2135, %v2265
      %v2357 = vadd.f32 %v2136, %v2267
      %v2358 = vadd.f32 %v2137, %v2269
      %v2359 = vadd.f32 %v2138, %v2272
      %v2360 = vadd.f32 %v2139, %v2274
      %v2361 = vadd.f32 %v2140, %v2276
      %v2362 = vadd.f32 %v2141, %v2278
      %v2363 = vadd.f32 %v2142, %v2281
      %v2364 = vadd.f32 %v2143, %v2283
      %v2365 = vadd.f32 %v2144, %v2285
      %v2366 = vadd.f32 %v2145, %v2287
      %v2367 = vadd.f32 %v2146, %v2290
      %v2368 = vadd.f32 %v2147, %v2292
      %v2369 = vadd.f32 %v2148, %v2294
      %v2370 = vadd.f32 %v2149, %v2296
      %v2371 = vadd.f32 %v2150, %v2299
      %v2372 = vadd.f32 %v2151, %v2301
      %v2373 = vadd.f32 %v2152, %v2303
      %v2374 = vadd.f32 %v2153, %v2305
      %v2375 = vadd.f32 %v2154, %v2308
      %v2376 = vadd.f32 %v2155, %v2310
      %v2377 = vadd.f32 %v2156, %v2312
      %v2378 = vadd.f32 %v2157, %v2314
      %v2379 = vld [vmem:[%s1 + $0x7] sm:$0x1]
      %v2380 = vlaneseq
      %v2381 = vshrl.u32 %v2380, 7
      %v2382 = vsub.s32 0, %v2381
      %v2383 = vrot.slane %v2379, %v2382
      %v2384 = vmul.f32 %v318, %v2383
      %v2385 = vmul.f32 %v319, %v2383
      %v2386 = vmul.f32 %v320, %v2383
      %v2387 = vmul.f32 %v321, %v2383
      %v2388 = vmul.f32 %v322, %v2383
      %v2389 = vmul.f32 %v323, %v2383
      %v2390 = vmul.f32 %v324, %v2383
      %v2391 = vmul.f32 %v325, %v2383
      %v2392 = vmul.f32 %v326, %v2383
      %v2393 = vmul.f32 %v327, %v2383
      %v2394 = vmul.f32 %v328, %v2383
      %v2395 = vmul.f32 %v329, %v2383
      %v2396 = vmul.f32 %v330, %v2383
      %v2397 = vmul.f32 %v331, %v2383
      %v2398 = vmul.f32 %v332, %v2383
      %v2399 = vmul.f32 %v333, %v2383
      %v2400 = vmul.f32 %v334, %v2383
      %v2401 = vmul.f32 %v335, %v2383
      %v2402 = vmul.f32 %v336, %v2383
      %v2403 = vmul.f32 %v337, %v2383
      %v2404 = vmul.f32 %v338, %v2383
      %v2405 = vmul.f32 %v339, %v2383
      %v2406 = vmul.f32 %v340, %v2383
      %v2407 = vmul.f32 %v341, %v2383
      %v2408 = vmul.f32 %v342, %v2383
      %v2409 = vmul.f32 %v343, %v2383
      %v2410 = vmul.f32 %v344, %v2383
      %v2411 = vmul.f32 %v345, %v2383
      %v2412 = vmul.f32 %v346, %v2383
      %v2413 = vmul.f32 %v347, %v2383
      %v2414 = vmul.f32 %v348, %v2383
      %v2415 = vmul.f32 %v349, %v2383
      %v2416 = vmul.f32 %v350, %v2383
      %v2417 = vmul.f32 %v351, %v2383
      %v2418 = vmul.f32 %v352, %v2383
      %v2419 = vmul.f32 %v353, %v2383
      %v2420 = vmul.f32 %v354, %v2383
      %v2421 = vmul.f32 %v355, %v2383
      %v2422 = vmul.f32 %v356, %v2383
      %v2423 = vmul.f32 %v357, %v2383
      %v2464 = vrot.slane %v2384, 3
      %v2465 = vrot.slane %v2385, 3
      %v2466 = vsel %vm999, %v2464, %v2465
      %v2467 = vrot.slane %v2386, 3
      %v2468 = vsel %vm999, %v2465, %v2467
      %v2469 = vrot.slane %v2387, 3
      %v2470 = vsel %vm999, %v2467, %v2469
      %v2471 = vrot.slane %v2388, 3
      %v2472 = vsel %vm999, %v2469, %v2471
      %v2473 = vrot.slane %v2389, 3
      %v2474 = vrot.slane %v2390, 3
      %v2475 = vsel %vm999, %v2473, %v2474
      %v2476 = vrot.slane %v2391, 3
      %v2477 = vsel %vm999, %v2474, %v2476
      %v2478 = vrot.slane %v2392, 3
      %v2479 = vsel %vm999, %v2476, %v2478
      %v2480 = vrot.slane %v2393, 3
      %v2481 = vsel %vm999, %v2478, %v2480
      %v2482 = vrot.slane %v2394, 3
      %v2483 = vrot.slane %v2395, 3
      %v2484 = vsel %vm999, %v2482, %v2483
      %v2485 = vrot.slane %v2396, 3
      %v2486 = vsel %vm999, %v2483, %v2485
      %v2487 = vrot.slane %v2397, 3
      %v2488 = vsel %vm999, %v2485, %v2487
      %v2489 = vrot.slane %v2398, 3
      %v2490 = vsel %vm999, %v2487, %v2489
      %v2491 = vrot.slane %v2399, 3
      %v2492 = vrot.slane %v2400, 3
      %v2493 = vsel %vm999, %v2491, %v2492
      %v2494 = vrot.slane %v2401, 3
      %v2495 = vsel %vm999, %v2492, %v2494
      %v2496 = vrot.slane %v2402, 3
      %v2497 = vsel %vm999, %v2494, %v2496
      %v2498 = vrot.slane %v2403, 3
      %v2499 = vsel %vm999, %v2496, %v2498
      %v2500 = vrot.slane %v2404, 3
      %v2501 = vrot.slane %v2405, 3
      %v2502 = vsel %vm999, %v2500, %v2501
      %v2503 = vrot.slane %v2406, 3
      %v2504 = vsel %vm999, %v2501, %v2503
      %v2505 = vrot.slane %v2407, 3
      %v2506 = vsel %vm999, %v2503, %v2505
      %v2507 = vrot.slane %v2408, 3
      %v2508 = vsel %vm999, %v2505, %v2507
      %v2509 = vrot.slane %v2409, 3
      %v2510 = vrot.slane %v2410, 3
      %v2511 = vsel %vm999, %v2509, %v2510
      %v2512 = vrot.slane %v2411, 3
      %v2513 = vsel %vm999, %v2510, %v2512
      %v2514 = vrot.slane %v2412, 3
      %v2515 = vsel %vm999, %v2512, %v2514
      %v2516 = vrot.slane %v2413, 3
      %v2517 = vsel %vm999, %v2514, %v2516
      %v2518 = vrot.slane %v2414, 3
      %v2519 = vrot.slane %v2415, 3
      %v2520 = vsel %vm999, %v2518, %v2519
      %v2521 = vrot.slane %v2416, 3
      %v2522 = vsel %vm999, %v2519, %v2521
      %v2523 = vrot.slane %v2417, 3
      %v2524 = vsel %vm999, %v2521, %v2523
      %v2525 = vrot.slane %v2418, 3
      %v2526 = vsel %vm999, %v2523, %v2525
      %v2527 = vrot.slane %v2419, 3
      %v2528 = vrot.slane %v2420, 3
      %v2529 = vsel %vm999, %v2527, %v2528
      %v2530 = vrot.slane %v2421, 3
      %v2531 = vsel %vm999, %v2528, %v2530
      %v2532 = vrot.slane %v2422, 3
      %v2533 = vsel %vm999, %v2530, %v2532
      %v2534 = vrot.slane %v2423, 3
      %v2535 = vsel %vm999, %v2532, %v2534
      %v2568 = vadd.f32 %v2347, %v2466
      %v2569 = vadd.f32 %v2348, %v2468
      %v2570 = vadd.f32 %v2349, %v2470
      %v2571 = vadd.f32 %v2350, %v2472
      %v2572 = vadd.f32 %v2351, %v2475
      %v2573 = vadd.f32 %v2352, %v2477
      %v2574 = vadd.f32 %v2353, %v2479
      %v2575 = vadd.f32 %v2354, %v2481
      %v2576 = vadd.f32 %v2355, %v2484
      %v2577 = vadd.f32 %v2356, %v2486
      %v2578 = vadd.f32 %v2357, %v2488
      %v2579 = vadd.f32 %v2358, %v2490
      %v2580 = vadd.f32 %v2359, %v2493
      %v2581 = vadd.f32 %v2360, %v2495
      %v2582 = vadd.f32 %v2361, %v2497
      %v2583 = vadd.f32 %v2362, %v2499
      %v2584 = vadd.f32 %v2363, %v2502
      %v2585 = vadd.f32 %v2364, %v2504
      %v2586 = vadd.f32 %v2365, %v2506
      %v2587 = vadd.f32 %v2366, %v2508
      %v2588 = vadd.f32 %v2367, %v2511
      %v2589 = vadd.f32 %v2368, %v2513
      %v2590 = vadd.f32 %v2369, %v2515
      %v2591 = vadd.f32 %v2370, %v2517
      %v2592 = vadd.f32 %v2371, %v2520
      %v2593 = vadd.f32 %v2372, %v2522
      %v2594 = vadd.f32 %v2373, %v2524
      %v2595 = vadd.f32 %v2374, %v2526
      %v2596 = vadd.f32 %v2375, %v2529
      %v2597 = vadd.f32 %v2376, %v2531
      %v2598 = vadd.f32 %v2377, %v2533
      %v2599 = vadd.f32 %v2378, %v2535
      %v2600 = vld [vmem:[%s1 + $0xc] sm:$0x1]
      %v2601 = vlaneseq
      %v2602 = vshrl.u32 %v2601, 7
      %v2603 = vsub.s32 0, %v2602
      %v2604 = vrot.slane %v2600, %v2603
      %v2605 = vmul.f32 %v361, %v2604
      %v2606 = vmul.f32 %v362, %v2604
      %v2607 = vmul.f32 %v363, %v2604
      %v2608 = vmul.f32 %v364, %v2604
      %v2609 = vmul.f32 %v366, %v2604
      %v2610 = vmul.f32 %v367, %v2604
      %v2611 = vmul.f32 %v368, %v2604
      %v2612 = vmul.f32 %v369, %v2604
      %v2613 = vmul.f32 %v371, %v2604
      %v2614 = vmul.f32 %v372, %v2604
      %v2615 = vmul.f32 %v373, %v2604
      %v2616 = vmul.f32 %v374, %v2604
      %v2617 = vmul.f32 %v376, %v2604
      %v2618 = vmul.f32 %v377, %v2604
      %v2619 = vmul.f32 %v378, %v2604
      %v2620 = vmul.f32 %v379, %v2604
      %v2621 = vmul.f32 %v381, %v2604
      %v2622 = vmul.f32 %v382, %v2604
      %v2623 = vmul.f32 %v383, %v2604
      %v2624 = vmul.f32 %v384, %v2604
      %v2625 = vmul.f32 %v386, %v2604
      %v2626 = vmul.f32 %v387, %v2604
      %v2627 = vmul.f32 %v388, %v2604
      %v2628 = vmul.f32 %v389, %v2604
      %v2629 = vmul.f32 %v391, %v2604
      %v2630 = vmul.f32 %v392, %v2604
      %v2631 = vmul.f32 %v393, %v2604
      %v2632 = vmul.f32 %v394, %v2604
      %v2633 = vmul.f32 %v396, %v2604
      %v2634 = vmul.f32 %v397, %v2604
      %v2635 = vmul.f32 %v398, %v2604
      %v2636 = vmul.f32 %v399, %v2604
      %v2637 = vadd.f32 %v2568, %v2605
      %v2638 = vadd.f32 %v2569, %v2606
      %v2639 = vadd.f32 %v2570, %v2607
      %v2640 = vadd.f32 %v2571, %v2608
      %v2641 = vadd.f32 %v2572, %v2609
      %v2642 = vadd.f32 %v2573, %v2610
      %v2643 = vadd.f32 %v2574, %v2611
      %v2644 = vadd.f32 %v2575, %v2612
      %v2645 = vadd.f32 %v2576, %v2613
      %v2646 = vadd.f32 %v2577, %v2614
      %v2647 = vadd.f32 %v2578, %v2615
      %v2648 = vadd.f32 %v2579, %v2616
      %v2649 = vadd.f32 %v2580, %v2617
      %v2650 = vadd.f32 %v2581, %v2618
      %v2651 = vadd.f32 %v2582, %v2619
      %v2652 = vadd.f32 %v2583, %v2620
      %v2653 = vadd.f32 %v2584, %v2621
      %v2654 = vadd.f32 %v2585, %v2622
      %v2655 = vadd.f32 %v2586, %v2623
      %v2656 = vadd.f32 %v2587, %v2624
      %v2657 = vadd.f32 %v2588, %v2625
      %v2658 = vadd.f32 %v2589, %v2626
      %v2659 = vadd.f32 %v2590, %v2627
      %v2660 = vadd.f32 %v2591, %v2628
      %v2661 = vadd.f32 %v2592, %v2629
      %v2662 = vadd.f32 %v2593, %v2630
      %v2663 = vadd.f32 %v2594, %v2631
      %v2664 = vadd.f32 %v2595, %v2632
      %v2665 = vadd.f32 %v2596, %v2633
      %v2666 = vadd.f32 %v2597, %v2634
      %v2667 = vadd.f32 %v2598, %v2635
      %v2668 = vadd.f32 %v2599, %v2636
      %v2669 = vld [vmem:[%s1 + $0xd] sm:$0x1]
      %v2670 = vlaneseq
      %v2671 = vshrl.u32 %v2670, 7
      %v2672 = vsub.s32 0, %v2671
      %v2673 = vrot.slane %v2669, %v2672
      %v2674 = vmul.f32 %v361, %v2673
      %v2675 = vmul.f32 %v362, %v2673
      %v2676 = vmul.f32 %v363, %v2673
      %v2677 = vmul.f32 %v364, %v2673
      %v2678 = vmul.f32 %v365, %v2673
      %v2679 = vmul.f32 %v366, %v2673
      %v2680 = vmul.f32 %v367, %v2673
      %v2681 = vmul.f32 %v368, %v2673
      %v2682 = vmul.f32 %v369, %v2673
      %v2683 = vmul.f32 %v370, %v2673
      %v2684 = vmul.f32 %v371, %v2673
      %v2685 = vmul.f32 %v372, %v2673
      %v2686 = vmul.f32 %v373, %v2673
      %v2687 = vmul.f32 %v374, %v2673
      %v2688 = vmul.f32 %v375, %v2673
      %v2689 = vmul.f32 %v376, %v2673
      %v2690 = vmul.f32 %v377, %v2673
      %v2691 = vmul.f32 %v378, %v2673
      %v2692 = vmul.f32 %v379, %v2673
      %v2693 = vmul.f32 %v380, %v2673
      %v2694 = vmul.f32 %v381, %v2673
      %v2695 = vmul.f32 %v382, %v2673
      %v2696 = vmul.f32 %v383, %v2673
      %v2697 = vmul.f32 %v384, %v2673
      %v2698 = vmul.f32 %v385, %v2673
      %v2699 = vmul.f32 %v386, %v2673
      %v2700 = vmul.f32 %v387, %v2673
      %v2701 = vmul.f32 %v388, %v2673
      %v2702 = vmul.f32 %v389, %v2673
      %v2703 = vmul.f32 %v390, %v2673
      %v2704 = vmul.f32 %v391, %v2673
      %v2705 = vmul.f32 %v392, %v2673
      %v2706 = vmul.f32 %v393, %v2673
      %v2707 = vmul.f32 %v394, %v2673
      %v2708 = vmul.f32 %v395, %v2673
      %v2709 = vmul.f32 %v396, %v2673
      %v2710 = vmul.f32 %v397, %v2673
      %v2711 = vmul.f32 %v398, %v2673
      %v2712 = vmul.f32 %v399, %v2673
      %v2713 = vmul.f32 %v400, %v2673
      %v2754 = vrot.slane %v2674, 1
      %v2755 = vrot.slane %v2675, 1
      %v2756 = vsel %vm555, %v2754, %v2755
      %v2757 = vrot.slane %v2676, 1
      %v2758 = vsel %vm555, %v2755, %v2757
      %v2759 = vrot.slane %v2677, 1
      %v2760 = vsel %vm555, %v2757, %v2759
      %v2761 = vrot.slane %v2678, 1
      %v2762 = vsel %vm555, %v2759, %v2761
      %v2763 = vrot.slane %v2679, 1
      %v2764 = vrot.slane %v2680, 1
      %v2765 = vsel %vm555, %v2763, %v2764
      %v2766 = vrot.slane %v2681, 1
      %v2767 = vsel %vm555, %v2764, %v2766
      %v2768 = vrot.slane %v2682, 1
      %v2769 = vsel %vm555, %v2766, %v2768
      %v2770 = vrot.slane %v2683, 1
      %v2771 = vsel %vm555, %v2768, %v2770
      %v2772 = vrot.slane %v2684, 1
      %v2773 = vrot.slane %v2685, 1
      %v2774 = vsel %vm555, %v2772, %v2773
      %v2775 = vrot.slane %v2686, 1
      %v2776 = vsel %vm555, %v2773, %v2775
      %v2777 = vrot.slane %v2687, 1
      %v2778 = vsel %vm555, %v2775, %v2777
      %v2779 = vrot.slane %v2688, 1
      %v2780 = vsel %vm555, %v2777, %v2779
      %v2781 = vrot.slane %v2689, 1
      %v2782 = vrot.slane %v2690, 1
      %v2783 = vsel %vm555, %v2781, %v2782
      %v2784 = vrot.slane %v2691, 1
      %v2785 = vsel %vm555, %v2782, %v2784
      %v2786 = vrot.slane %v2692, 1
      %v2787 = vsel %vm555, %v2784, %v2786
      %v2788 = vrot.slane %v2693, 1
      %v2789 = vsel %vm555, %v2786, %v2788
      %v2790 = vrot.slane %v2694, 1
      %v2791 = vrot.slane %v2695, 1
      %v2792 = vsel %vm555, %v2790, %v2791
      %v2793 = vrot.slane %v2696, 1
      %v2794 = vsel %vm555, %v2791, %v2793
      %v2795 = vrot.slane %v2697, 1
      %v2796 = vsel %vm555, %v2793, %v2795
      %v2797 = vrot.slane %v2698, 1
      %v2798 = vsel %vm555, %v2795, %v2797
      %v2799 = vrot.slane %v2699, 1
      %v2800 = vrot.slane %v2700, 1
      %v2801 = vsel %vm555, %v2799, %v2800
      %v2802 = vrot.slane %v2701, 1
      %v2803 = vsel %vm555, %v2800, %v2802
      %v2804 = vrot.slane %v2702, 1
      %v2805 = vsel %vm555, %v2802, %v2804
      %v2806 = vrot.slane %v2703, 1
      %v2807 = vsel %vm555, %v2804, %v2806
      %v2808 = vrot.slane %v2704, 1
      %v2809 = vrot.slane %v2705, 1
      %v2810 = vsel %vm555, %v2808, %v2809
      %v2811 = vrot.slane %v2706, 1
      %v2812 = vsel %vm555, %v2809, %v2811
      %v2813 = vrot.slane %v2707, 1
      %v2814 = vsel %vm555, %v2811, %v2813
      %v2815 = vrot.slane %v2708, 1
      %v2816 = vsel %vm555, %v2813, %v2815
      %v2817 = vrot.slane %v2709, 1
      %v2818 = vrot.slane %v2710, 1
      %v2819 = vsel %vm555, %v2817, %v2818
      %v2820 = vrot.slane %v2711, 1
      %v2821 = vsel %vm555, %v2818, %v2820
      %v2822 = vrot.slane %v2712, 1
      %v2823 = vsel %vm555, %v2820, %v2822
      %v2824 = vrot.slane %v2713, 1
      %v2825 = vsel %vm555, %v2822, %v2824
      %v2858 = vadd.f32 %v2637, %v2756
      %v2859 = vadd.f32 %v2638, %v2758
      %v2860 = vadd.f32 %v2639, %v2760
      %v2861 = vadd.f32 %v2640, %v2762
      %v2862 = vadd.f32 %v2641, %v2765
      %v2863 = vadd.f32 %v2642, %v2767
      %v2864 = vadd.f32 %v2643, %v2769
      %v2865 = vadd.f32 %v2644, %v2771
      %v2866 = vadd.f32 %v2645, %v2774
      %v2867 = vadd.f32 %v2646, %v2776
      %v2868 = vadd.f32 %v2647, %v2778
      %v2869 = vadd.f32 %v2648, %v2780
      %v2870 = vadd.f32 %v2649, %v2783
      %v2871 = vadd.f32 %v2650, %v2785
      %v2872 = vadd.f32 %v2651, %v2787
      %v2873 = vadd.f32 %v2652, %v2789
      %v2874 = vadd.f32 %v2653, %v2792
      %v2875 = vadd.f32 %v2654, %v2794
      %v2876 = vadd.f32 %v2655, %v2796
      %v2877 = vadd.f32 %v2656, %v2798
      %v2878 = vadd.f32 %v2657, %v2801
      %v2879 = vadd.f32 %v2658, %v2803
      %v2880 = vadd.f32 %v2659, %v2805
      %v2881 = vadd.f32 %v2660, %v2807
      %v2882 = vadd.f32 %v2661, %v2810
      %v2883 = vadd.f32 %v2662, %v2812
      %v2884 = vadd.f32 %v2663, %v2814
      %v2885 = vadd.f32 %v2664, %v2816
      %v2886 = vadd.f32 %v2665, %v2819
      %v2887 = vadd.f32 %v2666, %v2821
      %v2888 = vadd.f32 %v2667, %v2823
      %v2889 = vadd.f32 %v2668, %v2825
      %v2890 = vld [vmem:[%s1 + $0xe] sm:$0x1]
      %v2891 = vlaneseq
      %v2892 = vshrl.u32 %v2891, 7
      %v2893 = vsub.s32 0, %v2892
      %v2894 = vrot.slane %v2890, %v2893
      %v2895 = vmul.f32 %v361, %v2894
      %v2896 = vmul.f32 %v362, %v2894
      %v2897 = vmul.f32 %v363, %v2894
      %v2898 = vmul.f32 %v364, %v2894
      %v2899 = vmul.f32 %v365, %v2894
      %v2900 = vmul.f32 %v366, %v2894
      %v2901 = vmul.f32 %v367, %v2894
      %v2902 = vmul.f32 %v368, %v2894
      %v2903 = vmul.f32 %v369, %v2894
      %v2904 = vmul.f32 %v370, %v2894
      %v2905 = vmul.f32 %v371, %v2894
      %v2906 = vmul.f32 %v372, %v2894
      %v2907 = vmul.f32 %v373, %v2894
      %v2908 = vmul.f32 %v374, %v2894
      %v2909 = vmul.f32 %v375, %v2894
      %v2910 = vmul.f32 %v376, %v2894
      %v2911 = vmul.f32 %v377, %v2894
      %v2912 = vmul.f32 %v378, %v2894
      %v2913 = vmul.f32 %v379, %v2894
      %v2914 = vmul.f32 %v380, %v2894
      %v2915 = vmul.f32 %v381, %v2894
      %v2916 = vmul.f32 %v382, %v2894
      %v2917 = vmul.f32 %v383, %v2894
      %v2918 = vmul.f32 %v384, %v2894
      %v2919 = vmul.f32 %v385, %v2894
      %v2920 = vmul.f32 %v386, %v2894
      %v2921 = vmul.f32 %v387, %v2894
      %v2922 = vmul.f32 %v388, %v2894
      %v2923 = vmul.f32 %v389, %v2894
      %v2924 = vmul.f32 %v390, %v2894
      %v2925 = vmul.f32 %v391, %v2894
      %v2926 = vmul.f32 %v392, %v2894
      %v2927 = vmul.f32 %v393, %v2894
      %v2928 = vmul.f32 %v394, %v2894
      %v2929 = vmul.f32 %v395, %v2894
      %v2930 = vmul.f32 %v396, %v2894
      %v2931 = vmul.f32 %v397, %v2894
      %v2932 = vmul.f32 %v398, %v2894
      %v2933 = vmul.f32 %v399, %v2894
      %v2934 = vmul.f32 %v400, %v2894
      %v2975 = vrot.slane %v2895, 2
      %v2976 = vrot.slane %v2896, 2
      %v2977 = vsel %vm777, %v2975, %v2976
      %v2978 = vrot.slane %v2897, 2
      %v2979 = vsel %vm777, %v2976, %v2978
      %v2980 = vrot.slane %v2898, 2
      %v2981 = vsel %vm777, %v2978, %v2980
      %v2982 = vrot.slane %v2899, 2
      %v2983 = vsel %vm777, %v2980, %v2982
      %v2984 = vrot.slane %v2900, 2
      %v2985 = vrot.slane %v2901, 2
      %v2986 = vsel %vm777, %v2984, %v2985
      %v2987 = vrot.slane %v2902, 2
      %v2988 = vsel %vm777, %v2985, %v2987
      %v2989 = vrot.slane %v2903, 2
      %v2990 = vsel %vm777, %v2987, %v2989
      %v2991 = vrot.slane %v2904, 2
      %v2992 = vsel %vm777, %v2989, %v2991
      %v2993 = vrot.slane %v2905, 2
      %v2994 = vrot.slane %v2906, 2
      %v2995 = vsel %vm777, %v2993, %v2994
      %v2996 = vrot.slane %v2907, 2
      %v2997 = vsel %vm777, %v2994, %v2996
      %v2998 = vrot.slane %v2908, 2
      %v2999 = vsel %vm777, %v2996, %v2998
      %v3000 = vrot.slane %v2909, 2
      %v3001 = vsel %vm777, %v2998, %v3000
      %v3002 = vrot.slane %v2910, 2
      %v3003 = vrot.slane %v2911, 2
      %v3004 = vsel %vm777, %v3002, %v3003
      %v3005 = vrot.slane %v2912, 2
      %v3006 = vsel %vm777, %v3003, %v3005
      %v3007 = vrot.slane %v2913, 2
      %v3008 = vsel %vm777, %v3005, %v3007
      %v3009 = vrot.slane %v2914, 2
      %v3010 = vsel %vm777, %v3007, %v3009
      %v3011 = vrot.slane %v2915, 2
      %v3012 = vrot.slane %v2916, 2
      %v3013 = vsel %vm777, %v3011, %v3012
      %v3014 = vrot.slane %v2917, 2
      %v3015 = vsel %vm777, %v3012, %v3014
      %v3016 = vrot.slane %v2918, 2
      %v3017 = vsel %vm777, %v3014, %v3016
      %v3018 = vrot.slane %v2919, 2
      %v3019 = vsel %vm777, %v3016, %v3018
      %v3020 = vrot.slane %v2920, 2
      %v3021 = vrot.slane %v2921, 2
      %v3022 = vsel %vm777, %v3020, %v3021
      %v3023 = vrot.slane %v2922, 2
      %v3024 = vsel %vm777, %v3021, %v3023
      %v3025 = vrot.slane %v2923, 2
      %v3026 = vsel %vm777, %v3023, %v3025
      %v3027 = vrot.slane %v2924, 2
      %v3028 = vsel %vm777, %v3025, %v3027
      %v3029 = vrot.slane %v2925, 2
      %v3030 = vrot.slane %v2926, 2
      %v3031 = vsel %vm777, %v3029, %v3030
      %v3032 = vrot.slane %v2927, 2
      %v3033 = vsel %vm777, %v3030, %v3032
      %v3034 = vrot.slane %v2928, 2
      %v3035 = vsel %vm777, %v3032, %v3034
      %v3036 = vrot.slane %v2929, 2
      %v3037 = vsel %vm777, %v3034, %v3036
      %v3038 = vrot.slane %v2930, 2
      %v3039 = vrot.slane %v2931, 2
      %v3040 = vsel %vm777, %v3038, %v3039
      %v3041 = vrot.slane %v2932, 2
      %v3042 = vsel %vm777, %v3039, %v3041
      %v3043 = vrot.slane %v2933, 2
      %v3044 = vsel %vm777, %v3041, %v3043
      %v3045 = vrot.slane %v2934, 2
      %v3046 = vsel %vm777, %v3043, %v3045
      %v3079 = vadd.f32 %v2858, %v2977
      %v3080 = vadd.f32 %v2859, %v2979
      %v3081 = vadd.f32 %v2860, %v2981
      %v3082 = vadd.f32 %v2861, %v2983
      %v3083 = vadd.f32 %v2862, %v2986
      %v3084 = vadd.f32 %v2863, %v2988
      %v3085 = vadd.f32 %v2864, %v2990
      %v3086 = vadd.f32 %v2865, %v2992
      %v3087 = vadd.f32 %v2866, %v2995
      %v3088 = vadd.f32 %v2867, %v2997
      %v3089 = vadd.f32 %v2868, %v2999
      %v3090 = vadd.f32 %v2869, %v3001
      %v3091 = vadd.f32 %v2870, %v3004
      %v3092 = vadd.f32 %v2871, %v3006
      %v3093 = vadd.f32 %v2872, %v3008
      %v3094 = vadd.f32 %v2873, %v3010
      %v3095 = vadd.f32 %v2874, %v3013
      %v3096 = vadd.f32 %v2875, %v3015
      %v3097 = vadd.f32 %v2876, %v3017
      %v3098 = vadd.f32 %v2877, %v3019
      %v3099 = vadd.f32 %v2878, %v3022
      %v3100 = vadd.f32 %v2879, %v3024
      %v3101 = vadd.f32 %v2880, %v3026
      %v3102 = vadd.f32 %v2881, %v3028
      %v3103 = vadd.f32 %v2882, %v3031
      %v3104 = vadd.f32 %v2883, %v3033
      %v3105 = vadd.f32 %v2884, %v3035
      %v3106 = vadd.f32 %v2885, %v3037
      %v3107 = vadd.f32 %v2886, %v3040
      %v3108 = vadd.f32 %v2887, %v3042
      %v3109 = vadd.f32 %v2888, %v3044
      %v3110 = vadd.f32 %v2889, %v3046
      %v3111 = vld [vmem:[%s1 + $0xf] sm:$0x1]
      %v3112 = vlaneseq
      %v3113 = vshrl.u32 %v3112, 7
      %v3114 = vsub.s32 0, %v3113
      %v3115 = vrot.slane %v3111, %v3114
      %v3116 = vmul.f32 %v361, %v3115
      %v3117 = vmul.f32 %v362, %v3115
      %v3118 = vmul.f32 %v363, %v3115
      %v3119 = vmul.f32 %v364, %v3115
      %v3120 = vmul.f32 %v365, %v3115
      %v3121 = vmul.f32 %v366, %v3115
      %v3122 = vmul.f32 %v367, %v3115
      %v3123 = vmul.f32 %v368, %v3115
      %v3124 = vmul.f32 %v369, %v3115
      %v3125 = vmul.f32 %v370, %v3115
      %v3126 = vmul.f32 %v371, %v3115
      %v3127 = vmul.f32 %v372, %v3115
      %v3128 = vmul.f32 %v373, %v3115
      %v3129 = vmul.f32 %v374, %v3115
      %v3130 = vmul.f32 %v375, %v3115
      %v3131 = vmul.f32 %v376, %v3115
      %v3132 = vmul.f32 %v377, %v3115
      %v3133 = vmul.f32 %v378, %v3115
      %v3134 = vmul.f32 %v379, %v3115
      %v3135 = vmul.f32 %v380, %v3115
      %v3136 = vmul.f32 %v381, %v3115
      %v3137 = vmul.f32 %v382, %v3115
      %v3138 = vmul.f32 %v383, %v3115
      %v3139 = vmul.f32 %v384, %v3115
      %v3140 = vmul.f32 %v385, %v3115
      %v3141 = vmul.f32 %v386, %v3115
      %v3142 = vmul.f32 %v387, %v3115
      %v3143 = vmul.f32 %v388, %v3115
      %v3144 = vmul.f32 %v389, %v3115
      %v3145 = vmul.f32 %v390, %v3115
      %v3146 = vmul.f32 %v391, %v3115
      %v3147 = vmul.f32 %v392, %v3115
      %v3148 = vmul.f32 %v393, %v3115
      %v3149 = vmul.f32 %v394, %v3115
      %v3150 = vmul.f32 %v395, %v3115
      %v3151 = vmul.f32 %v396, %v3115
      %v3152 = vmul.f32 %v397, %v3115
      %v3153 = vmul.f32 %v398, %v3115
      %v3154 = vmul.f32 %v399, %v3115
      %v3155 = vmul.f32 %v400, %v3115
      %v3196 = vrot.slane %v3116, 3
      %v3197 = vrot.slane %v3117, 3
      %v3198 = vsel %vm999, %v3196, %v3197
      %v3199 = vrot.slane %v3118, 3
      %v3200 = vsel %vm999, %v3197, %v3199
      %v3201 = vrot.slane %v3119, 3
      %v3202 = vsel %vm999, %v3199, %v3201
      %v3203 = vrot.slane %v3120, 3
      %v3204 = vsel %vm999, %v3201, %v3203
      %v3205 = vrot.slane %v3121, 3
      %v3206 = vrot.slane %v3122, 3
      %v3207 = vsel %vm999, %v3205, %v3206
      %v3208 = vrot.slane %v3123, 3
      %v3209 = vsel %vm999, %v3206, %v3208
      %v3210 = vrot.slane %v3124, 3
      %v3211 = vsel %vm999, %v3208, %v3210
      %v3212 = vrot.slane %v3125, 3
      %v3213 = vsel %vm999, %v3210, %v3212
      %v3214 = vrot.slane %v3126, 3
      %v3215 = vrot.slane %v3127, 3
      %v3216 = vsel %vm999, %v3214, %v3215
      %v3217 = vrot.slane %v3128, 3
      %v3218 = vsel %vm999, %v3215, %v3217
      %v3219 = vrot.slane %v3129, 3
      %v3220 = vsel %vm999, %v3217, %v3219
      %v3221 = vrot.slane %v3130, 3
      %v3222 = vsel %vm999, %v3219, %v3221
      %v3223 = vrot.slane %v3131, 3
      %v3224 = vrot.slane %v3132, 3
      %v3225 = vsel %vm999, %v3223, %v3224
      %v3226 = vrot.slane %v3133, 3
      %v3227 = vsel %vm999, %v3224, %v3226
      %v3228 = vrot.slane %v3134, 3
      %v3229 = vsel %vm999, %v3226, %v3228
      %v3230 = vrot.slane %v3135, 3
      %v3231 = vsel %vm999, %v3228, %v3230
      %v3232 = vrot.slane %v3136, 3
      %v3233 = vrot.slane %v3137, 3
      %v3234 = vsel %vm999, %v3232, %v3233
      %v3235 = vrot.slane %v3138, 3
      %v3236 = vsel %vm999, %v3233, %v3235
      %v3237 = vrot.slane %v3139, 3
      %v3238 = vsel %vm999, %v3235, %v3237
      %v3239 = vrot.slane %v3140, 3
      %v3240 = vsel %vm999, %v3237, %v3239
      %v3241 = vrot.slane %v3141, 3
      %v3242 = vrot.slane %v3142, 3
      %v3243 = vsel %vm999, %v3241, %v3242
      %v3244 = vrot.slane %v3143, 3
      %v3245 = vsel %vm999, %v3242, %v3244
      %v3246 = vrot.slane %v3144, 3
      %v3247 = vsel %vm999, %v3244, %v3246
      %v3248 = vrot.slane %v3145, 3
      %v3249 = vsel %vm999, %v3246, %v3248
      %v3250 = vrot.slane %v3146, 3
      %v3251 = vrot.slane %v3147, 3
      %v3252 = vsel %vm999, %v3250, %v3251
      %v3253 = vrot.slane %v3148, 3
      %v3254 = vsel %vm999, %v3251, %v3253
      %v3255 = vrot.slane %v3149, 3
      %v3256 = vsel %vm999, %v3253, %v3255
      %v3257 = vrot.slane %v3150, 3
      %v3258 = vsel %vm999, %v3255, %v3257
      %v3259 = vrot.slane %v3151, 3
      %v3260 = vrot.slane %v3152, 3
      %v3261 = vsel %vm999, %v3259, %v3260
      %v3262 = vrot.slane %v3153, 3
      %v3263 = vsel %vm999, %v3260, %v3262
      %v3264 = vrot.slane %v3154, 3
      %v3265 = vsel %vm999, %v3262, %v3264
      %v3266 = vrot.slane %v3155, 3
      %v3267 = vsel %vm999, %v3264, %v3266
      %v3300 = vadd.f32 %v3079, %v3198
      %v3301 = vadd.f32 %v3080, %v3200
      %v3302 = vadd.f32 %v3081, %v3202
      %v3303 = vadd.f32 %v3082, %v3204
      %v3304 = vadd.f32 %v3083, %v3207
      %v3305 = vadd.f32 %v3084, %v3209
      %v3306 = vadd.f32 %v3085, %v3211
      %v3307 = vadd.f32 %v3086, %v3213
      %v3308 = vadd.f32 %v3087, %v3216
      %v3309 = vadd.f32 %v3088, %v3218
      %v3310 = vadd.f32 %v3089, %v3220
      %v3311 = vadd.f32 %v3090, %v3222
      %v3312 = vadd.f32 %v3091, %v3225
      %v3313 = vadd.f32 %v3092, %v3227
      %v3314 = vadd.f32 %v3093, %v3229
      %v3315 = vadd.f32 %v3094, %v3231
      %v3316 = vadd.f32 %v3095, %v3234
      %v3317 = vadd.f32 %v3096, %v3236
      %v3318 = vadd.f32 %v3097, %v3238
      %v3319 = vadd.f32 %v3098, %v3240
      %v3320 = vadd.f32 %v3099, %v3243
      %v3321 = vadd.f32 %v3100, %v3245
      %v3322 = vadd.f32 %v3101, %v3247
      %v3323 = vadd.f32 %v3102, %v3249
      %v3324 = vadd.f32 %v3103, %v3252
      %v3325 = vadd.f32 %v3104, %v3254
      %v3326 = vadd.f32 %v3105, %v3256
      %v3327 = vadd.f32 %v3106, %v3258
      %v3328 = vadd.f32 %v3107, %v3261
      %v3329 = vadd.f32 %v3108, %v3263
      %v3330 = vadd.f32 %v3109, %v3265
      %v3331 = vadd.f32 %v3110, %v3267
      %v3332 = vld [vmem:[%s2] sm:$0x1]
      %v3334 = vlaneseq
      %v3335 = vshrl.u32 %v3334, 7
      %v3336 = vsub.s32 0, %v3335
      %v3337 = vrot.slane %v3332, %v3336
      %v3339 = vadd.f32 %v1836, %v3337
      %v3340 = vadd.f32 %v1837, %v3337
      %v3341 = vadd.f32 %v1838, %v3337
      %v3342 = vadd.f32 %v1839, %v3337
      %v3343 = vadd.f32 %v3300, %v3337
      %v3344 = vadd.f32 %v3301, %v3337
      %v3345 = vadd.f32 %v3302, %v3337
      %v3346 = vadd.f32 %v3303, %v3337
      %v3347 = vadd.f32 %v1840, %v3337
      %v3348 = vadd.f32 %v1841, %v3337
      %v3349 = vadd.f32 %v1842, %v3337
      %v3350 = vadd.f32 %v1843, %v3337
      %v3351 = vadd.f32 %v3304, %v3337
      %v3352 = vadd.f32 %v3305, %v3337
      %v3353 = vadd.f32 %v3306, %v3337
      %v3354 = vadd.f32 %v3307, %v3337
      %v3355 = vadd.f32 %v1844, %v3337
      %v3356 = vadd.f32 %v1845, %v3337
      %v3357 = vadd.f32 %v1846, %v3337
      %v3358 = vadd.f32 %v1847, %v3337
      %v3359 = vadd.f32 %v3308, %v3337
      %v3360 = vadd.f32 %v3309, %v3337
      %v3361 = vadd.f32 %v3310, %v3337
      %v3362 = vadd.f32 %v3311, %v3337
      %v3363 = vadd.f32 %v1848, %v3337
      %v3364 = vadd.f32 %v1849, %v3337
      %v3365 = vadd.f32 %v1850, %v3337
      %v3366 = vadd.f32 %v1851, %v3337
      %v3367 = vadd.f32 %v3312, %v3337
      %v3368 = vadd.f32 %v3313, %v3337
      %v3369 = vadd.f32 %v3314, %v3337
      %v3370 = vadd.f32 %v3315, %v3337
      %v3371 = vadd.f32 %v1852, %v3337
      %v3372 = vadd.f32 %v1853, %v3337
      %v3373 = vadd.f32 %v1854, %v3337
      %v3374 = vadd.f32 %v1855, %v3337
      %v3375 = vadd.f32 %v3316, %v3337
      %v3376 = vadd.f32 %v3317, %v3337
      %v3377 = vadd.f32 %v3318, %v3337
      %v3378 = vadd.f32 %v3319, %v3337
      %v3379 = vadd.f32 %v1856, %v3337
      %v3380 = vadd.f32 %v1857, %v3337
      %v3381 = vadd.f32 %v1858, %v3337
      %v3382 = vadd.f32 %v1859, %v3337
      %v3383 = vadd.f32 %v3320, %v3337
      %v3384 = vadd.f32 %v3321, %v3337
      %v3385 = vadd.f32 %v3322, %v3337
      %v3386 = vadd.f32 %v3323, %v3337
      %v3387 = vadd.f32 %v1860, %v3337
      %v3388 = vadd.f32 %v1861, %v3337
      %v3389 = vadd.f32 %v1862, %v3337
      %v3390 = vadd.f32 %v1863, %v3337
      %v3391 = vadd.f32 %v3324, %v3337
      %v3392 = vadd.f32 %v3325, %v3337
      %v3393 = vadd.f32 %v3326, %v3337
      %v3394 = vadd.f32 %v3327, %v3337
      %v3395 = vadd.f32 %v1864, %v3337
      %v3396 = vadd.f32 %v1865, %v3337
      %v3397 = vadd.f32 %v1866, %v3337
      %v3398 = vadd.f32 %v1867, %v3337
      %v3399 = vadd.f32 %v3328, %v3337
      %v3400 = vadd.f32 %v3329, %v3337
      %v3401 = vadd.f32 %v3330, %v3337
      %v3402 = vadd.f32 %v3331, %v3337
      %v3403 = vld [vmem:[%s4] sm:$0x1]
      %v3405 = vlaneseq
      %v3406 = vshrl.u32 %v3405, 7
      %v3407 = vsub.s32 0, %v3406
      %v3408 = vrot.slane %v3403, %v3407
      %v3410 = vmul.f32 %v3339, %v3408
      %v3411 = vmul.f32 %v3340, %v3408
      %v3412 = vmul.f32 %v3341, %v3408
      %v3413 = vmul.f32 %v3342, %v3408
      %v3414 = vmul.f32 %v3343, %v3408
      %v3415 = vmul.f32 %v3344, %v3408
      %v3416 = vmul.f32 %v3345, %v3408
      %v3417 = vmul.f32 %v3346, %v3408
      %v3418 = vmul.f32 %v3347, %v3408
      %v3419 = vmul.f32 %v3348, %v3408
      %v3420 = vmul.f32 %v3349, %v3408
      %v3421 = vmul.f32 %v3350, %v3408
      %v3422 = vmul.f32 %v3351, %v3408
      %v3423 = vmul.f32 %v3352, %v3408
      %v3424 = vmul.f32 %v3353, %v3408
      %v3425 = vmul.f32 %v3354, %v3408
      %v3426 = vmul.f32 %v3355, %v3408
      %v3427 = vmul.f32 %v3356, %v3408
      %v3428 = vmul.f32 %v3357, %v3408
      %v3429 = vmul.f32 %v3358, %v3408
      %v3430 = vmul.f32 %v3359, %v3408
      %v3431 = vmul.f32 %v3360, %v3408
      %v3432 = vmul.f32 %v3361, %v3408
      %v3433 = vmul.f32 %v3362, %v3408
      %v3434 = vmul.f32 %v3363, %v3408
      %v3435 = vmul.f32 %v3364, %v3408
      %v3436 = vmul.f32 %v3365, %v3408
      %v3437 = vmul.f32 %v3366, %v3408
      %v3438 = vmul.f32 %v3367, %v3408
      %v3439 = vmul.f32 %v3368, %v3408
      %v3440 = vmul.f32 %v3369, %v3408
      %v3441 = vmul.f32 %v3370, %v3408
      %v3442 = vmul.f32 %v3371, %v3408
      %v3443 = vmul.f32 %v3372, %v3408
      %v3444 = vmul.f32 %v3373, %v3408
      %v3445 = vmul.f32 %v3374, %v3408
      %v3446 = vmul.f32 %v3375, %v3408
      %v3447 = vmul.f32 %v3376, %v3408
      %v3448 = vmul.f32 %v3377, %v3408
      %v3449 = vmul.f32 %v3378, %v3408
      %v3450 = vmul.f32 %v3379, %v3408
      %v3451 = vmul.f32 %v3380, %v3408
      %v3452 = vmul.f32 %v3381, %v3408
      %v3453 = vmul.f32 %v3382, %v3408
      %v3454 = vmul.f32 %v3383, %v3408
      %v3455 = vmul.f32 %v3384, %v3408
      %v3456 = vmul.f32 %v3385, %v3408
      %v3457 = vmul.f32 %v3386, %v3408
      %v3458 = vmul.f32 %v3387, %v3408
      %v3459 = vmul.f32 %v3388, %v3408
      %v3460 = vmul.f32 %v3389, %v3408
      %v3461 = vmul.f32 %v3390, %v3408
      %v3462 = vmul.f32 %v3391, %v3408
      %v3463 = vmul.f32 %v3392, %v3408
      %v3464 = vmul.f32 %v3393, %v3408
      %v3465 = vmul.f32 %v3394, %v3408
      %v3466 = vmul.f32 %v3395, %v3408
      %v3467 = vmul.f32 %v3396, %v3408
      %v3468 = vmul.f32 %v3397, %v3408
      %v3469 = vmul.f32 %v3398, %v3408
      %v3470 = vmul.f32 %v3399, %v3408
      %v3471 = vmul.f32 %v3400, %v3408
      %v3472 = vmul.f32 %v3401, %v3408
      %v3473 = vmul.f32 %v3402, %v3408
      %v3474 = vld [vmem:[%s5] sm:$0x1]
      %v3476 = vlaneseq
      %v3477 = vshrl.u32 %v3476, 7
      %v3478 = vsub.s32 0, %v3477
      %v3479 = vrot.slane %v3474, %v3478
      %v3481 = vadd.f32 %v3410, %v3479
      %v3482 = vadd.f32 %v3411, %v3479
      %v3483 = vadd.f32 %v3412, %v3479
      %v3484 = vadd.f32 %v3413, %v3479
      %v3485 = vadd.f32 %v3414, %v3479
      %v3486 = vadd.f32 %v3415, %v3479
      %v3487 = vadd.f32 %v3416, %v3479
      %v3488 = vadd.f32 %v3417, %v3479
      %v3489 = vadd.f32 %v3418, %v3479
      %v3490 = vadd.f32 %v3419, %v3479
      %v3491 = vadd.f32 %v3420, %v3479
      %v3492 = vadd.f32 %v3421, %v3479
      %v3493 = vadd.f32 %v3422, %v3479
      %v3494 = vadd.f32 %v3423, %v3479
      %v3495 = vadd.f32 %v3424, %v3479
      %v3496 = vadd.f32 %v3425, %v3479
      %v3497 = vadd.f32 %v3426, %v3479
      %v3498 = vadd.f32 %v3427, %v3479
      %v3499 = vadd.f32 %v3428, %v3479
      %v3500 = vadd.f32 %v3429, %v3479
      %v3501 = vadd.f32 %v3430, %v3479
      %v3502 = vadd.f32 %v3431, %v3479
      %v3503 = vadd.f32 %v3432, %v3479
      %v3504 = vadd.f32 %v3433, %v3479
      %v3505 = vadd.f32 %v3434, %v3479
      %v3506 = vadd.f32 %v3435, %v3479
      %v3507 = vadd.f32 %v3436, %v3479
      %v3508 = vadd.f32 %v3437, %v3479
      %v3509 = vadd.f32 %v3438, %v3479
      %v3510 = vadd.f32 %v3439, %v3479
      %v3511 = vadd.f32 %v3440, %v3479
      %v3512 = vadd.f32 %v3441, %v3479
      %v3513 = vadd.f32 %v3442, %v3479
      %v3514 = vadd.f32 %v3443, %v3479
      %v3515 = vadd.f32 %v3444, %v3479
      %v3516 = vadd.f32 %v3445, %v3479
      %v3517 = vadd.f32 %v3446, %v3479
      %v3518 = vadd.f32 %v3447, %v3479
      %v3519 = vadd.f32 %v3448, %v3479
      %v3520 = vadd.f32 %v3449, %v3479
      %v3521 = vadd.f32 %v3450, %v3479
      %v3522 = vadd.f32 %v3451, %v3479
      %v3523 = vadd.f32 %v3452, %v3479
      %v3524 = vadd.f32 %v3453, %v3479
      %v3525 = vadd.f32 %v3454, %v3479
      %v3526 = vadd.f32 %v3455, %v3479
      %v3527 = vadd.f32 %v3456, %v3479
      %v3528 = vadd.f32 %v3457, %v3479
      %v3529 = vadd.f32 %v3458, %v3479
      %v3530 = vadd.f32 %v3459, %v3479
      %v3531 = vadd.f32 %v3460, %v3479
      %v3532 = vadd.f32 %v3461, %v3479
      %v3533 = vadd.f32 %v3462, %v3479
      %v3534 = vadd.f32 %v3463, %v3479
      %v3535 = vadd.f32 %v3464, %v3479
      %v3536 = vadd.f32 %v3465, %v3479
      %v3537 = vadd.f32 %v3466, %v3479
      %v3538 = vadd.f32 %v3467, %v3479
      %v3539 = vadd.f32 %v3468, %v3479
      %v3540 = vadd.f32 %v3469, %v3479
      %v3541 = vadd.f32 %v3470, %v3479
      %v3542 = vadd.f32 %v3471, %v3479
      %v3543 = vadd.f32 %v3472, %v3479
      %v3544 = vadd.f32 %v3473, %v3479
      %v3545 = vmax.f32 %v3481, 0.0
      %v3546 = vmax.f32 %v3482, 0.0
      %v3547 = vmax.f32 %v3483, 0.0
      %v3548 = vmax.f32 %v3484, 0.0
      %v3549 = vmax.f32 %v3485, 0.0
      %v3550 = vmax.f32 %v3486, 0.0
      %v3551 = vmax.f32 %v3487, 0.0
      %v3552 = vmax.f32 %v3488, 0.0
      %v3553 = vmax.f32 %v3489, 0.0
      %v3554 = vmax.f32 %v3490, 0.0
      %v3555 = vmax.f32 %v3491, 0.0
      %v3556 = vmax.f32 %v3492, 0.0
      %v3557 = vmax.f32 %v3493, 0.0
      %v3558 = vmax.f32 %v3494, 0.0
      %v3559 = vmax.f32 %v3495, 0.0
      %v3560 = vmax.f32 %v3496, 0.0
      %v3561 = vmax.f32 %v3497, 0.0
      %v3562 = vmax.f32 %v3498, 0.0
      %v3563 = vmax.f32 %v3499, 0.0
      %v3564 = vmax.f32 %v3500, 0.0
      %v3565 = vmax.f32 %v3501, 0.0
      %v3566 = vmax.f32 %v3502, 0.0
      %v3567 = vmax.f32 %v3503, 0.0
      %v3568 = vmax.f32 %v3504, 0.0
      %v3569 = vmax.f32 %v3505, 0.0
      %v3570 = vmax.f32 %v3506, 0.0
      %v3571 = vmax.f32 %v3507, 0.0
      %v3572 = vmax.f32 %v3508, 0.0
      %v3573 = vmax.f32 %v3509, 0.0
      %v3574 = vmax.f32 %v3510, 0.0
      %v3575 = vmax.f32 %v3511, 0.0
      %v3576 = vmax.f32 %v3512, 0.0
      %v3577 = vmax.f32 %v3513, 0.0
      %v3578 = vmax.f32 %v3514, 0.0
      %v3579 = vmax.f32 %v3515, 0.0
      %v3580 = vmax.f32 %v3516, 0.0
      %v3581 = vmax.f32 %v3517, 0.0
      %v3582 = vmax.f32 %v3518, 0.0
      %v3583 = vmax.f32 %v3519, 0.0
      %v3584 = vmax.f32 %v3520, 0.0
      %v3585 = vmax.f32 %v3521, 0.0
      %v3586 = vmax.f32 %v3522, 0.0
      %v3587 = vmax.f32 %v3523, 0.0
      %v3588 = vmax.f32 %v3524, 0.0
      %v3589 = vmax.f32 %v3525, 0.0
      %v3590 = vmax.f32 %v3526, 0.0
      %v3591 = vmax.f32 %v3527, 0.0
      %v3592 = vmax.f32 %v3528, 0.0
      %v3593 = vmax.f32 %v3529, 0.0
      %v3594 = vmax.f32 %v3530, 0.0
      %v3595 = vmax.f32 %v3531, 0.0
      %v3596 = vmax.f32 %v3532, 0.0
      %v3597 = vmax.f32 %v3533, 0.0
      %v3598 = vmax.f32 %v3534, 0.0
      %v3599 = vmax.f32 %v3535, 0.0
      %v3600 = vmax.f32 %v3536, 0.0
      %v3601 = vmax.f32 %v3537, 0.0
      %v3602 = vmax.f32 %v3538, 0.0
      %v3603 = vmax.f32 %v3539, 0.0
      %v3604 = vmax.f32 %v3540, 0.0
      %v3605 = vmax.f32 %v3541, 0.0
      %v3606 = vmax.f32 %v3542, 0.0
      %v3607 = vmax.f32 %v3543, 0.0
      %v3608 = vmax.f32 %v3544, 0.0
      %v3609 = vld [vmem:[%s3] sm:$0xff]
      %vm3610 = vcmask 31744
      %v3612 = vsel %vm3610, %v3609, 0
      %v3615 = vsel %vm3610, %v3545, 0
      %v3618 = vsel %vm3610, %v3546, 0
      %v3621 = vsel %vm3610, %v3547, 0
      %v3624 = vsel %vm3610, %v3548, 0
      %v3627 = vsel %vm3610, %v3549, 0
      %v3630 = vsel %vm3610, %v3550, 0
      %v3633 = vsel %vm3610, %v3551, 0
      %v3636 = vsel %vm3610, %v3552, 0
      %v3639 = vsel %vm3610, %v3553, 0
      %v3642 = vsel %vm3610, %v3554, 0
      %v3645 = vsel %vm3610, %v3555, 0
      %v3648 = vsel %vm3610, %v3556, 0
      %v3651 = vsel %vm3610, %v3557, 0
      %v3654 = vsel %vm3610, %v3558, 0
      %v3657 = vsel %vm3610, %v3559, 0
      %v3660 = vsel %vm3610, %v3560, 0
      %v3663 = vsel %vm3610, %v3561, 0
      %v3666 = vsel %vm3610, %v3562, 0
      %v3669 = vsel %vm3610, %v3563, 0
      %v3672 = vsel %vm3610, %v3564, 0
      %v3675 = vsel %vm3610, %v3565, 0
      %v3678 = vsel %vm3610, %v3566, 0
      %v3681 = vsel %vm3610, %v3567, 0
      %v3684 = vsel %vm3610, %v3568, 0
      %v3687 = vsel %vm3610, %v3569, 0
      %v3690 = vsel %vm3610, %v3570, 0
      %v3693 = vsel %vm3610, %v3571, 0
      %v3696 = vsel %vm3610, %v3572, 0
      %v3699 = vsel %vm3610, %v3573, 0
      %v3702 = vsel %vm3610, %v3574, 0
      %v3705 = vsel %vm3610, %v3575, 0
      %v3708 = vsel %vm3610, %v3576, 0
      %v3711 = vsel %vm3610, %v3577, 0
      %v3714 = vsel %vm3610, %v3578, 0
      %v3717 = vsel %vm3610, %v3579, 0
      %v3720 = vsel %vm3610, %v3580, 0
      %v3723 = vsel %vm3610, %v3581, 0
      %v3726 = vsel %vm3610, %v3582, 0
      %v3729 = vsel %vm3610, %v3583, 0
      %v3732 = vsel %vm3610, %v3584, 0
      %v3735 = vsel %vm3610, %v3585, 0
      %v3738 = vsel %vm3610, %v3586, 0
      %v3741 = vsel %vm3610, %v3587, 0
      %v3744 = vsel %vm3610, %v3588, 0
      %v3747 = vsel %vm3610, %v3589, 0
      %v3750 = vsel %vm3610, %v3590, 0
      %v3753 = vsel %vm3610, %v3591, 0
      %v3756 = vsel %vm3610, %v3592, 0
      %v3759 = vsel %vm3610, %v3593, 0
      %v3762 = vsel %vm3610, %v3594, 0
      %v3765 = vsel %vm3610, %v3595, 0
      %v3768 = vsel %vm3610, %v3596, 0
      %v3771 = vsel %vm3610, %v3597, 0
      %v3774 = vsel %vm3610, %v3598, 0
      %v3777 = vsel %vm3610, %v3599, 0
      %v3780 = vsel %vm3610, %v3600, 0
      %v3783 = vsel %vm3610, %v3601, 0
      %v3786 = vsel %vm3610, %v3602, 0
      %v3789 = vsel %vm3610, %v3603, 0
      %v3792 = vsel %vm3610, %v3604, 0
      %v3795 = vsel %vm3610, %v3605, 0
      %v3798 = vsel %vm3610, %v3606, 0
      %v3801 = vsel %vm3610, %v3607, 0
      %v3804 = vsel %vm3610, %v3608, 0
      %3806 = vmatprep.subr.mxu0 0.0
      %3807 = vmatpush1.xpose.msra.mxu0 %v3615
      %3808 = vmatprep.subr.mxu0 0.0
      %3809 = vmatpush1.xpose.msra.mxu0 %v3618
      %3810 = vmatprep.subr.mxu0 0.0
      %3811 = vmatpush1.xpose.msra.mxu0 %v3621
      %3812 = vmatprep.subr.mxu0 0.0
      %3813 = vmatpush1.xpose.msra.mxu0 %v3624
      %3814 = vmatprep.subr.mxu0 0.0
      %3815 = vmatpush1.xpose.msra.mxu0 %v3627
      %3816 = vmatprep.subr.mxu0 0.0
      %3817 = vmatpush1.xpose.msra.mxu0 %v3630
      %3818 = vmatprep.subr.mxu0 0.0
      %3819 = vmatpush1.xpose.msra.mxu0 %v3633
      %3820 = vmatprep.subr.mxu0 0.0
      %3821 = vmatpush1.xpose.msra.mxu0 %v3636
      %3822 = vmatprep.subr.mxu0 0.0
      %3823 = vmatpush1.xpose.msra.mxu0 %v3639
      %3824 = vmatprep.subr.mxu0 0.0
      %3825 = vmatpush1.xpose.msra.mxu0 %v3642
      %3826 = vmatprep.subr.mxu0 0.0
      %3827 = vmatpush1.xpose.msra.mxu0 %v3645
      %3828 = vmatprep.subr.mxu0 0.0
      %3829 = vmatpush1.xpose.msra.mxu0 %v3648
      %3830 = vmatprep.subr.mxu0 0.0
      %3831 = vmatpush1.xpose.msra.mxu0 %v3651
      %3832 = vmatprep.subr.mxu0 0.0
      %3833 = vmatpush1.xpose.msra.mxu0 %v3654
      %3834 = vmatprep.subr.mxu0 0.0
      %3835 = vmatpush1.xpose.msra.mxu0 %v3657
      %3836 = vmatprep.subr.mxu0 0.0
      %3837 = vmatpush1.xpose.msra.mxu0 %v3660
      %3838 = vmatprep.subr.mxu0 0.0
      %3839 = vmatpush1.xpose.msra.mxu0 %v3663
      %3840 = vmatprep.subr.mxu0 0.0
      %3841 = vmatpush1.xpose.msra.mxu0 %v3666
      %3842 = vmatprep.subr.mxu0 0.0
      %3843 = vmatpush1.xpose.msra.mxu0 %v3669
      %3844 = vmatprep.subr.mxu0 0.0
      %3845 = vmatpush1.xpose.msra.mxu0 %v3672
      %3846 = vmatprep.subr.mxu0 0.0
      %3847 = vmatpush1.xpose.msra.mxu0 %v3675
      %3848 = vmatprep.subr.mxu0 0.0
      %3849 = vmatpush1.xpose.msra.mxu0 %v3678
      %3850 = vmatprep.subr.mxu0 0.0
      %3851 = vmatpush1.xpose.msra.mxu0 %v3681
      %3852 = vmatprep.subr.mxu0 0.0
      %3853 = vmatpush1.xpose.msra.mxu0 %v3684
      %3854 = vmatprep.subr.mxu0 0.0
      %3855 = vmatpush1.xpose.msra.mxu0 %v3687
      %3856 = vmatprep.subr.mxu0 0.0
      %3857 = vmatpush1.xpose.msra.mxu0 %v3690
      %3858 = vmatprep.subr.mxu0 0.0
      %3859 = vmatpush1.xpose.msra.mxu0 %v3693
      %3860 = vmatprep.subr.mxu0 0.0
      %3861 = vmatpush1.xpose.msra.mxu0 %v3696
      %3862 = vmatprep.subr.mxu0 0.0
      %3863 = vmatpush1.xpose.msra.mxu0 %v3699
      %3864 = vmatprep.subr.mxu0 0.0
      %3865 = vmatpush1.xpose.msra.mxu0 %v3702
      %3866 = vmatprep.subr.mxu0 0.0
      %3867 = vmatpush1.xpose.msra.mxu0 %v3705
      %3868 = vmatprep.subr.mxu0 0.0
      %3869 = vmatpush1.xpose.msra.mxu0 %v3708
      %3870 = vmatprep.mubr.f32.mxu0 0.0
      %3871 = vmatmul.mubr.f32.gmra.mrb[0].mxu0 %v3612
      %v3872 = vpop.f32.mrb[0].mxu0
      %v3873 = vadd.f32 0.0, %v3872
      %v3874 = vpop.f32.mrb[0].mxu0
      %v3875 = vadd.f32 0.0, %v3874
      %3876 = vdwg.mxu0
      %3877 = vmatprep.subr.mxu0 0.0
      %3878 = vmatpush1.xpose.msra.mxu0 %v3711
      %3879 = vmatprep.subr.mxu0 0.0
      %3880 = vmatpush1.xpose.msra.mxu0 %v3714
      %3881 = vmatprep.subr.mxu0 0.0
      %3882 = vmatpush1.xpose.msra.mxu0 %v3717
      %3883 = vmatprep.subr.mxu0 0.0
      %3884 = vmatpush1.xpose.msra.mxu0 %v3720
      %3885 = vmatprep.subr.mxu0 0.0
      %3886 = vmatpush1.xpose.msra.mxu0 %v3723
      %3887 = vmatprep.subr.mxu0 0.0
      %3888 = vmatpush1.xpose.msra.mxu0 %v3726
      %3889 = vmatprep.subr.mxu0 0.0
      %3890 = vmatpush1.xpose.msra.mxu0 %v3729
      %3891 = vmatprep.subr.mxu0 0.0
      %3892 = vmatpush1.xpose.msra.mxu0 %v3732
      %3893 = vmatprep.subr.mxu0 0.0
      %3894 = vmatpush1.xpose.msra.mxu0 %v3735
      %3895 = vmatprep.subr.mxu0 0.0
      %3896 = vmatpush1.xpose.msra.mxu0 %v3738
      %3897 = vmatprep.subr.mxu0 0.0
      %3898 = vmatpush1.xpose.msra.mxu0 %v3741
      %3899 = vmatprep.subr.mxu0 0.0
      %3900 = vmatpush1.xpose.msra.mxu0 %v3744
      %3901 = vmatprep.subr.mxu0 0.0
      %3902 = vmatpush1.xpose.msra.mxu0 %v3747
      %3903 = vmatprep.subr.mxu0 0.0
      %3904 = vmatpush1.xpose.msra.mxu0 %v3750
      %3905 = vmatprep.subr.mxu0 0.0
      %3906 = vmatpush1.xpose.msra.mxu0 %v3753
      %3907 = vmatprep.subr.mxu0 0.0
      %3908 = vmatpush1.xpose.msra.mxu0 %v3756
      %3909 = vmatprep.subr.mxu0 0.0
      %3910 = vmatpush1.xpose.msra.mxu0 %v3759
      %3911 = vmatprep.subr.mxu0 0.0
      %3912 = vmatpush1.xpose.msra.mxu0 %v3762
      %3913 = vmatprep.subr.mxu0 0.0
      %3914 = vmatpush1.xpose.msra.mxu0 %v3765
      %3915 = vmatprep.subr.mxu0 0.0
      %3916 = vmatpush1.xpose.msra.mxu0 %v3768
      %3917 = vmatprep.subr.mxu0 0.0
      %3918 = vmatpush1.xpose.msra.mxu0 %v3771
      %3919 = vmatprep.subr.mxu0 0.0
      %3920 = vmatpush1.xpose.msra.mxu0 %v3774
      %3921 = vmatprep.subr.mxu0 0.0
      %3922 = vmatpush1.xpose.msra.mxu0 %v3777
      %3923 = vmatprep.subr.mxu0 0.0
      %3924 = vmatpush1.xpose.msra.mxu0 %v3780
      %3925 = vmatprep.subr.mxu0 0.0
      %3926 = vmatpush1.xpose.msra.mxu0 %v3783
      %3927 = vmatprep.subr.mxu0 0.0
      %3928 = vmatpush1.xpose.msra.mxu0 %v3786
      %3929 = vmatprep.subr.mxu0 0.0
      %3930 = vmatpush1.xpose.msra.mxu0 %v3789
      %3931 = vmatprep.subr.mxu0 0.0
      %3932 = vmatpush1.xpose.msra.mxu0 %v3792
      %3933 = vmatprep.subr.mxu0 0.0
      %3934 = vmatpush1.xpose.msra.mxu0 %v3795
      %3935 = vmatprep.subr.mxu0 0.0
      %3936 = vmatpush1.xpose.msra.mxu0 %v3798
      %3937 = vmatprep.subr.mxu0 0.0
      %3938 = vmatpush1.xpose.msra.mxu0 %v3801
      %3939 = vmatprep.subr.mxu0 0.0
      %3940 = vmatpush1.xpose.msra.mxu0 %v3804
      %3941 = vmatprep.mubr.f32.mxu0 0.0
      %3942 = vmatmul.mubr.f32.gmra.mrb[0].mxu0 %v3612
      %v3943 = vpop.f32.mrb[0].mxu0
      %v3944 = vadd.f32 0.0, %v3943
      %v3945 = vpop.f32.mrb[0].mxu0
      %v3946 = vadd.f32 0.0, %v3945
      %3947 = vdwg.mxu0
      %v3948 = vadd.f32 %v3873, %v3875
      %v3949 = vadd.f32 %v3948, %v3944
      %v3950 = vadd.f32 %v3949, %v3946
      %3951 = vadd.xlane.f32.xlu0 %v3950
      %v3952 = vpop.xlane.xlu0 %3951
      %v3953 = vmul.f32 %v3873, %v3873
      %v3954 = vmul.f32 %v3875, %v3875
      %v3955 = vmul.f32 %v3944, %v3944
      %v3956 = vmul.f32 %v3946, %v3946
      %v3957 = vadd.f32 %v3953, %v3954
      %v3958 = vadd.f32 %v3957, %v3955
      %v3959 = vadd.f32 %v3958, %v3956
      %3960 = vadd.xlane.f32.xlu0 %v3959
      %v3961 = vpop.xlane.xlu0 %3960
      %vm3962 = vcmask 7168
      %v3963 = vsel %vm3962, %v3952, %v3961
      %vm3964 = vcmask 15360
      %3965 = vst.msk [vmem:[%s271] sm:$0xff] %vm3964, %v3963
      %p3966 = scmp.lt.s32.totalorder %s21, 1
      %s3967 = scalar_select %p3966, %s21, 1
      %p3968 = scmp.lt.s32.totalorder %s22, 1
      %s3969 = scalar_select %p3968, %s22, 1
      %s3970 = smul.addr %s3967, 2
      %s3971 = sadd.s32 %s3969, %s3970
      %s3972 = smul.addr %s3971, 8
      %s3973 = scalar_lea.vmem %s6, %s3972
      // Predicated region
      $region45: #{depth_transpose_cnn_forward.4} parent=43 // pred_check
        %p3974 = pneg %p180
      $region46: #{depth_transpose_cnn_forward.4} parent=43 // pred_check_branch
        %3976 = sbr.rel (%p3974) target = $region48
      $region47: #{depth_transpose_cnn_forward.4} parent=43 // pred_region
        _
      $region48: #{depth_transpose_cnn_forward.4} parent=43 // pred_fallthru
        _
    $region44: #{depth_transpose_cnn_forward.4} parent=5 // pred_fallthru
      _
    %p3977 = scmp.le.s32.totalorder 2, %s12
    // Predicated region
    $region49: #{depth_transpose_cnn_forward.4} parent=5 // pred_check
      %p3978 = pneg %p3977
    $region50: #{depth_transpose_cnn_forward.4} parent=5 // pred_check_branch
      %3980 = sbr.rel (%p3978) target = $region52
    $region51: #{depth_transpose_cnn_forward.4} parent=5 // pred_region
      %s3981 = ssub.s32 %s12, 2
      // Predicated region
      $region53: #{depth_transpose_cnn_forward.4} parent=51 // pred_check
        %p3982 = pneg %p186
      $region54: #{depth_transpose_cnn_forward.4} parent=51 // pred_check_branch
        %3984 = sbr.rel (%p3982) target = $region56
      $region55: #{depth_transpose_cnn_forward.4} parent=51 // pred_region
        %p3985 = scmp.lt.s32.totalorder %s23, 1
        %s3986 = scalar_select %p3985, %s23, 1
        %p3987 = scmp.lt.s32.totalorder %s24, 1
        %s3988 = scalar_select %p3987, %s24, 1
        %s3989 = smul.addr %s3986, 2
        %s3990 = sadd.s32 %s3988, %s3989
        %s3991 = smul.addr %s3990, 8
        %s3992 = scalar_lea.vmem %s6, %s3991
      $region56: #{depth_transpose_cnn_forward.4} parent=51 // pred_fallthru
        _
    $region52: #{depth_transpose_cnn_forward.4} parent=5 // pred_fallthru
      _
  $region6: #{depth_transpose_cnn_forward.4} parent=0 // loop_footer
    %s16 = sadd.s32 1, %s12
  $region7: #{depth_transpose_cnn_forward.4} parent=0 // loop_footer_branch
    %11 = sbr.rel target = $region3
  $region8: #{depth_transpose_cnn_forward.4} parent=0 // loop_exit
    _

// kernel: depth_transpose_cnn_forward.5
$region0: #{depth_transpose_cnn_forward.5}
  #allocation0 [shape = 'u32[]', space=smem, size = 0x4, offset = 0x4, fixed_abs, tag = 'smem constant byte address 0x4 - core index']
  #allocation1 [shape = 'u32[144,128]{1,0:T(1,128)}', space=vmem, size = 0x12000, scoped, tag = 'internal scratch']
  %s0 = inlined_call_operand.vmem [shape: f32[2,18,35,4], index: 0, kind: input, shape index: {}]
  %s1 = inlined_call_operand.vmem [shape: f32[16,4], index: 1, kind: input, shape index: {}]
  %s2 = inlined_call_operand.vmem [shape: f32[1,4], index: 2, kind: input, shape index: {}]
  %s3 = inlined_call_operand.vmem [shape: f32[8,4], index: 3, kind: input, shape index: {}]
  %s4 = inlined_call_operand.vmem [shape: f32[1,4], index: 4, kind: input, shape index: {}]
  %s5 = inlined_call_operand.vmem [shape: f32[1,4], index: 5, kind: input, shape index: {}]
  %s6 = inlined_call_operand.vmem [shape: f32[8,1], index: 6, kind: input, shape index: {}]
  %s7 = inlined_call_operand.vmem [shape: f32[8,1], index: 7, kind: input, shape index: {}]
  %s8 = inlined_call_operand.vmem [shape: f32[2,8,1024], index: 8, kind: output, shape index: {}]
  %s9 = sld [smem:[#allocation0]]
  $region65: #{depth_transpose_cnn_forward.5} parent=0
    _
  %s11 = ssub.s32 1, %s9
  %s12 = scalar_select 0, %s11, %s9
  loop: start=0, step=1, limit=6
  $region2: #{depth_transpose_cnn_forward.5} parent=0 // loop_pre_header
    _
  $region3: #{depth_transpose_cnn_forward.5} parent=0 // loop_header
    %s14 = sphi 0, %s18
    %p15 = scmp.ge.s32.totalorder %s14, 6
    %s21 = sphi 0, %s33
    %s22 = sphi 0, %s29
    %s23 = sphi 0, %s21
    %s24 = sphi 0, %s22
    %s25 = sphi 0, %s23
    %s26 = sphi 0, %s24
    %s36 = sphi 0, %s38
    %s39 = sphi 0, %s36
    %s40 = sphi 0, %s39
    %s56 = sphi 0, %s40
    %s60 = sphi 0, %s60
    %s62 = sphi 0, %s60
    %s63 = sphi 0, %s62
    %s77 = sphi 0, %s63
    %s81 = sphi 0, %s81
    %s83 = sphi 0, %s81
    %s84 = sphi 0, %s83
    %s98 = sphi 0, %s84
    %s102 = sphi 0, %s102
    %s104 = sphi 0, %s102
    %s105 = sphi 0, %s104
    %s119 = sphi 0, %s105
    %s123 = sphi 0, %s123
    %s125 = sphi 0, %s123
    %s126 = sphi 0, %s125
    %s140 = sphi 0, %s126
    %s144 = sphi 0, %s144
    %s146 = sphi 0, %s144
    %s147 = sphi 0, %s146
    %s161 = sphi 0, %s147
    %s165 = sphi 0, %s165
    %s167 = sphi 0, %s165
    %s168 = sphi 0, %s167
    %s182 = sphi 0, %s168
    %s186 = sphi 0, %s186
    %s188 = sphi 0, %s186
    %s189 = sphi 0, %s188
    %s203 = sphi 0, %s189
    %s211 = sphi 0, %s213
    %s214 = sphi 0, %s211
    %s215 = sphi 0, %s214
    %s231 = sphi 0, %s215
  $region4: #{depth_transpose_cnn_forward.5} parent=0 // loop_header_branch
    %17 = sbr.rel (%p15) target = $region8
  $region5: #{depth_transpose_cnn_forward.5} parent=0 // loop_body
    %s19 = ssub.s32 %s14, 1
    %s20 = ssub.s32 %s14, 2
    %s27 = sadd.s32 1, %s22
    %p28 = scmp.ge.s32.totalorder %s27, 2
    %s29 = scalar_select %p28, 0, %s27
    %s30 = sadd.s32 1, %s21
    %s31 = scalar_select %p28, %s30, %s21
    %p32 = scmp.ge.s32.totalorder %s31, 2
    %s33 = scalar_select %p32, 0, %s31
    %s34 = ssub.s32 %s21, %s33
    %p35 = scmp.eq.s32.totalorder %s34, 0
    %s37 = sadd.s32 %s36, 1
    %s38 = scalar_select %p35, %s36, %s37
    %p41 = pneg %p35
    %p42 = scmp.eq.s32.totalorder %s14, 3
    %p43 = por %p41, %p42
    %p44 = scmp.ne.s32.totalorder %s36, %s39
    %p45 = scmp.eq.s32.totalorder %s14, 0
    %p46 = por %p44, %p45
    %p47 = scmp.ne.s32.totalorder %s36, %s39
    %p48 = scmp.eq.s32.totalorder %s19, 3
    %p49 = por %p47, %p48
    %p50 = scmp.ne.s32.totalorder %s39, %s40
    %p51 = scmp.eq.s32.totalorder %s19, 0
    %p52 = por %p50, %p51
    %p53 = scmp.ne.s32.totalorder %s39, %s40
    %p54 = scmp.eq.s32.totalorder %s20, 3
    %p55 = por %p53, %p54
    %p57 = scmp.ne.s32.totalorder %s40, %s56
    %p58 = scmp.eq.s32.totalorder %s20, 0
    %p59 = por %p57, %p58
    %s61 = sadd.s32 %s60, 1
    %p64 = scmp.eq.s32.totalorder %s14, 3
    %p65 = scmp.ne.s32.totalorder %s60, %s62
    %p66 = scmp.eq.s32.totalorder %s14, 0
    %p67 = por %p65, %p66
    %p68 = scmp.ne.s32.totalorder %s60, %s62
    %p69 = scmp.eq.s32.totalorder %s19, 3
    %p70 = por %p68, %p69
    %p71 = scmp.ne.s32.totalorder %s62, %s63
    %p72 = scmp.eq.s32.totalorder %s19, 0
    %p73 = por %p71, %p72
    %p74 = scmp.ne.s32.totalorder %s62, %s63
    %p75 = scmp.eq.s32.totalorder %s20, 3
    %p76 = por %p74, %p75
    %p78 = scmp.ne.s32.totalorder %s63, %s77
    %p79 = scmp.eq.s32.totalorder %s20, 0
    %p80 = por %p78, %p79
    %s82 = sadd.s32 %s81, 1
    %p85 = scmp.eq.s32.totalorder %s14, 3
    %p86 = scmp.ne.s32.totalorder %s81, %s83
    %p87 = scmp.eq.s32.totalorder %s14, 0
    %p88 = por %p86, %p87
    %p89 = scmp.ne.s32.totalorder %s81, %s83
    %p90 = scmp.eq.s32.totalorder %s19, 3
    %p91 = por %p89, %p90
    %p92 = scmp.ne.s32.totalorder %s83, %s84
    %p93 = scmp.eq.s32.totalorder %s19, 0
    %p94 = por %p92, %p93
    %p95 = scmp.ne.s32.totalorder %s83, %s84
    %p96 = scmp.eq.s32.totalorder %s20, 3
    %p97 = por %p95, %p96
    %p99 = scmp.ne.s32.totalorder %s84, %s98
    %p100 = scmp.eq.s32.totalorder %s20, 0
    %p101 = por %p99, %p100
    %s103 = sadd.s32 %s102, 1
    %p106 = scmp.eq.s32.totalorder %s14, 3
    %p107 = scmp.ne.s32.totalorder %s102, %s104
    %p108 = scmp.eq.s32.totalorder %s14, 0
    %p109 = por %p107, %p108
    %p110 = scmp.ne.s32.totalorder %s102, %s104
    %p111 = scmp.eq.s32.totalorder %s19, 3
    %p112 = por %p110, %p111
    %p113 = scmp.ne.s32.totalorder %s104, %s105
    %p114 = scmp.eq.s32.totalorder %s19, 0
    %p115 = por %p113, %p114
    %p116 = scmp.ne.s32.totalorder %s104, %s105
    %p117 = scmp.eq.s32.totalorder %s20, 3
    %p118 = por %p116, %p117
    %p120 = scmp.ne.s32.totalorder %s105, %s119
    %p121 = scmp.eq.s32.totalorder %s20, 0
    %p122 = por %p120, %p121
    %s124 = sadd.s32 %s123, 1
    %p127 = scmp.eq.s32.totalorder %s14, 3
    %p128 = scmp.ne.s32.totalorder %s123, %s125
    %p129 = scmp.eq.s32.totalorder %s14, 0
    %p130 = por %p128, %p129
    %p131 = scmp.ne.s32.totalorder %s123, %s125
    %p132 = scmp.eq.s32.totalorder %s19, 3
    %p133 = por %p131, %p132
    %p134 = scmp.ne.s32.totalorder %s125, %s126
    %p135 = scmp.eq.s32.totalorder %s19, 0
    %p136 = por %p134, %p135
    %p137 = scmp.ne.s32.totalorder %s125, %s126
    %p138 = scmp.eq.s32.totalorder %s20, 3
    %p139 = por %p137, %p138
    %p141 = scmp.ne.s32.totalorder %s126, %s140
    %p142 = scmp.eq.s32.totalorder %s20, 0
    %p143 = por %p141, %p142
    %s145 = sadd.s32 %s144, 1
    %p148 = scmp.eq.s32.totalorder %s14, 3
    %p149 = scmp.ne.s32.totalorder %s144, %s146
    %p150 = scmp.eq.s32.totalorder %s14, 0
    %p151 = por %p149, %p150
    %p152 = scmp.ne.s32.totalorder %s144, %s146
    %p153 = scmp.eq.s32.totalorder %s19, 3
    %p154 = por %p152, %p153
    %p155 = scmp.ne.s32.totalorder %s146, %s147
    %p156 = scmp.eq.s32.totalorder %s19, 0
    %p157 = por %p155, %p156
    %p158 = scmp.ne.s32.totalorder %s146, %s147
    %p159 = scmp.eq.s32.totalorder %s20, 3
    %p160 = por %p158, %p159
    %p162 = scmp.ne.s32.totalorder %s147, %s161
    %p163 = scmp.eq.s32.totalorder %s20, 0
    %p164 = por %p162, %p163
    %s166 = sadd.s32 %s165, 1
    %p169 = scmp.eq.s32.totalorder %s14, 3
    %p170 = scmp.ne.s32.totalorder %s165, %s167
    %p171 = scmp.eq.s32.totalorder %s14, 0
    %p172 = por %p170, %p171
    %p173 = scmp.ne.s32.totalorder %s165, %s167
    %p174 = scmp.eq.s32.totalorder %s19, 3
    %p175 = por %p173, %p174
    %p176 = scmp.ne.s32.totalorder %s167, %s168
    %p177 = scmp.eq.s32.totalorder %s19, 0
    %p178 = por %p176, %p177
    %p179 = scmp.ne.s32.totalorder %s167, %s168
    %p180 = scmp.eq.s32.totalorder %s20, 3
    %p181 = por %p179, %p180
    %p183 = scmp.ne.s32.totalorder %s168, %s182
    %p184 = scmp.eq.s32.totalorder %s20, 0
    %p185 = por %p183, %p184
    %s187 = sadd.s32 %s186, 1
    %p190 = scmp.eq.s32.totalorder %s14, 3
    %p191 = scmp.ne.s32.totalorder %s186, %s188
    %p192 = scmp.eq.s32.totalorder %s14, 0
    %p193 = por %p191, %p192
    %p194 = scmp.ne.s32.totalorder %s186, %s188
    %p195 = scmp.eq.s32.totalorder %s19, 3
    %p196 = por %p194, %p195
    %p197 = scmp.ne.s32.totalorder %s188, %s189
    %p198 = scmp.eq.s32.totalorder %s19, 0
    %p199 = por %p197, %p198
    %p200 = scmp.ne.s32.totalorder %s188, %s189
    %p201 = scmp.eq.s32.totalorder %s20, 3
    %p202 = por %p200, %p201
    %p204 = scmp.ne.s32.totalorder %s189, %s203
    %p205 = scmp.eq.s32.totalorder %s20, 0
    %p206 = por %p204, %p205
    %s207 = ssub.s32 %s21, %s33
    %s208 = ssub.s32 %s22, %s29
    %s209 = sor.u32 %s207, %s208
    %p210 = scmp.eq.s32.totalorder %s209, 0
    %s212 = sadd.s32 %s211, 1
    %s213 = scalar_select %p210, %s211, %s212
    %p216 = pneg %p210
    %p217 = scmp.eq.s32.totalorder %s14, 3
    %p218 = por %p216, %p217
    %p219 = scmp.ne.s32.totalorder %s211, %s214
    %p220 = scmp.eq.s32.totalorder %s14, 0
    %p221 = por %p219, %p220
    %p222 = scmp.ne.s32.totalorder %s211, %s214
    %p223 = scmp.eq.s32.totalorder %s19, 3
    %p224 = por %p222, %p223
    %p225 = scmp.ne.s32.totalorder %s214, %s215
    %p226 = scmp.eq.s32.totalorder %s19, 0
    %p227 = por %p225, %p226
    %p228 = scmp.ne.s32.totalorder %s214, %s215
    %p229 = scmp.eq.s32.totalorder %s20, 3
    %p230 = por %p228, %p229
    %p232 = scmp.ne.s32.totalorder %s215, %s231
    %p233 = scmp.eq.s32.totalorder %s20, 0
    %p234 = por %p232, %p233
    %p235 = scmp.le.s32.totalorder 1, %s14
    %p236 = scmp.lt.s32.totalorder %s14, 5
    %p237 = pnand %p235, %p236
    %p238 = pneg %p237
    // Predicated region
    $region9: #{depth_transpose_cnn_forward.5} parent=5 // pred_check
      _
    $region10: #{depth_transpose_cnn_forward.5} parent=5 // pred_check_branch
      %240 = sbr.rel (%p237) target = $region12
    $region11: #{depth_transpose_cnn_forward.5} parent=5 // pred_region
      %s241 = ssub.s32 %s14, 1
      // Predicated region
      $region13: #{depth_transpose_cnn_forward.5} parent=11 // pred_check
        %p242 = pneg %p73
      $region14: #{depth_transpose_cnn_forward.5} parent=11 // pred_check_branch
        %244 = sbr.rel (%p242) target = $region16
      $region15: #{depth_transpose_cnn_forward.5} parent=11 // pred_region
        _
      $region16: #{depth_transpose_cnn_forward.5} parent=11 // pred_fallthru
        _
      // Predicated region
      $region17: #{depth_transpose_cnn_forward.5} parent=11 // pred_check
        %p245 = pneg %p94
      $region18: #{depth_transpose_cnn_forward.5} parent=11 // pred_check_branch
        %247 = sbr.rel (%p245) target = $region20
      $region19: #{depth_transpose_cnn_forward.5} parent=11 // pred_region
        _
      $region20: #{depth_transpose_cnn_forward.5} parent=11 // pred_fallthru
        _
      // Predicated region
      $region21: #{depth_transpose_cnn_forward.5} parent=11 // pred_check
        %p248 = pneg %p115
      $region22: #{depth_transpose_cnn_forward.5} parent=11 // pred_check_branch
        %250 = sbr.rel (%p248) target = $region24
      $region23: #{depth_transpose_cnn_forward.5} parent=11 // pred_region
        _
      $region24: #{depth_transpose_cnn_forward.5} parent=11 // pred_fallthru
        _
      // Predicated region
      $region25: #{depth_transpose_cnn_forward.5} parent=11 // pred_check
        %p251 = pneg %p136
      $region26: #{depth_transpose_cnn_forward.5} parent=11 // pred_check_branch
        %253 = sbr.rel (%p251) target = $region28
      $region27: #{depth_transpose_cnn_forward.5} parent=11 // pred_region
        _
      $region28: #{depth_transpose_cnn_forward.5} parent=11 // pred_fallthru
        _
      // Predicated region
      $region29: #{depth_transpose_cnn_forward.5} parent=11 // pred_check
        %p254 = pneg %p157
      $region30: #{depth_transpose_cnn_forward.5} parent=11 // pred_check_branch
        %256 = sbr.rel (%p254) target = $region32
      $region31: #{depth_transpose_cnn_forward.5} parent=11 // pred_region
        _
      $region32: #{depth_transpose_cnn_forward.5} parent=11 // pred_fallthru
        _
      // Predicated region
      $region33: #{depth_transpose_cnn_forward.5} parent=11 // pred_check
        %p257 = pneg %p178
      $region34: #{depth_transpose_cnn_forward.5} parent=11 // pred_check_branch
        %259 = sbr.rel (%p257) target = $region36
      $region35: #{depth_transpose_cnn_forward.5} parent=11 // pred_region
        _
      $region36: #{depth_transpose_cnn_forward.5} parent=11 // pred_fallthru
        _
      // Predicated region
      $region37: #{depth_transpose_cnn_forward.5} parent=11 // pred_check
        %p260 = pneg %p199
      $region38: #{depth_transpose_cnn_forward.5} parent=11 // pred_check_branch
        %262 = sbr.rel (%p260) target = $region40
      $region39: #{depth_transpose_cnn_forward.5} parent=11 // pred_region
        _
      $region40: #{depth_transpose_cnn_forward.5} parent=11 // pred_fallthru
        _
    $region12: #{depth_transpose_cnn_forward.5} parent=5 // pred_fallthru
      _
    %p263 = scmp.lt.s32.totalorder %s14, 4
    // Predicated region
    $region41: #{depth_transpose_cnn_forward.5} parent=5 // pred_check
      %p264 = pneg %p263
    $region42: #{depth_transpose_cnn_forward.5} parent=5 // pred_check_branch
      %266 = sbr.rel (%p264) target = $region44
    $region43: #{depth_transpose_cnn_forward.5} parent=5 // pred_region
      // Predicated region
      $region45: #{depth_transpose_cnn_forward.5} parent=43 // pred_check
        %p267 = pneg %p46
      $region46: #{depth_transpose_cnn_forward.5} parent=43 // pred_check_branch
        %269 = sbr.rel (%p267) target = $region48
      $region47: #{depth_transpose_cnn_forward.5} parent=43 // pred_region
        %p270 = scmp.lt.s32.totalorder %s21, 1
        %s271 = scalar_select %p270, %s21, 1
        %s272 = smul.addr %s271, 90
        %s273 = smul.addr %s272, 8
        %s274 = scalar_lea.vmem %s0, %s273
      $region48: #{depth_transpose_cnn_forward.5} parent=43 // pred_fallthru
        _
    $region44: #{depth_transpose_cnn_forward.5} parent=5 // pred_fallthru
      _
    %p275 = scmp.le.s32.totalorder 1, %s14
    %p276 = scmp.lt.s32.totalorder %s14, 5
    %p277 = pnand %p275, %p276
    %p278 = pneg %p277
    // Predicated region
    $region49: #{depth_transpose_cnn_forward.5} parent=5 // pred_check
      _
    $region50: #{depth_transpose_cnn_forward.5} parent=5 // pred_check_branch
      %280 = sbr.rel (%p277) target = $region52
    $region51: #{depth_transpose_cnn_forward.5} parent=5 // pred_region
      %s281 = ssub.s32 %s14, 1
      %p282 = scmp.lt.s32.totalorder %s23, 1
      %s283 = scalar_select %p282, %s23, 1
      %s284 = smul.addr %s283, 90
      %s285 = smul.addr %s284, 8
      %s286 = scalar_lea.vmem %s0, %s285
      %p287 = pneg %p52
      %p288 = pneg %p49
      %p289 = pneg %p73
      %p290 = pneg %p70
      %p291 = pneg %p94
      %p292 = pneg %p91
      %p293 = pneg %p115
      %p294 = pneg %p112
      %p295 = pneg %p136
      %p296 = pneg %p133
      %p297 = pneg %p157
      %p298 = pneg %p154
      %p299 = pneg %p178
      %p300 = pneg %p175
      %p301 = pneg %p199
      %p302 = pneg %p196
      %p303 = pneg %p227
      %p304 = pneg %p224
      %s305 = smul.u32 4, %s24
      %p306 = scmp.lt.s32.totalorder %s23, 1
      %s307 = scalar_select %p306, %s23, 1
      %p308 = scmp.lt.s32.totalorder %s305, 7
      %s309 = scalar_select %p308, %s305, 7
      %s310 = smul.addr %s307, 8
      %s311 = sadd.s32 %s309, %s310
      %s312 = smul.addr %s311, 8
      %s313 = scalar_lea.vmem %s8, %s312
      %p314 = scmp.lt.s32.totalorder %s23, 1
      %s315 = scalar_select %p314, %s23, 1
      %s316 = smul.addr %s315, 90
      %s317 = smul.addr %s316, 8
      %s318 = scalar_lea.vmem %s0, %s317
      %s319 = smul.u32 4, %s24
      %p320 = scmp.lt.s32.totalorder %s23, 1
      %s321 = scalar_select %p320, %s23, 1
      %p322 = scmp.lt.s32.totalorder %s319, 7
      %s323 = scalar_select %p322, %s319, 7
      %s324 = smul.addr %s321, 8
      %s325 = sadd.s32 %s323, %s324
      %s326 = smul.addr %s325, 8
      %s327 = scalar_lea.vmem %s8, %s326
      %s328 = smul.u32 4, %s24
      %s329 = smul.u32 %s24, 8
      %s330 = smul.u32 %s329, 40
      %s331 = scalar_lea.vmem %s318, %s330
      %v332 = vld [vmem:[%s331] sm:$0xff]
      %v333 = vld [vmem:[%s331 + $0x8] sm:$0xff]
      %v334 = vld [vmem:[%s331 + $0x10] sm:$0xff]
      %v335 = vld [vmem:[%s331 + $0x18] sm:$0xff]
      %v336 = vld [vmem:[%s331 + $0x20] sm:$0x7]
      %v337 = vld [vmem:[%s331 + $0x28] sm:$0xff]
      %v338 = vld [vmem:[%s331 + $0x30] sm:$0xff]
      %v339 = vld [vmem:[%s331 + $0x38] sm:$0xff]
      %v340 = vld [vmem:[%s331 + $0x40] sm:$0xff]
      %v341 = vld [vmem:[%s331 + $0x48] sm:$0x7]
      %v342 = vld [vmem:[%s331 + $0x50] sm:$0xff]
      %v343 = vld [vmem:[%s331 + $0x58] sm:$0xff]
      %v344 = vld [vmem:[%s331 + $0x60] sm:$0xff]
      %v345 = vld [vmem:[%s331 + $0x68] sm:$0xff]
      %v346 = vld [vmem:[%s331 + $0x70] sm:$0x7]
      %v347 = vld [vmem:[%s331 + $0x78] sm:$0xff]
      %v348 = vld [vmem:[%s331 + $0x80] sm:$0xff]
      %v349 = vld [vmem:[%s331 + $0x88] sm:$0xff]
      %v350 = vld [vmem:[%s331 + $0x90] sm:$0xff]
      %v351 = vld [vmem:[%s331 + $0x98] sm:$0x7]
      %v352 = vld [vmem:[%s331 + $0xa0] sm:$0xff]
      %v353 = vld [vmem:[%s331 + $0xa8] sm:$0xff]
      %v354 = vld [vmem:[%s331 + $0xb0] sm:$0xff]
      %v355 = vld [vmem:[%s331 + $0xb8] sm:$0xff]
      %v356 = vld [vmem:[%s331 + $0xc0] sm:$0x7]
      %v357 = vld [vmem:[%s331 + $0xc8] sm:$0xff]
      %v358 = vld [vmem:[%s331 + $0xd0] sm:$0xff]
      %v359 = vld [vmem:[%s331 + $0xd8] sm:$0xff]
      %v360 = vld [vmem:[%s331 + $0xe0] sm:$0xff]
      %v361 = vld [vmem:[%s331 + $0xe8] sm:$0x7]
      %v362 = vld [vmem:[%s331 + $0xf0] sm:$0xff]
      %v363 = vld [vmem:[%s331 + $0xf8] sm:$0xff]
      %v364 = vld [vmem:[%s331 + $0x100] sm:$0xff]
      %v365 = vld [vmem:[%s331 + $0x108] sm:$0xff]
      %v366 = vld [vmem:[%s331 + $0x110] sm:$0x7]
      %v367 = vld [vmem:[%s331 + $0x118] sm:$0xff]
      %v368 = vld [vmem:[%s331 + $0x120] sm:$0xff]
      %v369 = vld [vmem:[%s331 + $0x128] sm:$0xff]
      %v370 = vld [vmem:[%s331 + $0x130] sm:$0xff]
      %v371 = vld [vmem:[%s331 + $0x138] sm:$0x7]
      %s372 = sadd.s32 %s329, 1
      %s373 = smul.u32 %s372, 40
      %s374 = scalar_lea.vmem %s318, %s373
      %v375 = vld [vmem:[%s374] sm:$0xff]
      %v376 = vld [vmem:[%s374 + $0x8] sm:$0xff]
      %v377 = vld [vmem:[%s374 + $0x10] sm:$0xff]
      %v378 = vld [vmem:[%s374 + $0x18] sm:$0xff]
      %v379 = vld [vmem:[%s374 + $0x20] sm:$0x7]
      %v380 = vld [vmem:[%s374 + $0x28] sm:$0xff]
      %v381 = vld [vmem:[%s374 + $0x30] sm:$0xff]
      %v382 = vld [vmem:[%s374 + $0x38] sm:$0xff]
      %v383 = vld [vmem:[%s374 + $0x40] sm:$0xff]
      %v384 = vld [vmem:[%s374 + $0x48] sm:$0x7]
      %v385 = vld [vmem:[%s374 + $0x50] sm:$0xff]
      %v386 = vld [vmem:[%s374 + $0x58] sm:$0xff]
      %v387 = vld [vmem:[%s374 + $0x60] sm:$0xff]
      %v388 = vld [vmem:[%s374 + $0x68] sm:$0xff]
      %v389 = vld [vmem:[%s374 + $0x70] sm:$0x7]
      %v390 = vld [vmem:[%s374 + $0x78] sm:$0xff]
      %v391 = vld [vmem:[%s374 + $0x80] sm:$0xff]
      %v392 = vld [vmem:[%s374 + $0x88] sm:$0xff]
      %v393 = vld [vmem:[%s374 + $0x90] sm:$0xff]
      %v394 = vld [vmem:[%s374 + $0x98] sm:$0x7]
      %v395 = vld [vmem:[%s374 + $0xa0] sm:$0xff]
      %v396 = vld [vmem:[%s374 + $0xa8] sm:$0xff]
      %v397 = vld [vmem:[%s374 + $0xb0] sm:$0xff]
      %v398 = vld [vmem:[%s374 + $0xb8] sm:$0xff]
      %v399 = vld [vmem:[%s374 + $0xc0] sm:$0x7]
      %v400 = vld [vmem:[%s374 + $0xc8] sm:$0xff]
      %v401 = vld [vmem:[%s374 + $0xd0] sm:$0xff]
      %v402 = vld [vmem:[%s374 + $0xd8] sm:$0xff]
      %v403 = vld [vmem:[%s374 + $0xe0] sm:$0xff]
      %v404 = vld [vmem:[%s374 + $0xe8] sm:$0x7]
      %v405 = vld [vmem:[%s374 + $0xf0] sm:$0xff]
      %v406 = vld [vmem:[%s374 + $0xf8] sm:$0xff]
      %v407 = vld [vmem:[%s374 + $0x100] sm:$0xff]
      %v408 = vld [vmem:[%s374 + $0x108] sm:$0xff]
      %v409 = vld [vmem:[%s374 + $0x110] sm:$0x7]
      %v410 = vld [vmem:[%s374 + $0x118] sm:$0xff]
      %v411 = vld [vmem:[%s374 + $0x120] sm:$0xff]
      %v412 = vld [vmem:[%s374 + $0x128] sm:$0xff]
      %v413 = vld [vmem:[%s374 + $0x130] sm:$0xff]
      %v414 = vld [vmem:[%s374 + $0x138] sm:$0x7]
      %s415 = sadd.s32 %s329, 2
      %s416 = smul.u32 %s415, 40
      %s417 = scalar_lea.vmem %s318, %s416
      %v418 = vld [vmem:[%s417] sm:$0xff]
      %v419 = vld [vmem:[%s417 + $0x8] sm:$0xff]
      %v420 = vld [vmem:[%s417 + $0x10] sm:$0xff]
      %v421 = vld [vmem:[%s417 + $0x18] sm:$0xff]
      %v422 = vld [vmem:[%s417 + $0x20] sm:$0x7]
      %v423 = vld [vmem:[%s417 + $0x28] sm:$0xff]
      %v424 = vld [vmem:[%s417 + $0x30] sm:$0xff]
      %v425 = vld [vmem:[%s417 + $0x38] sm:$0xff]
      %v426 = vld [vmem:[%s417 + $0x40] sm:$0xff]
      %v427 = vld [vmem:[%s417 + $0x48] sm:$0x7]
      %v428 = vld [vmem:[%s417 + $0x50] sm:$0xff]
      %v429 = vld [vmem:[%s417 + $0x58] sm:$0xff]
      %v430 = vld [vmem:[%s417 + $0x60] sm:$0xff]
      %v431 = vld [vmem:[%s417 + $0x68] sm:$0xff]
      %v432 = vld [vmem:[%s417 + $0x70] sm:$0x7]
      %v433 = vld [vmem:[%s417 + $0x78] sm:$0xff]
      %v434 = vld [vmem:[%s417 + $0x80] sm:$0xff]
      %v435 = vld [vmem:[%s417 + $0x88] sm:$0xff]
      %v436 = vld [vmem:[%s417 + $0x90] sm:$0xff]
      %v437 = vld [vmem:[%s417 + $0x98] sm:$0x7]
      %v438 = vld [vmem:[%s417 + $0xa0] sm:$0xff]
      %v439 = vld [vmem:[%s417 + $0xa8] sm:$0xff]
      %v440 = vld [vmem:[%s417 + $0xb0] sm:$0xff]
      %v441 = vld [vmem:[%s417 + $0xb8] sm:$0xff]
      %v442 = vld [vmem:[%s417 + $0xc0] sm:$0x7]
      %v443 = vld [vmem:[%s417 + $0xc8] sm:$0xff]
      %v444 = vld [vmem:[%s417 + $0xd0] sm:$0xff]
      %v445 = vld [vmem:[%s417 + $0xd8] sm:$0xff]
      %v446 = vld [vmem:[%s417 + $0xe0] sm:$0xff]
      %v447 = vld [vmem:[%s417 + $0xe8] sm:$0x7]
      %v448 = vld [vmem:[%s417 + $0xf0] sm:$0xff]
      %v449 = vld [vmem:[%s417 + $0xf8] sm:$0xff]
      %v450 = vld [vmem:[%s417 + $0x100] sm:$0xff]
      %v451 = vld [vmem:[%s417 + $0x108] sm:$0xff]
      %v452 = vld [vmem:[%s417 + $0x110] sm:$0x7]
      %v453 = vld [vmem:[%s417 + $0x118] sm:$0xff]
      %v454 = vld [vmem:[%s417 + $0x120] sm:$0xff]
      %v455 = vld [vmem:[%s417 + $0x128] sm:$0xff]
      %v456 = vld [vmem:[%s417 + $0x130] sm:$0xff]
      %v457 = vld [vmem:[%s417 + $0x138] sm:$0x7]
      %v458 = vld [vmem:[%s1] sm:$0x1]
      %v459 = vlaneseq
      %v460 = vshrl.u32 %v459, 7
      %v461 = vsub.s32 0, %v460
      %v462 = vrot.slane %v458, %v461
      %v463 = vmul.f32 %v332, %v462
      %v464 = vmul.f32 %v333, %v462
      %v465 = vmul.f32 %v334, %v462
      %v466 = vmul.f32 %v335, %v462
      %v467 = vmul.f32 %v337, %v462
      %v468 = vmul.f32 %v338, %v462
      %v469 = vmul.f32 %v339, %v462
      %v470 = vmul.f32 %v340, %v462
      %v471 = vmul.f32 %v342, %v462
      %v472 = vmul.f32 %v343, %v462
      %v473 = vmul.f32 %v344, %v462
      %v474 = vmul.f32 %v345, %v462
      %v475 = vmul.f32 %v347, %v462
      %v476 = vmul.f32 %v348, %v462
      %v477 = vmul.f32 %v349, %v462
      %v478 = vmul.f32 %v350, %v462
      %v479 = vmul.f32 %v352, %v462
      %v480 = vmul.f32 %v353, %v462
      %v481 = vmul.f32 %v354, %v462
      %v482 = vmul.f32 %v355, %v462
      %v483 = vmul.f32 %v357, %v462
      %v484 = vmul.f32 %v358, %v462
      %v485 = vmul.f32 %v359, %v462
      %v486 = vmul.f32 %v360, %v462
      %v487 = vmul.f32 %v362, %v462
      %v488 = vmul.f32 %v363, %v462
      %v489 = vmul.f32 %v364, %v462
      %v490 = vmul.f32 %v365, %v462
      %v491 = vmul.f32 %v367, %v462
      %v492 = vmul.f32 %v368, %v462
      %v493 = vmul.f32 %v369, %v462
      %v494 = vmul.f32 %v370, %v462
      %v495 = vadd.f32 %v463, 0.0
      %v496 = vadd.f32 %v464, 0.0
      %v497 = vadd.f32 %v465, 0.0
      %v498 = vadd.f32 %v466, 0.0
      %v499 = vadd.f32 %v467, 0.0
      %v500 = vadd.f32 %v468, 0.0
      %v501 = vadd.f32 %v469, 0.0
      %v502 = vadd.f32 %v470, 0.0
      %v503 = vadd.f32 %v471, 0.0
      %v504 = vadd.f32 %v472, 0.0
      %v505 = vadd.f32 %v473, 0.0
      %v506 = vadd.f32 %v474, 0.0
      %v507 = vadd.f32 %v475, 0.0
      %v508 = vadd.f32 %v476, 0.0
      %v509 = vadd.f32 %v477, 0.0
      %v510 = vadd.f32 %v478, 0.0
      %v511 = vadd.f32 %v479, 0.0
      %v512 = vadd.f32 %v480, 0.0
      %v513 = vadd.f32 %v481, 0.0
      %v514 = vadd.f32 %v482, 0.0
      %v515 = vadd.f32 %v483, 0.0
      %v516 = vadd.f32 %v484, 0.0
      %v517 = vadd.f32 %v485, 0.0
      %v518 = vadd.f32 %v486, 0.0
      %v519 = vadd.f32 %v487, 0.0
      %v520 = vadd.f32 %v488, 0.0
      %v521 = vadd.f32 %v489, 0.0
      %v522 = vadd.f32 %v490, 0.0
      %v523 = vadd.f32 %v491, 0.0
      %v524 = vadd.f32 %v492, 0.0
      %v525 = vadd.f32 %v493, 0.0
      %v526 = vadd.f32 %v494, 0.0
      %v527 = vld [vmem:[%s1 + $0x1] sm:$0x1]
      %v528 = vlaneseq
      %v529 = vshrl.u32 %v528, 7
      %v530 = vsub.s32 0, %v529
      %v531 = vrot.slane %v527, %v530
      %v532 = vmul.f32 %v332, %v531
      %v533 = vmul.f32 %v333, %v531
      %v534 = vmul.f32 %v334, %v531
      %v535 = vmul.f32 %v335, %v531
      %v536 = vmul.f32 %v336, %v531
      %v537 = vmul.f32 %v337, %v531
      %v538 = vmul.f32 %v338, %v531
      %v539 = vmul.f32 %v339, %v531
      %v540 = vmul.f32 %v340, %v531
      %v541 = vmul.f32 %v341, %v531
      %v542 = vmul.f32 %v342, %v531
      %v543 = vmul.f32 %v343, %v531
      %v544 = vmul.f32 %v344, %v531
      %v545 = vmul.f32 %v345, %v531
      %v546 = vmul.f32 %v346, %v531
      %v547 = vmul.f32 %v347, %v531
      %v548 = vmul.f32 %v348, %v531
      %v549 = vmul.f32 %v349, %v531
      %v550 = vmul.f32 %v350, %v531
      %v551 = vmul.f32 %v351, %v531
      %v552 = vmul.f32 %v352, %v531
      %v553 = vmul.f32 %v353, %v531
      %v554 = vmul.f32 %v354, %v531
      %v555 = vmul.f32 %v355, %v531
      %v556 = vmul.f32 %v356, %v531
      %v557 = vmul.f32 %v357, %v531
      %v558 = vmul.f32 %v358, %v531
      %v559 = vmul.f32 %v359, %v531
      %v560 = vmul.f32 %v360, %v531
      %v561 = vmul.f32 %v361, %v531
      %v562 = vmul.f32 %v362, %v531
      %v563 = vmul.f32 %v363, %v531
      %v564 = vmul.f32 %v364, %v531
      %v565 = vmul.f32 %v365, %v531
      %v566 = vmul.f32 %v366, %v531
      %v567 = vmul.f32 %v367, %v531
      %v568 = vmul.f32 %v368, %v531
      %v569 = vmul.f32 %v369, %v531
      %v570 = vmul.f32 %v370, %v531
      %v571 = vmul.f32 %v371, %v531
      %vm612 = vcmask 1046528
      %v613 = vrot.slane %v532, 1
      %v614 = vrot.slane %v533, 1
      %v615 = vsel %vm612, %v613, %v614
      %v616 = vrot.slane %v534, 1
      %v617 = vsel %vm612, %v614, %v616
      %v618 = vrot.slane %v535, 1
      %v619 = vsel %vm612, %v616, %v618
      %v620 = vrot.slane %v536, 1
      %v621 = vsel %vm612, %v618, %v620
      %v622 = vrot.slane %v537, 1
      %v623 = vrot.slane %v538, 1
      %v624 = vsel %vm612, %v622, %v623
      %v625 = vrot.slane %v539, 1
      %v626 = vsel %vm612, %v623, %v625
      %v627 = vrot.slane %v540, 1
      %v628 = vsel %vm612, %v625, %v627
      %v629 = vrot.slane %v541, 1
      %v630 = vsel %vm612, %v627, %v629
      %v631 = vrot.slane %v542, 1
      %v632 = vrot.slane %v543, 1
      %v633 = vsel %vm612, %v631, %v632
      %v634 = vrot.slane %v544, 1
      %v635 = vsel %vm612, %v632, %v634
      %v636 = vrot.slane %v545, 1
      %v637 = vsel %vm612, %v634, %v636
      %v638 = vrot.slane %v546, 1
      %v639 = vsel %vm612, %v636, %v638
      %v640 = vrot.slane %v547, 1
      %v641 = vrot.slane %v548, 1
      %v642 = vsel %vm612, %v640, %v641
      %v643 = vrot.slane %v549, 1
      %v644 = vsel %vm612, %v641, %v643
      %v645 = vrot.slane %v550, 1
      %v646 = vsel %vm612, %v643, %v645
      %v647 = vrot.slane %v551, 1
      %v648 = vsel %vm612, %v645, %v647
      %v649 = vrot.slane %v552, 1
      %v650 = vrot.slane %v553, 1
      %v651 = vsel %vm612, %v649, %v650
      %v652 = vrot.slane %v554, 1
      %v653 = vsel %vm612, %v650, %v652
      %v654 = vrot.slane %v555, 1
      %v655 = vsel %vm612, %v652, %v654
      %v656 = vrot.slane %v556, 1
      %v657 = vsel %vm612, %v654, %v656
      %v658 = vrot.slane %v557, 1
      %v659 = vrot.slane %v558, 1
      %v660 = vsel %vm612, %v658, %v659
      %v661 = vrot.slane %v559, 1
      %v662 = vsel %vm612, %v659, %v661
      %v663 = vrot.slane %v560, 1
      %v664 = vsel %vm612, %v661, %v663
      %v665 = vrot.slane %v561, 1
      %v666 = vsel %vm612, %v663, %v665
      %v667 = vrot.slane %v562, 1
      %v668 = vrot.slane %v563, 1
      %v669 = vsel %vm612, %v667, %v668
      %v670 = vrot.slane %v564, 1
      %v671 = vsel %vm612, %v668, %v670
      %v672 = vrot.slane %v565, 1
      %v673 = vsel %vm612, %v670, %v672
      %v674 = vrot.slane %v566, 1
      %v675 = vsel %vm612, %v672, %v674
      %v676 = vrot.slane %v567, 1
      %v677 = vrot.slane %v568, 1
      %v678 = vsel %vm612, %v676, %v677
      %v679 = vrot.slane %v569, 1
      %v680 = vsel %vm612, %v677, %v679
      %v681 = vrot.slane %v570, 1
      %v682 = vsel %vm612, %v679, %v681
      %v683 = vrot.slane %v571, 1
      %v684 = vsel %vm612, %v681, %v683
      %v717 = vadd.f32 %v495, %v615
      %v718 = vadd.f32 %v496, %v617
      %v719 = vadd.f32 %v497, %v619
      %v720 = vadd.f32 %v498, %v621
      %v721 = vadd.f32 %v499, %v624
      %v722 = vadd.f32 %v500, %v626
      %v723 = vadd.f32 %v501, %v628
      %v724 = vadd.f32 %v502, %v630
      %v725 = vadd.f32 %v503, %v633
      %v726 = vadd.f32 %v504, %v635
      %v727 = vadd.f32 %v505, %v637
      %v728 = vadd.f32 %v506, %v639
      %v729 = vadd.f32 %v507, %v642
      %v730 = vadd.f32 %v508, %v644
      %v731 = vadd.f32 %v509, %v646
      %v732 = vadd.f32 %v510, %v648
      %v733 = vadd.f32 %v511, %v651
      %v734 = vadd.f32 %v512, %v653
      %v735 = vadd.f32 %v513, %v655
      %v736 = vadd.f32 %v514, %v657
      %v737 = vadd.f32 %v515, %v660
      %v738 = vadd.f32 %v516, %v662
      %v739 = vadd.f32 %v517, %v664
      %v740 = vadd.f32 %v518, %v666
      %v741 = vadd.f32 %v519, %v669
      %v742 = vadd.f32 %v520, %v671
      %v743 = vadd.f32 %v521, %v673
      %v744 = vadd.f32 %v522, %v675
      %v745 = vadd.f32 %v523, %v678
      %v746 = vadd.f32 %v524, %v680
      %v747 = vadd.f32 %v525, %v682
      %v748 = vadd.f32 %v526, %v684
      %v749 = vld [vmem:[%s1 + $0x2] sm:$0x1]
      %v750 = vlaneseq
      %v751 = vshrl.u32 %v750, 7
      %v752 = vsub.s32 0, %v751
      %v753 = vrot.slane %v749, %v752
      %v754 = vmul.f32 %v332, %v753
      %v755 = vmul.f32 %v333, %v753
      %v756 = vmul.f32 %v334, %v753
      %v757 = vmul.f32 %v335, %v753
      %v758 = vmul.f32 %v336, %v753
      %v759 = vmul.f32 %v337, %v753
      %v760 = vmul.f32 %v338, %v753
      %v761 = vmul.f32 %v339, %v753
      %v762 = vmul.f32 %v340, %v753
      %v763 = vmul.f32 %v341, %v753
      %v764 = vmul.f32 %v342, %v753
      %v765 = vmul.f32 %v343, %v753
      %v766 = vmul.f32 %v344, %v753
      %v767 = vmul.f32 %v345, %v753
      %v768 = vmul.f32 %v346, %v753
      %v769 = vmul.f32 %v347, %v753
      %v770 = vmul.f32 %v348, %v753
      %v771 = vmul.f32 %v349, %v753
      %v772 = vmul.f32 %v350, %v753
      %v773 = vmul.f32 %v351, %v753
      %v774 = vmul.f32 %v352, %v753
      %v775 = vmul.f32 %v353, %v753
      %v776 = vmul.f32 %v354, %v753
      %v777 = vmul.f32 %v355, %v753
      %v778 = vmul.f32 %v356, %v753
      %v779 = vmul.f32 %v357, %v753
      %v780 = vmul.f32 %v358, %v753
      %v781 = vmul.f32 %v359, %v753
      %v782 = vmul.f32 %v360, %v753
      %v783 = vmul.f32 %v361, %v753
      %v784 = vmul.f32 %v362, %v753
      %v785 = vmul.f32 %v363, %v753
      %v786 = vmul.f32 %v364, %v753
      %v787 = vmul.f32 %v365, %v753
      %v788 = vmul.f32 %v366, %v753
      %v789 = vmul.f32 %v367, %v753
      %v790 = vmul.f32 %v368, %v753
      %v791 = vmul.f32 %v369, %v753
      %v792 = vmul.f32 %v370, %v753
      %v793 = vmul.f32 %v371, %v753
      %vm834 = vcmask 1045504
      %v835 = vrot.slane %v754, 2
      %v836 = vrot.slane %v755, 2
      %v837 = vsel %vm834, %v835, %v836
      %v838 = vrot.slane %v756, 2
      %v839 = vsel %vm834, %v836, %v838
      %v840 = vrot.slane %v757, 2
      %v841 = vsel %vm834, %v838, %v840
      %v842 = vrot.slane %v758, 2
      %v843 = vsel %vm834, %v840, %v842
      %v844 = vrot.slane %v759, 2
      %v845 = vrot.slane %v760, 2
      %v846 = vsel %vm834, %v844, %v845
      %v847 = vrot.slane %v761, 2
      %v848 = vsel %vm834, %v845, %v847
      %v849 = vrot.slane %v762, 2
      %v850 = vsel %vm834, %v847, %v849
      %v851 = vrot.slane %v763, 2
      %v852 = vsel %vm834, %v849, %v851
      %v853 = vrot.slane %v764, 2
      %v854 = vrot.slane %v765, 2
      %v855 = vsel %vm834, %v853, %v854
      %v856 = vrot.slane %v766, 2
      %v857 = vsel %vm834, %v854, %v856
      %v858 = vrot.slane %v767, 2
      %v859 = vsel %vm834, %v856, %v858
      %v860 = vrot.slane %v768, 2
      %v861 = vsel %vm834, %v858, %v860
      %v862 = vrot.slane %v769, 2
      %v863 = vrot.slane %v770, 2
      %v864 = vsel %vm834, %v862, %v863
      %v865 = vrot.slane %v771, 2
      %v866 = vsel %vm834, %v863, %v865
      %v867 = vrot.slane %v772, 2
      %v868 = vsel %vm834, %v865, %v867
      %v869 = vrot.slane %v773, 2
      %v870 = vsel %vm834, %v867, %v869
      %v871 = vrot.slane %v774, 2
      %v872 = vrot.slane %v775, 2
      %v873 = vsel %vm834, %v871, %v872
      %v874 = vrot.slane %v776, 2
      %v875 = vsel %vm834, %v872, %v874
      %v876 = vrot.slane %v777, 2
      %v877 = vsel %vm834, %v874, %v876
      %v878 = vrot.slane %v778, 2
      %v879 = vsel %vm834, %v876, %v878
      %v880 = vrot.slane %v779, 2
      %v881 = vrot.slane %v780, 2
      %v882 = vsel %vm834, %v880, %v881
      %v883 = vrot.slane %v781, 2
      %v884 = vsel %vm834, %v881, %v883
      %v885 = vrot.slane %v782, 2
      %v886 = vsel %vm834, %v883, %v885
      %v887 = vrot.slane %v783, 2
      %v888 = vsel %vm834, %v885, %v887
      %v889 = vrot.slane %v784, 2
      %v890 = vrot.slane %v785, 2
      %v891 = vsel %vm834, %v889, %v890
      %v892 = vrot.slane %v786, 2
      %v893 = vsel %vm834, %v890, %v892
      %v894 = vrot.slane %v787, 2
      %v895 = vsel %vm834, %v892, %v894
      %v896 = vrot.slane %v788, 2
      %v897 = vsel %vm834, %v894, %v896
      %v898 = vrot.slane %v789, 2
      %v899 = vrot.slane %v790, 2
      %v900 = vsel %vm834, %v898, %v899
      %v901 = vrot.slane %v791, 2
      %v902 = vsel %vm834, %v899, %v901
      %v903 = vrot.slane %v792, 2
      %v904 = vsel %vm834, %v901, %v903
      %v905 = vrot.slane %v793, 2
      %v906 = vsel %vm834, %v903, %v905
      %v939 = vadd.f32 %v717, %v837
      %v940 = vadd.f32 %v718, %v839
      %v941 = vadd.f32 %v719, %v841
      %v942 = vadd.f32 %v720, %v843
      %v943 = vadd.f32 %v721, %v846
      %v944 = vadd.f32 %v722, %v848
      %v945 = vadd.f32 %v723, %v850
      %v946 = vadd.f32 %v724, %v852
      %v947 = vadd.f32 %v725, %v855
      %v948 = vadd.f32 %v726, %v857
      %v949 = vadd.f32 %v727, %v859
      %v950 = vadd.f32 %v728, %v861
      %v951 = vadd.f32 %v729, %v864
      %v952 = vadd.f32 %v730, %v866
      %v953 = vadd.f32 %v731, %v868
      %v954 = vadd.f32 %v732, %v870
      %v955 = vadd.f32 %v733, %v873
      %v956 = vadd.f32 %v734, %v875
      %v957 = vadd.f32 %v735, %v877
      %v958 = vadd.f32 %v736, %v879
      %v959 = vadd.f32 %v737, %v882
      %v960 = vadd.f32 %v738, %v884
      %v961 = vadd.f32 %v739, %v886
      %v962 = vadd.f32 %v740, %v888
      %v963 = vadd.f32 %v741, %v891
      %v964 = vadd.f32 %v742, %v893
      %v965 = vadd.f32 %v743, %v895
      %v966 = vadd.f32 %v744, %v897
      %v967 = vadd.f32 %v745, %v900
      %v968 = vadd.f32 %v746, %v902
      %v969 = vadd.f32 %v747, %v904
      %v970 = vadd.f32 %v748, %v906
      %v971 = vld [vmem:[%s1 + $0x3] sm:$0x1]
      %v972 = vlaneseq
      %v973 = vshrl.u32 %v972, 7
      %v974 = vsub.s32 0, %v973
      %v975 = vrot.slane %v971, %v974
      %v976 = vmul.f32 %v332, %v975
      %v977 = vmul.f32 %v333, %v975
      %v978 = vmul.f32 %v334, %v975
      %v979 = vmul.f32 %v335, %v975
      %v980 = vmul.f32 %v336, %v975
      %v981 = vmul.f32 %v337, %v975
      %v982 = vmul.f32 %v338, %v975
      %v983 = vmul.f32 %v339, %v975
      %v984 = vmul.f32 %v340, %v975
      %v985 = vmul.f32 %v341, %v975
      %v986 = vmul.f32 %v342, %v975
      %v987 = vmul.f32 %v343, %v975
      %v988 = vmul.f32 %v344, %v975
      %v989 = vmul.f32 %v345, %v975
      %v990 = vmul.f32 %v346, %v975
      %v991 = vmul.f32 %v347, %v975
      %v992 = vmul.f32 %v348, %v975
      %v993 = vmul.f32 %v349, %v975
      %v994 = vmul.f32 %v350, %v975
      %v995 = vmul.f32 %v351, %v975
      %v996 = vmul.f32 %v352, %v975
      %v997 = vmul.f32 %v353, %v975
      %v998 = vmul.f32 %v354, %v975
      %v999 = vmul.f32 %v355, %v975
      %v1000 = vmul.f32 %v356, %v975
      %v1001 = vmul.f32 %v357, %v975
      %v1002 = vmul.f32 %v358, %v975
      %v1003 = vmul.f32 %v359, %v975
      %v1004 = vmul.f32 %v360, %v975
      %v1005 = vmul.f32 %v361, %v975
      %v1006 = vmul.f32 %v362, %v975
      %v1007 = vmul.f32 %v363, %v975
      %v1008 = vmul.f32 %v364, %v975
      %v1009 = vmul.f32 %v365, %v975
      %v1010 = vmul.f32 %v366, %v975
      %v1011 = vmul.f32 %v367, %v975
      %v1012 = vmul.f32 %v368, %v975
      %v1013 = vmul.f32 %v369, %v975
      %v1014 = vmul.f32 %v370, %v975
      %v1015 = vmul.f32 %v371, %v975
      %vm1056 = vcmask 1044480
      %v1057 = vrot.slane %v976, 3
      %v1058 = vrot.slane %v977, 3
      %v1059 = vsel %vm1056, %v1057, %v1058
      %v1060 = vrot.slane %v978, 3
      %v1061 = vsel %vm1056, %v1058, %v1060
      %v1062 = vrot.slane %v979, 3
      %v1063 = vsel %vm1056, %v1060, %v1062
      %v1064 = vrot.slane %v980, 3
      %v1065 = vsel %vm1056, %v1062, %v1064
      %v1066 = vrot.slane %v981, 3
      %v1067 = vrot.slane %v982, 3
      %v1068 = vsel %vm1056, %v1066, %v1067
      %v1069 = vrot.slane %v983, 3
      %v1070 = vsel %vm1056, %v1067, %v1069
      %v1071 = vrot.slane %v984, 3
      %v1072 = vsel %vm1056, %v1069, %v1071
      %v1073 = vrot.slane %v985, 3
      %v1074 = vsel %vm1056, %v1071, %v1073
      %v1075 = vrot.slane %v986, 3
      %v1076 = vrot.slane %v987, 3
      %v1077 = vsel %vm1056, %v1075, %v1076
      %v1078 = vrot.slane %v988, 3
      %v1079 = vsel %vm1056, %v1076, %v1078
      %v1080 = vrot.slane %v989, 3
      %v1081 = vsel %vm1056, %v1078, %v1080
      %v1082 = vrot.slane %v990, 3
      %v1083 = vsel %vm1056, %v1080, %v1082
      %v1084 = vrot.slane %v991, 3
      %v1085 = vrot.slane %v992, 3
      %v1086 = vsel %vm1056, %v1084, %v1085
      %v1087 = vrot.slane %v993, 3
      %v1088 = vsel %vm1056, %v1085, %v1087
      %v1089 = vrot.slane %v994, 3
      %v1090 = vsel %vm1056, %v1087, %v1089
      %v1091 = vrot.slane %v995, 3
      %v1092 = vsel %vm1056, %v1089, %v1091
      %v1093 = vrot.slane %v996, 3
      %v1094 = vrot.slane %v997, 3
      %v1095 = vsel %vm1056, %v1093, %v1094
      %v1096 = vrot.slane %v998, 3
      %v1097 = vsel %vm1056, %v1094, %v1096
      %v1098 = vrot.slane %v999, 3
      %v1099 = vsel %vm1056, %v1096, %v1098
      %v1100 = vrot.slane %v1000, 3
      %v1101 = vsel %vm1056, %v1098, %v1100
      %v1102 = vrot.slane %v1001, 3
      %v1103 = vrot.slane %v1002, 3
      %v1104 = vsel %vm1056, %v1102, %v1103
      %v1105 = vrot.slane %v1003, 3
      %v1106 = vsel %vm1056, %v1103, %v1105
      %v1107 = vrot.slane %v1004, 3
      %v1108 = vsel %vm1056, %v1105, %v1107
      %v1109 = vrot.slane %v1005, 3
      %v1110 = vsel %vm1056, %v1107, %v1109
      %v1111 = vrot.slane %v1006, 3
      %v1112 = vrot.slane %v1007, 3
      %v1113 = vsel %vm1056, %v1111, %v1112
      %v1114 = vrot.slane %v1008, 3
      %v1115 = vsel %vm1056, %v1112, %v1114
      %v1116 = vrot.slane %v1009, 3
      %v1117 = vsel %vm1056, %v1114, %v1116
      %v1118 = vrot.slane %v1010, 3
      %v1119 = vsel %vm1056, %v1116, %v1118
      %v1120 = vrot.slane %v1011, 3
      %v1121 = vrot.slane %v1012, 3
      %v1122 = vsel %vm1056, %v1120, %v1121
      %v1123 = vrot.slane %v1013, 3
      %v1124 = vsel %vm1056, %v1121, %v1123
      %v1125 = vrot.slane %v1014, 3
      %v1126 = vsel %vm1056, %v1123, %v1125
      %v1127 = vrot.slane %v1015, 3
      %v1128 = vsel %vm1056, %v1125, %v1127
      %v1161 = vadd.f32 %v939, %v1059
      %v1162 = vadd.f32 %v940, %v1061
      %v1163 = vadd.f32 %v941, %v1063
      %v1164 = vadd.f32 %v942, %v1065
      %v1165 = vadd.f32 %v943, %v1068
      %v1166 = vadd.f32 %v944, %v1070
      %v1167 = vadd.f32 %v945, %v1072
      %v1168 = vadd.f32 %v946, %v1074
      %v1169 = vadd.f32 %v947, %v1077
      %v1170 = vadd.f32 %v948, %v1079
      %v1171 = vadd.f32 %v949, %v1081
      %v1172 = vadd.f32 %v950, %v1083
      %v1173 = vadd.f32 %v951, %v1086
      %v1174 = vadd.f32 %v952, %v1088
      %v1175 = vadd.f32 %v953, %v1090
      %v1176 = vadd.f32 %v954, %v1092
      %v1177 = vadd.f32 %v955, %v1095
      %v1178 = vadd.f32 %v956, %v1097
      %v1179 = vadd.f32 %v957, %v1099
      %v1180 = vadd.f32 %v958, %v1101
      %v1181 = vadd.f32 %v959, %v1104
      %v1182 = vadd.f32 %v960, %v1106
      %v1183 = vadd.f32 %v961, %v1108
      %v1184 = vadd.f32 %v962, %v1110
      %v1185 = vadd.f32 %v963, %v1113
      %v1186 = vadd.f32 %v964, %v1115
      %v1187 = vadd.f32 %v965, %v1117
      %v1188 = vadd.f32 %v966, %v1119
      %v1189 = vadd.f32 %v967, %v1122
      %v1190 = vadd.f32 %v968, %v1124
      %v1191 = vadd.f32 %v969, %v1126
      %v1192 = vadd.f32 %v970, %v1128
      %v1193 = vld [vmem:[%s1 + $0x8] sm:$0x1]
      %v1194 = vlaneseq
      %v1195 = vshrl.u32 %v1194, 7
      %v1196 = vsub.s32 0, %v1195
      %v1197 = vrot.slane %v1193, %v1196
      %v1198 = vmul.f32 %v375, %v1197
      %v1199 = vmul.f32 %v376, %v1197
      %v1200 = vmul.f32 %v377, %v1197
      %v1201 = vmul.f32 %v378, %v1197
      %v1202 = vmul.f32 %v380, %v1197
      %v1203 = vmul.f32 %v381, %v1197
      %v1204 = vmul.f32 %v382, %v1197
      %v1205 = vmul.f32 %v383, %v1197
      %v1206 = vmul.f32 %v385, %v1197
      %v1207 = vmul.f32 %v386, %v1197
      %v1208 = vmul.f32 %v387, %v1197
      %v1209 = vmul.f32 %v388, %v1197
      %v1210 = vmul.f32 %v390, %v1197
      %v1211 = vmul.f32 %v391, %v1197
      %v1212 = vmul.f32 %v392, %v1197
      %v1213 = vmul.f32 %v393, %v1197
      %v1214 = vmul.f32 %v395, %v1197
      %v1215 = vmul.f32 %v396, %v1197
      %v1216 = vmul.f32 %v397, %v1197
      %v1217 = vmul.f32 %v398, %v1197
      %v1218 = vmul.f32 %v400, %v1197
      %v1219 = vmul.f32 %v401, %v1197
      %v1220 = vmul.f32 %v402, %v1197
      %v1221 = vmul.f32 %v403, %v1197
      %v1222 = vmul.f32 %v405, %v1197
      %v1223 = vmul.f32 %v406, %v1197
      %v1224 = vmul.f32 %v407, %v1197
      %v1225 = vmul.f32 %v408, %v1197
      %v1226 = vmul.f32 %v410, %v1197
      %v1227 = vmul.f32 %v411, %v1197
      %v1228 = vmul.f32 %v412, %v1197
      %v1229 = vmul.f32 %v413, %v1197
      %v1230 = vadd.f32 %v1161, %v1198
      %v1231 = vadd.f32 %v1162, %v1199
      %v1232 = vadd.f32 %v1163, %v1200
      %v1233 = vadd.f32 %v1164, %v1201
      %v1234 = vadd.f32 %v1165, %v1202
      %v1235 = vadd.f32 %v1166, %v1203
      %v1236 = vadd.f32 %v1167, %v1204
      %v1237 = vadd.f32 %v1168, %v1205
      %v1238 = vadd.f32 %v1169, %v1206
      %v1239 = vadd.f32 %v1170, %v1207
      %v1240 = vadd.f32 %v1171, %v1208
      %v1241 = vadd.f32 %v1172, %v1209
      %v1242 = vadd.f32 %v1173, %v1210
      %v1243 = vadd.f32 %v1174, %v1211
      %v1244 = vadd.f32 %v1175, %v1212
      %v1245 = vadd.f32 %v1176, %v1213
      %v1246 = vadd.f32 %v1177, %v1214
      %v1247 = vadd.f32 %v1178, %v1215
      %v1248 = vadd.f32 %v1179, %v1216
      %v1249 = vadd.f32 %v1180, %v1217
      %v1250 = vadd.f32 %v1181, %v1218
      %v1251 = vadd.f32 %v1182, %v1219
      %v1252 = vadd.f32 %v1183, %v1220
      %v1253 = vadd.f32 %v1184, %v1221
      %v1254 = vadd.f32 %v1185, %v1222
      %v1255 = vadd.f32 %v1186, %v1223
      %v1256 = vadd.f32 %v1187, %v1224
      %v1257 = vadd.f32 %v1188, %v1225
      %v1258 = vadd.f32 %v1189, %v1226
      %v1259 = vadd.f32 %v1190, %v1227
      %v1260 = vadd.f32 %v1191, %v1228
      %v1261 = vadd.f32 %v1192, %v1229
      %v1262 = vld [vmem:[%s1 + $0x9] sm:$0x1]
      %v1263 = vlaneseq
      %v1264 = vshrl.u32 %v1263, 7
      %v1265 = vsub.s32 0, %v1264
      %v1266 = vrot.slane %v1262, %v1265
      %v1267 = vmul.f32 %v375, %v1266
      %v1268 = vmul.f32 %v376, %v1266
      %v1269 = vmul.f32 %v377, %v1266
      %v1270 = vmul.f32 %v378, %v1266
      %v1271 = vmul.f32 %v379, %v1266
      %v1272 = vmul.f32 %v380, %v1266
      %v1273 = vmul.f32 %v381, %v1266
      %v1274 = vmul.f32 %v382, %v1266
      %v1275 = vmul.f32 %v383, %v1266
      %v1276 = vmul.f32 %v384, %v1266
      %v1277 = vmul.f32 %v385, %v1266
      %v1278 = vmul.f32 %v386, %v1266
      %v1279 = vmul.f32 %v387, %v1266
      %v1280 = vmul.f32 %v388, %v1266
      %v1281 = vmul.f32 %v389, %v1266
      %v1282 = vmul.f32 %v390, %v1266
      %v1283 = vmul.f32 %v391, %v1266
      %v1284 = vmul.f32 %v392, %v1266
      %v1285 = vmul.f32 %v393, %v1266
      %v1286 = vmul.f32 %v394, %v1266
      %v1287 = vmul.f32 %v395, %v1266
      %v1288 = vmul.f32 %v396, %v1266
      %v1289 = vmul.f32 %v397, %v1266
      %v1290 = vmul.f32 %v398, %v1266
      %v1291 = vmul.f32 %v399, %v1266
      %v1292 = vmul.f32 %v400, %v1266
      %v1293 = vmul.f32 %v401, %v1266
      %v1294 = vmul.f32 %v402, %v1266
      %v1295 = vmul.f32 %v403, %v1266
      %v1296 = vmul.f32 %v404, %v1266
      %v1297 = vmul.f32 %v405, %v1266
      %v1298 = vmul.f32 %v406, %v1266
      %v1299 = vmul.f32 %v407, %v1266
      %v1300 = vmul.f32 %v408, %v1266
      %v1301 = vmul.f32 %v409, %v1266
      %v1302 = vmul.f32 %v410, %v1266
      %v1303 = vmul.f32 %v411, %v1266
      %v1304 = vmul.f32 %v412, %v1266
      %v1305 = vmul.f32 %v413, %v1266
      %v1306 = vmul.f32 %v414, %v1266
      %v1347 = vrot.slane %v1267, 1
      %v1348 = vrot.slane %v1268, 1
      %v1349 = vsel %vm612, %v1347, %v1348
      %v1350 = vrot.slane %v1269, 1
      %v1351 = vsel %vm612, %v1348, %v1350
      %v1352 = vrot.slane %v1270, 1
      %v1353 = vsel %vm612, %v1350, %v1352
      %v1354 = vrot.slane %v1271, 1
      %v1355 = vsel %vm612, %v1352, %v1354
      %v1356 = vrot.slane %v1272, 1
      %v1357 = vrot.slane %v1273, 1
      %v1358 = vsel %vm612, %v1356, %v1357
      %v1359 = vrot.slane %v1274, 1
      %v1360 = vsel %vm612, %v1357, %v1359
      %v1361 = vrot.slane %v1275, 1
      %v1362 = vsel %vm612, %v1359, %v1361
      %v1363 = vrot.slane %v1276, 1
      %v1364 = vsel %vm612, %v1361, %v1363
      %v1365 = vrot.slane %v1277, 1
      %v1366 = vrot.slane %v1278, 1
      %v1367 = vsel %vm612, %v1365, %v1366
      %v1368 = vrot.slane %v1279, 1
      %v1369 = vsel %vm612, %v1366, %v1368
      %v1370 = vrot.slane %v1280, 1
      %v1371 = vsel %vm612, %v1368, %v1370
      %v1372 = vrot.slane %v1281, 1
      %v1373 = vsel %vm612, %v1370, %v1372
      %v1374 = vrot.slane %v1282, 1
      %v1375 = vrot.slane %v1283, 1
      %v1376 = vsel %vm612, %v1374, %v1375
      %v1377 = vrot.slane %v1284, 1
      %v1378 = vsel %vm612, %v1375, %v1377
      %v1379 = vrot.slane %v1285, 1
      %v1380 = vsel %vm612, %v1377, %v1379
      %v1381 = vrot.slane %v1286, 1
      %v1382 = vsel %vm612, %v1379, %v1381
      %v1383 = vrot.slane %v1287, 1
      %v1384 = vrot.slane %v1288, 1
      %v1385 = vsel %vm612, %v1383, %v1384
      %v1386 = vrot.slane %v1289, 1
      %v1387 = vsel %vm612, %v1384, %v1386
      %v1388 = vrot.slane %v1290, 1
      %v1389 = vsel %vm612, %v1386, %v1388
      %v1390 = vrot.slane %v1291, 1
      %v1391 = vsel %vm612, %v1388, %v1390
      %v1392 = vrot.slane %v1292, 1
      %v1393 = vrot.slane %v1293, 1
      %v1394 = vsel %vm612, %v1392, %v1393
      %v1395 = vrot.slane %v1294, 1
      %v1396 = vsel %vm612, %v1393, %v1395
      %v1397 = vrot.slane %v1295, 1
      %v1398 = vsel %vm612, %v1395, %v1397
      %v1399 = vrot.slane %v1296, 1
      %v1400 = vsel %vm612, %v1397, %v1399
      %v1401 = vrot.slane %v1297, 1
      %v1402 = vrot.slane %v1298, 1
      %v1403 = vsel %vm612, %v1401, %v1402
      %v1404 = vrot.slane %v1299, 1
      %v1405 = vsel %vm612, %v1402, %v1404
      %v1406 = vrot.slane %v1300, 1
      %v1407 = vsel %vm612, %v1404, %v1406
      %v1408 = vrot.slane %v1301, 1
      %v1409 = vsel %vm612, %v1406, %v1408
      %v1410 = vrot.slane %v1302, 1
      %v1411 = vrot.slane %v1303, 1
      %v1412 = vsel %vm612, %v1410, %v1411
      %v1413 = vrot.slane %v1304, 1
      %v1414 = vsel %vm612, %v1411, %v1413
      %v1415 = vrot.slane %v1305, 1
      %v1416 = vsel %vm612, %v1413, %v1415
      %v1417 = vrot.slane %v1306, 1
      %v1418 = vsel %vm612, %v1415, %v1417
      %v1451 = vadd.f32 %v1230, %v1349
      %v1452 = vadd.f32 %v1231, %v1351
      %v1453 = vadd.f32 %v1232, %v1353
      %v1454 = vadd.f32 %v1233, %v1355
      %v1455 = vadd.f32 %v1234, %v1358
      %v1456 = vadd.f32 %v1235, %v1360
      %v1457 = vadd.f32 %v1236, %v1362
      %v1458 = vadd.f32 %v1237, %v1364
      %v1459 = vadd.f32 %v1238, %v1367
      %v1460 = vadd.f32 %v1239, %v1369
      %v1461 = vadd.f32 %v1240, %v1371
      %v1462 = vadd.f32 %v1241, %v1373
      %v1463 = vadd.f32 %v1242, %v1376
      %v1464 = vadd.f32 %v1243, %v1378
      %v1465 = vadd.f32 %v1244, %v1380
      %v1466 = vadd.f32 %v1245, %v1382
      %v1467 = vadd.f32 %v1246, %v1385
      %v1468 = vadd.f32 %v1247, %v1387
      %v1469 = vadd.f32 %v1248, %v1389
      %v1470 = vadd.f32 %v1249, %v1391
      %v1471 = vadd.f32 %v1250, %v1394
      %v1472 = vadd.f32 %v1251, %v1396
      %v1473 = vadd.f32 %v1252, %v1398
      %v1474 = vadd.f32 %v1253, %v1400
      %v1475 = vadd.f32 %v1254, %v1403
      %v1476 = vadd.f32 %v1255, %v1405
      %v1477 = vadd.f32 %v1256, %v1407
      %v1478 = vadd.f32 %v1257, %v1409
      %v1479 = vadd.f32 %v1258, %v1412
      %v1480 = vadd.f32 %v1259, %v1414
      %v1481 = vadd.f32 %v1260, %v1416
      %v1482 = vadd.f32 %v1261, %v1418
      %v1483 = vld [vmem:[%s1 + $0xa] sm:$0x1]
      %v1484 = vlaneseq
      %v1485 = vshrl.u32 %v1484, 7
      %v1486 = vsub.s32 0, %v1485
      %v1487 = vrot.slane %v1483, %v1486
      %v1488 = vmul.f32 %v375, %v1487
      %v1489 = vmul.f32 %v376, %v1487
      %v1490 = vmul.f32 %v377, %v1487
      %v1491 = vmul.f32 %v378, %v1487
      %v1492 = vmul.f32 %v379, %v1487
      %v1493 = vmul.f32 %v380, %v1487
      %v1494 = vmul.f32 %v381, %v1487
      %v1495 = vmul.f32 %v382, %v1487
      %v1496 = vmul.f32 %v383, %v1487
      %v1497 = vmul.f32 %v384, %v1487
      %v1498 = vmul.f32 %v385, %v1487
      %v1499 = vmul.f32 %v386, %v1487
      %v1500 = vmul.f32 %v387, %v1487
      %v1501 = vmul.f32 %v388, %v1487
      %v1502 = vmul.f32 %v389, %v1487
      %v1503 = vmul.f32 %v390, %v1487
      %v1504 = vmul.f32 %v391, %v1487
      %v1505 = vmul.f32 %v392, %v1487
      %v1506 = vmul.f32 %v393, %v1487
      %v1507 = vmul.f32 %v394, %v1487
      %v1508 = vmul.f32 %v395, %v1487
      %v1509 = vmul.f32 %v396, %v1487
      %v1510 = vmul.f32 %v397, %v1487
      %v1511 = vmul.f32 %v398, %v1487
      %v1512 = vmul.f32 %v399, %v1487
      %v1513 = vmul.f32 %v400, %v1487
      %v1514 = vmul.f32 %v401, %v1487
      %v1515 = vmul.f32 %v402, %v1487
      %v1516 = vmul.f32 %v403, %v1487
      %v1517 = vmul.f32 %v404, %v1487
      %v1518 = vmul.f32 %v405, %v1487
      %v1519 = vmul.f32 %v406, %v1487
      %v1520 = vmul.f32 %v407, %v1487
      %v1521 = vmul.f32 %v408, %v1487
      %v1522 = vmul.f32 %v409, %v1487
      %v1523 = vmul.f32 %v410, %v1487
      %v1524 = vmul.f32 %v411, %v1487
      %v1525 = vmul.f32 %v412, %v1487
      %v1526 = vmul.f32 %v413, %v1487
      %v1527 = vmul.f32 %v414, %v1487
      %v1568 = vrot.slane %v1488, 2
      %v1569 = vrot.slane %v1489, 2
      %v1570 = vsel %vm834, %v1568, %v1569
      %v1571 = vrot.slane %v1490, 2
      %v1572 = vsel %vm834, %v1569, %v1571
      %v1573 = vrot.slane %v1491, 2
      %v1574 = vsel %vm834, %v1571, %v1573
      %v1575 = vrot.slane %v1492, 2
      %v1576 = vsel %vm834, %v1573, %v1575
      %v1577 = vrot.slane %v1493, 2
      %v1578 = vrot.slane %v1494, 2
      %v1579 = vsel %vm834, %v1577, %v1578
      %v1580 = vrot.slane %v1495, 2
      %v1581 = vsel %vm834, %v1578, %v1580
      %v1582 = vrot.slane %v1496, 2
      %v1583 = vsel %vm834, %v1580, %v1582
      %v1584 = vrot.slane %v1497, 2
      %v1585 = vsel %vm834, %v1582, %v1584
      %v1586 = vrot.slane %v1498, 2
      %v1587 = vrot.slane %v1499, 2
      %v1588 = vsel %vm834, %v1586, %v1587
      %v1589 = vrot.slane %v1500, 2
      %v1590 = vsel %vm834, %v1587, %v1589
      %v1591 = vrot.slane %v1501, 2
      %v1592 = vsel %vm834, %v1589, %v1591
      %v1593 = vrot.slane %v1502, 2
      %v1594 = vsel %vm834, %v1591, %v1593
      %v1595 = vrot.slane %v1503, 2
      %v1596 = vrot.slane %v1504, 2
      %v1597 = vsel %vm834, %v1595, %v1596
      %v1598 = vrot.slane %v1505, 2
      %v1599 = vsel %vm834, %v1596, %v1598
      %v1600 = vrot.slane %v1506, 2
      %v1601 = vsel %vm834, %v1598, %v1600
      %v1602 = vrot.slane %v1507, 2
      %v1603 = vsel %vm834, %v1600, %v1602
      %v1604 = vrot.slane %v1508, 2
      %v1605 = vrot.slane %v1509, 2
      %v1606 = vsel %vm834, %v1604, %v1605
      %v1607 = vrot.slane %v1510, 2
      %v1608 = vsel %vm834, %v1605, %v1607
      %v1609 = vrot.slane %v1511, 2
      %v1610 = vsel %vm834, %v1607, %v1609
      %v1611 = vrot.slane %v1512, 2
      %v1612 = vsel %vm834, %v1609, %v1611
      %v1613 = vrot.slane %v1513, 2
      %v1614 = vrot.slane %v1514, 2
      %v1615 = vsel %vm834, %v1613, %v1614
      %v1616 = vrot.slane %v1515, 2
      %v1617 = vsel %vm834, %v1614, %v1616
      %v1618 = vrot.slane %v1516, 2
      %v1619 = vsel %vm834, %v1616, %v1618
      %v1620 = vrot.slane %v1517, 2
      %v1621 = vsel %vm834, %v1618, %v1620
      %v1622 = vrot.slane %v1518, 2
      %v1623 = vrot.slane %v1519, 2
      %v1624 = vsel %vm834, %v1622, %v1623
      %v1625 = vrot.slane %v1520, 2
      %v1626 = vsel %vm834, %v1623, %v1625
      %v1627 = vrot.slane %v1521, 2
      %v1628 = vsel %vm834, %v1625, %v1627
      %v1629 = vrot.slane %v1522, 2
      %v1630 = vsel %vm834, %v1627, %v1629
      %v1631 = vrot.slane %v1523, 2
      %v1632 = vrot.slane %v1524, 2
      %v1633 = vsel %vm834, %v1631, %v1632
      %v1634 = vrot.slane %v1525, 2
      %v1635 = vsel %vm834, %v1632, %v1634
      %v1636 = vrot.slane %v1526, 2
      %v1637 = vsel %vm834, %v1634, %v1636
      %v1638 = vrot.slane %v1527, 2
      %v1639 = vsel %vm834, %v1636, %v1638
      %v1672 = vadd.f32 %v1451, %v1570
      %v1673 = vadd.f32 %v1452, %v1572
      %v1674 = vadd.f32 %v1453, %v1574
      %v1675 = vadd.f32 %v1454, %v1576
      %v1676 = vadd.f32 %v1455, %v1579
      %v1677 = vadd.f32 %v1456, %v1581
      %v1678 = vadd.f32 %v1457, %v1583
      %v1679 = vadd.f32 %v1458, %v1585
      %v1680 = vadd.f32 %v1459, %v1588
      %v1681 = vadd.f32 %v1460, %v1590
      %v1682 = vadd.f32 %v1461, %v1592
      %v1683 = vadd.f32 %v1462, %v1594
      %v1684 = vadd.f32 %v1463, %v1597
      %v1685 = vadd.f32 %v1464, %v1599
      %v1686 = vadd.f32 %v1465, %v1601
      %v1687 = vadd.f32 %v1466, %v1603
      %v1688 = vadd.f32 %v1467, %v1606
      %v1689 = vadd.f32 %v1468, %v1608
      %v1690 = vadd.f32 %v1469, %v1610
      %v1691 = vadd.f32 %v1470, %v1612
      %v1692 = vadd.f32 %v1471, %v1615
      %v1693 = vadd.f32 %v1472, %v1617
      %v1694 = vadd.f32 %v1473, %v1619
      %v1695 = vadd.f32 %v1474, %v1621
      %v1696 = vadd.f32 %v1475, %v1624
      %v1697 = vadd.f32 %v1476, %v1626
      %v1698 = vadd.f32 %v1477, %v1628
      %v1699 = vadd.f32 %v1478, %v1630
      %v1700 = vadd.f32 %v1479, %v1633
      %v1701 = vadd.f32 %v1480, %v1635
      %v1702 = vadd.f32 %v1481, %v1637
      %v1703 = vadd.f32 %v1482, %v1639
      %v1704 = vld [vmem:[%s1 + $0xb] sm:$0x1]
      %v1705 = vlaneseq
      %v1706 = vshrl.u32 %v1705, 7
      %v1707 = vsub.s32 0, %v1706
      %v1708 = vrot.slane %v1704, %v1707
      %v1709 = vmul.f32 %v375, %v1708
      %v1710 = vmul.f32 %v376, %v1708
      %v1711 = vmul.f32 %v377, %v1708
      %v1712 = vmul.f32 %v378, %v1708
      %v1713 = vmul.f32 %v379, %v1708
      %v1714 = vmul.f32 %v380, %v1708
      %v1715 = vmul.f32 %v381, %v1708
      %v1716 = vmul.f32 %v382, %v1708
      %v1717 = vmul.f32 %v383, %v1708
      %v1718 = vmul.f32 %v384, %v1708
      %v1719 = vmul.f32 %v385, %v1708
      %v1720 = vmul.f32 %v386, %v1708
      %v1721 = vmul.f32 %v387, %v1708
      %v1722 = vmul.f32 %v388, %v1708
      %v1723 = vmul.f32 %v389, %v1708
      %v1724 = vmul.f32 %v390, %v1708
      %v1725 = vmul.f32 %v391, %v1708
      %v1726 = vmul.f32 %v392, %v1708
      %v1727 = vmul.f32 %v393, %v1708
      %v1728 = vmul.f32 %v394, %v1708
      %v1729 = vmul.f32 %v395, %v1708
      %v1730 = vmul.f32 %v396, %v1708
      %v1731 = vmul.f32 %v397, %v1708
      %v1732 = vmul.f32 %v398, %v1708
      %v1733 = vmul.f32 %v399, %v1708
      %v1734 = vmul.f32 %v400, %v1708
      %v1735 = vmul.f32 %v401, %v1708
      %v1736 = vmul.f32 %v402, %v1708
      %v1737 = vmul.f32 %v403, %v1708
      %v1738 = vmul.f32 %v404, %v1708
      %v1739 = vmul.f32 %v405, %v1708
      %v1740 = vmul.f32 %v406, %v1708
      %v1741 = vmul.f32 %v407, %v1708
      %v1742 = vmul.f32 %v408, %v1708
      %v1743 = vmul.f32 %v409, %v1708
      %v1744 = vmul.f32 %v410, %v1708
      %v1745 = vmul.f32 %v411, %v1708
      %v1746 = vmul.f32 %v412, %v1708
      %v1747 = vmul.f32 %v413, %v1708
      %v1748 = vmul.f32 %v414, %v1708
      %v1789 = vrot.slane %v1709, 3
      %v1790 = vrot.slane %v1710, 3
      %v1791 = vsel %vm1056, %v1789, %v1790
      %v1792 = vrot.slane %v1711, 3
      %v1793 = vsel %vm1056, %v1790, %v1792
      %v1794 = vrot.slane %v1712, 3
      %v1795 = vsel %vm1056, %v1792, %v1794
      %v1796 = vrot.slane %v1713, 3
      %v1797 = vsel %vm1056, %v1794, %v1796
      %v1798 = vrot.slane %v1714, 3
      %v1799 = vrot.slane %v1715, 3
      %v1800 = vsel %vm1056, %v1798, %v1799
      %v1801 = vrot.slane %v1716, 3
      %v1802 = vsel %vm1056, %v1799, %v1801
      %v1803 = vrot.slane %v1717, 3
      %v1804 = vsel %vm1056, %v1801, %v1803
      %v1805 = vrot.slane %v1718, 3
      %v1806 = vsel %vm1056, %v1803, %v1805
      %v1807 = vrot.slane %v1719, 3
      %v1808 = vrot.slane %v1720, 3
      %v1809 = vsel %vm1056, %v1807, %v1808
      %v1810 = vrot.slane %v1721, 3
      %v1811 = vsel %vm1056, %v1808, %v1810
      %v1812 = vrot.slane %v1722, 3
      %v1813 = vsel %vm1056, %v1810, %v1812
      %v1814 = vrot.slane %v1723, 3
      %v1815 = vsel %vm1056, %v1812, %v1814
      %v1816 = vrot.slane %v1724, 3
      %v1817 = vrot.slane %v1725, 3
      %v1818 = vsel %vm1056, %v1816, %v1817
      %v1819 = vrot.slane %v1726, 3
      %v1820 = vsel %vm1056, %v1817, %v1819
      %v1821 = vrot.slane %v1727, 3
      %v1822 = vsel %vm1056, %v1819, %v1821
      %v1823 = vrot.slane %v1728, 3
      %v1824 = vsel %vm1056, %v1821, %v1823
      %v1825 = vrot.slane %v1729, 3
      %v1826 = vrot.slane %v1730, 3
      %v1827 = vsel %vm1056, %v1825, %v1826
      %v1828 = vrot.slane %v1731, 3
      %v1829 = vsel %vm1056, %v1826, %v1828
      %v1830 = vrot.slane %v1732, 3
      %v1831 = vsel %vm1056, %v1828, %v1830
      %v1832 = vrot.slane %v1733, 3
      %v1833 = vsel %vm1056, %v1830, %v1832
      %v1834 = vrot.slane %v1734, 3
      %v1835 = vrot.slane %v1735, 3
      %v1836 = vsel %vm1056, %v1834, %v1835
      %v1837 = vrot.slane %v1736, 3
      %v1838 = vsel %vm1056, %v1835, %v1837
      %v1839 = vrot.slane %v1737, 3
      %v1840 = vsel %vm1056, %v1837, %v1839
      %v1841 = vrot.slane %v1738, 3
      %v1842 = vsel %vm1056, %v1839, %v1841
      %v1843 = vrot.slane %v1739, 3
      %v1844 = vrot.slane %v1740, 3
      %v1845 = vsel %vm1056, %v1843, %v1844
      %v1846 = vrot.slane %v1741, 3
      %v1847 = vsel %vm1056, %v1844, %v1846
      %v1848 = vrot.slane %v1742, 3
      %v1849 = vsel %vm1056, %v1846, %v1848
      %v1850 = vrot.slane %v1743, 3
      %v1851 = vsel %vm1056, %v1848, %v1850
      %v1852 = vrot.slane %v1744, 3
      %v1853 = vrot.slane %v1745, 3
      %v1854 = vsel %vm1056, %v1852, %v1853
      %v1855 = vrot.slane %v1746, 3
      %v1856 = vsel %vm1056, %v1853, %v1855
      %v1857 = vrot.slane %v1747, 3
      %v1858 = vsel %vm1056, %v1855, %v1857
      %v1859 = vrot.slane %v1748, 3
      %v1860 = vsel %vm1056, %v1857, %v1859
      %v1893 = vadd.f32 %v1672, %v1791
      %v1894 = vadd.f32 %v1673, %v1793
      %v1895 = vadd.f32 %v1674, %v1795
      %v1896 = vadd.f32 %v1675, %v1797
      %v1897 = vadd.f32 %v1676, %v1800
      %v1898 = vadd.f32 %v1677, %v1802
      %v1899 = vadd.f32 %v1678, %v1804
      %v1900 = vadd.f32 %v1679, %v1806
      %v1901 = vadd.f32 %v1680, %v1809
      %v1902 = vadd.f32 %v1681, %v1811
      %v1903 = vadd.f32 %v1682, %v1813
      %v1904 = vadd.f32 %v1683, %v1815
      %v1905 = vadd.f32 %v1684, %v1818
      %v1906 = vadd.f32 %v1685, %v1820
      %v1907 = vadd.f32 %v1686, %v1822
      %v1908 = vadd.f32 %v1687, %v1824
      %v1909 = vadd.f32 %v1688, %v1827
      %v1910 = vadd.f32 %v1689, %v1829
      %v1911 = vadd.f32 %v1690, %v1831
      %v1912 = vadd.f32 %v1691, %v1833
      %v1913 = vadd.f32 %v1692, %v1836
      %v1914 = vadd.f32 %v1693, %v1838
      %v1915 = vadd.f32 %v1694, %v1840
      %v1916 = vadd.f32 %v1695, %v1842
      %v1917 = vadd.f32 %v1696, %v1845
      %v1918 = vadd.f32 %v1697, %v1847
      %v1919 = vadd.f32 %v1698, %v1849
      %v1920 = vadd.f32 %v1699, %v1851
      %v1921 = vadd.f32 %v1700, %v1854
      %v1922 = vadd.f32 %v1701, %v1856
      %v1923 = vadd.f32 %v1702, %v1858
      %v1924 = vadd.f32 %v1703, %v1860
      %v1925 = vld [vmem:[%s1 + $0x4] sm:$0x1]
      %v1926 = vlaneseq
      %v1927 = vshrl.u32 %v1926, 7
      %v1928 = vsub.s32 0, %v1927
      %v1929 = vrot.slane %v1925, %v1928
      %v1930 = vmul.f32 %v375, %v1929
      %v1931 = vmul.f32 %v376, %v1929
      %v1932 = vmul.f32 %v377, %v1929
      %v1933 = vmul.f32 %v378, %v1929
      %v1934 = vmul.f32 %v380, %v1929
      %v1935 = vmul.f32 %v381, %v1929
      %v1936 = vmul.f32 %v382, %v1929
      %v1937 = vmul.f32 %v383, %v1929
      %v1938 = vmul.f32 %v385, %v1929
      %v1939 = vmul.f32 %v386, %v1929
      %v1940 = vmul.f32 %v387, %v1929
      %v1941 = vmul.f32 %v388, %v1929
      %v1942 = vmul.f32 %v390, %v1929
      %v1943 = vmul.f32 %v391, %v1929
      %v1944 = vmul.f32 %v392, %v1929
      %v1945 = vmul.f32 %v393, %v1929
      %v1946 = vmul.f32 %v395, %v1929
      %v1947 = vmul.f32 %v396, %v1929
      %v1948 = vmul.f32 %v397, %v1929
      %v1949 = vmul.f32 %v398, %v1929
      %v1950 = vmul.f32 %v400, %v1929
      %v1951 = vmul.f32 %v401, %v1929
      %v1952 = vmul.f32 %v402, %v1929
      %v1953 = vmul.f32 %v403, %v1929
      %v1954 = vmul.f32 %v405, %v1929
      %v1955 = vmul.f32 %v406, %v1929
      %v1956 = vmul.f32 %v407, %v1929
      %v1957 = vmul.f32 %v408, %v1929
      %v1958 = vmul.f32 %v410, %v1929
      %v1959 = vmul.f32 %v411, %v1929
      %v1960 = vmul.f32 %v412, %v1929
      %v1961 = vmul.f32 %v413, %v1929
      %v1962 = vadd.f32 %v1930, 0.0
      %v1963 = vadd.f32 %v1931, 0.0
      %v1964 = vadd.f32 %v1932, 0.0
      %v1965 = vadd.f32 %v1933, 0.0
      %v1966 = vadd.f32 %v1934, 0.0
      %v1967 = vadd.f32 %v1935, 0.0
      %v1968 = vadd.f32 %v1936, 0.0
      %v1969 = vadd.f32 %v1937, 0.0
      %v1970 = vadd.f32 %v1938, 0.0
      %v1971 = vadd.f32 %v1939, 0.0
      %v1972 = vadd.f32 %v1940, 0.0
      %v1973 = vadd.f32 %v1941, 0.0
      %v1974 = vadd.f32 %v1942, 0.0
      %v1975 = vadd.f32 %v1943, 0.0
      %v1976 = vadd.f32 %v1944, 0.0
      %v1977 = vadd.f32 %v1945, 0.0
      %v1978 = vadd.f32 %v1946, 0.0
      %v1979 = vadd.f32 %v1947, 0.0
      %v1980 = vadd.f32 %v1948, 0.0
      %v1981 = vadd.f32 %v1949, 0.0
      %v1982 = vadd.f32 %v1950, 0.0
      %v1983 = vadd.f32 %v1951, 0.0
      %v1984 = vadd.f32 %v1952, 0.0
      %v1985 = vadd.f32 %v1953, 0.0
      %v1986 = vadd.f32 %v1954, 0.0
      %v1987 = vadd.f32 %v1955, 0.0
      %v1988 = vadd.f32 %v1956, 0.0
      %v1989 = vadd.f32 %v1957, 0.0
      %v1990 = vadd.f32 %v1958, 0.0
      %v1991 = vadd.f32 %v1959, 0.0
      %v1992 = vadd.f32 %v1960, 0.0
      %v1993 = vadd.f32 %v1961, 0.0
      %v1994 = vld [vmem:[%s1 + $0x5] sm:$0x1]
      %v1995 = vlaneseq
      %v1996 = vshrl.u32 %v1995, 7
      %v1997 = vsub.s32 0, %v1996
      %v1998 = vrot.slane %v1994, %v1997
      %v1999 = vmul.f32 %v375, %v1998
      %v2000 = vmul.f32 %v376, %v1998
      %v2001 = vmul.f32 %v377, %v1998
      %v2002 = vmul.f32 %v378, %v1998
      %v2003 = vmul.f32 %v379, %v1998
      %v2004 = vmul.f32 %v380, %v1998
      %v2005 = vmul.f32 %v381, %v1998
      %v2006 = vmul.f32 %v382, %v1998
      %v2007 = vmul.f32 %v383, %v1998
      %v2008 = vmul.f32 %v384, %v1998
      %v2009 = vmul.f32 %v385, %v1998
      %v2010 = vmul.f32 %v386, %v1998
      %v2011 = vmul.f32 %v387, %v1998
      %v2012 = vmul.f32 %v388, %v1998
      %v2013 = vmul.f32 %v389, %v1998
      %v2014 = vmul.f32 %v390, %v1998
      %v2015 = vmul.f32 %v391, %v1998
      %v2016 = vmul.f32 %v392, %v1998
      %v2017 = vmul.f32 %v393, %v1998
      %v2018 = vmul.f32 %v394, %v1998
      %v2019 = vmul.f32 %v395, %v1998
      %v2020 = vmul.f32 %v396, %v1998
      %v2021 = vmul.f32 %v397, %v1998
      %v2022 = vmul.f32 %v398, %v1998
      %v2023 = vmul.f32 %v399, %v1998
      %v2024 = vmul.f32 %v400, %v1998
      %v2025 = vmul.f32 %v401, %v1998
      %v2026 = vmul.f32 %v402, %v1998
      %v2027 = vmul.f32 %v403, %v1998
      %v2028 = vmul.f32 %v404, %v1998
      %v2029 = vmul.f32 %v405, %v1998
      %v2030 = vmul.f32 %v406, %v1998
      %v2031 = vmul.f32 %v407, %v1998
      %v2032 = vmul.f32 %v408, %v1998
      %v2033 = vmul.f32 %v409, %v1998
      %v2034 = vmul.f32 %v410, %v1998
      %v2035 = vmul.f32 %v411, %v1998
      %v2036 = vmul.f32 %v412, %v1998
      %v2037 = vmul.f32 %v413, %v1998
      %v2038 = vmul.f32 %v414, %v1998
      %v2079 = vrot.slane %v1999, 1
      %v2080 = vrot.slane %v2000, 1
      %v2081 = vsel %vm612, %v2079, %v2080
      %v2082 = vrot.slane %v2001, 1
      %v2083 = vsel %vm612, %v2080, %v2082
      %v2084 = vrot.slane %v2002, 1
      %v2085 = vsel %vm612, %v2082, %v2084
      %v2086 = vrot.slane %v2003, 1
      %v2087 = vsel %vm612, %v2084, %v2086
      %v2088 = vrot.slane %v2004, 1
      %v2089 = vrot.slane %v2005, 1
      %v2090 = vsel %vm612, %v2088, %v2089
      %v2091 = vrot.slane %v2006, 1
      %v2092 = vsel %vm612, %v2089, %v2091
      %v2093 = vrot.slane %v2007, 1
      %v2094 = vsel %vm612, %v2091, %v2093
      %v2095 = vrot.slane %v2008, 1
      %v2096 = vsel %vm612, %v2093, %v2095
      %v2097 = vrot.slane %v2009, 1
      %v2098 = vrot.slane %v2010, 1
      %v2099 = vsel %vm612, %v2097, %v2098
      %v2100 = vrot.slane %v2011, 1
      %v2101 = vsel %vm612, %v2098, %v2100
      %v2102 = vrot.slane %v2012, 1
      %v2103 = vsel %vm612, %v2100, %v2102
      %v2104 = vrot.slane %v2013, 1
      %v2105 = vsel %vm612, %v2102, %v2104
      %v2106 = vrot.slane %v2014, 1
      %v2107 = vrot.slane %v2015, 1
      %v2108 = vsel %vm612, %v2106, %v2107
      %v2109 = vrot.slane %v2016, 1
      %v2110 = vsel %vm612, %v2107, %v2109
      %v2111 = vrot.slane %v2017, 1
      %v2112 = vsel %vm612, %v2109, %v2111
      %v2113 = vrot.slane %v2018, 1
      %v2114 = vsel %vm612, %v2111, %v2113
      %v2115 = vrot.slane %v2019, 1
      %v2116 = vrot.slane %v2020, 1
      %v2117 = vsel %vm612, %v2115, %v2116
      %v2118 = vrot.slane %v2021, 1
      %v2119 = vsel %vm612, %v2116, %v2118
      %v2120 = vrot.slane %v2022, 1
      %v2121 = vsel %vm612, %v2118, %v2120
      %v2122 = vrot.slane %v2023, 1
      %v2123 = vsel %vm612, %v2120, %v2122
      %v2124 = vrot.slane %v2024, 1
      %v2125 = vrot.slane %v2025, 1
      %v2126 = vsel %vm612, %v2124, %v2125
      %v2127 = vrot.slane %v2026, 1
      %v2128 = vsel %vm612, %v2125, %v2127
      %v2129 = vrot.slane %v2027, 1
      %v2130 = vsel %vm612, %v2127, %v2129
      %v2131 = vrot.slane %v2028, 1
      %v2132 = vsel %vm612, %v2129, %v2131
      %v2133 = vrot.slane %v2029, 1
      %v2134 = vrot.slane %v2030, 1
      %v2135 = vsel %vm612, %v2133, %v2134
      %v2136 = vrot.slane %v2031, 1
      %v2137 = vsel %vm612, %v2134, %v2136
      %v2138 = vrot.slane %v2032, 1
      %v2139 = vsel %vm612, %v2136, %v2138
      %v2140 = vrot.slane %v2033, 1
      %v2141 = vsel %vm612, %v2138, %v2140
      %v2142 = vrot.slane %v2034, 1
      %v2143 = vrot.slane %v2035, 1
      %v2144 = vsel %vm612, %v2142, %v2143
      %v2145 = vrot.slane %v2036, 1
      %v2146 = vsel %vm612, %v2143, %v2145
      %v2147 = vrot.slane %v2037, 1
      %v2148 = vsel %vm612, %v2145, %v2147
      %v2149 = vrot.slane %v2038, 1
      %v2150 = vsel %vm612, %v2147, %v2149
      %v2183 = vadd.f32 %v1962, %v2081
      %v2184 = vadd.f32 %v1963, %v2083
      %v2185 = vadd.f32 %v1964, %v2085
      %v2186 = vadd.f32 %v1965, %v2087
      %v2187 = vadd.f32 %v1966, %v2090
      %v2188 = vadd.f32 %v1967, %v2092
      %v2189 = vadd.f32 %v1968, %v2094
      %v2190 = vadd.f32 %v1969, %v2096
      %v2191 = vadd.f32 %v1970, %v2099
      %v2192 = vadd.f32 %v1971, %v2101
      %v2193 = vadd.f32 %v1972, %v2103
      %v2194 = vadd.f32 %v1973, %v2105
      %v2195 = vadd.f32 %v1974, %v2108
      %v2196 = vadd.f32 %v1975, %v2110
      %v2197 = vadd.f32 %v1976, %v2112
      %v2198 = vadd.f32 %v1977, %v2114
      %v2199 = vadd.f32 %v1978, %v2117
      %v2200 = vadd.f32 %v1979, %v2119
      %v2201 = vadd.f32 %v1980, %v2121
      %v2202 = vadd.f32 %v1981, %v2123
      %v2203 = vadd.f32 %v1982, %v2126
      %v2204 = vadd.f32 %v1983, %v2128
      %v2205 = vadd.f32 %v1984, %v2130
      %v2206 = vadd.f32 %v1985, %v2132
      %v2207 = vadd.f32 %v1986, %v2135
      %v2208 = vadd.f32 %v1987, %v2137
      %v2209 = vadd.f32 %v1988, %v2139
      %v2210 = vadd.f32 %v1989, %v2141
      %v2211 = vadd.f32 %v1990, %v2144
      %v2212 = vadd.f32 %v1991, %v2146
      %v2213 = vadd.f32 %v1992, %v2148
      %v2214 = vadd.f32 %v1993, %v2150
      %v2215 = vld [vmem:[%s1 + $0x6] sm:$0x1]
      %v2216 = vlaneseq
      %v2217 = vshrl.u32 %v2216, 7
      %v2218 = vsub.s32 0, %v2217
      %v2219 = vrot.slane %v2215, %v2218
      %v2220 = vmul.f32 %v375, %v2219
      %v2221 = vmul.f32 %v376, %v2219
      %v2222 = vmul.f32 %v377, %v2219
      %v2223 = vmul.f32 %v378, %v2219
      %v2224 = vmul.f32 %v379, %v2219
      %v2225 = vmul.f32 %v380, %v2219
      %v2226 = vmul.f32 %v381, %v2219
      %v2227 = vmul.f32 %v382, %v2219
      %v2228 = vmul.f32 %v383, %v2219
      %v2229 = vmul.f32 %v384, %v2219
      %v2230 = vmul.f32 %v385, %v2219
      %v2231 = vmul.f32 %v386, %v2219
      %v2232 = vmul.f32 %v387, %v2219
      %v2233 = vmul.f32 %v388, %v2219
      %v2234 = vmul.f32 %v389, %v2219
      %v2235 = vmul.f32 %v390, %v2219
      %v2236 = vmul.f32 %v391, %v2219
      %v2237 = vmul.f32 %v392, %v2219
      %v2238 = vmul.f32 %v393, %v2219
      %v2239 = vmul.f32 %v394, %v2219
      %v2240 = vmul.f32 %v395, %v2219
      %v2241 = vmul.f32 %v396, %v2219
      %v2242 = vmul.f32 %v397, %v2219
      %v2243 = vmul.f32 %v398, %v2219
      %v2244 = vmul.f32 %v399, %v2219
      %v2245 = vmul.f32 %v400, %v2219
      %v2246 = vmul.f32 %v401, %v2219
      %v2247 = vmul.f32 %v402, %v2219
      %v2248 = vmul.f32 %v403, %v2219
      %v2249 = vmul.f32 %v404, %v2219
      %v2250 = vmul.f32 %v405, %v2219
      %v2251 = vmul.f32 %v406, %v2219
      %v2252 = vmul.f32 %v407, %v2219
      %v2253 = vmul.f32 %v408, %v2219
      %v2254 = vmul.f32 %v409, %v2219
      %v2255 = vmul.f32 %v410, %v2219
      %v2256 = vmul.f32 %v411, %v2219
      %v2257 = vmul.f32 %v412, %v2219
      %v2258 = vmul.f32 %v413, %v2219
      %v2259 = vmul.f32 %v414, %v2219
      %v2300 = vrot.slane %v2220, 2
      %v2301 = vrot.slane %v2221, 2
      %v2302 = vsel %vm834, %v2300, %v2301
      %v2303 = vrot.slane %v2222, 2
      %v2304 = vsel %vm834, %v2301, %v2303
      %v2305 = vrot.slane %v2223, 2
      %v2306 = vsel %vm834, %v2303, %v2305
      %v2307 = vrot.slane %v2224, 2
      %v2308 = vsel %vm834, %v2305, %v2307
      %v2309 = vrot.slane %v2225, 2
      %v2310 = vrot.slane %v2226, 2
      %v2311 = vsel %vm834, %v2309, %v2310
      %v2312 = vrot.slane %v2227, 2
      %v2313 = vsel %vm834, %v2310, %v2312
      %v2314 = vrot.slane %v2228, 2
      %v2315 = vsel %vm834, %v2312, %v2314
      %v2316 = vrot.slane %v2229, 2
      %v2317 = vsel %vm834, %v2314, %v2316
      %v2318 = vrot.slane %v2230, 2
      %v2319 = vrot.slane %v2231, 2
      %v2320 = vsel %vm834, %v2318, %v2319
      %v2321 = vrot.slane %v2232, 2
      %v2322 = vsel %vm834, %v2319, %v2321
      %v2323 = vrot.slane %v2233, 2
      %v2324 = vsel %vm834, %v2321, %v2323
      %v2325 = vrot.slane %v2234, 2
      %v2326 = vsel %vm834, %v2323, %v2325
      %v2327 = vrot.slane %v2235, 2
      %v2328 = vrot.slane %v2236, 2
      %v2329 = vsel %vm834, %v2327, %v2328
      %v2330 = vrot.slane %v2237, 2
      %v2331 = vsel %vm834, %v2328, %v2330
      %v2332 = vrot.slane %v2238, 2
      %v2333 = vsel %vm834, %v2330, %v2332
      %v2334 = vrot.slane %v2239, 2
      %v2335 = vsel %vm834, %v2332, %v2334
      %v2336 = vrot.slane %v2240, 2
      %v2337 = vrot.slane %v2241, 2
      %v2338 = vsel %vm834, %v2336, %v2337
      %v2339 = vrot.slane %v2242, 2
      %v2340 = vsel %vm834, %v2337, %v2339
      %v2341 = vrot.slane %v2243, 2
      %v2342 = vsel %vm834, %v2339, %v2341
      %v2343 = vrot.slane %v2244, 2
      %v2344 = vsel %vm834, %v2341, %v2343
      %v2345 = vrot.slane %v2245, 2
      %v2346 = vrot.slane %v2246, 2
      %v2347 = vsel %vm834, %v2345, %v2346
      %v2348 = vrot.slane %v2247, 2
      %v2349 = vsel %vm834, %v2346, %v2348
      %v2350 = vrot.slane %v2248, 2
      %v2351 = vsel %vm834, %v2348, %v2350
      %v2352 = vrot.slane %v2249, 2
      %v2353 = vsel %vm834, %v2350, %v2352
      %v2354 = vrot.slane %v2250, 2
      %v2355 = vrot.slane %v2251, 2
      %v2356 = vsel %vm834, %v2354, %v2355
      %v2357 = vrot.slane %v2252, 2
      %v2358 = vsel %vm834, %v2355, %v2357
      %v2359 = vrot.slane %v2253, 2
      %v2360 = vsel %vm834, %v2357, %v2359
      %v2361 = vrot.slane %v2254, 2
      %v2362 = vsel %vm834, %v2359, %v2361
      %v2363 = vrot.slane %v2255, 2
      %v2364 = vrot.slane %v2256, 2
      %v2365 = vsel %vm834, %v2363, %v2364
      %v2366 = vrot.slane %v2257, 2
      %v2367 = vsel %vm834, %v2364, %v2366
      %v2368 = vrot.slane %v2258, 2
      %v2369 = vsel %vm834, %v2366, %v2368
      %v2370 = vrot.slane %v2259, 2
      %v2371 = vsel %vm834, %v2368, %v2370
      %v2404 = vadd.f32 %v2183, %v2302
      %v2405 = vadd.f32 %v2184, %v2304
      %v2406 = vadd.f32 %v2185, %v2306
      %v2407 = vadd.f32 %v2186, %v2308
      %v2408 = vadd.f32 %v2187, %v2311
      %v2409 = vadd.f32 %v2188, %v2313
      %v2410 = vadd.f32 %v2189, %v2315
      %v2411 = vadd.f32 %v2190, %v2317
      %v2412 = vadd.f32 %v2191, %v2320
      %v2413 = vadd.f32 %v2192, %v2322
      %v2414 = vadd.f32 %v2193, %v2324
      %v2415 = vadd.f32 %v2194, %v2326
      %v2416 = vadd.f32 %v2195, %v2329
      %v2417 = vadd.f32 %v2196, %v2331
      %v2418 = vadd.f32 %v2197, %v2333
      %v2419 = vadd.f32 %v2198, %v2335
      %v2420 = vadd.f32 %v2199, %v2338
      %v2421 = vadd.f32 %v2200, %v2340
      %v2422 = vadd.f32 %v2201, %v2342
      %v2423 = vadd.f32 %v2202, %v2344
      %v2424 = vadd.f32 %v2203, %v2347
      %v2425 = vadd.f32 %v2204, %v2349
      %v2426 = vadd.f32 %v2205, %v2351
      %v2427 = vadd.f32 %v2206, %v2353
      %v2428 = vadd.f32 %v2207, %v2356
      %v2429 = vadd.f32 %v2208, %v2358
      %v2430 = vadd.f32 %v2209, %v2360
      %v2431 = vadd.f32 %v2210, %v2362
      %v2432 = vadd.f32 %v2211, %v2365
      %v2433 = vadd.f32 %v2212, %v2367
      %v2434 = vadd.f32 %v2213, %v2369
      %v2435 = vadd.f32 %v2214, %v2371
      %v2436 = vld [vmem:[%s1 + $0x7] sm:$0x1]
      %v2437 = vlaneseq
      %v2438 = vshrl.u32 %v2437, 7
      %v2439 = vsub.s32 0, %v2438
      %v2440 = vrot.slane %v2436, %v2439
      %v2441 = vmul.f32 %v375, %v2440
      %v2442 = vmul.f32 %v376, %v2440
      %v2443 = vmul.f32 %v377, %v2440
      %v2444 = vmul.f32 %v378, %v2440
      %v2445 = vmul.f32 %v379, %v2440
      %v2446 = vmul.f32 %v380, %v2440
      %v2447 = vmul.f32 %v381, %v2440
      %v2448 = vmul.f32 %v382, %v2440
      %v2449 = vmul.f32 %v383, %v2440
      %v2450 = vmul.f32 %v384, %v2440
      %v2451 = vmul.f32 %v385, %v2440
      %v2452 = vmul.f32 %v386, %v2440
      %v2453 = vmul.f32 %v387, %v2440
      %v2454 = vmul.f32 %v388, %v2440
      %v2455 = vmul.f32 %v389, %v2440
      %v2456 = vmul.f32 %v390, %v2440
      %v2457 = vmul.f32 %v391, %v2440
      %v2458 = vmul.f32 %v392, %v2440
      %v2459 = vmul.f32 %v393, %v2440
      %v2460 = vmul.f32 %v394, %v2440
      %v2461 = vmul.f32 %v395, %v2440
      %v2462 = vmul.f32 %v396, %v2440
      %v2463 = vmul.f32 %v397, %v2440
      %v2464 = vmul.f32 %v398, %v2440
      %v2465 = vmul.f32 %v399, %v2440
      %v2466 = vmul.f32 %v400, %v2440
      %v2467 = vmul.f32 %v401, %v2440
      %v2468 = vmul.f32 %v402, %v2440
      %v2469 = vmul.f32 %v403, %v2440
      %v2470 = vmul.f32 %v404, %v2440
      %v2471 = vmul.f32 %v405, %v2440
      %v2472 = vmul.f32 %v406, %v2440
      %v2473 = vmul.f32 %v407, %v2440
      %v2474 = vmul.f32 %v408, %v2440
      %v2475 = vmul.f32 %v409, %v2440
      %v2476 = vmul.f32 %v410, %v2440
      %v2477 = vmul.f32 %v411, %v2440
      %v2478 = vmul.f32 %v412, %v2440
      %v2479 = vmul.f32 %v413, %v2440
      %v2480 = vmul.f32 %v414, %v2440
      %v2521 = vrot.slane %v2441, 3
      %v2522 = vrot.slane %v2442, 3
      %v2523 = vsel %vm1056, %v2521, %v2522
      %v2524 = vrot.slane %v2443, 3
      %v2525 = vsel %vm1056, %v2522, %v2524
      %v2526 = vrot.slane %v2444, 3
      %v2527 = vsel %vm1056, %v2524, %v2526
      %v2528 = vrot.slane %v2445, 3
      %v2529 = vsel %vm1056, %v2526, %v2528
      %v2530 = vrot.slane %v2446, 3
      %v2531 = vrot.slane %v2447, 3
      %v2532 = vsel %vm1056, %v2530, %v2531
      %v2533 = vrot.slane %v2448, 3
      %v2534 = vsel %vm1056, %v2531, %v2533
      %v2535 = vrot.slane %v2449, 3
      %v2536 = vsel %vm1056, %v2533, %v2535
      %v2537 = vrot.slane %v2450, 3
      %v2538 = vsel %vm1056, %v2535, %v2537
      %v2539 = vrot.slane %v2451, 3
      %v2540 = vrot.slane %v2452, 3
      %v2541 = vsel %vm1056, %v2539, %v2540
      %v2542 = vrot.slane %v2453, 3
      %v2543 = vsel %vm1056, %v2540, %v2542
      %v2544 = vrot.slane %v2454, 3
      %v2545 = vsel %vm1056, %v2542, %v2544
      %v2546 = vrot.slane %v2455, 3
      %v2547 = vsel %vm1056, %v2544, %v2546
      %v2548 = vrot.slane %v2456, 3
      %v2549 = vrot.slane %v2457, 3
      %v2550 = vsel %vm1056, %v2548, %v2549
      %v2551 = vrot.slane %v2458, 3
      %v2552 = vsel %vm1056, %v2549, %v2551
      %v2553 = vrot.slane %v2459, 3
      %v2554 = vsel %vm1056, %v2551, %v2553
      %v2555 = vrot.slane %v2460, 3
      %v2556 = vsel %vm1056, %v2553, %v2555
      %v2557 = vrot.slane %v2461, 3
      %v2558 = vrot.slane %v2462, 3
      %v2559 = vsel %vm1056, %v2557, %v2558
      %v2560 = vrot.slane %v2463, 3
      %v2561 = vsel %vm1056, %v2558, %v2560
      %v2562 = vrot.slane %v2464, 3
      %v2563 = vsel %vm1056, %v2560, %v2562
      %v2564 = vrot.slane %v2465, 3
      %v2565 = vsel %vm1056, %v2562, %v2564
      %v2566 = vrot.slane %v2466, 3
      %v2567 = vrot.slane %v2467, 3
      %v2568 = vsel %vm1056, %v2566, %v2567
      %v2569 = vrot.slane %v2468, 3
      %v2570 = vsel %vm1056, %v2567, %v2569
      %v2571 = vrot.slane %v2469, 3
      %v2572 = vsel %vm1056, %v2569, %v2571
      %v2573 = vrot.slane %v2470, 3
      %v2574 = vsel %vm1056, %v2571, %v2573
      %v2575 = vrot.slane %v2471, 3
      %v2576 = vrot.slane %v2472, 3
      %v2577 = vsel %vm1056, %v2575, %v2576
      %v2578 = vrot.slane %v2473, 3
      %v2579 = vsel %vm1056, %v2576, %v2578
      %v2580 = vrot.slane %v2474, 3
      %v2581 = vsel %vm1056, %v2578, %v2580
      %v2582 = vrot.slane %v2475, 3
      %v2583 = vsel %vm1056, %v2580, %v2582
      %v2584 = vrot.slane %v2476, 3
      %v2585 = vrot.slane %v2477, 3
      %v2586 = vsel %vm1056, %v2584, %v2585
      %v2587 = vrot.slane %v2478, 3
      %v2588 = vsel %vm1056, %v2585, %v2587
      %v2589 = vrot.slane %v2479, 3
      %v2590 = vsel %vm1056, %v2587, %v2589
      %v2591 = vrot.slane %v2480, 3
      %v2592 = vsel %vm1056, %v2589, %v2591
      %v2625 = vadd.f32 %v2404, %v2523
      %v2626 = vadd.f32 %v2405, %v2525
      %v2627 = vadd.f32 %v2406, %v2527
      %v2628 = vadd.f32 %v2407, %v2529
      %v2629 = vadd.f32 %v2408, %v2532
      %v2630 = vadd.f32 %v2409, %v2534
      %v2631 = vadd.f32 %v2410, %v2536
      %v2632 = vadd.f32 %v2411, %v2538
      %v2633 = vadd.f32 %v2412, %v2541
      %v2634 = vadd.f32 %v2413, %v2543
      %v2635 = vadd.f32 %v2414, %v2545
      %v2636 = vadd.f32 %v2415, %v2547
      %v2637 = vadd.f32 %v2416, %v2550
      %v2638 = vadd.f32 %v2417, %v2552
      %v2639 = vadd.f32 %v2418, %v2554
      %v2640 = vadd.f32 %v2419, %v2556
      %v2641 = vadd.f32 %v2420, %v2559
      %v2642 = vadd.f32 %v2421, %v2561
      %v2643 = vadd.f32 %v2422, %v2563
      %v2644 = vadd.f32 %v2423, %v2565
      %v2645 = vadd.f32 %v2424, %v2568
      %v2646 = vadd.f32 %v2425, %v2570
      %v2647 = vadd.f32 %v2426, %v2572
      %v2648 = vadd.f32 %v2427, %v2574
      %v2649 = vadd.f32 %v2428, %v2577
      %v2650 = vadd.f32 %v2429, %v2579
      %v2651 = vadd.f32 %v2430, %v2581
      %v2652 = vadd.f32 %v2431, %v2583
      %v2653 = vadd.f32 %v2432, %v2586
      %v2654 = vadd.f32 %v2433, %v2588
      %v2655 = vadd.f32 %v2434, %v2590
      %v2656 = vadd.f32 %v2435, %v2592
      %v2657 = vld [vmem:[%s1 + $0xc] sm:$0x1]
      %v2658 = vlaneseq
      %v2659 = vshrl.u32 %v2658, 7
      %v2660 = vsub.s32 0, %v2659
      %v2661 = vrot.slane %v2657, %v2660
      %v2662 = vmul.f32 %v418, %v2661
      %v2663 = vmul.f32 %v419, %v2661
      %v2664 = vmul.f32 %v420, %v2661
      %v2665 = vmul.f32 %v421, %v2661
      %v2666 = vmul.f32 %v423, %v2661
      %v2667 = vmul.f32 %v424, %v2661
      %v2668 = vmul.f32 %v425, %v2661
      %v2669 = vmul.f32 %v426, %v2661
      %v2670 = vmul.f32 %v428, %v2661
      %v2671 = vmul.f32 %v429, %v2661
      %v2672 = vmul.f32 %v430, %v2661
      %v2673 = vmul.f32 %v431, %v2661
      %v2674 = vmul.f32 %v433, %v2661
      %v2675 = vmul.f32 %v434, %v2661
      %v2676 = vmul.f32 %v435, %v2661
      %v2677 = vmul.f32 %v436, %v2661
      %v2678 = vmul.f32 %v438, %v2661
      %v2679 = vmul.f32 %v439, %v2661
      %v2680 = vmul.f32 %v440, %v2661
      %v2681 = vmul.f32 %v441, %v2661
      %v2682 = vmul.f32 %v443, %v2661
      %v2683 = vmul.f32 %v444, %v2661
      %v2684 = vmul.f32 %v445, %v2661
      %v2685 = vmul.f32 %v446, %v2661
      %v2686 = vmul.f32 %v448, %v2661
      %v2687 = vmul.f32 %v449, %v2661
      %v2688 = vmul.f32 %v450, %v2661
      %v2689 = vmul.f32 %v451, %v2661
      %v2690 = vmul.f32 %v453, %v2661
      %v2691 = vmul.f32 %v454, %v2661
      %v2692 = vmul.f32 %v455, %v2661
      %v2693 = vmul.f32 %v456, %v2661
      %v2694 = vadd.f32 %v2625, %v2662
      %v2695 = vadd.f32 %v2626, %v2663
      %v2696 = vadd.f32 %v2627, %v2664
      %v2697 = vadd.f32 %v2628, %v2665
      %v2698 = vadd.f32 %v2629, %v2666
      %v2699 = vadd.f32 %v2630, %v2667
      %v2700 = vadd.f32 %v2631, %v2668
      %v2701 = vadd.f32 %v2632, %v2669
      %v2702 = vadd.f32 %v2633, %v2670
      %v2703 = vadd.f32 %v2634, %v2671
      %v2704 = vadd.f32 %v2635, %v2672
      %v2705 = vadd.f32 %v2636, %v2673
      %v2706 = vadd.f32 %v2637, %v2674
      %v2707 = vadd.f32 %v2638, %v2675
      %v2708 = vadd.f32 %v2639, %v2676
      %v2709 = vadd.f32 %v2640, %v2677
      %v2710 = vadd.f32 %v2641, %v2678
      %v2711 = vadd.f32 %v2642, %v2679
      %v2712 = vadd.f32 %v2643, %v2680
      %v2713 = vadd.f32 %v2644, %v2681
      %v2714 = vadd.f32 %v2645, %v2682
      %v2715 = vadd.f32 %v2646, %v2683
      %v2716 = vadd.f32 %v2647, %v2684
      %v2717 = vadd.f32 %v2648, %v2685
      %v2718 = vadd.f32 %v2649, %v2686
      %v2719 = vadd.f32 %v2650, %v2687
      %v2720 = vadd.f32 %v2651, %v2688
      %v2721 = vadd.f32 %v2652, %v2689
      %v2722 = vadd.f32 %v2653, %v2690
      %v2723 = vadd.f32 %v2654, %v2691
      %v2724 = vadd.f32 %v2655, %v2692
      %v2725 = vadd.f32 %v2656, %v2693
      %v2726 = vld [vmem:[%s1 + $0xd] sm:$0x1]
      %v2727 = vlaneseq
      %v2728 = vshrl.u32 %v2727, 7
      %v2729 = vsub.s32 0, %v2728
      %v2730 = vrot.slane %v2726, %v2729
      %v2731 = vmul.f32 %v418, %v2730
      %v2732 = vmul.f32 %v419, %v2730
      %v2733 = vmul.f32 %v420, %v2730
      %v2734 = vmul.f32 %v421, %v2730
      %v2735 = vmul.f32 %v422, %v2730
      %v2736 = vmul.f32 %v423, %v2730
      %v2737 = vmul.f32 %v424, %v2730
      %v2738 = vmul.f32 %v425, %v2730
      %v2739 = vmul.f32 %v426, %v2730
      %v2740 = vmul.f32 %v427, %v2730
      %v2741 = vmul.f32 %v428, %v2730
      %v2742 = vmul.f32 %v429, %v2730
      %v2743 = vmul.f32 %v430, %v2730
      %v2744 = vmul.f32 %v431, %v2730
      %v2745 = vmul.f32 %v432, %v2730
      %v2746 = vmul.f32 %v433, %v2730
      %v2747 = vmul.f32 %v434, %v2730
      %v2748 = vmul.f32 %v435, %v2730
      %v2749 = vmul.f32 %v436, %v2730
      %v2750 = vmul.f32 %v437, %v2730
      %v2751 = vmul.f32 %v438, %v2730
      %v2752 = vmul.f32 %v439, %v2730
      %v2753 = vmul.f32 %v440, %v2730
      %v2754 = vmul.f32 %v441, %v2730
      %v2755 = vmul.f32 %v442, %v2730
      %v2756 = vmul.f32 %v443, %v2730
      %v2757 = vmul.f32 %v444, %v2730
      %v2758 = vmul.f32 %v445, %v2730
      %v2759 = vmul.f32 %v446, %v2730
      %v2760 = vmul.f32 %v447, %v2730
      %v2761 = vmul.f32 %v448, %v2730
      %v2762 = vmul.f32 %v449, %v2730
      %v2763 = vmul.f32 %v450, %v2730
      %v2764 = vmul.f32 %v451, %v2730
      %v2765 = vmul.f32 %v452, %v2730
      %v2766 = vmul.f32 %v453, %v2730
      %v2767 = vmul.f32 %v454, %v2730
      %v2768 = vmul.f32 %v455, %v2730
      %v2769 = vmul.f32 %v456, %v2730
      %v2770 = vmul.f32 %v457, %v2730
      %v2811 = vrot.slane %v2731, 1
      %v2812 = vrot.slane %v2732, 1
      %v2813 = vsel %vm612, %v2811, %v2812
      %v2814 = vrot.slane %v2733, 1
      %v2815 = vsel %vm612, %v2812, %v2814
      %v2816 = vrot.slane %v2734, 1
      %v2817 = vsel %vm612, %v2814, %v2816
      %v2818 = vrot.slane %v2735, 1
      %v2819 = vsel %vm612, %v2816, %v2818
      %v2820 = vrot.slane %v2736, 1
      %v2821 = vrot.slane %v2737, 1
      %v2822 = vsel %vm612, %v2820, %v2821
      %v2823 = vrot.slane %v2738, 1
      %v2824 = vsel %vm612, %v2821, %v2823
      %v2825 = vrot.slane %v2739, 1
      %v2826 = vsel %vm612, %v2823, %v2825
      %v2827 = vrot.slane %v2740, 1
      %v2828 = vsel %vm612, %v2825, %v2827
      %v2829 = vrot.slane %v2741, 1
      %v2830 = vrot.slane %v2742, 1
      %v2831 = vsel %vm612, %v2829, %v2830
      %v2832 = vrot.slane %v2743, 1
      %v2833 = vsel %vm612, %v2830, %v2832
      %v2834 = vrot.slane %v2744, 1
      %v2835 = vsel %vm612, %v2832, %v2834
      %v2836 = vrot.slane %v2745, 1
      %v2837 = vsel %vm612, %v2834, %v2836
      %v2838 = vrot.slane %v2746, 1
      %v2839 = vrot.slane %v2747, 1
      %v2840 = vsel %vm612, %v2838, %v2839
      %v2841 = vrot.slane %v2748, 1
      %v2842 = vsel %vm612, %v2839, %v2841
      %v2843 = vrot.slane %v2749, 1
      %v2844 = vsel %vm612, %v2841, %v2843
      %v2845 = vrot.slane %v2750, 1
      %v2846 = vsel %vm612, %v2843, %v2845
      %v2847 = vrot.slane %v2751, 1
      %v2848 = vrot.slane %v2752, 1
      %v2849 = vsel %vm612, %v2847, %v2848
      %v2850 = vrot.slane %v2753, 1
      %v2851 = vsel %vm612, %v2848, %v2850
      %v2852 = vrot.slane %v2754, 1
      %v2853 = vsel %vm612, %v2850, %v2852
      %v2854 = vrot.slane %v2755, 1
      %v2855 = vsel %vm612, %v2852, %v2854
      %v2856 = vrot.slane %v2756, 1
      %v2857 = vrot.slane %v2757, 1
      %v2858 = vsel %vm612, %v2856, %v2857
      %v2859 = vrot.slane %v2758, 1
      %v2860 = vsel %vm612, %v2857, %v2859
      %v2861 = vrot.slane %v2759, 1
      %v2862 = vsel %vm612, %v2859, %v2861
      %v2863 = vrot.slane %v2760, 1
      %v2864 = vsel %vm612, %v2861, %v2863
      %v2865 = vrot.slane %v2761, 1
      %v2866 = vrot.slane %v2762, 1
      %v2867 = vsel %vm612, %v2865, %v2866
      %v2868 = vrot.slane %v2763, 1
      %v2869 = vsel %vm612, %v2866, %v2868
      %v2870 = vrot.slane %v2764, 1
      %v2871 = vsel %vm612, %v2868, %v2870
      %v2872 = vrot.slane %v2765, 1
      %v2873 = vsel %vm612, %v2870, %v2872
      %v2874 = vrot.slane %v2766, 1
      %v2875 = vrot.slane %v2767, 1
      %v2876 = vsel %vm612, %v2874, %v2875
      %v2877 = vrot.slane %v2768, 1
      %v2878 = vsel %vm612, %v2875, %v2877
      %v2879 = vrot.slane %v2769, 1
      %v2880 = vsel %vm612, %v2877, %v2879
      %v2881 = vrot.slane %v2770, 1
      %v2882 = vsel %vm612, %v2879, %v2881
      %v2915 = vadd.f32 %v2694, %v2813
      %v2916 = vadd.f32 %v2695, %v2815
      %v2917 = vadd.f32 %v2696, %v2817
      %v2918 = vadd.f32 %v2697, %v2819
      %v2919 = vadd.f32 %v2698, %v2822
      %v2920 = vadd.f32 %v2699, %v2824
      %v2921 = vadd.f32 %v2700, %v2826
      %v2922 = vadd.f32 %v2701, %v2828
      %v2923 = vadd.f32 %v2702, %v2831
      %v2924 = vadd.f32 %v2703, %v2833
      %v2925 = vadd.f32 %v2704, %v2835
      %v2926 = vadd.f32 %v2705, %v2837
      %v2927 = vadd.f32 %v2706, %v2840
      %v2928 = vadd.f32 %v2707, %v2842
      %v2929 = vadd.f32 %v2708, %v2844
      %v2930 = vadd.f32 %v2709, %v2846
      %v2931 = vadd.f32 %v2710, %v2849
      %v2932 = vadd.f32 %v2711, %v2851
      %v2933 = vadd.f32 %v2712, %v2853
      %v2934 = vadd.f32 %v2713, %v2855
      %v2935 = vadd.f32 %v2714, %v2858
      %v2936 = vadd.f32 %v2715, %v2860
      %v2937 = vadd.f32 %v2716, %v2862
      %v2938 = vadd.f32 %v2717, %v2864
      %v2939 = vadd.f32 %v2718, %v2867
      %v2940 = vadd.f32 %v2719, %v2869
      %v2941 = vadd.f32 %v2720, %v2871
      %v2942 = vadd.f32 %v2721, %v2873
      %v2943 = vadd.f32 %v2722, %v2876
      %v2944 = vadd.f32 %v2723, %v2878
      %v2945 = vadd.f32 %v2724, %v2880
      %v2946 = vadd.f32 %v2725, %v2882
      %v2947 = vld [vmem:[%s1 + $0xe] sm:$0x1]
      %v2948 = vlaneseq
      %v2949 = vshrl.u32 %v2948, 7
      %v2950 = vsub.s32 0, %v2949
      %v2951 = vrot.slane %v2947, %v2950
      %v2952 = vmul.f32 %v418, %v2951
      %v2953 = vmul.f32 %v419, %v2951
      %v2954 = vmul.f32 %v420, %v2951
      %v2955 = vmul.f32 %v421, %v2951
      %v2956 = vmul.f32 %v422, %v2951
      %v2957 = vmul.f32 %v423, %v2951
      %v2958 = vmul.f32 %v424, %v2951
      %v2959 = vmul.f32 %v425, %v2951
      %v2960 = vmul.f32 %v426, %v2951
      %v2961 = vmul.f32 %v427, %v2951
      %v2962 = vmul.f32 %v428, %v2951
      %v2963 = vmul.f32 %v429, %v2951
      %v2964 = vmul.f32 %v430, %v2951
      %v2965 = vmul.f32 %v431, %v2951
      %v2966 = vmul.f32 %v432, %v2951
      %v2967 = vmul.f32 %v433, %v2951
      %v2968 = vmul.f32 %v434, %v2951
      %v2969 = vmul.f32 %v435, %v2951
      %v2970 = vmul.f32 %v436, %v2951
      %v2971 = vmul.f32 %v437, %v2951
      %v2972 = vmul.f32 %v438, %v2951
      %v2973 = vmul.f32 %v439, %v2951
      %v2974 = vmul.f32 %v440, %v2951
      %v2975 = vmul.f32 %v441, %v2951
      %v2976 = vmul.f32 %v442, %v2951
      %v2977 = vmul.f32 %v443, %v2951
      %v2978 = vmul.f32 %v444, %v2951
      %v2979 = vmul.f32 %v445, %v2951
      %v2980 = vmul.f32 %v446, %v2951
      %v2981 = vmul.f32 %v447, %v2951
      %v2982 = vmul.f32 %v448, %v2951
      %v2983 = vmul.f32 %v449, %v2951
      %v2984 = vmul.f32 %v450, %v2951
      %v2985 = vmul.f32 %v451, %v2951
      %v2986 = vmul.f32 %v452, %v2951
      %v2987 = vmul.f32 %v453, %v2951
      %v2988 = vmul.f32 %v454, %v2951
      %v2989 = vmul.f32 %v455, %v2951
      %v2990 = vmul.f32 %v456, %v2951
      %v2991 = vmul.f32 %v457, %v2951
      %v3032 = vrot.slane %v2952, 2
      %v3033 = vrot.slane %v2953, 2
      %v3034 = vsel %vm834, %v3032, %v3033
      %v3035 = vrot.slane %v2954, 2
      %v3036 = vsel %vm834, %v3033, %v3035
      %v3037 = vrot.slane %v2955, 2
      %v3038 = vsel %vm834, %v3035, %v3037
      %v3039 = vrot.slane %v2956, 2
      %v3040 = vsel %vm834, %v3037, %v3039
      %v3041 = vrot.slane %v2957, 2
      %v3042 = vrot.slane %v2958, 2
      %v3043 = vsel %vm834, %v3041, %v3042
      %v3044 = vrot.slane %v2959, 2
      %v3045 = vsel %vm834, %v3042, %v3044
      %v3046 = vrot.slane %v2960, 2
      %v3047 = vsel %vm834, %v3044, %v3046
      %v3048 = vrot.slane %v2961, 2
      %v3049 = vsel %vm834, %v3046, %v3048
      %v3050 = vrot.slane %v2962, 2
      %v3051 = vrot.slane %v2963, 2
      %v3052 = vsel %vm834, %v3050, %v3051
      %v3053 = vrot.slane %v2964, 2
      %v3054 = vsel %vm834, %v3051, %v3053
      %v3055 = vrot.slane %v2965, 2
      %v3056 = vsel %vm834, %v3053, %v3055
      %v3057 = vrot.slane %v2966, 2
      %v3058 = vsel %vm834, %v3055, %v3057
      %v3059 = vrot.slane %v2967, 2
      %v3060 = vrot.slane %v2968, 2
      %v3061 = vsel %vm834, %v3059, %v3060
      %v3062 = vrot.slane %v2969, 2
      %v3063 = vsel %vm834, %v3060, %v3062
      %v3064 = vrot.slane %v2970, 2
      %v3065 = vsel %vm834, %v3062, %v3064
      %v3066 = vrot.slane %v2971, 2
      %v3067 = vsel %vm834, %v3064, %v3066
      %v3068 = vrot.slane %v2972, 2
      %v3069 = vrot.slane %v2973, 2
      %v3070 = vsel %vm834, %v3068, %v3069
      %v3071 = vrot.slane %v2974, 2
      %v3072 = vsel %vm834, %v3069, %v3071
      %v3073 = vrot.slane %v2975, 2
      %v3074 = vsel %vm834, %v3071, %v3073
      %v3075 = vrot.slane %v2976, 2
      %v3076 = vsel %vm834, %v3073, %v3075
      %v3077 = vrot.slane %v2977, 2
      %v3078 = vrot.slane %v2978, 2
      %v3079 = vsel %vm834, %v3077, %v3078
      %v3080 = vrot.slane %v2979, 2
      %v3081 = vsel %vm834, %v3078, %v3080
      %v3082 = vrot.slane %v2980, 2
      %v3083 = vsel %vm834, %v3080, %v3082
      %v3084 = vrot.slane %v2981, 2
      %v3085 = vsel %vm834, %v3082, %v3084
      %v3086 = vrot.slane %v2982, 2
      %v3087 = vrot.slane %v2983, 2
      %v3088 = vsel %vm834, %v3086, %v3087
      %v3089 = vrot.slane %v2984, 2
      %v3090 = vsel %vm834, %v3087, %v3089
      %v3091 = vrot.slane %v2985, 2
      %v3092 = vsel %vm834, %v3089, %v3091
      %v3093 = vrot.slane %v2986, 2
      %v3094 = vsel %vm834, %v3091, %v3093
      %v3095 = vrot.slane %v2987, 2
      %v3096 = vrot.slane %v2988, 2
      %v3097 = vsel %vm834, %v3095, %v3096
      %v3098 = vrot.slane %v2989, 2
      %v3099 = vsel %vm834, %v3096, %v3098
      %v3100 = vrot.slane %v2990, 2
      %v3101 = vsel %vm834, %v3098, %v3100
      %v3102 = vrot.slane %v2991, 2
      %v3103 = vsel %vm834, %v3100, %v3102
      %v3136 = vadd.f32 %v2915, %v3034
      %v3137 = vadd.f32 %v2916, %v3036
      %v3138 = vadd.f32 %v2917, %v3038
      %v3139 = vadd.f32 %v2918, %v3040
      %v3140 = vadd.f32 %v2919, %v3043
      %v3141 = vadd.f32 %v2920, %v3045
      %v3142 = vadd.f32 %v2921, %v3047
      %v3143 = vadd.f32 %v2922, %v3049
      %v3144 = vadd.f32 %v2923, %v3052
      %v3145 = vadd.f32 %v2924, %v3054
      %v3146 = vadd.f32 %v2925, %v3056
      %v3147 = vadd.f32 %v2926, %v3058
      %v3148 = vadd.f32 %v2927, %v3061
      %v3149 = vadd.f32 %v2928, %v3063
      %v3150 = vadd.f32 %v2929, %v3065
      %v3151 = vadd.f32 %v2930, %v3067
      %v3152 = vadd.f32 %v2931, %v3070
      %v3153 = vadd.f32 %v2932, %v3072
      %v3154 = vadd.f32 %v2933, %v3074
      %v3155 = vadd.f32 %v2934, %v3076
      %v3156 = vadd.f32 %v2935, %v3079
      %v3157 = vadd.f32 %v2936, %v3081
      %v3158 = vadd.f32 %v2937, %v3083
      %v3159 = vadd.f32 %v2938, %v3085
      %v3160 = vadd.f32 %v2939, %v3088
      %v3161 = vadd.f32 %v2940, %v3090
      %v3162 = vadd.f32 %v2941, %v3092
      %v3163 = vadd.f32 %v2942, %v3094
      %v3164 = vadd.f32 %v2943, %v3097
      %v3165 = vadd.f32 %v2944, %v3099
      %v3166 = vadd.f32 %v2945, %v3101
      %v3167 = vadd.f32 %v2946, %v3103
      %v3168 = vld [vmem:[%s1 + $0xf] sm:$0x1]
      %v3169 = vlaneseq
      %v3170 = vshrl.u32 %v3169, 7
      %v3171 = vsub.s32 0, %v3170
      %v3172 = vrot.slane %v3168, %v3171
      %v3173 = vmul.f32 %v418, %v3172
      %v3174 = vmul.f32 %v419, %v3172
      %v3175 = vmul.f32 %v420, %v3172
      %v3176 = vmul.f32 %v421, %v3172
      %v3177 = vmul.f32 %v422, %v3172
      %v3178 = vmul.f32 %v423, %v3172
      %v3179 = vmul.f32 %v424, %v3172
      %v3180 = vmul.f32 %v425, %v3172
      %v3181 = vmul.f32 %v426, %v3172
      %v3182 = vmul.f32 %v427, %v3172
      %v3183 = vmul.f32 %v428, %v3172
      %v3184 = vmul.f32 %v429, %v3172
      %v3185 = vmul.f32 %v430, %v3172
      %v3186 = vmul.f32 %v431, %v3172
      %v3187 = vmul.f32 %v432, %v3172
      %v3188 = vmul.f32 %v433, %v3172
      %v3189 = vmul.f32 %v434, %v3172
      %v3190 = vmul.f32 %v435, %v3172
      %v3191 = vmul.f32 %v436, %v3172
      %v3192 = vmul.f32 %v437, %v3172
      %v3193 = vmul.f32 %v438, %v3172
      %v3194 = vmul.f32 %v439, %v3172
      %v3195 = vmul.f32 %v440, %v3172
      %v3196 = vmul.f32 %v441, %v3172
      %v3197 = vmul.f32 %v442, %v3172
      %v3198 = vmul.f32 %v443, %v3172
      %v3199 = vmul.f32 %v444, %v3172
      %v3200 = vmul.f32 %v445, %v3172
      %v3201 = vmul.f32 %v446, %v3172
      %v3202 = vmul.f32 %v447, %v3172
      %v3203 = vmul.f32 %v448, %v3172
      %v3204 = vmul.f32 %v449, %v3172
      %v3205 = vmul.f32 %v450, %v3172
      %v3206 = vmul.f32 %v451, %v3172
      %v3207 = vmul.f32 %v452, %v3172
      %v3208 = vmul.f32 %v453, %v3172
      %v3209 = vmul.f32 %v454, %v3172
      %v3210 = vmul.f32 %v455, %v3172
      %v3211 = vmul.f32 %v456, %v3172
      %v3212 = vmul.f32 %v457, %v3172
      %v3253 = vrot.slane %v3173, 3
      %v3254 = vrot.slane %v3174, 3
      %v3255 = vsel %vm1056, %v3253, %v3254
      %v3256 = vrot.slane %v3175, 3
      %v3257 = vsel %vm1056, %v3254, %v3256
      %v3258 = vrot.slane %v3176, 3
      %v3259 = vsel %vm1056, %v3256, %v3258
      %v3260 = vrot.slane %v3177, 3
      %v3261 = vsel %vm1056, %v3258, %v3260
      %v3262 = vrot.slane %v3178, 3
      %v3263 = vrot.slane %v3179, 3
      %v3264 = vsel %vm1056, %v3262, %v3263
      %v3265 = vrot.slane %v3180, 3
      %v3266 = vsel %vm1056, %v3263, %v3265
      %v3267 = vrot.slane %v3181, 3
      %v3268 = vsel %vm1056, %v3265, %v3267
      %v3269 = vrot.slane %v3182, 3
      %v3270 = vsel %vm1056, %v3267, %v3269
      %v3271 = vrot.slane %v3183, 3
      %v3272 = vrot.slane %v3184, 3
      %v3273 = vsel %vm1056, %v3271, %v3272
      %v3274 = vrot.slane %v3185, 3
      %v3275 = vsel %vm1056, %v3272, %v3274
      %v3276 = vrot.slane %v3186, 3
      %v3277 = vsel %vm1056, %v3274, %v3276
      %v3278 = vrot.slane %v3187, 3
      %v3279 = vsel %vm1056, %v3276, %v3278
      %v3280 = vrot.slane %v3188, 3
      %v3281 = vrot.slane %v3189, 3
      %v3282 = vsel %vm1056, %v3280, %v3281
      %v3283 = vrot.slane %v3190, 3
      %v3284 = vsel %vm1056, %v3281, %v3283
      %v3285 = vrot.slane %v3191, 3
      %v3286 = vsel %vm1056, %v3283, %v3285
      %v3287 = vrot.slane %v3192, 3
      %v3288 = vsel %vm1056, %v3285, %v3287
      %v3289 = vrot.slane %v3193, 3
      %v3290 = vrot.slane %v3194, 3
      %v3291 = vsel %vm1056, %v3289, %v3290
      %v3292 = vrot.slane %v3195, 3
      %v3293 = vsel %vm1056, %v3290, %v3292
      %v3294 = vrot.slane %v3196, 3
      %v3295 = vsel %vm1056, %v3292, %v3294
      %v3296 = vrot.slane %v3197, 3
      %v3297 = vsel %vm1056, %v3294, %v3296
      %v3298 = vrot.slane %v3198, 3
      %v3299 = vrot.slane %v3199, 3
      %v3300 = vsel %vm1056, %v3298, %v3299
      %v3301 = vrot.slane %v3200, 3
      %v3302 = vsel %vm1056, %v3299, %v3301
      %v3303 = vrot.slane %v3201, 3
      %v3304 = vsel %vm1056, %v3301, %v3303
      %v3305 = vrot.slane %v3202, 3
      %v3306 = vsel %vm1056, %v3303, %v3305
      %v3307 = vrot.slane %v3203, 3
      %v3308 = vrot.slane %v3204, 3
      %v3309 = vsel %vm1056, %v3307, %v3308
      %v3310 = vrot.slane %v3205, 3
      %v3311 = vsel %vm1056, %v3308, %v3310
      %v3312 = vrot.slane %v3206, 3
      %v3313 = vsel %vm1056, %v3310, %v3312
      %v3314 = vrot.slane %v3207, 3
      %v3315 = vsel %vm1056, %v3312, %v3314
      %v3316 = vrot.slane %v3208, 3
      %v3317 = vrot.slane %v3209, 3
      %v3318 = vsel %vm1056, %v3316, %v3317
      %v3319 = vrot.slane %v3210, 3
      %v3320 = vsel %vm1056, %v3317, %v3319
      %v3321 = vrot.slane %v3211, 3
      %v3322 = vsel %vm1056, %v3319, %v3321
      %v3323 = vrot.slane %v3212, 3
      %v3324 = vsel %vm1056, %v3321, %v3323
      %v3357 = vadd.f32 %v3136, %v3255
      %v3358 = vadd.f32 %v3137, %v3257
      %v3359 = vadd.f32 %v3138, %v3259
      %v3360 = vadd.f32 %v3139, %v3261
      %v3361 = vadd.f32 %v3140, %v3264
      %v3362 = vadd.f32 %v3141, %v3266
      %v3363 = vadd.f32 %v3142, %v3268
      %v3364 = vadd.f32 %v3143, %v3270
      %v3365 = vadd.f32 %v3144, %v3273
      %v3366 = vadd.f32 %v3145, %v3275
      %v3367 = vadd.f32 %v3146, %v3277
      %v3368 = vadd.f32 %v3147, %v3279
      %v3369 = vadd.f32 %v3148, %v3282
      %v3370 = vadd.f32 %v3149, %v3284
      %v3371 = vadd.f32 %v3150, %v3286
      %v3372 = vadd.f32 %v3151, %v3288
      %v3373 = vadd.f32 %v3152, %v3291
      %v3374 = vadd.f32 %v3153, %v3293
      %v3375 = vadd.f32 %v3154, %v3295
      %v3376 = vadd.f32 %v3155, %v3297
      %v3377 = vadd.f32 %v3156, %v3300
      %v3378 = vadd.f32 %v3157, %v3302
      %v3379 = vadd.f32 %v3158, %v3304
      %v3380 = vadd.f32 %v3159, %v3306
      %v3381 = vadd.f32 %v3160, %v3309
      %v3382 = vadd.f32 %v3161, %v3311
      %v3383 = vadd.f32 %v3162, %v3313
      %v3384 = vadd.f32 %v3163, %v3315
      %v3385 = vadd.f32 %v3164, %v3318
      %v3386 = vadd.f32 %v3165, %v3320
      %v3387 = vadd.f32 %v3166, %v3322
      %v3388 = vadd.f32 %v3167, %v3324
      %v3389 = vld [vmem:[%s2] sm:$0x1]
      %v3391 = vlaneseq
      %v3392 = vshrl.u32 %v3391, 7
      %v3393 = vsub.s32 0, %v3392
      %v3394 = vrot.slane %v3389, %v3393
      %v3396 = vadd.f32 %v1893, %v3394
      %v3397 = vadd.f32 %v1894, %v3394
      %v3398 = vadd.f32 %v1895, %v3394
      %v3399 = vadd.f32 %v1896, %v3394
      %v3400 = vadd.f32 %v3357, %v3394
      %v3401 = vadd.f32 %v3358, %v3394
      %v3402 = vadd.f32 %v3359, %v3394
      %v3403 = vadd.f32 %v3360, %v3394
      %v3404 = vadd.f32 %v1897, %v3394
      %v3405 = vadd.f32 %v1898, %v3394
      %v3406 = vadd.f32 %v1899, %v3394
      %v3407 = vadd.f32 %v1900, %v3394
      %v3408 = vadd.f32 %v3361, %v3394
      %v3409 = vadd.f32 %v3362, %v3394
      %v3410 = vadd.f32 %v3363, %v3394
      %v3411 = vadd.f32 %v3364, %v3394
      %v3412 = vadd.f32 %v1901, %v3394
      %v3413 = vadd.f32 %v1902, %v3394
      %v3414 = vadd.f32 %v1903, %v3394
      %v3415 = vadd.f32 %v1904, %v3394
      %v3416 = vadd.f32 %v3365, %v3394
      %v3417 = vadd.f32 %v3366, %v3394
      %v3418 = vadd.f32 %v3367, %v3394
      %v3419 = vadd.f32 %v3368, %v3394
      %v3420 = vadd.f32 %v1905, %v3394
      %v3421 = vadd.f32 %v1906, %v3394
      %v3422 = vadd.f32 %v1907, %v3394
      %v3423 = vadd.f32 %v1908, %v3394
      %v3424 = vadd.f32 %v3369, %v3394
      %v3425 = vadd.f32 %v3370, %v3394
      %v3426 = vadd.f32 %v3371, %v3394
      %v3427 = vadd.f32 %v3372, %v3394
      %v3428 = vadd.f32 %v1909, %v3394
      %v3429 = vadd.f32 %v1910, %v3394
      %v3430 = vadd.f32 %v1911, %v3394
      %v3431 = vadd.f32 %v1912, %v3394
      %v3432 = vadd.f32 %v3373, %v3394
      %v3433 = vadd.f32 %v3374, %v3394
      %v3434 = vadd.f32 %v3375, %v3394
      %v3435 = vadd.f32 %v3376, %v3394
      %v3436 = vadd.f32 %v1913, %v3394
      %v3437 = vadd.f32 %v1914, %v3394
      %v3438 = vadd.f32 %v1915, %v3394
      %v3439 = vadd.f32 %v1916, %v3394
      %v3440 = vadd.f32 %v3377, %v3394
      %v3441 = vadd.f32 %v3378, %v3394
      %v3442 = vadd.f32 %v3379, %v3394
      %v3443 = vadd.f32 %v3380, %v3394
      %v3444 = vadd.f32 %v1917, %v3394
      %v3445 = vadd.f32 %v1918, %v3394
      %v3446 = vadd.f32 %v1919, %v3394
      %v3447 = vadd.f32 %v1920, %v3394
      %v3448 = vadd.f32 %v3381, %v3394
      %v3449 = vadd.f32 %v3382, %v3394
      %v3450 = vadd.f32 %v3383, %v3394
      %v3451 = vadd.f32 %v3384, %v3394
      %v3452 = vadd.f32 %v1921, %v3394
      %v3453 = vadd.f32 %v1922, %v3394
      %v3454 = vadd.f32 %v1923, %v3394
      %v3455 = vadd.f32 %v1924, %v3394
      %v3456 = vadd.f32 %v3385, %v3394
      %v3457 = vadd.f32 %v3386, %v3394
      %v3458 = vadd.f32 %v3387, %v3394
      %v3459 = vadd.f32 %v3388, %v3394
      %v3460 = vld [vmem:[%s4] sm:$0x1]
      %v3462 = vlaneseq
      %v3463 = vshrl.u32 %v3462, 7
      %v3464 = vsub.s32 0, %v3463
      %v3465 = vrot.slane %v3460, %v3464
      %v3467 = vmul.f32 %v3396, %v3465
      %v3468 = vmul.f32 %v3397, %v3465
      %v3469 = vmul.f32 %v3398, %v3465
      %v3470 = vmul.f32 %v3399, %v3465
      %v3471 = vmul.f32 %v3400, %v3465
      %v3472 = vmul.f32 %v3401, %v3465
      %v3473 = vmul.f32 %v3402, %v3465
      %v3474 = vmul.f32 %v3403, %v3465
      %v3475 = vmul.f32 %v3404, %v3465
      %v3476 = vmul.f32 %v3405, %v3465
      %v3477 = vmul.f32 %v3406, %v3465
      %v3478 = vmul.f32 %v3407, %v3465
      %v3479 = vmul.f32 %v3408, %v3465
      %v3480 = vmul.f32 %v3409, %v3465
      %v3481 = vmul.f32 %v3410, %v3465
      %v3482 = vmul.f32 %v3411, %v3465
      %v3483 = vmul.f32 %v3412, %v3465
      %v3484 = vmul.f32 %v3413, %v3465
      %v3485 = vmul.f32 %v3414, %v3465
      %v3486 = vmul.f32 %v3415, %v3465
      %v3487 = vmul.f32 %v3416, %v3465
      %v3488 = vmul.f32 %v3417, %v3465
      %v3489 = vmul.f32 %v3418, %v3465
      %v3490 = vmul.f32 %v3419, %v3465
      %v3491 = vmul.f32 %v3420, %v3465
      %v3492 = vmul.f32 %v3421, %v3465
      %v3493 = vmul.f32 %v3422, %v3465
      %v3494 = vmul.f32 %v3423, %v3465
      %v3495 = vmul.f32 %v3424, %v3465
      %v3496 = vmul.f32 %v3425, %v3465
      %v3497 = vmul.f32 %v3426, %v3465
      %v3498 = vmul.f32 %v3427, %v3465
      %v3499 = vmul.f32 %v3428, %v3465
      %v3500 = vmul.f32 %v3429, %v3465
      %v3501 = vmul.f32 %v3430, %v3465
      %v3502 = vmul.f32 %v3431, %v3465
      %v3503 = vmul.f32 %v3432, %v3465
      %v3504 = vmul.f32 %v3433, %v3465
      %v3505 = vmul.f32 %v3434, %v3465
      %v3506 = vmul.f32 %v3435, %v3465
      %v3507 = vmul.f32 %v3436, %v3465
      %v3508 = vmul.f32 %v3437, %v3465
      %v3509 = vmul.f32 %v3438, %v3465
      %v3510 = vmul.f32 %v3439, %v3465
      %v3511 = vmul.f32 %v3440, %v3465
      %v3512 = vmul.f32 %v3441, %v3465
      %v3513 = vmul.f32 %v3442, %v3465
      %v3514 = vmul.f32 %v3443, %v3465
      %v3515 = vmul.f32 %v3444, %v3465
      %v3516 = vmul.f32 %v3445, %v3465
      %v3517 = vmul.f32 %v3446, %v3465
      %v3518 = vmul.f32 %v3447, %v3465
      %v3519 = vmul.f32 %v3448, %v3465
      %v3520 = vmul.f32 %v3449, %v3465
      %v3521 = vmul.f32 %v3450, %v3465
      %v3522 = vmul.f32 %v3451, %v3465
      %v3523 = vmul.f32 %v3452, %v3465
      %v3524 = vmul.f32 %v3453, %v3465
      %v3525 = vmul.f32 %v3454, %v3465
      %v3526 = vmul.f32 %v3455, %v3465
      %v3527 = vmul.f32 %v3456, %v3465
      %v3528 = vmul.f32 %v3457, %v3465
      %v3529 = vmul.f32 %v3458, %v3465
      %v3530 = vmul.f32 %v3459, %v3465
      %v3531 = vld [vmem:[%s5] sm:$0x1]
      %v3533 = vlaneseq
      %v3534 = vshrl.u32 %v3533, 7
      %v3535 = vsub.s32 0, %v3534
      %v3536 = vrot.slane %v3531, %v3535
      %v3538 = vadd.f32 %v3467, %v3536
      %v3539 = vadd.f32 %v3468, %v3536
      %v3540 = vadd.f32 %v3469, %v3536
      %v3541 = vadd.f32 %v3470, %v3536
      %v3542 = vadd.f32 %v3471, %v3536
      %v3543 = vadd.f32 %v3472, %v3536
      %v3544 = vadd.f32 %v3473, %v3536
      %v3545 = vadd.f32 %v3474, %v3536
      %v3546 = vadd.f32 %v3475, %v3536
      %v3547 = vadd.f32 %v3476, %v3536
      %v3548 = vadd.f32 %v3477, %v3536
      %v3549 = vadd.f32 %v3478, %v3536
      %v3550 = vadd.f32 %v3479, %v3536
      %v3551 = vadd.f32 %v3480, %v3536
      %v3552 = vadd.f32 %v3481, %v3536
      %v3553 = vadd.f32 %v3482, %v3536
      %v3554 = vadd.f32 %v3483, %v3536
      %v3555 = vadd.f32 %v3484, %v3536
      %v3556 = vadd.f32 %v3485, %v3536
      %v3557 = vadd.f32 %v3486, %v3536
      %v3558 = vadd.f32 %v3487, %v3536
      %v3559 = vadd.f32 %v3488, %v3536
      %v3560 = vadd.f32 %v3489, %v3536
      %v3561 = vadd.f32 %v3490, %v3536
      %v3562 = vadd.f32 %v3491, %v3536
      %v3563 = vadd.f32 %v3492, %v3536
      %v3564 = vadd.f32 %v3493, %v3536
      %v3565 = vadd.f32 %v3494, %v3536
      %v3566 = vadd.f32 %v3495, %v3536
      %v3567 = vadd.f32 %v3496, %v3536
      %v3568 = vadd.f32 %v3497, %v3536
      %v3569 = vadd.f32 %v3498, %v3536
      %v3570 = vadd.f32 %v3499, %v3536
      %v3571 = vadd.f32 %v3500, %v3536
      %v3572 = vadd.f32 %v3501, %v3536
      %v3573 = vadd.f32 %v3502, %v3536
      %v3574 = vadd.f32 %v3503, %v3536
      %v3575 = vadd.f32 %v3504, %v3536
      %v3576 = vadd.f32 %v3505, %v3536
      %v3577 = vadd.f32 %v3506, %v3536
      %v3578 = vadd.f32 %v3507, %v3536
      %v3579 = vadd.f32 %v3508, %v3536
      %v3580 = vadd.f32 %v3509, %v3536
      %v3581 = vadd.f32 %v3510, %v3536
      %v3582 = vadd.f32 %v3511, %v3536
      %v3583 = vadd.f32 %v3512, %v3536
      %v3584 = vadd.f32 %v3513, %v3536
      %v3585 = vadd.f32 %v3514, %v3536
      %v3586 = vadd.f32 %v3515, %v3536
      %v3587 = vadd.f32 %v3516, %v3536
      %v3588 = vadd.f32 %v3517, %v3536
      %v3589 = vadd.f32 %v3518, %v3536
      %v3590 = vadd.f32 %v3519, %v3536
      %v3591 = vadd.f32 %v3520, %v3536
      %v3592 = vadd.f32 %v3521, %v3536
      %v3593 = vadd.f32 %v3522, %v3536
      %v3594 = vadd.f32 %v3523, %v3536
      %v3595 = vadd.f32 %v3524, %v3536
      %v3596 = vadd.f32 %v3525, %v3536
      %v3597 = vadd.f32 %v3526, %v3536
      %v3598 = vadd.f32 %v3527, %v3536
      %v3599 = vadd.f32 %v3528, %v3536
      %v3600 = vadd.f32 %v3529, %v3536
      %v3601 = vadd.f32 %v3530, %v3536
      %v3602 = vmax.f32 %v3538, 0.0
      %v3603 = vmax.f32 %v3539, 0.0
      %v3604 = vmax.f32 %v3540, 0.0
      %v3605 = vmax.f32 %v3541, 0.0
      %v3606 = vmax.f32 %v3542, 0.0
      %v3607 = vmax.f32 %v3543, 0.0
      %v3608 = vmax.f32 %v3544, 0.0
      %v3609 = vmax.f32 %v3545, 0.0
      %v3610 = vmax.f32 %v3546, 0.0
      %v3611 = vmax.f32 %v3547, 0.0
      %v3612 = vmax.f32 %v3548, 0.0
      %v3613 = vmax.f32 %v3549, 0.0
      %v3614 = vmax.f32 %v3550, 0.0
      %v3615 = vmax.f32 %v3551, 0.0
      %v3616 = vmax.f32 %v3552, 0.0
      %v3617 = vmax.f32 %v3553, 0.0
      %v3618 = vmax.f32 %v3554, 0.0
      %v3619 = vmax.f32 %v3555, 0.0
      %v3620 = vmax.f32 %v3556, 0.0
      %v3621 = vmax.f32 %v3557, 0.0
      %v3622 = vmax.f32 %v3558, 0.0
      %v3623 = vmax.f32 %v3559, 0.0
      %v3624 = vmax.f32 %v3560, 0.0
      %v3625 = vmax.f32 %v3561, 0.0
      %v3626 = vmax.f32 %v3562, 0.0
      %v3627 = vmax.f32 %v3563, 0.0
      %v3628 = vmax.f32 %v3564, 0.0
      %v3629 = vmax.f32 %v3565, 0.0
      %v3630 = vmax.f32 %v3566, 0.0
      %v3631 = vmax.f32 %v3567, 0.0
      %v3632 = vmax.f32 %v3568, 0.0
      %v3633 = vmax.f32 %v3569, 0.0
      %v3634 = vmax.f32 %v3570, 0.0
      %v3635 = vmax.f32 %v3571, 0.0
      %v3636 = vmax.f32 %v3572, 0.0
      %v3637 = vmax.f32 %v3573, 0.0
      %v3638 = vmax.f32 %v3574, 0.0
      %v3639 = vmax.f32 %v3575, 0.0
      %v3640 = vmax.f32 %v3576, 0.0
      %v3641 = vmax.f32 %v3577, 0.0
      %v3642 = vmax.f32 %v3578, 0.0
      %v3643 = vmax.f32 %v3579, 0.0
      %v3644 = vmax.f32 %v3580, 0.0
      %v3645 = vmax.f32 %v3581, 0.0
      %v3646 = vmax.f32 %v3582, 0.0
      %v3647 = vmax.f32 %v3583, 0.0
      %v3648 = vmax.f32 %v3584, 0.0
      %v3649 = vmax.f32 %v3585, 0.0
      %v3650 = vmax.f32 %v3586, 0.0
      %v3651 = vmax.f32 %v3587, 0.0
      %v3652 = vmax.f32 %v3588, 0.0
      %v3653 = vmax.f32 %v3589, 0.0
      %v3654 = vmax.f32 %v3590, 0.0
      %v3655 = vmax.f32 %v3591, 0.0
      %v3656 = vmax.f32 %v3592, 0.0
      %v3657 = vmax.f32 %v3593, 0.0
      %v3658 = vmax.f32 %v3594, 0.0
      %v3659 = vmax.f32 %v3595, 0.0
      %v3660 = vmax.f32 %v3596, 0.0
      %v3661 = vmax.f32 %v3597, 0.0
      %v3662 = vmax.f32 %v3598, 0.0
      %v3663 = vmax.f32 %v3599, 0.0
      %v3664 = vmax.f32 %v3600, 0.0
      %v3665 = vmax.f32 %v3601, 0.0
      %v3666 = vld [vmem:[%s3] sm:$0xff]
      %vm3667 = vcmask 31744
      %v3669 = vsel %vm3667, %v3666, 0
      %v3672 = vsel %vm3667, %v3602, 0
      %v3675 = vsel %vm3667, %v3603, 0
      %v3678 = vsel %vm3667, %v3604, 0
      %v3681 = vsel %vm3667, %v3605, 0
      %v3684 = vsel %vm3667, %v3606, 0
      %v3687 = vsel %vm3667, %v3607, 0
      %v3690 = vsel %vm3667, %v3608, 0
      %v3693 = vsel %vm3667, %v3609, 0
      %v3696 = vsel %vm3667, %v3610, 0
      %v3699 = vsel %vm3667, %v3611, 0
      %v3702 = vsel %vm3667, %v3612, 0
      %v3705 = vsel %vm3667, %v3613, 0
      %v3708 = vsel %vm3667, %v3614, 0
      %v3711 = vsel %vm3667, %v3615, 0
      %v3714 = vsel %vm3667, %v3616, 0
      %v3717 = vsel %vm3667, %v3617, 0
      %v3720 = vsel %vm3667, %v3618, 0
      %v3723 = vsel %vm3667, %v3619, 0
      %v3726 = vsel %vm3667, %v3620, 0
      %v3729 = vsel %vm3667, %v3621, 0
      %v3732 = vsel %vm3667, %v3622, 0
      %v3735 = vsel %vm3667, %v3623, 0
      %v3738 = vsel %vm3667, %v3624, 0
      %v3741 = vsel %vm3667, %v3625, 0
      %v3744 = vsel %vm3667, %v3626, 0
      %v3747 = vsel %vm3667, %v3627, 0
      %v3750 = vsel %vm3667, %v3628, 0
      %v3753 = vsel %vm3667, %v3629, 0
      %v3756 = vsel %vm3667, %v3630, 0
      %v3759 = vsel %vm3667, %v3631, 0
      %v3762 = vsel %vm3667, %v3632, 0
      %v3765 = vsel %vm3667, %v3633, 0
      %v3768 = vsel %vm3667, %v3634, 0
      %v3771 = vsel %vm3667, %v3635, 0
      %v3774 = vsel %vm3667, %v3636, 0
      %v3777 = vsel %vm3667, %v3637, 0
      %v3780 = vsel %vm3667, %v3638, 0
      %v3783 = vsel %vm3667, %v3639, 0
      %v3786 = vsel %vm3667, %v3640, 0
      %v3789 = vsel %vm3667, %v3641, 0
      %v3792 = vsel %vm3667, %v3642, 0
      %v3795 = vsel %vm3667, %v3643, 0
      %v3798 = vsel %vm3667, %v3644, 0
      %v3801 = vsel %vm3667, %v3645, 0
      %v3804 = vsel %vm3667, %v3646, 0
      %v3807 = vsel %vm3667, %v3647, 0
      %v3810 = vsel %vm3667, %v3648, 0
      %v3813 = vsel %vm3667, %v3649, 0
      %v3816 = vsel %vm3667, %v3650, 0
      %v3819 = vsel %vm3667, %v3651, 0
      %v3822 = vsel %vm3667, %v3652, 0
      %v3825 = vsel %vm3667, %v3653, 0
      %v3828 = vsel %vm3667, %v3654, 0
      %v3831 = vsel %vm3667, %v3655, 0
      %v3834 = vsel %vm3667, %v3656, 0
      %v3837 = vsel %vm3667, %v3657, 0
      %v3840 = vsel %vm3667, %v3658, 0
      %v3843 = vsel %vm3667, %v3659, 0
      %v3846 = vsel %vm3667, %v3660, 0
      %v3849 = vsel %vm3667, %v3661, 0
      %v3852 = vsel %vm3667, %v3662, 0
      %v3855 = vsel %vm3667, %v3663, 0
      %v3858 = vsel %vm3667, %v3664, 0
      %v3861 = vsel %vm3667, %v3665, 0
      %3863 = vmatprep.subr.mxu0 0.0
      %3864 = vmatpush1.xpose.msra.mxu0 %v3672
      %3865 = vmatprep.subr.mxu0 0.0
      %3866 = vmatpush1.xpose.msra.mxu0 %v3675
      %3867 = vmatprep.subr.mxu0 0.0
      %3868 = vmatpush1.xpose.msra.mxu0 %v3678
      %3869 = vmatprep.subr.mxu0 0.0
      %3870 = vmatpush1.xpose.msra.mxu0 %v3681
      %3871 = vmatprep.subr.mxu0 0.0
      %3872 = vmatpush1.xpose.msra.mxu0 %v3684
      %3873 = vmatprep.subr.mxu0 0.0
      %3874 = vmatpush1.xpose.msra.mxu0 %v3687
      %3875 = vmatprep.subr.mxu0 0.0
      %3876 = vmatpush1.xpose.msra.mxu0 %v3690
      %3877 = vmatprep.subr.mxu0 0.0
      %3878 = vmatpush1.xpose.msra.mxu0 %v3693
      %3879 = vmatprep.subr.mxu0 0.0
      %3880 = vmatpush1.xpose.msra.mxu0 %v3696
      %3881 = vmatprep.subr.mxu0 0.0
      %3882 = vmatpush1.xpose.msra.mxu0 %v3699
      %3883 = vmatprep.subr.mxu0 0.0
      %3884 = vmatpush1.xpose.msra.mxu0 %v3702
      %3885 = vmatprep.subr.mxu0 0.0
      %3886 = vmatpush1.xpose.msra.mxu0 %v3705
      %3887 = vmatprep.subr.mxu0 0.0
      %3888 = vmatpush1.xpose.msra.mxu0 %v3708
      %3889 = vmatprep.subr.mxu0 0.0
      %3890 = vmatpush1.xpose.msra.mxu0 %v3711
      %3891 = vmatprep.subr.mxu0 0.0
      %3892 = vmatpush1.xpose.msra.mxu0 %v3714
      %3893 = vmatprep.subr.mxu0 0.0
      %3894 = vmatpush1.xpose.msra.mxu0 %v3717
      %3895 = vmatprep.subr.mxu0 0.0
      %3896 = vmatpush1.xpose.msra.mxu0 %v3720
      %3897 = vmatprep.subr.mxu0 0.0
      %3898 = vmatpush1.xpose.msra.mxu0 %v3723
      %3899 = vmatprep.subr.mxu0 0.0
      %3900 = vmatpush1.xpose.msra.mxu0 %v3726
      %3901 = vmatprep.subr.mxu0 0.0
      %3902 = vmatpush1.xpose.msra.mxu0 %v3729
      %3903 = vmatprep.subr.mxu0 0.0
      %3904 = vmatpush1.xpose.msra.mxu0 %v3732
      %3905 = vmatprep.subr.mxu0 0.0
      %3906 = vmatpush1.xpose.msra.mxu0 %v3735
      %3907 = vmatprep.subr.mxu0 0.0
      %3908 = vmatpush1.xpose.msra.mxu0 %v3738
      %3909 = vmatprep.subr.mxu0 0.0
      %3910 = vmatpush1.xpose.msra.mxu0 %v3741
      %3911 = vmatprep.subr.mxu0 0.0
      %3912 = vmatpush1.xpose.msra.mxu0 %v3744
      %3913 = vmatprep.subr.mxu0 0.0
      %3914 = vmatpush1.xpose.msra.mxu0 %v3747
      %3915 = vmatprep.subr.mxu0 0.0
      %3916 = vmatpush1.xpose.msra.mxu0 %v3750
      %3917 = vmatprep.subr.mxu0 0.0
      %3918 = vmatpush1.xpose.msra.mxu0 %v3753
      %3919 = vmatprep.subr.mxu0 0.0
      %3920 = vmatpush1.xpose.msra.mxu0 %v3756
      %3921 = vmatprep.subr.mxu0 0.0
      %3922 = vmatpush1.xpose.msra.mxu0 %v3759
      %3923 = vmatprep.subr.mxu0 0.0
      %3924 = vmatpush1.xpose.msra.mxu0 %v3762
      %3925 = vmatprep.subr.mxu0 0.0
      %3926 = vmatpush1.xpose.msra.mxu0 %v3765
      %3927 = vmatprep.mubr.f32.mxu0 0.0
      %3928 = vmatmul.mubr.f32.gmra.mrb[0].mxu0 %v3669
      %v3929 = vpop.f32.mrb[0].mxu0
      %v3930 = vadd.f32 0.0, %v3929
      %v3931 = vpop.f32.mrb[0].mxu0
      %v3932 = vadd.f32 0.0, %v3931
      %3933 = vdwg.mxu0
      %3934 = vmatprep.subr.mxu0 0.0
      %3935 = vmatpush1.xpose.msra.mxu0 %v3768
      %3936 = vmatprep.subr.mxu0 0.0
      %3937 = vmatpush1.xpose.msra.mxu0 %v3771
      %3938 = vmatprep.subr.mxu0 0.0
      %3939 = vmatpush1.xpose.msra.mxu0 %v3774
      %3940 = vmatprep.subr.mxu0 0.0
      %3941 = vmatpush1.xpose.msra.mxu0 %v3777
      %3942 = vmatprep.subr.mxu0 0.0
      %3943 = vmatpush1.xpose.msra.mxu0 %v3780
      %3944 = vmatprep.subr.mxu0 0.0
      %3945 = vmatpush1.xpose.msra.mxu0 %v3783
      %3946 = vmatprep.subr.mxu0 0.0
      %3947 = vmatpush1.xpose.msra.mxu0 %v3786
      %3948 = vmatprep.subr.mxu0 0.0
      %3949 = vmatpush1.xpose.msra.mxu0 %v3789
      %3950 = vmatprep.subr.mxu0 0.0
      %3951 = vmatpush1.xpose.msra.mxu0 %v3792
      %3952 = vmatprep.subr.mxu0 0.0
      %3953 = vmatpush1.xpose.msra.mxu0 %v3795
      %3954 = vmatprep.subr.mxu0 0.0
      %3955 = vmatpush1.xpose.msra.mxu0 %v3798
      %3956 = vmatprep.subr.mxu0 0.0
      %3957 = vmatpush1.xpose.msra.mxu0 %v3801
      %3958 = vmatprep.subr.mxu0 0.0
      %3959 = vmatpush1.xpose.msra.mxu0 %v3804
      %3960 = vmatprep.subr.mxu0 0.0
      %3961 = vmatpush1.xpose.msra.mxu0 %v3807
      %3962 = vmatprep.subr.mxu0 0.0
      %3963 = vmatpush1.xpose.msra.mxu0 %v3810
      %3964 = vmatprep.subr.mxu0 0.0
      %3965 = vmatpush1.xpose.msra.mxu0 %v3813
      %3966 = vmatprep.subr.mxu0 0.0
      %3967 = vmatpush1.xpose.msra.mxu0 %v3816
      %3968 = vmatprep.subr.mxu0 0.0
      %3969 = vmatpush1.xpose.msra.mxu0 %v3819
      %3970 = vmatprep.subr.mxu0 0.0
      %3971 = vmatpush1.xpose.msra.mxu0 %v3822
      %3972 = vmatprep.subr.mxu0 0.0
      %3973 = vmatpush1.xpose.msra.mxu0 %v3825
      %3974 = vmatprep.subr.mxu0 0.0
      %3975 = vmatpush1.xpose.msra.mxu0 %v3828
      %3976 = vmatprep.subr.mxu0 0.0
      %3977 = vmatpush1.xpose.msra.mxu0 %v3831
      %3978 = vmatprep.subr.mxu0 0.0
      %3979 = vmatpush1.xpose.msra.mxu0 %v3834
      %3980 = vmatprep.subr.mxu0 0.0
      %3981 = vmatpush1.xpose.msra.mxu0 %v3837
      %3982 = vmatprep.subr.mxu0 0.0
      %3983 = vmatpush1.xpose.msra.mxu0 %v3840
      %3984 = vmatprep.subr.mxu0 0.0
      %3985 = vmatpush1.xpose.msra.mxu0 %v3843
      %3986 = vmatprep.subr.mxu0 0.0
      %3987 = vmatpush1.xpose.msra.mxu0 %v3846
      %3988 = vmatprep.subr.mxu0 0.0
      %3989 = vmatpush1.xpose.msra.mxu0 %v3849
      %3990 = vmatprep.subr.mxu0 0.0
      %3991 = vmatpush1.xpose.msra.mxu0 %v3852
      %3992 = vmatprep.subr.mxu0 0.0
      %3993 = vmatpush1.xpose.msra.mxu0 %v3855
      %3994 = vmatprep.subr.mxu0 0.0
      %3995 = vmatpush1.xpose.msra.mxu0 %v3858
      %3996 = vmatprep.subr.mxu0 0.0
      %3997 = vmatpush1.xpose.msra.mxu0 %v3861
      %3998 = vmatprep.mubr.f32.mxu0 0.0
      %3999 = vmatmul.mubr.f32.gmra.mrb[0].mxu0 %v3669
      %v4000 = vpop.f32.mrb[0].mxu0
      %v4001 = vadd.f32 0.0, %v4000
      %v4002 = vpop.f32.mrb[0].mxu0
      %v4003 = vadd.f32 0.0, %v4002
      %4004 = vdwg.mxu0
      %v4005 = vld [vmem:[%s6] sm:$0xff]
      %4007 = vset.pattern.permute.xlu0 0
      %4008 = vperm.xlu0 %4007, %v4005
      %v4009 = vpop.permute.xlu0 %4008
      %v4011 = vmul.f32 %v3930, %v4009
      %v4012 = vmul.f32 %v3932, %v4009
      %v4013 = vmul.f32 %v4001, %v4009
      %v4014 = vmul.f32 %v4003, %v4009
      %v4015 = vld [vmem:[%s7] sm:$0xff]
      %4017 = vset.pattern.permute.xlu0 0
      %4018 = vperm.xlu0 %4017, %v4015
      %v4019 = vpop.permute.xlu0 %4018
      %v4021 = vadd.f32 %v4011, %v4019
      %v4022 = vadd.f32 %v4012, %v4019
      %v4023 = vadd.f32 %v4013, %v4019
      %v4024 = vadd.f32 %v4014, %v4019
      %v4025 = vmax.f32 %v4021, 0.0
      %v4026 = vmax.f32 %v4022, 0.0
      %v4027 = vmax.f32 %v4023, 0.0
      %v4028 = vmax.f32 %v4024, 0.0
      %4029 = vst [vmem:[%s327] sm:$0xff] %v4025
      %4030 = vst [vmem:[%s327 + $0x8] sm:$0xff] %v4026
      %4031 = vst [vmem:[%s327 + $0x10] sm:$0xff] %v4027
      %4032 = vst [vmem:[%s327 + $0x18] sm:$0xff] %v4028
      %s4033 = smul.u32 4, %s24
      %p4034 = scmp.lt.s32.totalorder %s23, 1
      %s4035 = scalar_select %p4034, %s23, 1
      %p4036 = scmp.lt.s32.totalorder %s4033, 7
      %s4037 = scalar_select %p4036, %s4033, 7
      %s4038 = smul.addr %s4035, 8
      %s4039 = sadd.s32 %s4037, %s4038
      %s4040 = smul.addr %s4039, 8
      %s4041 = scalar_lea.vmem %s8, %s4040
      // Predicated region
      $region53: #{depth_transpose_cnn_forward.5} parent=51 // pred_check
        %p4042 = pneg %p224
      $region54: #{depth_transpose_cnn_forward.5} parent=51 // pred_check_branch
        %4044 = sbr.rel (%p4042) target = $region56
      $region55: #{depth_transpose_cnn_forward.5} parent=51 // pred_region
        %s4045 = smul.u32 4, %s24
      $region56: #{depth_transpose_cnn_forward.5} parent=51 // pred_fallthru
        _
    $region52: #{depth_transpose_cnn_forward.5} parent=5 // pred_fallthru
      _
    %p4046 = scmp.le.s32.totalorder 2, %s14
    // Predicated region
    $region57: #{depth_transpose_cnn_forward.5} parent=5 // pred_check
      %p4047 = pneg %p4046
    $region58: #{depth_transpose_cnn_forward.5} parent=5 // pred_check_branch
      %4049 = sbr.rel (%p4047) target = $region60
    $region59: #{depth_transpose_cnn_forward.5} parent=5 // pred_region
      %s4050 = ssub.s32 %s14, 2
      // Predicated region
      $region61: #{depth_transpose_cnn_forward.5} parent=59 // pred_check
        %p4051 = pneg %p230
      $region62: #{depth_transpose_cnn_forward.5} parent=59 // pred_check_branch
        %4053 = sbr.rel (%p4051) target = $region64
      $region63: #{depth_transpose_cnn_forward.5} parent=59 // pred_region
        %s4054 = smul.u32 4, %s26
        %p4055 = scmp.lt.s32.totalorder %s25, 1
        %s4056 = scalar_select %p4055, %s25, 1
        %p4057 = scmp.lt.s32.totalorder %s4054, 7
        %s4058 = scalar_select %p4057, %s4054, 7
        %s4059 = smul.addr %s4056, 8
        %s4060 = sadd.s32 %s4058, %s4059
        %s4061 = smul.addr %s4060, 8
        %s4062 = scalar_lea.vmem %s8, %s4061
      $region64: #{depth_transpose_cnn_forward.5} parent=59 // pred_fallthru
        _
    $region60: #{depth_transpose_cnn_forward.5} parent=5 // pred_fallthru
      _
  $region6: #{depth_transpose_cnn_forward.5} parent=0 // loop_footer
    %s18 = sadd.s32 1, %s14
  $region7: #{depth_transpose_cnn_forward.5} parent=0 // loop_footer_branch
    %13 = sbr.rel target = $region3
  $region8: #{depth_transpose_cnn_forward.5} parent=0 // loop_exit
    _

</llo_original>
